<compile_context>
chip_gen: v5e
topology: v5e:2x2
jax: 0.10.0
libtpu: 0.0.40
codegen_flags: <defaults>
</compile_context>

<pallas_src>
import functools

import jax
import jax.numpy as jnp
import numpy as np
from jax.experimental import pallas as pl
from jax.experimental.pallas import tpu as pltpu

_VMEM_LIMIT = 48 * 1024 * 1024   # v7x has 64 MiB/TC; v5e/v6e could go higher

_K = 5          # conv kernel size
_STRIDE = 2
_PAD = 2


def _out_size(n):
    return (n + 2 * _PAD - _K) // _STRIDE + 1


def _pick_group(batch):
    """Return (padded_batch, samples_per_group).

    Group size is a multiple of 8 (sublane tiling), capped at 64 (VMEM / MXU
    M-dim), and chosen so there are >= 2 grid blocks whenever batch allows
    (v7x has 2 TensorCores; on v5e/v6e the extra block costs ~nothing)."""
    b8 = ((batch + 7) // 8) * 8
    if b8 <= 8:
        return b8, b8
    s = min(64, b8 // 2)
    s = max(8, (s // 8) * 8)
    while b8 % s:
        s -= 8
    return b8, s


def _expand_conv_weight(w, w_in, w_out):
    """PyTorch conv weight (Cout, Cin, 5, 5) -> BigW (5, w_in*Cin, w_out*Cout).

    BigW[di] maps one (col, chan)-flattened UNPADDED input row to the
    (col, chan)-flattened output row; the 5 column taps, the stride-2 column
    selection and the horizontal zero-padding are all baked into its sparsity,
    so the in-kernel conv needs only contiguous row loads + 2D matmuls."""
    cout, cin, k, _ = w.shape
    w = jnp.transpose(w, (2, 3, 1, 0))                    # (k, k, cin, cout)
    big = jnp.zeros((k, w_in, cin, w_out, cout), jnp.float32)
    for dj in range(k):
        for j in range(w_out):
            src = _STRIDE * j + dj - _PAD
            if 0 <= src < w_in:
                big = big.at[:, src, :, j, :].set(w[:, dj])
    return big.reshape(k, w_in * cin, w_out * cout).astype(jnp.bfloat16)


def _tile_bias(b, w_out):
    # (Cout,) -> (1, w_out*Cout) in the kernel's (col, chan) lane order.
    return jnp.tile(b.astype(jnp.float32), (w_out,)).reshape(1, -1)


# ------------------------------ fused kernel ------------------------------- #

def _fused_kernel(x_ref, w1_ref, b1_ref, w2_ref, b2_ref, w3_ref, b3_ref,
                  fcw_ref, fcb_ref, o_ref, a1_ref, a2_ref,
                  *, s, n1, c1, n2, c2, n3, c3):
    def conv_row(in_ref, w_ref, b_ref, i):
        # 5 contiguous row loads + 5 2D bf16 matmuls, f32 accumulation.
        acc = jnp.dot(in_ref[_STRIDE * i], w_ref[0],
                      preferred_element_type=jnp.float32)
        for di in range(1, _K):
            acc = acc + jnp.dot(in_ref[_STRIDE * i + di], w_ref[di],
                                preferred_element_type=jnp.float32)
        return jnp.maximum(acc + b_ref[...], 0.0)

    # Zero only the vertical-padding border rows of the VMEM activations
    # (interior rows are fully overwritten below before being read).
    for r in (0, 1, n1 + 2, n1 + 3):
        a1_ref[r] = jnp.zeros((s, n1 * c1), jnp.bfloat16)
    for r in (0, 1, n2 + 2, n2 + 3):
        a2_ref[r] = jnp.zeros((s, n2 * c2), jnp.bfloat16)

    # conv1 + ReLU: rows (S, 28) -> (S, 14*c1), kept in VMEM as bf16.
    for i in range(n1):
        a1_ref[i + 2] = conv_row(x_ref, w1_ref, b1_ref, i).astype(jnp.bfloat16)

    # conv2 + ReLU: rows (S, 14*c1) -> (S, 7*c2), kept in VMEM as bf16.
    for i in range(n2):
        a2_ref[i + 2] = conv_row(a1_ref, w2_ref, b2_ref, i).astype(jnp.bfloat16)

    # conv3 + ReLU + fused Linear(4*4*4h -> 1): per output row, multiply by the
    # FC weights (pre-permuted to this row's (col, chan) lane order) and
    # lane-reduce.  conv3 output never touches HBM; no 1-lane-wide matmul.
    y = jnp.zeros((s, 1), jnp.float32)
    for i in range(n3):
        row = conv_row(a2_ref, w3_ref, b3_ref, i)            # (S, n3*c3) f32
        y = y + jnp.sum(row * fcw_ref[i], axis=-1, keepdims=True)
    o_ref[...] = y + fcb_ref[0, 0]


# ------------------------------ forward wrapper ----------------------------- #

def mnist_discriminator_forward(params, x, *, input_dim=28, hidden_dim=64):
    assert _out_size(_out_size(_out_size(input_dim))) == 4, \
        "architecture requires input_dim -> 4 after three stride-2 convs"
    assert params["conv1_w"].shape[0] == hidden_dim

    imgs = x.reshape(-1, input_dim, input_dim).astype(jnp.float32)
    batch = imgs.shape[0]
    bpad, s = _pick_group(batch)

    n0 = input_dim
    n1, n2, n3 = _out_size(n0), _out_size(_out_size(n0)), 4
    c1 = params["conv1_w"].shape[0]
    c2 = params["conv2_w"].shape[0]
    c3 = params["conv3_w"].shape[0]

    # Input prepared once wrapper-side (tiny): pad batch to bpad, add the two
    # vertical zero-pad rows, lay out as (H+4, B, W) so the kernel only ever
    # indexes the leading (untiled) row axis.  Cast to bf16 (MXU operand).
    xp = jnp.pad(imgs, ((0, bpad - batch), (_PAD, _PAD), (0, 0)))
    xp = jnp.transpose(xp, (1, 0, 2)).astype(jnp.bfloat16)      # (n0+4, bpad, n0)

    # One-time weight expansion (column taps / stride / horizontal pad baked
    # into structural zeros) + bias tiling + FC-weight permutation (NCHW
    # flatten order (c, i, j) -> kernel row order (j, c)).
    w1 = _expand_conv_weight(params["conv1_w"], n0, n1)
    w2 = _expand_conv_weight(params["conv2_w"], n1, n2)
    w3 = _expand_conv_weight(params["conv3_w"], n2, n3)
    b1 = _tile_bias(params["conv1_b"], n1)
    b2 = _tile_bias(params["conv2_b"], n2)
    b3 = _tile_bias(params["conv3_b"], n3)
    fcw = (params["fc_w"].reshape(c3, n3, n3).transpose(1, 2, 0)
           .reshape(n3, 1, n3 * c3).astype(jnp.float32))
    fcb = params["fc_b"].reshape(1, 1).astype(jnp.float32)

    kernel = functools.partial(_fused_kernel, s=s, n1=n1, c1=c1,
                               n2=n2, c2=c2, n3=n3, c3=c3)

    flops = 2 * bpad * (n1 * _K * (n0 * 1) * (n1 * c1)
                        + n2 * _K * (n1 * c1) * (n2 * c2)
                        + n3 * _K * (n2 * c2) * (n3 * c3)
                        + n3 * n3 * c3)
    bytes_accessed = (xp.size * 2
                      + (w1.size + w2.size + w3.size) * 2
                      + (b1.size + b2.size + b3.size + fcw.size + 1) * 4
                      + bpad * 4)

    out = pl.pallas_call(
        kernel,
        out_shape=jax.ShapeDtypeStruct((bpad, 1), jnp.float32),
        grid=(bpad // s,),
        in_specs=[
            pl.BlockSpec((n0 + 4, s, n0), lambda g: (0, g, 0)),   # input rows
            pl.BlockSpec(w1.shape, lambda g: (0, 0, 0)),          # resident BigW1
            pl.BlockSpec(b1.shape, lambda g: (0, 0)),
            pl.BlockSpec(w2.shape, lambda g: (0, 0, 0)),          # resident BigW2
            pl.BlockSpec(b2.shape, lambda g: (0, 0)),
            pl.BlockSpec(w3.shape, lambda g: (0, 0, 0)),          # resident BigW3
            pl.BlockSpec(b3.shape, lambda g: (0, 0)),
            pl.BlockSpec(fcw.shape, lambda g: (0, 0, 0)),         # resident FC w
            pl.BlockSpec(memory_space=pltpu.MemorySpace.SMEM),    # FC bias scalar
        ],
        out_specs=pl.BlockSpec((s, 1), lambda g: (g, 0)),
        scratch_shapes=[
            pltpu.VMEM((n1 + 4, s, n1 * c1), jnp.bfloat16),  # conv1 out / conv2 in
            pltpu.VMEM((n2 + 4, s, n2 * c2), jnp.bfloat16),  # conv2 out / conv3 in
        ],
        compiler_params=pltpu.CompilerParams(
            dimension_semantics=("parallel",),
            vmem_limit_bytes=_VMEM_LIMIT),
        cost_estimate=pl.CostEstimate(flops=int(flops), transcendentals=0,
                                      bytes_accessed=int(bytes_accessed)),
    )(xp, w1, b1, w2, b2, w3, b3, fcw, fcb)
    return out[:batch, 0]


# ---------------------------------- params ---------------------------------- #

def init_params(key, hidden_dim=64, init_var=0.02):
    """Deterministic synthetic params mimicking weight_init('normal', 0.02)."""
    h = hidden_dim
    ks = jax.random.split(key, 4)
    return {
        "conv1_w": init_var * jax.random.normal(ks[0], (h, 1, 5, 5), jnp.float32),
        "conv1_b": jnp.zeros((h,), jnp.float32),
        "conv2_w": init_var * jax.random.normal(ks[1], (2 * h, h, 5, 5), jnp.float32),
        "conv2_b": jnp.zeros((2 * h,), jnp.float32),
        "conv3_w": init_var * jax.random.normal(ks[2], (4 * h, 2 * h, 5, 5), jnp.float32),
        "conv3_b": jnp.zeros((4 * h,), jnp.float32),
        "fc_w": init_var * jax.random.normal(ks[3], (1, 4 * 4 * 4 * h), jnp.float32),
        "fc_b": jnp.zeros((1,), jnp.float32),
    }


# ------------------------------ pure-JAX reference -------------------------- #

def _im2col_nhwc(x, k, stride, pad):
    B, H, W, C = x.shape
    xp = jnp.pad(x, ((0, 0), (pad, pad), (pad, pad), (0, 0)))
    Ho = (H + 2 * pad - k) // stride + 1
    Wo = (W + 2 * pad - k) // stride + 1
    cols = []
    for di in range(k):
        for dj in range(k):
            cols.append(xp[:, di:di + stride * Ho:stride,
                           dj:dj + stride * Wo:stride, :])
    patches = jnp.concatenate(cols, axis=-1)
    return patches.reshape(B * Ho * Wo, k * k * C), Ho, Wo


def _reference_forward(params, x, *, input_dim, hidden_dim):
    """Pure-JAX reference mirroring the kernel numerics (bf16 MXU operands,
    f32 accumulate, bf16 conv1/conv2 activations, f32 conv3 + FC)."""
    h = hidden_dim
    out = x.reshape(-1, input_dim, input_dim).astype(jnp.float32)[..., None]
    B = out.shape[0]

    def conv(a, w, b, cast_out):
        p, Ho, Wo = _im2col_nhwc(a, w.shape[2], 2, 2)
        w2d = jnp.transpose(w, (2, 3, 1, 0)).reshape(-1, w.shape[0])
        acc = jnp.dot(p.astype(jnp.bfloat16), w2d.astype(jnp.bfloat16),
                      preferred_element_type=jnp.float32)
        acc = jnp.maximum(acc + b.reshape(1, -1), 0.0)
        if cast_out:
            acc = acc.astype(jnp.bfloat16)
        return acc.reshape(B, Ho, Wo, -1)

    o1 = conv(out, params["conv1_w"], params["conv1_b"], True)
    o2 = conv(o1, params["conv2_w"], params["conv2_b"], True)
    o3 = conv(o2, params["conv3_w"], params["conv3_b"], False)    # (B,4,4,4h) f32
    fcw = params["fc_w"].reshape(4 * h, 4, 4).transpose(1, 2, 0)  # (i, j, c)
    return jnp.sum(o3 * fcw[None, ...], axis=(1, 2, 3)) + params["fc_b"][0]


# ---------------------------------- main ------------------------------------ #

if __name__ == "__main__":
    INPUT_DIM = 28      # architecture needs 28 -> 14 -> 7 -> 4 for the FC
    HIDDEN_DIM = 8      # small hidden_dim for the synthetic run
    key = jax.random.PRNGKey(0)
    pkey, xkey, xkey2 = jax.random.split(key, 3)
    params = init_params(pkey, hidden_dim=HIDDEN_DIM)

    fwd = jax.jit(functools.partial(
        mnist_discriminator_forward, input_dim=INPUT_DIM, hidden_dim=HIDDEN_DIM))

    # Batch 4: exercises batch padding (4 -> 8) and a single sample group.
    x = jax.random.normal(xkey, (4, 1, INPUT_DIM, INPUT_DIM), jnp.float32)
    y = fwd(params, x)
    jax.block_until_ready(y)
    assert y.shape == (4,) and y.dtype == jnp.float32, (y.shape, y.dtype)
    y_ref = _reference_forward(params, x, input_dim=INPUT_DIM, hidden_dim=HIDDEN_DIM)
    np.testing.assert_allclose(np.asarray(y), np.asarray(y_ref),
                               rtol=2e-2, atol=1e-4)

    # Batch 32: exercises the multi-block "parallel" grid (2 groups of 16).
    x2 = jax.random.normal(xkey2, (32, 1, INPUT_DIM, INPUT_DIM), jnp.float32)
    y2 = fwd(params, x2)
    jax.block_until_ready(y2)
    y2_ref = _reference_forward(params, x2, input_dim=INPUT_DIM,
                                hidden_dim=HIDDEN_DIM)
    np.testing.assert_allclose(np.asarray(y2), np.asarray(y2_ref),
                               rtol=2e-2, atol=1e-4)

    print("KERNEL_OK")
</pallas_src>

<mosaic_0001>
module attributes {stable_mosaic.version = 11 : i64} {
  func.func @_fused_kernel(%arg0: i32, %arg1: memref<32x8x28xbf16, #tpu.memory_space<vmem>>, %arg2: memref<5x28x112xbf16, #tpu.memory_space<vmem>>, %arg3: memref<1x112xf32, #tpu.memory_space<vmem>>, %arg4: memref<5x112x112xbf16, #tpu.memory_space<vmem>>, %arg5: memref<1x112xf32, #tpu.memory_space<vmem>>, %arg6: memref<5x112x128xbf16, #tpu.memory_space<vmem>>, %arg7: memref<1x128xf32, #tpu.memory_space<vmem>>, %arg8: memref<4x1x128xf32, #tpu.memory_space<vmem>>, %arg9: memref<1x1xf32, #tpu.memory_space<smem>>, %arg10: memref<8x1xf32, #tpu.memory_space<vmem>>, %arg11: memref<18x8x112xbf16, #tpu.memory_space<vmem>>, %arg12: memref<11x8x112xbf16, #tpu.memory_space<vmem>>) attributes {dimension_semantics = [#tpu.dimension_semantics<parallel>], iteration_bounds = array<i64: 1>, scalar_prefetch = 0 : i64, scratch_operands = 2 : i64, tpu.core_type = #tpu.core_type<tc>, window_params = [{transform_indices = @transform_0, window_bounds = array<i64: 32, 8, 28>}, {pipeline_mode = #tpu.pipeline_mode<synchronous>, transform_indices = @transform_1, window_bounds = array<i64: 5, 28, 112>}, {pipeline_mode = #tpu.pipeline_mode<synchronous>, transform_indices = @transform_2, window_bounds = array<i64: 1, 112>}, {pipeline_mode = #tpu.pipeline_mode<synchronous>, transform_indices = @transform_3, window_bounds = array<i64: 5, 112, 112>}, {pipeline_mode = #tpu.pipeline_mode<synchronous>, transform_indices = @transform_4, window_bounds = array<i64: 1, 112>}, {pipeline_mode = #tpu.pipeline_mode<synchronous>, transform_indices = @transform_5, window_bounds = array<i64: 5, 112, 128>}, {pipeline_mode = #tpu.pipeline_mode<synchronous>, transform_indices = @transform_6, window_bounds = array<i64: 1, 128>}, {pipeline_mode = #tpu.pipeline_mode<synchronous>, transform_indices = @transform_7, window_bounds = array<i64: 4, 1, 128>}, {transform_indices = @transform_8, window_bounds = array<i64: 1, 1>}, {transform_indices = @transform_9, window_bounds = array<i64: 8, 1>}]} {
    %cst = arith.constant 0.000000e+00 : bf16
    %0 = vector.broadcast %cst : bf16 to vector<8x112xbf16>
    %c0 = arith.constant 0 : index
    %c0_0 = arith.constant 0 : index
    %c0_1 = arith.constant 0 : index
    %1 = vector.load %arg11[%c0, %c0_0, %c0_1] : memref<18x8x112xbf16, #tpu.memory_space<vmem>>, vector<1x8x112xbf16>
    %2 = vector.shape_cast %1 : vector<1x8x112xbf16> to vector<8x112xbf16>
    %3 = vector.shape_cast %0 : vector<8x112xbf16> to vector<1x8x112xbf16>
    tpu.vector_store %arg11[%c0, %c0_0, %c0_1], %3 {strides = array<i32>} : memref<18x8x112xbf16, #tpu.memory_space<vmem>>, vector<1x8x112xbf16>,
    %cst_2 = arith.constant 0.000000e+00 : bf16
    %4 = vector.broadcast %cst_2 : bf16 to vector<8x112xbf16>
    %c1 = arith.constant 1 : index
    %c0_3 = arith.constant 0 : index
    %c0_4 = arith.constant 0 : index
    %5 = vector.load %arg11[%c1, %c0_3, %c0_4] : memref<18x8x112xbf16, #tpu.memory_space<vmem>>, vector<1x8x112xbf16>
    %6 = vector.shape_cast %5 : vector<1x8x112xbf16> to vector<8x112xbf16>
    %7 = vector.shape_cast %4 : vector<8x112xbf16> to vector<1x8x112xbf16>
    tpu.vector_store %arg11[%c1, %c0_3, %c0_4], %7 {strides = array<i32>} : memref<18x8x112xbf16, #tpu.memory_space<vmem>>, vector<1x8x112xbf16>,
    %cst_5 = arith.constant 0.000000e+00 : bf16
    %8 = vector.broadcast %cst_5 : bf16 to vector<8x112xbf16>
    %c16 = arith.constant 16 : index
    %c0_6 = arith.constant 0 : index
    %c0_7 = arith.constant 0 : index
    %9 = vector.load %arg11[%c16, %c0_6, %c0_7] : memref<18x8x112xbf16, #tpu.memory_space<vmem>>, vector<1x8x112xbf16>
    %10 = vector.shape_cast %9 : vector<1x8x112xbf16> to vector<8x112xbf16>
    %11 = vector.shape_cast %8 : vector<8x112xbf16> to vector<1x8x112xbf16>
    tpu.vector_store %arg11[%c16, %c0_6, %c0_7], %11 {strides = array<i32>} : memref<18x8x112xbf16, #tpu.memory_space<vmem>>, vector<1x8x112xbf16>,
    %cst_8 = arith.constant 0.000000e+00 : bf16
    %12 = vector.broadcast %cst_8 : bf16 to vector<8x112xbf16>
    %c17 = arith.constant 17 : index
    %c0_9 = arith.constant 0 : index
    %c0_10 = arith.constant 0 : index
    %13 = vector.load %arg11[%c17, %c0_9, %c0_10] : memref<18x8x112xbf16, #tpu.memory_space<vmem>>, vector<1x8x112xbf16>
    %14 = vector.shape_cast %13 : vector<1x8x112xbf16> to vector<8x112xbf16>
    %15 = vector.shape_cast %12 : vector<8x112xbf16> to vector<1x8x112xbf16>
    tpu.vector_store %arg11[%c17, %c0_9, %c0_10], %15 {strides = array<i32>} : memref<18x8x112xbf16, #tpu.memory_space<vmem>>, vector<1x8x112xbf16>,
    %cst_11 = arith.constant 0.000000e+00 : bf16
    %16 = vector.broadcast %cst_11 : bf16 to vector<8x112xbf16>
    %c0_12 = arith.constant 0 : index
    %c0_13 = arith.constant 0 : index
    %c0_14 = arith.constant 0 : index
    %17 = vector.load %arg12[%c0_12, %c0_13, %c0_14] : memref<11x8x112xbf16, #tpu.memory_space<vmem>>, vector<1x8x112xbf16>
    %18 = vector.shape_cast %17 : vector<1x8x112xbf16> to vector<8x112xbf16>
    %19 = vector.shape_cast %16 : vector<8x112xbf16> to vector<1x8x112xbf16>
    tpu.vector_store %arg12[%c0_12, %c0_13, %c0_14], %19 {strides = array<i32>} : memref<11x8x112xbf16, #tpu.memory_space<vmem>>, vector<1x8x112xbf16>,
    %cst_15 = arith.constant 0.000000e+00 : bf16
    %20 = vector.broadcast %cst_15 : bf16 to vector<8x112xbf16>
    %c1_16 = arith.constant 1 : index
    %c0_17 = arith.constant 0 : index
    %c0_18 = arith.constant 0 : index
    %21 = vector.load %arg12[%c1_16, %c0_17, %c0_18] : memref<11x8x112xbf16, #tpu.memory_space<vmem>>, vector<1x8x112xbf16>
    %22 = vector.shape_cast %21 : vector<1x8x112xbf16> to vector<8x112xbf16>
    %23 = vector.shape_cast %20 : vector<8x112xbf16> to vector<1x8x112xbf16>
    tpu.vector_store %arg12[%c1_16, %c0_17, %c0_18], %23 {strides = array<i32>} : memref<11x8x112xbf16, #tpu.memory_space<vmem>>, vector<1x8x112xbf16>,
    %cst_19 = arith.constant 0.000000e+00 : bf16
    %24 = vector.broadcast %cst_19 : bf16 to vector<8x112xbf16>
    %c9 = arith.constant 9 : index
    %c0_20 = arith.constant 0 : index
    %c0_21 = arith.constant 0 : index
    %25 = vector.load %arg12[%c9, %c0_20, %c0_21] : memref<11x8x112xbf16, #tpu.memory_space<vmem>>, vector<1x8x112xbf16>
    %26 = vector.shape_cast %25 : vector<1x8x112xbf16> to vector<8x112xbf16>
    %27 = vector.shape_cast %24 : vector<8x112xbf16> to vector<1x8x112xbf16>
    tpu.vector_store %arg12[%c9, %c0_20, %c0_21], %27 {strides = array<i32>} : memref<11x8x112xbf16, #tpu.memory_space<vmem>>, vector<1x8x112xbf16>,
    %cst_22 = arith.constant 0.000000e+00 : bf16
    %28 = vector.broadcast %cst_22 : bf16 to vector<8x112xbf16>
    %c10 = arith.constant 10 : index
    %c0_23 = arith.constant 0 : index
    %c0_24 = arith.constant 0 : index
    %29 = vector.load %arg12[%c10, %c0_23, %c0_24] : memref<11x8x112xbf16, #tpu.memory_space<vmem>>, vector<1x8x112xbf16>
    %30 = vector.shape_cast %29 : vector<1x8x112xbf16> to vector<8x112xbf16>
    %31 = vector.shape_cast %28 : vector<8x112xbf16> to vector<1x8x112xbf16>
    tpu.vector_store %arg12[%c10, %c0_23, %c0_24], %31 {strides = array<i32>} : memref<11x8x112xbf16, #tpu.memory_space<vmem>>, vector<1x8x112xbf16>,
    %c0_25 = arith.constant 0 : index
    %c0_26 = arith.constant 0 : index
    %c0_27 = arith.constant 0 : index
    %32 = vector.load %arg1[%c0_25, %c0_26, %c0_27] : memref<32x8x28xbf16, #tpu.memory_space<vmem>>, vector<1x8x28xbf16>
    %33 = vector.shape_cast %32 : vector<1x8x28xbf16> to vector<8x28xbf16>
    %c0_28 = arith.constant 0 : index
    %c0_29 = arith.constant 0 : index
    %c0_30 = arith.constant 0 : index
    %34 = vector.load %arg2[%c0_28, %c0_29, %c0_30] : memref<5x28x112xbf16, #tpu.memory_space<vmem>>, vector<1x28x112xbf16>
    %35 = vector.shape_cast %34 : vector<1x28x112xbf16> to vector<28x112xbf16>
    %cst_31 = arith.constant dense<0.000000e+00> : vector<8x112xf32>
    %36 = tpu.matmul %33, %35, %cst_31 {dimension_numbers = #tpu.dot_dimension_numbers<[1], [0], [0], [1], [0, 0, 1, 1], [], []>} : vector<8x28xbf16>, vector<28x112xbf16>, vector<8x112xf32> -> vector<8x112xf32>
    %c1_32 = arith.constant 1 : index
    %c0_33 = arith.constant 0 : index
    %c0_34 = arith.constant 0 : index
    %37 = vector.load %arg1[%c1_32, %c0_33, %c0_34] : memref<32x8x28xbf16, #tpu.memory_space<vmem>>, vector<1x8x28xbf16>
    %38 = vector.shape_cast %37 : vector<1x8x28xbf16> to vector<8x28xbf16>
    %c1_35 = arith.constant 1 : index
    %c0_36 = arith.constant 0 : index
    %c0_37 = arith.constant 0 : index
    %39 = vector.load %arg2[%c1_35, %c0_36, %c0_37] : memref<5x28x112xbf16, #tpu.memory_space<vmem>>, vector<1x28x112xbf16>
    %40 = vector.shape_cast %39 : vector<1x28x112xbf16> to vector<28x112xbf16>
    %cst_38 = arith.constant dense<0.000000e+00> : vector<8x112xf32>
    %41 = tpu.matmul %38, %40, %cst_38 {dimension_numbers = #tpu.dot_dimension_numbers<[1], [0], [0], [1], [0, 0, 1, 1], [], []>} : vector<8x28xbf16>, vector<28x112xbf16>, vector<8x112xf32> -> vector<8x112xf32>
    %42 = arith.addf %36, %41 : vector<8x112xf32>
    %c2 = arith.constant 2 : index
    %c0_39 = arith.constant 0 : index
    %c0_40 = arith.constant 0 : index
    %43 = vector.load %arg1[%c2, %c0_39, %c0_40] : memref<32x8x28xbf16, #tpu.memory_space<vmem>>, vector<1x8x28xbf16>
    %44 = vector.shape_cast %43 : vector<1x8x28xbf16> to vector<8x28xbf16>
    %c2_41 = arith.constant 2 : index
    %c0_42 = arith.constant 0 : index
    %c0_43 = arith.constant 0 : index
    %45 = vector.load %arg2[%c2_41, %c0_42, %c0_43] : memref<5x28x112xbf16, #tpu.memory_space<vmem>>, vector<1x28x112xbf16>
    %46 = vector.shape_cast %45 : vector<1x28x112xbf16> to vector<28x112xbf16>
    %cst_44 = arith.constant dense<0.000000e+00> : vector<8x112xf32>
    %47 = tpu.matmul %44, %46, %cst_44 {dimension_numbers = #tpu.dot_dimension_numbers<[1], [0], [0], [1], [0, 0, 1, 1], [], []>} : vector<8x28xbf16>, vector<28x112xbf16>, vector<8x112xf32> -> vector<8x112xf32>
    %48 = arith.addf %42, %47 : vector<8x112xf32>
    %c3 = arith.constant 3 : index
    %c0_45 = arith.constant 0 : index
    %c0_46 = arith.constant 0 : index
    %49 = vector.load %arg1[%c3, %c0_45, %c0_46] : memref<32x8x28xbf16, #tpu.memory_space<vmem>>, vector<1x8x28xbf16>
    %50 = vector.shape_cast %49 : vector<1x8x28xbf16> to vector<8x28xbf16>
    %c3_47 = arith.constant 3 : index
    %c0_48 = arith.constant 0 : index
    %c0_49 = arith.constant 0 : index
    %51 = vector.load %arg2[%c3_47, %c0_48, %c0_49] : memref<5x28x112xbf16, #tpu.memory_space<vmem>>, vector<1x28x112xbf16>
    %52 = vector.shape_cast %51 : vector<1x28x112xbf16> to vector<28x112xbf16>
    %cst_50 = arith.constant dense<0.000000e+00> : vector<8x112xf32>
    %53 = tpu.matmul %50, %52, %cst_50 {dimension_numbers = #tpu.dot_dimension_numbers<[1], [0], [0], [1], [0, 0, 1, 1], [], []>} : vector<8x28xbf16>, vector<28x112xbf16>, vector<8x112xf32> -> vector<8x112xf32>
    %54 = arith.addf %48, %53 : vector<8x112xf32>
    %c4 = arith.constant 4 : index
    %c0_51 = arith.constant 0 : index
    %c0_52 = arith.constant 0 : index
    %55 = vector.load %arg1[%c4, %c0_51, %c0_52] : memref<32x8x28xbf16, #tpu.memory_space<vmem>>, vector<1x8x28xbf16>
    %56 = vector.shape_cast %55 : vector<1x8x28xbf16> to vector<8x28xbf16>
    %c4_53 = arith.constant 4 : index
    %c0_54 = arith.constant 0 : index
    %c0_55 = arith.constant 0 : index
    %57 = vector.load %arg2[%c4_53, %c0_54, %c0_55] : memref<5x28x112xbf16, #tpu.memory_space<vmem>>, vector<1x28x112xbf16>
    %58 = vector.shape_cast %57 : vector<1x28x112xbf16> to vector<28x112xbf16>
    %cst_56 = arith.constant dense<0.000000e+00> : vector<8x112xf32>
    %59 = tpu.matmul %56, %58, %cst_56 {dimension_numbers = #tpu.dot_dimension_numbers<[1], [0], [0], [1], [0, 0, 1, 1], [], []>} : vector<8x28xbf16>, vector<28x112xbf16>, vector<8x112xf32> -> vector<8x112xf32>
    %60 = arith.addf %54, %59 : vector<8x112xf32>
    %c0_57 = arith.constant 0 : index
    %c0_58 = arith.constant 0 : index
    %61 = vector.load %arg3[%c0_57, %c0_58] : memref<1x112xf32, #tpu.memory_space<vmem>>, vector<1x112xf32>
    %62 = vector.broadcast %61 : vector<1x112xf32> to vector<8x112xf32>
    %63 = arith.addf %60, %62 : vector<8x112xf32>
    %cst_59 = arith.constant 0.000000e+00 : f32
    %64 = vector.broadcast %cst_59 : f32 to vector<8x112xf32>
    %65 = arith.maximumf %63, %64 : vector<8x112xf32>
    %66 = arith.truncf %65 : vector<8x112xf32> to vector<8x112xbf16>
    %c2_60 = arith.constant 2 : index
    %c0_61 = arith.constant 0 : index
    %c0_62 = arith.constant 0 : index
    %67 = vector.load %arg11[%c2_60, %c0_61, %c0_62] : memref<18x8x112xbf16, #tpu.memory_space<vmem>>, vector<1x8x112xbf16>
    %68 = vector.shape_cast %67 : vector<1x8x112xbf16> to vector<8x112xbf16>
    %69 = vector.shape_cast %66 : vector<8x112xbf16> to vector<1x8x112xbf16>
    tpu.vector_store %arg11[%c2_60, %c0_61, %c0_62], %69 {strides = array<i32>} : memref<18x8x112xbf16, #tpu.memory_space<vmem>>, vector<1x8x112xbf16>,
    %c2_63 = arith.constant 2 : index
    %c0_64 = arith.constant 0 : index
    %c0_65 = arith.constant 0 : index
    %70 = vector.load %arg1[%c2_63, %c0_64, %c0_65] : memref<32x8x28xbf16, #tpu.memory_space<vmem>>, vector<1x8x28xbf16>
    %71 = vector.shape_cast %70 : vector<1x8x28xbf16> to vector<8x28xbf16>
    %c0_66 = arith.constant 0 : index
    %c0_67 = arith.constant 0 : index
    %c0_68 = arith.constant 0 : index
    %72 = vector.load %arg2[%c0_66, %c0_67, %c0_68] : memref<5x28x112xbf16, #tpu.memory_space<vmem>>, vector<1x28x112xbf16>
    %73 = vector.shape_cast %72 : vector<1x28x112xbf16> to vector<28x112xbf16>
    %cst_69 = arith.constant dense<0.000000e+00> : vector<8x112xf32>
    %74 = tpu.matmul %71, %73, %cst_69 {dimension_numbers = #tpu.dot_dimension_numbers<[1], [0], [0], [1], [0, 0, 1, 1], [], []>} : vector<8x28xbf16>, vector<28x112xbf16>, vector<8x112xf32> -> vector<8x112xf32>
    %c3_70 = arith.constant 3 : index
    %c0_71 = arith.constant 0 : index
    %c0_72 = arith.constant 0 : index
    %75 = vector.load %arg1[%c3_70, %c0_71, %c0_72] : memref<32x8x28xbf16, #tpu.memory_space<vmem>>, vector<1x8x28xbf16>
    %76 = vector.shape_cast %75 : vector<1x8x28xbf16> to vector<8x28xbf16>
    %c1_73 = arith.constant 1 : index
    %c0_74 = arith.constant 0 : index
    %c0_75 = arith.constant 0 : index
    %77 = vector.load %arg2[%c1_73, %c0_74, %c0_75] : memref<5x28x112xbf16, #tpu.memory_space<vmem>>, vector<1x28x112xbf16>
    %78 = vector.shape_cast %77 : vector<1x28x112xbf16> to vector<28x112xbf16>
    %cst_76 = arith.constant dense<0.000000e+00> : vector<8x112xf32>
    %79 = tpu.matmul %76, %78, %cst_76 {dimension_numbers = #tpu.dot_dimension_numbers<[1], [0], [0], [1], [0, 0, 1, 1], [], []>} : vector<8x28xbf16>, vector<28x112xbf16>, vector<8x112xf32> -> vector<8x112xf32>
    %80 = arith.addf %74, %79 : vector<8x112xf32>
    %c4_77 = arith.constant 4 : index
    %c0_78 = arith.constant 0 : index
    %c0_79 = arith.constant 0 : index
    %81 = vector.load %arg1[%c4_77, %c0_78, %c0_79] : memref<32x8x28xbf16, #tpu.memory_space<vmem>>, vector<1x8x28xbf16>
    %82 = vector.shape_cast %81 : vector<1x8x28xbf16> to vector<8x28xbf16>
    %c2_80 = arith.constant 2 : index
    %c0_81 = arith.constant 0 : index
    %c0_82 = arith.constant 0 : index
    %83 = vector.load %arg2[%c2_80, %c0_81, %c0_82] : memref<5x28x112xbf16, #tpu.memory_space<vmem>>, vector<1x28x112xbf16>
    %84 = vector.shape_cast %83 : vector<1x28x112xbf16> to vector<28x112xbf16>
    %cst_83 = arith.constant dense<0.000000e+00> : vector<8x112xf32>
    %85 = tpu.matmul %82, %84, %cst_83 {dimension_numbers = #tpu.dot_dimension_numbers<[1], [0], [0], [1], [0, 0, 1, 1], [], []>} : vector<8x28xbf16>, vector<28x112xbf16>, vector<8x112xf32> -> vector<8x112xf32>
    %86 = arith.addf %80, %85 : vector<8x112xf32>
    %c5 = arith.constant 5 : index
    %c0_84 = arith.constant 0 : index
    %c0_85 = arith.constant 0 : index
    %87 = vector.load %arg1[%c5, %c0_84, %c0_85] : memref<32x8x28xbf16, #tpu.memory_space<vmem>>, vector<1x8x28xbf16>
    %88 = vector.shape_cast %87 : vector<1x8x28xbf16> to vector<8x28xbf16>
    %c3_86 = arith.constant 3 : index
    %c0_87 = arith.constant 0 : index
    %c0_88 = arith.constant 0 : index
    %89 = vector.load %arg2[%c3_86, %c0_87, %c0_88] : memref<5x28x112xbf16, #tpu.memory_space<vmem>>, vector<1x28x112xbf16>
    %90 = vector.shape_cast %89 : vector<1x28x112xbf16> to vector<28x112xbf16>
    %cst_89 = arith.constant dense<0.000000e+00> : vector<8x112xf32>
    %91 = tpu.matmul %88, %90, %cst_89 {dimension_numbers = #tpu.dot_dimension_numbers<[1], [0], [0], [1], [0, 0, 1, 1], [], []>} : vector<8x28xbf16>, vector<28x112xbf16>, vector<8x112xf32> -> vector<8x112xf32>
    %92 = arith.addf %86, %91 : vector<8x112xf32>
    %c6 = arith.constant 6 : index
    %c0_90 = arith.constant 0 : index
    %c0_91 = arith.constant 0 : index
    %93 = vector.load %arg1[%c6, %c0_90, %c0_91] : memref<32x8x28xbf16, #tpu.memory_space<vmem>>, vector<1x8x28xbf16>
    %94 = vector.shape_cast %93 : vector<1x8x28xbf16> to vector<8x28xbf16>
    %c4_92 = arith.constant 4 : index
    %c0_93 = arith.constant 0 : index
    %c0_94 = arith.constant 0 : index
    %95 = vector.load %arg2[%c4_92, %c0_93, %c0_94] : memref<5x28x112xbf16, #tpu.memory_space<vmem>>, vector<1x28x112xbf16>
    %96 = vector.shape_cast %95 : vector<1x28x112xbf16> to vector<28x112xbf16>
    %cst_95 = arith.constant dense<0.000000e+00> : vector<8x112xf32>
    %97 = tpu.matmul %94, %96, %cst_95 {dimension_numbers = #tpu.dot_dimension_numbers<[1], [0], [0], [1], [0, 0, 1, 1], [], []>} : vector<8x28xbf16>, vector<28x112xbf16>, vector<8x112xf32> -> vector<8x112xf32>
    %98 = arith.addf %92, %97 : vector<8x112xf32>
    %c0_96 = arith.constant 0 : index
    %c0_97 = arith.constant 0 : index
    %99 = vector.load %arg3[%c0_96, %c0_97] : memref<1x112xf32, #tpu.memory_space<vmem>>, vector<1x112xf32>
    %100 = vector.broadcast %99 : vector<1x112xf32> to vector<8x112xf32>
    %101 = arith.addf %98, %100 : vector<8x112xf32>
    %cst_98 = arith.constant 0.000000e+00 : f32
    %102 = vector.broadcast %cst_98 : f32 to vector<8x112xf32>
    %103 = arith.maximumf %101, %102 : vector<8x112xf32>
    %104 = arith.truncf %103 : vector<8x112xf32> to vector<8x112xbf16>
    %c3_99 = arith.constant 3 : index
    %c0_100 = arith.constant 0 : index
    %c0_101 = arith.constant 0 : index
    %105 = vector.load %arg11[%c3_99, %c0_100, %c0_101] : memref<18x8x112xbf16, #tpu.memory_space<vmem>>, vector<1x8x112xbf16>
    %106 = vector.shape_cast %105 : vector<1x8x112xbf16> to vector<8x112xbf16>
    %107 = vector.shape_cast %104 : vector<8x112xbf16> to vector<1x8x112xbf16>
    tpu.vector_store %arg11[%c3_99, %c0_100, %c0_101], %107 {strides = array<i32>} : memref<18x8x112xbf16, #tpu.memory_space<vmem>>, vector<1x8x112xbf16>,
    %c4_102 = arith.constant 4 : index
    %c0_103 = arith.constant 0 : index
    %c0_104 = arith.constant 0 : index
    %108 = vector.load %arg1[%c4_102, %c0_103, %c0_104] : memref<32x8x28xbf16, #tpu.memory_space<vmem>>, vector<1x8x28xbf16>
    %109 = vector.shape_cast %108 : vector<1x8x28xbf16> to vector<8x28xbf16>
    %c0_105 = arith.constant 0 : index
    %c0_106 = arith.constant 0 : index
    %c0_107 = arith.constant 0 : index
    %110 = vector.load %arg2[%c0_105, %c0_106, %c0_107] : memref<5x28x112xbf16, #tpu.memory_space<vmem>>, vector<1x28x112xbf16>
    %111 = vector.shape_cast %110 : vector<1x28x112xbf16> to vector<28x112xbf16>
    %cst_108 = arith.constant dense<0.000000e+00> : vector<8x112xf32>
    %112 = tpu.matmul %109, %111, %cst_108 {dimension_numbers = #tpu.dot_dimension_numbers<[1], [0], [0], [1], [0, 0, 1, 1], [], []>} : vector<8x28xbf16>, vector<28x112xbf16>, vector<8x112xf32> -> vector<8x112xf32>
    %c5_109 = arith.constant 5 : index
    %c0_110 = arith.constant 0 : index
    %c0_111 = arith.constant 0 : index
    %113 = vector.load %arg1[%c5_109, %c0_110, %c0_111] : memref<32x8x28xbf16, #tpu.memory_space<vmem>>, vector<1x8x28xbf16>
    %114 = vector.shape_cast %113 : vector<1x8x28xbf16> to vector<8x28xbf16>
    %c1_112 = arith.constant 1 : index
    %c0_113 = arith.constant 0 : index
    %c0_114 = arith.constant 0 : index
    %115 = vector.load %arg2[%c1_112, %c0_113, %c0_114] : memref<5x28x112xbf16, #tpu.memory_space<vmem>>, vector<1x28x112xbf16>
    %116 = vector.shape_cast %115 : vector<1x28x112xbf16> to vector<28x112xbf16>
    %cst_115 = arith.constant dense<0.000000e+00> : vector<8x112xf32>
    %117 = tpu.matmul %114, %116, %cst_115 {dimension_numbers = #tpu.dot_dimension_numbers<[1], [0], [0], [1], [0, 0, 1, 1], [], []>} : vector<8x28xbf16>, vector<28x112xbf16>, vector<8x112xf32> -> vector<8x112xf32>
    %118 = arith.addf %112, %117 : vector<8x112xf32>
    %c6_116 = arith.constant 6 : index
    %c0_117 = arith.constant 0 : index
    %c0_118 = arith.constant 0 : index
    %119 = vector.load %arg1[%c6_116, %c0_117, %c0_118] : memref<32x8x28xbf16, #tpu.memory_space<vmem>>, vector<1x8x28xbf16>
    %120 = vector.shape_cast %119 : vector<1x8x28xbf16> to vector<8x28xbf16>
    %c2_119 = arith.constant 2 : index
    %c0_120 = arith.constant 0 : index
    %c0_121 = arith.constant 0 : index
    %121 = vector.load %arg2[%c2_119, %c0_120, %c0_121] : memref<5x28x112xbf16, #tpu.memory_space<vmem>>, vector<1x28x112xbf16>
    %122 = vector.shape_cast %121 : vector<1x28x112xbf16> to vector<28x112xbf16>
    %cst_122 = arith.constant dense<0.000000e+00> : vector<8x112xf32>
    %123 = tpu.matmul %120, %122, %cst_122 {dimension_numbers = #tpu.dot_dimension_numbers<[1], [0], [0], [1], [0, 0, 1, 1], [], []>} : vector<8x28xbf16>, vector<28x112xbf16>, vector<8x112xf32> -> vector<8x112xf32>
    %124 = arith.addf %118, %123 : vector<8x112xf32>
    %c7 = arith.constant 7 : index
    %c0_123 = arith.constant 0 : index
    %c0_124 = arith.constant 0 : index
    %125 = vector.load %arg1[%c7, %c0_123, %c0_124] : memref<32x8x28xbf16, #tpu.memory_space<vmem>>, vector<1x8x28xbf16>
    %126 = vector.shape_cast %125 : vector<1x8x28xbf16> to vector<8x28xbf16>
    %c3_125 = arith.constant 3 : index
    %c0_126 = arith.constant 0 : index
    %c0_127 = arith.constant 0 : index
    %127 = vector.load %arg2[%c3_125, %c0_126, %c0_127] : memref<5x28x112xbf16, #tpu.memory_space<vmem>>, vector<1x28x112xbf16>
    %128 = vector.shape_cast %127 : vector<1x28x112xbf16> to vector<28x112xbf16>
    %cst_128 = arith.constant dense<0.000000e+00> : vector<8x112xf32>
    %129 = tpu.matmul %126, %128, %cst_128 {dimension_numbers = #tpu.dot_dimension_numbers<[1], [0], [0], [1], [0, 0, 1, 1], [], []>} : vector<8x28xbf16>, vector<28x112xbf16>, vector<8x112xf32> -> vector<8x112xf32>
    %130 = arith.addf %124, %129 : vector<8x112xf32>
    %c8 = arith.constant 8 : index
    %c0_129 = arith.constant 0 : index
    %c0_130 = arith.constant 0 : index
    %131 = vector.load %arg1[%c8, %c0_129, %c0_130] : memref<32x8x28xbf16, #tpu.memory_space<vmem>>, vector<1x8x28xbf16>
    %132 = vector.shape_cast %131 : vector<1x8x28xbf16> to vector<8x28xbf16>
    %c4_131 = arith.constant 4 : index
    %c0_132 = arith.constant 0 : index
    %c0_133 = arith.constant 0 : index
    %133 = vector.load %arg2[%c4_131, %c0_132, %c0_133] : memref<5x28x112xbf16, #tpu.memory_space<vmem>>, vector<1x28x112xbf16>
    %134 = vector.shape_cast %133 : vector<1x28x112xbf16> to vector<28x112xbf16>
    %cst_134 = arith.constant dense<0.000000e+00> : vector<8x112xf32>
    %135 = tpu.matmul %132, %134, %cst_134 {dimension_numbers = #tpu.dot_dimension_numbers<[1], [0], [0], [1], [0, 0, 1, 1], [], []>} : vector<8x28xbf16>, vector<28x112xbf16>, vector<8x112xf32> -> vector<8x112xf32>
    %136 = arith.addf %130, %135 : vector<8x112xf32>
    %c0_135 = arith.constant 0 : index
    %c0_136 = arith.constant 0 : index
    %137 = vector.load %arg3[%c0_135, %c0_136] : memref<1x112xf32, #tpu.memory_space<vmem>>, vector<1x112xf32>
    %138 = vector.broadcast %137 : vector<1x112xf32> to vector<8x112xf32>
    %139 = arith.addf %136, %138 : vector<8x112xf32>
    %cst_137 = arith.constant 0.000000e+00 : f32
    %140 = vector.broadcast %cst_137 : f32 to vector<8x112xf32>
    %141 = arith.maximumf %139, %140 : vector<8x112xf32>
    %142 = arith.truncf %141 : vector<8x112xf32> to vector<8x112xbf16>
    %c4_138 = arith.constant 4 : index
    %c0_139 = arith.constant 0 : index
    %c0_140 = arith.constant 0 : index
    %143 = vector.load %arg11[%c4_138, %c0_139, %c0_140] : memref<18x8x112xbf16, #tpu.memory_space<vmem>>, vector<1x8x112xbf16>
    %144 = vector.shape_cast %143 : vector<1x8x112xbf16> to vector<8x112xbf16>
    %145 = vector.shape_cast %142 : vector<8x112xbf16> to vector<1x8x112xbf16>
    tpu.vector_store %arg11[%c4_138, %c0_139, %c0_140], %145 {strides = array<i32>} : memref<18x8x112xbf16, #tpu.memory_space<vmem>>, vector<1x8x112xbf16>,
    %c6_141 = arith.constant 6 : index
    %c0_142 = arith.constant 0 : index
    %c0_143 = arith.constant 0 : index
    %146 = vector.load %arg1[%c6_141, %c0_142, %c0_143] : memref<32x8x28xbf16, #tpu.memory_space<vmem>>, vector<1x8x28xbf16>
    %147 = vector.shape_cast %146 : vector<1x8x28xbf16> to vector<8x28xbf16>
    %c0_144 = arith.constant 0 : index
    %c0_145 = arith.constant 0 : index
    %c0_146 = arith.constant 0 : index
    %148 = vector.load %arg2[%c0_144, %c0_145, %c0_146] : memref<5x28x112xbf16, #tpu.memory_space<vmem>>, vector<1x28x112xbf16>
    %149 = vector.shape_cast %148 : vector<1x28x112xbf16> to vector<28x112xbf16>
    %cst_147 = arith.constant dense<0.000000e+00> : vector<8x112xf32>
    %150 = tpu.matmul %147, %149, %cst_147 {dimension_numbers = #tpu.dot_dimension_numbers<[1], [0], [0], [1], [0, 0, 1, 1], [], []>} : vector<8x28xbf16>, vector<28x112xbf16>, vector<8x112xf32> -> vector<8x112xf32>
    %c7_148 = arith.constant 7 : index
    %c0_149 = arith.constant 0 : index
    %c0_150 = arith.constant 0 : index
    %151 = vector.load %arg1[%c7_148, %c0_149, %c0_150] : memref<32x8x28xbf16, #tpu.memory_space<vmem>>, vector<1x8x28xbf16>
    %152 = vector.shape_cast %151 : vector<1x8x28xbf16> to vector<8x28xbf16>
    %c1_151 = arith.constant 1 : index
    %c0_152 = arith.constant 0 : index
    %c0_153 = arith.constant 0 : index
    %153 = vector.load %arg2[%c1_151, %c0_152, %c0_153] : memref<5x28x112xbf16, #tpu.memory_space<vmem>>, vector<1x28x112xbf16>
    %154 = vector.shape_cast %153 : vector<1x28x112xbf16> to vector<28x112xbf16>
    %cst_154 = arith.constant dense<0.000000e+00> : vector<8x112xf32>
    %155 = tpu.matmul %152, %154, %cst_154 {dimension_numbers = #tpu.dot_dimension_numbers<[1], [0], [0], [1], [0, 0, 1, 1], [], []>} : vector<8x28xbf16>, vector<28x112xbf16>, vector<8x112xf32> -> vector<8x112xf32>
    %156 = arith.addf %150, %155 : vector<8x112xf32>
    %c8_155 = arith.constant 8 : index
    %c0_156 = arith.constant 0 : index
    %c0_157 = arith.constant 0 : index
    %157 = vector.load %arg1[%c8_155, %c0_156, %c0_157] : memref<32x8x28xbf16, #tpu.memory_space<vmem>>, vector<1x8x28xbf16>
    %158 = vector.shape_cast %157 : vector<1x8x28xbf16> to vector<8x28xbf16>
    %c2_158 = arith.constant 2 : index
    %c0_159 = arith.constant 0 : index
    %c0_160 = arith.constant 0 : index
    %159 = vector.load %arg2[%c2_158, %c0_159, %c0_160] : memref<5x28x112xbf16, #tpu.memory_space<vmem>>, vector<1x28x112xbf16>
    %160 = vector.shape_cast %159 : vector<1x28x112xbf16> to vector<28x112xbf16>
    %cst_161 = arith.constant dense<0.000000e+00> : vector<8x112xf32>
    %161 = tpu.matmul %158, %160, %cst_161 {dimension_numbers = #tpu.dot_dimension_numbers<[1], [0], [0], [1], [0, 0, 1, 1], [], []>} : vector<8x28xbf16>, vector<28x112xbf16>, vector<8x112xf32> -> vector<8x112xf32>
    %162 = arith.addf %156, %161 : vector<8x112xf32>
    %c9_162 = arith.constant 9 : index
    %c0_163 = arith.constant 0 : index
    %c0_164 = arith.constant 0 : index
    %163 = vector.load %arg1[%c9_162, %c0_163, %c0_164] : memref<32x8x28xbf16, #tpu.memory_space<vmem>>, vector<1x8x28xbf16>
    %164 = vector.shape_cast %163 : vector<1x8x28xbf16> to vector<8x28xbf16>
    %c3_165 = arith.constant 3 : index
    %c0_166 = arith.constant 0 : index
    %c0_167 = arith.constant 0 : index
    %165 = vector.load %arg2[%c3_165, %c0_166, %c0_167] : memref<5x28x112xbf16, #tpu.memory_space<vmem>>, vector<1x28x112xbf16>
    %166 = vector.shape_cast %165 : vector<1x28x112xbf16> to vector<28x112xbf16>
    %cst_168 = arith.constant dense<0.000000e+00> : vector<8x112xf32>
    %167 = tpu.matmul %164, %166, %cst_168 {dimension_numbers = #tpu.dot_dimension_numbers<[1], [0], [0], [1], [0, 0, 1, 1], [], []>} : vector<8x28xbf16>, vector<28x112xbf16>, vector<8x112xf32> -> vector<8x112xf32>
    %168 = arith.addf %162, %167 : vector<8x112xf32>
    %c10_169 = arith.constant 10 : index
    %c0_170 = arith.constant 0 : index
    %c0_171 = arith.constant 0 : index
    %169 = vector.load %arg1[%c10_169, %c0_170, %c0_171] : memref<32x8x28xbf16, #tpu.memory_space<vmem>>, vector<1x8x28xbf16>
    %170 = vector.shape_cast %169 : vector<1x8x28xbf16> to vector<8x28xbf16>
    %c4_172 = arith.constant 4 : index
    %c0_173 = arith.constant 0 : index
    %c0_174 = arith.constant 0 : index
    %171 = vector.load %arg2[%c4_172, %c0_173, %c0_174] : memref<5x28x112xbf16, #tpu.memory_space<vmem>>, vector<1x28x112xbf16>
    %172 = vector.shape_cast %171 : vector<1x28x112xbf16> to vector<28x112xbf16>
    %cst_175 = arith.constant dense<0.000000e+00> : vector<8x112xf32>
    %173 = tpu.matmul %170, %172, %cst_175 {dimension_numbers = #tpu.dot_dimension_numbers<[1], [0], [0], [1], [0, 0, 1, 1], [], []>} : vector<8x28xbf16>, vector<28x112xbf16>, vector<8x112xf32> -> vector<8x112xf32>
    %174 = arith.addf %168, %173 : vector<8x112xf32>
    %c0_176 = arith.constant 0 : index
    %c0_177 = arith.constant 0 : index
    %175 = vector.load %arg3[%c0_176, %c0_177] : memref<1x112xf32, #tpu.memory_space<vmem>>, vector<1x112xf32>
    %176 = vector.broadcast %175 : vector<1x112xf32> to vector<8x112xf32>
    %177 = arith.addf %174, %176 : vector<8x112xf32>
    %cst_178 = arith.constant 0.000000e+00 : f32
    %178 = vector.broadcast %cst_178 : f32 to vector<8x112xf32>
    %179 = arith.maximumf %177, %178 : vector<8x112xf32>
    %180 = arith.truncf %179 : vector<8x112xf32> to vector<8x112xbf16>
    %c5_179 = arith.constant 5 : index
    %c0_180 = arith.constant 0 : index
    %c0_181 = arith.constant 0 : index
    %181 = vector.load %arg11[%c5_179, %c0_180, %c0_181] : memref<18x8x112xbf16, #tpu.memory_space<vmem>>, vector<1x8x112xbf16>
    %182 = vector.shape_cast %181 : vector<1x8x112xbf16> to vector<8x112xbf16>
    %183 = vector.shape_cast %180 : vector<8x112xbf16> to vector<1x8x112xbf16>
    tpu.vector_store %arg11[%c5_179, %c0_180, %c0_181], %183 {strides = array<i32>} : memref<18x8x112xbf16, #tpu.memory_space<vmem>>, vector<1x8x112xbf16>,
    %c8_182 = arith.constant 8 : index
    %c0_183 = arith.constant 0 : index
    %c0_184 = arith.constant 0 : index
    %184 = vector.load %arg1[%c8_182, %c0_183, %c0_184] : memref<32x8x28xbf16, #tpu.memory_space<vmem>>, vector<1x8x28xbf16>
    %185 = vector.shape_cast %184 : vector<1x8x28xbf16> to vector<8x28xbf16>
    %c0_185 = arith.constant 0 : index
    %c0_186 = arith.constant 0 : index
    %c0_187 = arith.constant 0 : index
    %186 = vector.load %arg2[%c0_185, %c0_186, %c0_187] : memref<5x28x112xbf16, #tpu.memory_space<vmem>>, vector<1x28x112xbf16>
    %187 = vector.shape_cast %186 : vector<1x28x112xbf16> to vector<28x112xbf16>
    %cst_188 = arith.constant dense<0.000000e+00> : vector<8x112xf32>
    %188 = tpu.matmul %185, %187, %cst_188 {dimension_numbers = #tpu.dot_dimension_numbers<[1], [0], [0], [1], [0, 0, 1, 1], [], []>} : vector<8x28xbf16>, vector<28x112xbf16>, vector<8x112xf32> -> vector<8x112xf32>
    %c9_189 = arith.constant 9 : index
    %c0_190 = arith.constant 0 : index
    %c0_191 = arith.constant 0 : index
    %189 = vector.load %arg1[%c9_189, %c0_190, %c0_191] : memref<32x8x28xbf16, #tpu.memory_space<vmem>>, vector<1x8x28xbf16>
    %190 = vector.shape_cast %189 : vector<1x8x28xbf16> to vector<8x28xbf16>
    %c1_192 = arith.constant 1 : index
    %c0_193 = arith.constant 0 : index
    %c0_194 = arith.constant 0 : index
    %191 = vector.load %arg2[%c1_192, %c0_193, %c0_194] : memref<5x28x112xbf16, #tpu.memory_space<vmem>>, vector<1x28x112xbf16>
    %192 = vector.shape_cast %191 : vector<1x28x112xbf16> to vector<28x112xbf16>
    %cst_195 = arith.constant dense<0.000000e+00> : vector<8x112xf32>
    %193 = tpu.matmul %190, %192, %cst_195 {dimension_numbers = #tpu.dot_dimension_numbers<[1], [0], [0], [1], [0, 0, 1, 1], [], []>} : vector<8x28xbf16>, vector<28x112xbf16>, vector<8x112xf32> -> vector<8x112xf32>
    %194 = arith.addf %188, %193 : vector<8x112xf32>
    %c10_196 = arith.constant 10 : index
    %c0_197 = arith.constant 0 : index
    %c0_198 = arith.constant 0 : index
    %195 = vector.load %arg1[%c10_196, %c0_197, %c0_198] : memref<32x8x28xbf16, #tpu.memory_space<vmem>>, vector<1x8x28xbf16>
    %196 = vector.shape_cast %195 : vector<1x8x28xbf16> to vector<8x28xbf16>
    %c2_199 = arith.constant 2 : index
    %c0_200 = arith.constant 0 : index
    %c0_201 = arith.constant 0 : index
    %197 = vector.load %arg2[%c2_199, %c0_200, %c0_201] : memref<5x28x112xbf16, #tpu.memory_space<vmem>>, vector<1x28x112xbf16>
    %198 = vector.shape_cast %197 : vector<1x28x112xbf16> to vector<28x112xbf16>
    %cst_202 = arith.constant dense<0.000000e+00> : vector<8x112xf32>
    %199 = tpu.matmul %196, %198, %cst_202 {dimension_numbers = #tpu.dot_dimension_numbers<[1], [0], [0], [1], [0, 0, 1, 1], [], []>} : vector<8x28xbf16>, vector<28x112xbf16>, vector<8x112xf32> -> vector<8x112xf32>
    %200 = arith.addf %194, %199 : vector<8x112xf32>
    %c11 = arith.constant 11 : index
    %c0_203 = arith.constant 0 : index
    %c0_204 = arith.constant 0 : index
    %201 = vector.load %arg1[%c11, %c0_203, %c0_204] : memref<32x8x28xbf16, #tpu.memory_space<vmem>>, vector<1x8x28xbf16>
    %202 = vector.shape_cast %201 : vector<1x8x28xbf16> to vector<8x28xbf16>
    %c3_205 = arith.constant 3 : index
    %c0_206 = arith.constant 0 : index
    %c0_207 = arith.constant 0 : index
    %203 = vector.load %arg2[%c3_205, %c0_206, %c0_207] : memref<5x28x112xbf16, #tpu.memory_space<vmem>>, vector<1x28x112xbf16>
    %204 = vector.shape_cast %203 : vector<1x28x112xbf16> to vector<28x112xbf16>
    %cst_208 = arith.constant dense<0.000000e+00> : vector<8x112xf32>
    %205 = tpu.matmul %202, %204, %cst_208 {dimension_numbers = #tpu.dot_dimension_numbers<[1], [0], [0], [1], [0, 0, 1, 1], [], []>} : vector<8x28xbf16>, vector<28x112xbf16>, vector<8x112xf32> -> vector<8x112xf32>
    %206 = arith.addf %200, %205 : vector<8x112xf32>
    %c12 = arith.constant 12 : index
    %c0_209 = arith.constant 0 : index
    %c0_210 = arith.constant 0 : index
    %207 = vector.load %arg1[%c12, %c0_209, %c0_210] : memref<32x8x28xbf16, #tpu.memory_space<vmem>>, vector<1x8x28xbf16>
    %208 = vector.shape_cast %207 : vector<1x8x28xbf16> to vector<8x28xbf16>
    %c4_211 = arith.constant 4 : index
    %c0_212 = arith.constant 0 : index
    %c0_213 = arith.constant 0 : index
    %209 = vector.load %arg2[%c4_211, %c0_212, %c0_213] : memref<5x28x112xbf16, #tpu.memory_space<vmem>>, vector<1x28x112xbf16>
    %210 = vector.shape_cast %209 : vector<1x28x112xbf16> to vector<28x112xbf16>
    %cst_214 = arith.constant dense<0.000000e+00> : vector<8x112xf32>
    %211 = tpu.matmul %208, %210, %cst_214 {dimension_numbers = #tpu.dot_dimension_numbers<[1], [0], [0], [1], [0, 0, 1, 1], [], []>} : vector<8x28xbf16>, vector<28x112xbf16>, vector<8x112xf32> -> vector<8x112xf32>
    %212 = arith.addf %206, %211 : vector<8x112xf32>
    %c0_215 = arith.constant 0 : index
    %c0_216 = arith.constant 0 : index
    %213 = vector.load %arg3[%c0_215, %c0_216] : memref<1x112xf32, #tpu.memory_space<vmem>>, vector<1x112xf32>
    %214 = vector.broadcast %213 : vector<1x112xf32> to vector<8x112xf32>
    %215 = arith.addf %212, %214 : vector<8x112xf32>
    %cst_217 = arith.constant 0.000000e+00 : f32
    %216 = vector.broadcast %cst_217 : f32 to vector<8x112xf32>
    %217 = arith.maximumf %215, %216 : vector<8x112xf32>
    %218 = arith.truncf %217 : vector<8x112xf32> to vector<8x112xbf16>
    %c6_218 = arith.constant 6 : index
    %c0_219 = arith.constant 0 : index
    %c0_220 = arith.constant 0 : index
    %219 = vector.load %arg11[%c6_218, %c0_219, %c0_220] : memref<18x8x112xbf16, #tpu.memory_space<vmem>>, vector<1x8x112xbf16>
    %220 = vector.shape_cast %219 : vector<1x8x112xbf16> to vector<8x112xbf16>
    %221 = vector.shape_cast %218 : vector<8x112xbf16> to vector<1x8x112xbf16>
    tpu.vector_store %arg11[%c6_218, %c0_219, %c0_220], %221 {strides = array<i32>} : memref<18x8x112xbf16, #tpu.memory_space<vmem>>, vector<1x8x112xbf16>,
    %c10_221 = arith.constant 10 : index
    %c0_222 = arith.constant 0 : index
    %c0_223 = arith.constant 0 : index
    %222 = vector.load %arg1[%c10_221, %c0_222, %c0_223] : memref<32x8x28xbf16, #tpu.memory_space<vmem>>, vector<1x8x28xbf16>
    %223 = vector.shape_cast %222 : vector<1x8x28xbf16> to vector<8x28xbf16>
    %c0_224 = arith.constant 0 : index
    %c0_225 = arith.constant 0 : index
    %c0_226 = arith.constant 0 : index
    %224 = vector.load %arg2[%c0_224, %c0_225, %c0_226] : memref<5x28x112xbf16, #tpu.memory_space<vmem>>, vector<1x28x112xbf16>
    %225 = vector.shape_cast %224 : vector<1x28x112xbf16> to vector<28x112xbf16>
    %cst_227 = arith.constant dense<0.000000e+00> : vector<8x112xf32>
    %226 = tpu.matmul %223, %225, %cst_227 {dimension_numbers = #tpu.dot_dimension_numbers<[1], [0], [0], [1], [0, 0, 1, 1], [], []>} : vector<8x28xbf16>, vector<28x112xbf16>, vector<8x112xf32> -> vector<8x112xf32>
    %c11_228 = arith.constant 11 : index
    %c0_229 = arith.constant 0 : index
    %c0_230 = arith.constant 0 : index
    %227 = vector.load %arg1[%c11_228, %c0_229, %c0_230] : memref<32x8x28xbf16, #tpu.memory_space<vmem>>, vector<1x8x28xbf16>
    %228 = vector.shape_cast %227 : vector<1x8x28xbf16> to vector<8x28xbf16>
    %c1_231 = arith.constant 1 : index
    %c0_232 = arith.constant 0 : index
    %c0_233 = arith.constant 0 : index
    %229 = vector.load %arg2[%c1_231, %c0_232, %c0_233] : memref<5x28x112xbf16, #tpu.memory_space<vmem>>, vector<1x28x112xbf16>
    %230 = vector.shape_cast %229 : vector<1x28x112xbf16> to vector<28x112xbf16>
    %cst_234 = arith.constant dense<0.000000e+00> : vector<8x112xf32>
    %231 = tpu.matmul %228, %230, %cst_234 {dimension_numbers = #tpu.dot_dimension_numbers<[1], [0], [0], [1], [0, 0, 1, 1], [], []>} : vector<8x28xbf16>, vector<28x112xbf16>, vector<8x112xf32> -> vector<8x112xf32>
    %232 = arith.addf %226, %231 : vector<8x112xf32>
    %c12_235 = arith.constant 12 : index
    %c0_236 = arith.constant 0 : index
    %c0_237 = arith.constant 0 : index
    %233 = vector.load %arg1[%c12_235, %c0_236, %c0_237] : memref<32x8x28xbf16, #tpu.memory_space<vmem>>, vector<1x8x28xbf16>
    %234 = vector.shape_cast %233 : vector<1x8x28xbf16> to vector<8x28xbf16>
    %c2_238 = arith.constant 2 : index
    %c0_239 = arith.constant 0 : index
    %c0_240 = arith.constant 0 : index
    %235 = vector.load %arg2[%c2_238, %c0_239, %c0_240] : memref<5x28x112xbf16, #tpu.memory_space<vmem>>, vector<1x28x112xbf16>
    %236 = vector.shape_cast %235 : vector<1x28x112xbf16> to vector<28x112xbf16>
    %cst_241 = arith.constant dense<0.000000e+00> : vector<8x112xf32>
    %237 = tpu.matmul %234, %236, %cst_241 {dimension_numbers = #tpu.dot_dimension_numbers<[1], [0], [0], [1], [0, 0, 1, 1], [], []>} : vector<8x28xbf16>, vector<28x112xbf16>, vector<8x112xf32> -> vector<8x112xf32>
    %238 = arith.addf %232, %237 : vector<8x112xf32>
    %c13 = arith.constant 13 : index
    %c0_242 = arith.constant 0 : index
    %c0_243 = arith.constant 0 : index
    %239 = vector.load %arg1[%c13, %c0_242, %c0_243] : memref<32x8x28xbf16, #tpu.memory_space<vmem>>, vector<1x8x28xbf16>
    %240 = vector.shape_cast %239 : vector<1x8x28xbf16> to vector<8x28xbf16>
    %c3_244 = arith.constant 3 : index
    %c0_245 = arith.constant 0 : index
    %c0_246 = arith.constant 0 : index
    %241 = vector.load %arg2[%c3_244, %c0_245, %c0_246] : memref<5x28x112xbf16, #tpu.memory_space<vmem>>, vector<1x28x112xbf16>
    %242 = vector.shape_cast %241 : vector<1x28x112xbf16> to vector<28x112xbf16>
    %cst_247 = arith.constant dense<0.000000e+00> : vector<8x112xf32>
    %243 = tpu.matmul %240, %242, %cst_247 {dimension_numbers = #tpu.dot_dimension_numbers<[1], [0], [0], [1], [0, 0, 1, 1], [], []>} : vector<8x28xbf16>, vector<28x112xbf16>, vector<8x112xf32> -> vector<8x112xf32>
    %244 = arith.addf %238, %243 : vector<8x112xf32>
    %c14 = arith.constant 14 : index
    %c0_248 = arith.constant 0 : index
    %c0_249 = arith.constant 0 : index
    %245 = vector.load %arg1[%c14, %c0_248, %c0_249] : memref<32x8x28xbf16, #tpu.memory_space<vmem>>, vector<1x8x28xbf16>
    %246 = vector.shape_cast %245 : vector<1x8x28xbf16> to vector<8x28xbf16>
    %c4_250 = arith.constant 4 : index
    %c0_251 = arith.constant 0 : index
    %c0_252 = arith.constant 0 : index
    %247 = vector.load %arg2[%c4_250, %c0_251, %c0_252] : memref<5x28x112xbf16, #tpu.memory_space<vmem>>, vector<1x28x112xbf16>
    %248 = vector.shape_cast %247 : vector<1x28x112xbf16> to vector<28x112xbf16>
    %cst_253 = arith.constant dense<0.000000e+00> : vector<8x112xf32>
    %249 = tpu.matmul %246, %248, %cst_253 {dimension_numbers = #tpu.dot_dimension_numbers<[1], [0], [0], [1], [0, 0, 1, 1], [], []>} : vector<8x28xbf16>, vector<28x112xbf16>, vector<8x112xf32> -> vector<8x112xf32>
    %250 = arith.addf %244, %249 : vector<8x112xf32>
    %c0_254 = arith.constant 0 : index
    %c0_255 = arith.constant 0 : index
    %251 = vector.load %arg3[%c0_254, %c0_255] : memref<1x112xf32, #tpu.memory_space<vmem>>, vector<1x112xf32>
    %252 = vector.broadcast %251 : vector<1x112xf32> to vector<8x112xf32>
    %253 = arith.addf %250, %252 : vector<8x112xf32>
    %cst_256 = arith.constant 0.000000e+00 : f32
    %254 = vector.broadcast %cst_256 : f32 to vector<8x112xf32>
    %255 = arith.maximumf %253, %254 : vector<8x112xf32>
    %256 = arith.truncf %255 : vector<8x112xf32> to vector<8x112xbf16>
    %c7_257 = arith.constant 7 : index
    %c0_258 = arith.constant 0 : index
    %c0_259 = arith.constant 0 : index
    %257 = vector.load %arg11[%c7_257, %c0_258, %c0_259] : memref<18x8x112xbf16, #tpu.memory_space<vmem>>, vector<1x8x112xbf16>
    %258 = vector.shape_cast %257 : vector<1x8x112xbf16> to vector<8x112xbf16>
    %259 = vector.shape_cast %256 : vector<8x112xbf16> to vector<1x8x112xbf16>
    tpu.vector_store %arg11[%c7_257, %c0_258, %c0_259], %259 {strides = array<i32>} : memref<18x8x112xbf16, #tpu.memory_space<vmem>>, vector<1x8x112xbf16>,
    %c12_260 = arith.constant 12 : index
    %c0_261 = arith.constant 0 : index
    %c0_262 = arith.constant 0 : index
    %260 = vector.load %arg1[%c12_260, %c0_261, %c0_262] : memref<32x8x28xbf16, #tpu.memory_space<vmem>>, vector<1x8x28xbf16>
    %261 = vector.shape_cast %260 : vector<1x8x28xbf16> to vector<8x28xbf16>
    %c0_263 = arith.constant 0 : index
    %c0_264 = arith.constant 0 : index
    %c0_265 = arith.constant 0 : index
    %262 = vector.load %arg2[%c0_263, %c0_264, %c0_265] : memref<5x28x112xbf16, #tpu.memory_space<vmem>>, vector<1x28x112xbf16>
    %263 = vector.shape_cast %262 : vector<1x28x112xbf16> to vector<28x112xbf16>
    %cst_266 = arith.constant dense<0.000000e+00> : vector<8x112xf32>
    %264 = tpu.matmul %261, %263, %cst_266 {dimension_numbers = #tpu.dot_dimension_numbers<[1], [0], [0], [1], [0, 0, 1, 1], [], []>} : vector<8x28xbf16>, vector<28x112xbf16>, vector<8x112xf32> -> vector<8x112xf32>
    %c13_267 = arith.constant 13 : index
    %c0_268 = arith.constant 0 : index
    %c0_269 = arith.constant 0 : index
    %265 = vector.load %arg1[%c13_267, %c0_268, %c0_269] : memref<32x8x28xbf16, #tpu.memory_space<vmem>>, vector<1x8x28xbf16>
    %266 = vector.shape_cast %265 : vector<1x8x28xbf16> to vector<8x28xbf16>
    %c1_270 = arith.constant 1 : index
    %c0_271 = arith.constant 0 : index
    %c0_272 = arith.constant 0 : index
    %267 = vector.load %arg2[%c1_270, %c0_271, %c0_272] : memref<5x28x112xbf16, #tpu.memory_space<vmem>>, vector<1x28x112xbf16>
    %268 = vector.shape_cast %267 : vector<1x28x112xbf16> to vector<28x112xbf16>
    %cst_273 = arith.constant dense<0.000000e+00> : vector<8x112xf32>
    %269 = tpu.matmul %266, %268, %cst_273 {dimension_numbers = #tpu.dot_dimension_numbers<[1], [0], [0], [1], [0, 0, 1, 1], [], []>} : vector<8x28xbf16>, vector<28x112xbf16>, vector<8x112xf32> -> vector<8x112xf32>
    %270 = arith.addf %264, %269 : vector<8x112xf32>
    %c14_274 = arith.constant 14 : index
    %c0_275 = arith.constant 0 : index
    %c0_276 = arith.constant 0 : index
    %271 = vector.load %arg1[%c14_274, %c0_275, %c0_276] : memref<32x8x28xbf16, #tpu.memory_space<vmem>>, vector<1x8x28xbf16>
    %272 = vector.shape_cast %271 : vector<1x8x28xbf16> to vector<8x28xbf16>
    %c2_277 = arith.constant 2 : index
    %c0_278 = arith.constant 0 : index
    %c0_279 = arith.constant 0 : index
    %273 = vector.load %arg2[%c2_277, %c0_278, %c0_279] : memref<5x28x112xbf16, #tpu.memory_space<vmem>>, vector<1x28x112xbf16>
    %274 = vector.shape_cast %273 : vector<1x28x112xbf16> to vector<28x112xbf16>
    %cst_280 = arith.constant dense<0.000000e+00> : vector<8x112xf32>
    %275 = tpu.matmul %272, %274, %cst_280 {dimension_numbers = #tpu.dot_dimension_numbers<[1], [0], [0], [1], [0, 0, 1, 1], [], []>} : vector<8x28xbf16>, vector<28x112xbf16>, vector<8x112xf32> -> vector<8x112xf32>
    %276 = arith.addf %270, %275 : vector<8x112xf32>
    %c15 = arith.constant 15 : index
    %c0_281 = arith.constant 0 : index
    %c0_282 = arith.constant 0 : index
    %277 = vector.load %arg1[%c15, %c0_281, %c0_282] : memref<32x8x28xbf16, #tpu.memory_space<vmem>>, vector<1x8x28xbf16>
    %278 = vector.shape_cast %277 : vector<1x8x28xbf16> to vector<8x28xbf16>
    %c3_283 = arith.constant 3 : index
    %c0_284 = arith.constant 0 : index
    %c0_285 = arith.constant 0 : index
    %279 = vector.load %arg2[%c3_283, %c0_284, %c0_285] : memref<5x28x112xbf16, #tpu.memory_space<vmem>>, vector<1x28x112xbf16>
    %280 = vector.shape_cast %279 : vector<1x28x112xbf16> to vector<28x112xbf16>
    %cst_286 = arith.constant dense<0.000000e+00> : vector<8x112xf32>
    %281 = tpu.matmul %278, %280, %cst_286 {dimension_numbers = #tpu.dot_dimension_numbers<[1], [0], [0], [1], [0, 0, 1, 1], [], []>} : vector<8x28xbf16>, vector<28x112xbf16>, vector<8x112xf32> -> vector<8x112xf32>
    %282 = arith.addf %276, %281 : vector<8x112xf32>
    %c16_287 = arith.constant 16 : index
    %c0_288 = arith.constant 0 : index
    %c0_289 = arith.constant 0 : index
    %283 = vector.load %arg1[%c16_287, %c0_288, %c0_289] : memref<32x8x28xbf16, #tpu.memory_space<vmem>>, vector<1x8x28xbf16>
    %284 = vector.shape_cast %283 : vector<1x8x28xbf16> to vector<8x28xbf16>
    %c4_290 = arith.constant 4 : index
    %c0_291 = arith.constant 0 : index
    %c0_292 = arith.constant 0 : index
    %285 = vector.load %arg2[%c4_290, %c0_291, %c0_292] : memref<5x28x112xbf16, #tpu.memory_space<vmem>>, vector<1x28x112xbf16>
    %286 = vector.shape_cast %285 : vector<1x28x112xbf16> to vector<28x112xbf16>
    %cst_293 = arith.constant dense<0.000000e+00> : vector<8x112xf32>
    %287 = tpu.matmul %284, %286, %cst_293 {dimension_numbers = #tpu.dot_dimension_numbers<[1], [0], [0], [1], [0, 0, 1, 1], [], []>} : vector<8x28xbf16>, vector<28x112xbf16>, vector<8x112xf32> -> vector<8x112xf32>
    %288 = arith.addf %282, %287 : vector<8x112xf32>
    %c0_294 = arith.constant 0 : index
    %c0_295 = arith.constant 0 : index
    %289 = vector.load %arg3[%c0_294, %c0_295] : memref<1x112xf32, #tpu.memory_space<vmem>>, vector<1x112xf32>
    %290 = vector.broadcast %289 : vector<1x112xf32> to vector<8x112xf32>
    %291 = arith.addf %288, %290 : vector<8x112xf32>
    %cst_296 = arith.constant 0.000000e+00 : f32
    %292 = vector.broadcast %cst_296 : f32 to vector<8x112xf32>
    %293 = arith.maximumf %291, %292 : vector<8x112xf32>
    %294 = arith.truncf %293 : vector<8x112xf32> to vector<8x112xbf16>
    %c8_297 = arith.constant 8 : index
    %c0_298 = arith.constant 0 : index
    %c0_299 = arith.constant 0 : index
    %295 = vector.load %arg11[%c8_297, %c0_298, %c0_299] : memref<18x8x112xbf16, #tpu.memory_space<vmem>>, vector<1x8x112xbf16>
    %296 = vector.shape_cast %295 : vector<1x8x112xbf16> to vector<8x112xbf16>
    %297 = vector.shape_cast %294 : vector<8x112xbf16> to vector<1x8x112xbf16>
    tpu.vector_store %arg11[%c8_297, %c0_298, %c0_299], %297 {strides = array<i32>} : memref<18x8x112xbf16, #tpu.memory_space<vmem>>, vector<1x8x112xbf16>,
    %c14_300 = arith.constant 14 : index
    %c0_301 = arith.constant 0 : index
    %c0_302 = arith.constant 0 : index
    %298 = vector.load %arg1[%c14_300, %c0_301, %c0_302] : memref<32x8x28xbf16, #tpu.memory_space<vmem>>, vector<1x8x28xbf16>
    %299 = vector.shape_cast %298 : vector<1x8x28xbf16> to vector<8x28xbf16>
    %c0_303 = arith.constant 0 : index
    %c0_304 = arith.constant 0 : index
    %c0_305 = arith.constant 0 : index
    %300 = vector.load %arg2[%c0_303, %c0_304, %c0_305] : memref<5x28x112xbf16, #tpu.memory_space<vmem>>, vector<1x28x112xbf16>
    %301 = vector.shape_cast %300 : vector<1x28x112xbf16> to vector<28x112xbf16>
    %cst_306 = arith.constant dense<0.000000e+00> : vector<8x112xf32>
    %302 = tpu.matmul %299, %301, %cst_306 {dimension_numbers = #tpu.dot_dimension_numbers<[1], [0], [0], [1], [0, 0, 1, 1], [], []>} : vector<8x28xbf16>, vector<28x112xbf16>, vector<8x112xf32> -> vector<8x112xf32>
    %c15_307 = arith.constant 15 : index
    %c0_308 = arith.constant 0 : index
    %c0_309 = arith.constant 0 : index
    %303 = vector.load %arg1[%c15_307, %c0_308, %c0_309] : memref<32x8x28xbf16, #tpu.memory_space<vmem>>, vector<1x8x28xbf16>
    %304 = vector.shape_cast %303 : vector<1x8x28xbf16> to vector<8x28xbf16>
    %c1_310 = arith.constant 1 : index
    %c0_311 = arith.constant 0 : index
    %c0_312 = arith.constant 0 : index
    %305 = vector.load %arg2[%c1_310, %c0_311, %c0_312] : memref<5x28x112xbf16, #tpu.memory_space<vmem>>, vector<1x28x112xbf16>
    %306 = vector.shape_cast %305 : vector<1x28x112xbf16> to vector<28x112xbf16>
    %cst_313 = arith.constant dense<0.000000e+00> : vector<8x112xf32>
    %307 = tpu.matmul %304, %306, %cst_313 {dimension_numbers = #tpu.dot_dimension_numbers<[1], [0], [0], [1], [0, 0, 1, 1], [], []>} : vector<8x28xbf16>, vector<28x112xbf16>, vector<8x112xf32> -> vector<8x112xf32>
    %308 = arith.addf %302, %307 : vector<8x112xf32>
    %c16_314 = arith.constant 16 : index
    %c0_315 = arith.constant 0 : index
    %c0_316 = arith.constant 0 : index
    %309 = vector.load %arg1[%c16_314, %c0_315, %c0_316] : memref<32x8x28xbf16, #tpu.memory_space<vmem>>, vector<1x8x28xbf16>
    %310 = vector.shape_cast %309 : vector<1x8x28xbf16> to vector<8x28xbf16>
    %c2_317 = arith.constant 2 : index
    %c0_318 = arith.constant 0 : index
    %c0_319 = arith.constant 0 : index
    %311 = vector.load %arg2[%c2_317, %c0_318, %c0_319] : memref<5x28x112xbf16, #tpu.memory_space<vmem>>, vector<1x28x112xbf16>
    %312 = vector.shape_cast %311 : vector<1x28x112xbf16> to vector<28x112xbf16>
    %cst_320 = arith.constant dense<0.000000e+00> : vector<8x112xf32>
    %313 = tpu.matmul %310, %312, %cst_320 {dimension_numbers = #tpu.dot_dimension_numbers<[1], [0], [0], [1], [0, 0, 1, 1], [], []>} : vector<8x28xbf16>, vector<28x112xbf16>, vector<8x112xf32> -> vector<8x112xf32>
    %314 = arith.addf %308, %313 : vector<8x112xf32>
    %c17_321 = arith.constant 17 : index
    %c0_322 = arith.constant 0 : index
    %c0_323 = arith.constant 0 : index
    %315 = vector.load %arg1[%c17_321, %c0_322, %c0_323] : memref<32x8x28xbf16, #tpu.memory_space<vmem>>, vector<1x8x28xbf16>
    %316 = vector.shape_cast %315 : vector<1x8x28xbf16> to vector<8x28xbf16>
    %c3_324 = arith.constant 3 : index
    %c0_325 = arith.constant 0 : index
    %c0_326 = arith.constant 0 : index
    %317 = vector.load %arg2[%c3_324, %c0_325, %c0_326] : memref<5x28x112xbf16, #tpu.memory_space<vmem>>, vector<1x28x112xbf16>
    %318 = vector.shape_cast %317 : vector<1x28x112xbf16> to vector<28x112xbf16>
    %cst_327 = arith.constant dense<0.000000e+00> : vector<8x112xf32>
    %319 = tpu.matmul %316, %318, %cst_327 {dimension_numbers = #tpu.dot_dimension_numbers<[1], [0], [0], [1], [0, 0, 1, 1], [], []>} : vector<8x28xbf16>, vector<28x112xbf16>, vector<8x112xf32> -> vector<8x112xf32>
    %320 = arith.addf %314, %319 : vector<8x112xf32>
    %c18 = arith.constant 18 : index
    %c0_328 = arith.constant 0 : index
    %c0_329 = arith.constant 0 : index
    %321 = vector.load %arg1[%c18, %c0_328, %c0_329] : memref<32x8x28xbf16, #tpu.memory_space<vmem>>, vector<1x8x28xbf16>
    %322 = vector.shape_cast %321 : vector<1x8x28xbf16> to vector<8x28xbf16>
    %c4_330 = arith.constant 4 : index
    %c0_331 = arith.constant 0 : index
    %c0_332 = arith.constant 0 : index
    %323 = vector.load %arg2[%c4_330, %c0_331, %c0_332] : memref<5x28x112xbf16, #tpu.memory_space<vmem>>, vector<1x28x112xbf16>
    %324 = vector.shape_cast %323 : vector<1x28x112xbf16> to vector<28x112xbf16>
    %cst_333 = arith.constant dense<0.000000e+00> : vector<8x112xf32>
    %325 = tpu.matmul %322, %324, %cst_333 {dimension_numbers = #tpu.dot_dimension_numbers<[1], [0], [0], [1], [0, 0, 1, 1], [], []>} : vector<8x28xbf16>, vector<28x112xbf16>, vector<8x112xf32> -> vector<8x112xf32>
    %326 = arith.addf %320, %325 : vector<8x112xf32>
    %c0_334 = arith.constant 0 : index
    %c0_335 = arith.constant 0 : index
    %327 = vector.load %arg3[%c0_334, %c0_335] : memref<1x112xf32, #tpu.memory_space<vmem>>, vector<1x112xf32>
    %328 = vector.broadcast %327 : vector<1x112xf32> to vector<8x112xf32>
    %329 = arith.addf %326, %328 : vector<8x112xf32>
    %cst_336 = arith.constant 0.000000e+00 : f32
    %330 = vector.broadcast %cst_336 : f32 to vector<8x112xf32>
    %331 = arith.maximumf %329, %330 : vector<8x112xf32>
    %332 = arith.truncf %331 : vector<8x112xf32> to vector<8x112xbf16>
    %c9_337 = arith.constant 9 : index
    %c0_338 = arith.constant 0 : index
    %c0_339 = arith.constant 0 : index
    %333 = vector.load %arg11[%c9_337, %c0_338, %c0_339] : memref<18x8x112xbf16, #tpu.memory_space<vmem>>, vector<1x8x112xbf16>
    %334 = vector.shape_cast %333 : vector<1x8x112xbf16> to vector<8x112xbf16>
    %335 = vector.shape_cast %332 : vector<8x112xbf16> to vector<1x8x112xbf16>
    tpu.vector_store %arg11[%c9_337, %c0_338, %c0_339], %335 {strides = array<i32>} : memref<18x8x112xbf16, #tpu.memory_space<vmem>>, vector<1x8x112xbf16>,
    %c16_340 = arith.constant 16 : index
    %c0_341 = arith.constant 0 : index
    %c0_342 = arith.constant 0 : index
    %336 = vector.load %arg1[%c16_340, %c0_341, %c0_342] : memref<32x8x28xbf16, #tpu.memory_space<vmem>>, vector<1x8x28xbf16>
    %337 = vector.shape_cast %336 : vector<1x8x28xbf16> to vector<8x28xbf16>
    %c0_343 = arith.constant 0 : index
    %c0_344 = arith.constant 0 : index
    %c0_345 = arith.constant 0 : index
    %338 = vector.load %arg2[%c0_343, %c0_344, %c0_345] : memref<5x28x112xbf16, #tpu.memory_space<vmem>>, vector<1x28x112xbf16>
    %339 = vector.shape_cast %338 : vector<1x28x112xbf16> to vector<28x112xbf16>
    %cst_346 = arith.constant dense<0.000000e+00> : vector<8x112xf32>
    %340 = tpu.matmul %337, %339, %cst_346 {dimension_numbers = #tpu.dot_dimension_numbers<[1], [0], [0], [1], [0, 0, 1, 1], [], []>} : vector<8x28xbf16>, vector<28x112xbf16>, vector<8x112xf32> -> vector<8x112xf32>
    %c17_347 = arith.constant 17 : index
    %c0_348 = arith.constant 0 : index
    %c0_349 = arith.constant 0 : index
    %341 = vector.load %arg1[%c17_347, %c0_348, %c0_349] : memref<32x8x28xbf16, #tpu.memory_space<vmem>>, vector<1x8x28xbf16>
    %342 = vector.shape_cast %341 : vector<1x8x28xbf16> to vector<8x28xbf16>
    %c1_350 = arith.constant 1 : index
    %c0_351 = arith.constant 0 : index
    %c0_352 = arith.constant 0 : index
    %343 = vector.load %arg2[%c1_350, %c0_351, %c0_352] : memref<5x28x112xbf16, #tpu.memory_space<vmem>>, vector<1x28x112xbf16>
    %344 = vector.shape_cast %343 : vector<1x28x112xbf16> to vector<28x112xbf16>
    %cst_353 = arith.constant dense<0.000000e+00> : vector<8x112xf32>
    %345 = tpu.matmul %342, %344, %cst_353 {dimension_numbers = #tpu.dot_dimension_numbers<[1], [0], [0], [1], [0, 0, 1, 1], [], []>} : vector<8x28xbf16>, vector<28x112xbf16>, vector<8x112xf32> -> vector<8x112xf32>
    %346 = arith.addf %340, %345 : vector<8x112xf32>
    %c18_354 = arith.constant 18 : index
    %c0_355 = arith.constant 0 : index
    %c0_356 = arith.constant 0 : index
    %347 = vector.load %arg1[%c18_354, %c0_355, %c0_356] : memref<32x8x28xbf16, #tpu.memory_space<vmem>>, vector<1x8x28xbf16>
    %348 = vector.shape_cast %347 : vector<1x8x28xbf16> to vector<8x28xbf16>
    %c2_357 = arith.constant 2 : index
    %c0_358 = arith.constant 0 : index
    %c0_359 = arith.constant 0 : index
    %349 = vector.load %arg2[%c2_357, %c0_358, %c0_359] : memref<5x28x112xbf16, #tpu.memory_space<vmem>>, vector<1x28x112xbf16>
    %350 = vector.shape_cast %349 : vector<1x28x112xbf16> to vector<28x112xbf16>
    %cst_360 = arith.constant dense<0.000000e+00> : vector<8x112xf32>
    %351 = tpu.matmul %348, %350, %cst_360 {dimension_numbers = #tpu.dot_dimension_numbers<[1], [0], [0], [1], [0, 0, 1, 1], [], []>} : vector<8x28xbf16>, vector<28x112xbf16>, vector<8x112xf32> -> vector<8x112xf32>
    %352 = arith.addf %346, %351 : vector<8x112xf32>
    %c19 = arith.constant 19 : index
    %c0_361 = arith.constant 0 : index
    %c0_362 = arith.constant 0 : index
    %353 = vector.load %arg1[%c19, %c0_361, %c0_362] : memref<32x8x28xbf16, #tpu.memory_space<vmem>>, vector<1x8x28xbf16>
    %354 = vector.shape_cast %353 : vector<1x8x28xbf16> to vector<8x28xbf16>
    %c3_363 = arith.constant 3 : index
    %c0_364 = arith.constant 0 : index
    %c0_365 = arith.constant 0 : index
    %355 = vector.load %arg2[%c3_363, %c0_364, %c0_365] : memref<5x28x112xbf16, #tpu.memory_space<vmem>>, vector<1x28x112xbf16>
    %356 = vector.shape_cast %355 : vector<1x28x112xbf16> to vector<28x112xbf16>
    %cst_366 = arith.constant dense<0.000000e+00> : vector<8x112xf32>
    %357 = tpu.matmul %354, %356, %cst_366 {dimension_numbers = #tpu.dot_dimension_numbers<[1], [0], [0], [1], [0, 0, 1, 1], [], []>} : vector<8x28xbf16>, vector<28x112xbf16>, vector<8x112xf32> -> vector<8x112xf32>
    %358 = arith.addf %352, %357 : vector<8x112xf32>
    %c20 = arith.constant 20 : index
    %c0_367 = arith.constant 0 : index
    %c0_368 = arith.constant 0 : index
    %359 = vector.load %arg1[%c20, %c0_367, %c0_368] : memref<32x8x28xbf16, #tpu.memory_space<vmem>>, vector<1x8x28xbf16>
    %360 = vector.shape_cast %359 : vector<1x8x28xbf16> to vector<8x28xbf16>
    %c4_369 = arith.constant 4 : index
    %c0_370 = arith.constant 0 : index
    %c0_371 = arith.constant 0 : index
    %361 = vector.load %arg2[%c4_369, %c0_370, %c0_371] : memref<5x28x112xbf16, #tpu.memory_space<vmem>>, vector<1x28x112xbf16>
    %362 = vector.shape_cast %361 : vector<1x28x112xbf16> to vector<28x112xbf16>
    %cst_372 = arith.constant dense<0.000000e+00> : vector<8x112xf32>
    %363 = tpu.matmul %360, %362, %cst_372 {dimension_numbers = #tpu.dot_dimension_numbers<[1], [0], [0], [1], [0, 0, 1, 1], [], []>} : vector<8x28xbf16>, vector<28x112xbf16>, vector<8x112xf32> -> vector<8x112xf32>
    %364 = arith.addf %358, %363 : vector<8x112xf32>
    %c0_373 = arith.constant 0 : index
    %c0_374 = arith.constant 0 : index
    %365 = vector.load %arg3[%c0_373, %c0_374] : memref<1x112xf32, #tpu.memory_space<vmem>>, vector<1x112xf32>
    %366 = vector.broadcast %365 : vector<1x112xf32> to vector<8x112xf32>
    %367 = arith.addf %364, %366 : vector<8x112xf32>
    %cst_375 = arith.constant 0.000000e+00 : f32
    %368 = vector.broadcast %cst_375 : f32 to vector<8x112xf32>
    %369 = arith.maximumf %367, %368 : vector<8x112xf32>
    %370 = arith.truncf %369 : vector<8x112xf32> to vector<8x112xbf16>
    %c10_376 = arith.constant 10 : index
    %c0_377 = arith.constant 0 : index
    %c0_378 = arith.constant 0 : index
    %371 = vector.load %arg11[%c10_376, %c0_377, %c0_378] : memref<18x8x112xbf16, #tpu.memory_space<vmem>>, vector<1x8x112xbf16>
    %372 = vector.shape_cast %371 : vector<1x8x112xbf16> to vector<8x112xbf16>
    %373 = vector.shape_cast %370 : vector<8x112xbf16> to vector<1x8x112xbf16>
    tpu.vector_store %arg11[%c10_376, %c0_377, %c0_378], %373 {strides = array<i32>} : memref<18x8x112xbf16, #tpu.memory_space<vmem>>, vector<1x8x112xbf16>,
    %c18_379 = arith.constant 18 : index
    %c0_380 = arith.constant 0 : index
    %c0_381 = arith.constant 0 : index
    %374 = vector.load %arg1[%c18_379, %c0_380, %c0_381] : memref<32x8x28xbf16, #tpu.memory_space<vmem>>, vector<1x8x28xbf16>
    %375 = vector.shape_cast %374 : vector<1x8x28xbf16> to vector<8x28xbf16>
    %c0_382 = arith.constant 0 : index
    %c0_383 = arith.constant 0 : index
    %c0_384 = arith.constant 0 : index
    %376 = vector.load %arg2[%c0_382, %c0_383, %c0_384] : memref<5x28x112xbf16, #tpu.memory_space<vmem>>, vector<1x28x112xbf16>
    %377 = vector.shape_cast %376 : vector<1x28x112xbf16> to vector<28x112xbf16>
    %cst_385 = arith.constant dense<0.000000e+00> : vector<8x112xf32>
    %378 = tpu.matmul %375, %377, %cst_385 {dimension_numbers = #tpu.dot_dimension_numbers<[1], [0], [0], [1], [0, 0, 1, 1], [], []>} : vector<8x28xbf16>, vector<28x112xbf16>, vector<8x112xf32> -> vector<8x112xf32>
    %c19_386 = arith.constant 19 : index
    %c0_387 = arith.constant 0 : index
    %c0_388 = arith.constant 0 : index
    %379 = vector.load %arg1[%c19_386, %c0_387, %c0_388] : memref<32x8x28xbf16, #tpu.memory_space<vmem>>, vector<1x8x28xbf16>
    %380 = vector.shape_cast %379 : vector<1x8x28xbf16> to vector<8x28xbf16>
    %c1_389 = arith.constant 1 : index
    %c0_390 = arith.constant 0 : index
    %c0_391 = arith.constant 0 : index
    %381 = vector.load %arg2[%c1_389, %c0_390, %c0_391] : memref<5x28x112xbf16, #tpu.memory_space<vmem>>, vector<1x28x112xbf16>
    %382 = vector.shape_cast %381 : vector<1x28x112xbf16> to vector<28x112xbf16>
    %cst_392 = arith.constant dense<0.000000e+00> : vector<8x112xf32>
    %383 = tpu.matmul %380, %382, %cst_392 {dimension_numbers = #tpu.dot_dimension_numbers<[1], [0], [0], [1], [0, 0, 1, 1], [], []>} : vector<8x28xbf16>, vector<28x112xbf16>, vector<8x112xf32> -> vector<8x112xf32>
    %384 = arith.addf %378, %383 : vector<8x112xf32>
    %c20_393 = arith.constant 20 : index
    %c0_394 = arith.constant 0 : index
    %c0_395 = arith.constant 0 : index
    %385 = vector.load %arg1[%c20_393, %c0_394, %c0_395] : memref<32x8x28xbf16, #tpu.memory_space<vmem>>, vector<1x8x28xbf16>
    %386 = vector.shape_cast %385 : vector<1x8x28xbf16> to vector<8x28xbf16>
    %c2_396 = arith.constant 2 : index
    %c0_397 = arith.constant 0 : index
    %c0_398 = arith.constant 0 : index
    %387 = vector.load %arg2[%c2_396, %c0_397, %c0_398] : memref<5x28x112xbf16, #tpu.memory_space<vmem>>, vector<1x28x112xbf16>
    %388 = vector.shape_cast %387 : vector<1x28x112xbf16> to vector<28x112xbf16>
    %cst_399 = arith.constant dense<0.000000e+00> : vector<8x112xf32>
    %389 = tpu.matmul %386, %388, %cst_399 {dimension_numbers = #tpu.dot_dimension_numbers<[1], [0], [0], [1], [0, 0, 1, 1], [], []>} : vector<8x28xbf16>, vector<28x112xbf16>, vector<8x112xf32> -> vector<8x112xf32>
    %390 = arith.addf %384, %389 : vector<8x112xf32>
    %c21 = arith.constant 21 : index
    %c0_400 = arith.constant 0 : index
    %c0_401 = arith.constant 0 : index
    %391 = vector.load %arg1[%c21, %c0_400, %c0_401] : memref<32x8x28xbf16, #tpu.memory_space<vmem>>, vector<1x8x28xbf16>
    %392 = vector.shape_cast %391 : vector<1x8x28xbf16> to vector<8x28xbf16>
    %c3_402 = arith.constant 3 : index
    %c0_403 = arith.constant 0 : index
    %c0_404 = arith.constant 0 : index
    %393 = vector.load %arg2[%c3_402, %c0_403, %c0_404] : memref<5x28x112xbf16, #tpu.memory_space<vmem>>, vector<1x28x112xbf16>
    %394 = vector.shape_cast %393 : vector<1x28x112xbf16> to vector<28x112xbf16>
    %cst_405 = arith.constant dense<0.000000e+00> : vector<8x112xf32>
    %395 = tpu.matmul %392, %394, %cst_405 {dimension_numbers = #tpu.dot_dimension_numbers<[1], [0], [0], [1], [0, 0, 1, 1], [], []>} : vector<8x28xbf16>, vector<28x112xbf16>, vector<8x112xf32> -> vector<8x112xf32>
    %396 = arith.addf %390, %395 : vector<8x112xf32>
    %c22 = arith.constant 22 : index
    %c0_406 = arith.constant 0 : index
    %c0_407 = arith.constant 0 : index
    %397 = vector.load %arg1[%c22, %c0_406, %c0_407] : memref<32x8x28xbf16, #tpu.memory_space<vmem>>, vector<1x8x28xbf16>
    %398 = vector.shape_cast %397 : vector<1x8x28xbf16> to vector<8x28xbf16>
    %c4_408 = arith.constant 4 : index
    %c0_409 = arith.constant 0 : index
    %c0_410 = arith.constant 0 : index
    %399 = vector.load %arg2[%c4_408, %c0_409, %c0_410] : memref<5x28x112xbf16, #tpu.memory_space<vmem>>, vector<1x28x112xbf16>
    %400 = vector.shape_cast %399 : vector<1x28x112xbf16> to vector<28x112xbf16>
    %cst_411 = arith.constant dense<0.000000e+00> : vector<8x112xf32>
    %401 = tpu.matmul %398, %400, %cst_411 {dimension_numbers = #tpu.dot_dimension_numbers<[1], [0], [0], [1], [0, 0, 1, 1], [], []>} : vector<8x28xbf16>, vector<28x112xbf16>, vector<8x112xf32> -> vector<8x112xf32>
    %402 = arith.addf %396, %401 : vector<8x112xf32>
    %c0_412 = arith.constant 0 : index
    %c0_413 = arith.constant 0 : index
    %403 = vector.load %arg3[%c0_412, %c0_413] : memref<1x112xf32, #tpu.memory_space<vmem>>, vector<1x112xf32>
    %404 = vector.broadcast %403 : vector<1x112xf32> to vector<8x112xf32>
    %405 = arith.addf %402, %404 : vector<8x112xf32>
    %cst_414 = arith.constant 0.000000e+00 : f32
    %406 = vector.broadcast %cst_414 : f32 to vector<8x112xf32>
    %407 = arith.maximumf %405, %406 : vector<8x112xf32>
    %408 = arith.truncf %407 : vector<8x112xf32> to vector<8x112xbf16>
    %c11_415 = arith.constant 11 : index
    %c0_416 = arith.constant 0 : index
    %c0_417 = arith.constant 0 : index
    %409 = vector.load %arg11[%c11_415, %c0_416, %c0_417] : memref<18x8x112xbf16, #tpu.memory_space<vmem>>, vector<1x8x112xbf16>
    %410 = vector.shape_cast %409 : vector<1x8x112xbf16> to vector<8x112xbf16>
    %411 = vector.shape_cast %408 : vector<8x112xbf16> to vector<1x8x112xbf16>
    tpu.vector_store %arg11[%c11_415, %c0_416, %c0_417], %411 {strides = array<i32>} : memref<18x8x112xbf16, #tpu.memory_space<vmem>>, vector<1x8x112xbf16>,
    %c20_418 = arith.constant 20 : index
    %c0_419 = arith.constant 0 : index
    %c0_420 = arith.constant 0 : index
    %412 = vector.load %arg1[%c20_418, %c0_419, %c0_420] : memref<32x8x28xbf16, #tpu.memory_space<vmem>>, vector<1x8x28xbf16>
    %413 = vector.shape_cast %412 : vector<1x8x28xbf16> to vector<8x28xbf16>
    %c0_421 = arith.constant 0 : index
    %c0_422 = arith.constant 0 : index
    %c0_423 = arith.constant 0 : index
    %414 = vector.load %arg2[%c0_421, %c0_422, %c0_423] : memref<5x28x112xbf16, #tpu.memory_space<vmem>>, vector<1x28x112xbf16>
    %415 = vector.shape_cast %414 : vector<1x28x112xbf16> to vector<28x112xbf16>
    %cst_424 = arith.constant dense<0.000000e+00> : vector<8x112xf32>
    %416 = tpu.matmul %413, %415, %cst_424 {dimension_numbers = #tpu.dot_dimension_numbers<[1], [0], [0], [1], [0, 0, 1, 1], [], []>} : vector<8x28xbf16>, vector<28x112xbf16>, vector<8x112xf32> -> vector<8x112xf32>
    %c21_425 = arith.constant 21 : index
    %c0_426 = arith.constant 0 : index
    %c0_427 = arith.constant 0 : index
    %417 = vector.load %arg1[%c21_425, %c0_426, %c0_427] : memref<32x8x28xbf16, #tpu.memory_space<vmem>>, vector<1x8x28xbf16>
    %418 = vector.shape_cast %417 : vector<1x8x28xbf16> to vector<8x28xbf16>
    %c1_428 = arith.constant 1 : index
    %c0_429 = arith.constant 0 : index
    %c0_430 = arith.constant 0 : index
    %419 = vector.load %arg2[%c1_428, %c0_429, %c0_430] : memref<5x28x112xbf16, #tpu.memory_space<vmem>>, vector<1x28x112xbf16>
    %420 = vector.shape_cast %419 : vector<1x28x112xbf16> to vector<28x112xbf16>
    %cst_431 = arith.constant dense<0.000000e+00> : vector<8x112xf32>
    %421 = tpu.matmul %418, %420, %cst_431 {dimension_numbers = #tpu.dot_dimension_numbers<[1], [0], [0], [1], [0, 0, 1, 1], [], []>} : vector<8x28xbf16>, vector<28x112xbf16>, vector<8x112xf32> -> vector<8x112xf32>
    %422 = arith.addf %416, %421 : vector<8x112xf32>
    %c22_432 = arith.constant 22 : index
    %c0_433 = arith.constant 0 : index
    %c0_434 = arith.constant 0 : index
    %423 = vector.load %arg1[%c22_432, %c0_433, %c0_434] : memref<32x8x28xbf16, #tpu.memory_space<vmem>>, vector<1x8x28xbf16>
    %424 = vector.shape_cast %423 : vector<1x8x28xbf16> to vector<8x28xbf16>
    %c2_435 = arith.constant 2 : index
    %c0_436 = arith.constant 0 : index
    %c0_437 = arith.constant 0 : index
    %425 = vector.load %arg2[%c2_435, %c0_436, %c0_437] : memref<5x28x112xbf16, #tpu.memory_space<vmem>>, vector<1x28x112xbf16>
    %426 = vector.shape_cast %425 : vector<1x28x112xbf16> to vector<28x112xbf16>
    %cst_438 = arith.constant dense<0.000000e+00> : vector<8x112xf32>
    %427 = tpu.matmul %424, %426, %cst_438 {dimension_numbers = #tpu.dot_dimension_numbers<[1], [0], [0], [1], [0, 0, 1, 1], [], []>} : vector<8x28xbf16>, vector<28x112xbf16>, vector<8x112xf32> -> vector<8x112xf32>
    %428 = arith.addf %422, %427 : vector<8x112xf32>
    %c23 = arith.constant 23 : index
    %c0_439 = arith.constant 0 : index
    %c0_440 = arith.constant 0 : index
    %429 = vector.load %arg1[%c23, %c0_439, %c0_440] : memref<32x8x28xbf16, #tpu.memory_space<vmem>>, vector<1x8x28xbf16>
    %430 = vector.shape_cast %429 : vector<1x8x28xbf16> to vector<8x28xbf16>
    %c3_441 = arith.constant 3 : index
    %c0_442 = arith.constant 0 : index
    %c0_443 = arith.constant 0 : index
    %431 = vector.load %arg2[%c3_441, %c0_442, %c0_443] : memref<5x28x112xbf16, #tpu.memory_space<vmem>>, vector<1x28x112xbf16>
    %432 = vector.shape_cast %431 : vector<1x28x112xbf16> to vector<28x112xbf16>
    %cst_444 = arith.constant dense<0.000000e+00> : vector<8x112xf32>
    %433 = tpu.matmul %430, %432, %cst_444 {dimension_numbers = #tpu.dot_dimension_numbers<[1], [0], [0], [1], [0, 0, 1, 1], [], []>} : vector<8x28xbf16>, vector<28x112xbf16>, vector<8x112xf32> -> vector<8x112xf32>
    %434 = arith.addf %428, %433 : vector<8x112xf32>
    %c24 = arith.constant 24 : index
    %c0_445 = arith.constant 0 : index
    %c0_446 = arith.constant 0 : index
    %435 = vector.load %arg1[%c24, %c0_445, %c0_446] : memref<32x8x28xbf16, #tpu.memory_space<vmem>>, vector<1x8x28xbf16>
    %436 = vector.shape_cast %435 : vector<1x8x28xbf16> to vector<8x28xbf16>
    %c4_447 = arith.constant 4 : index
    %c0_448 = arith.constant 0 : index
    %c0_449 = arith.constant 0 : index
    %437 = vector.load %arg2[%c4_447, %c0_448, %c0_449] : memref<5x28x112xbf16, #tpu.memory_space<vmem>>, vector<1x28x112xbf16>
    %438 = vector.shape_cast %437 : vector<1x28x112xbf16> to vector<28x112xbf16>
    %cst_450 = arith.constant dense<0.000000e+00> : vector<8x112xf32>
    %439 = tpu.matmul %436, %438, %cst_450 {dimension_numbers = #tpu.dot_dimension_numbers<[1], [0], [0], [1], [0, 0, 1, 1], [], []>} : vector<8x28xbf16>, vector<28x112xbf16>, vector<8x112xf32> -> vector<8x112xf32>
    %440 = arith.addf %434, %439 : vector<8x112xf32>
    %c0_451 = arith.constant 0 : index
    %c0_452 = arith.constant 0 : index
    %441 = vector.load %arg3[%c0_451, %c0_452] : memref<1x112xf32, #tpu.memory_space<vmem>>, vector<1x112xf32>
    %442 = vector.broadcast %441 : vector<1x112xf32> to vector<8x112xf32>
    %443 = arith.addf %440, %442 : vector<8x112xf32>
    %cst_453 = arith.constant 0.000000e+00 : f32
    %444 = vector.broadcast %cst_453 : f32 to vector<8x112xf32>
    %445 = arith.maximumf %443, %444 : vector<8x112xf32>
    %446 = arith.truncf %445 : vector<8x112xf32> to vector<8x112xbf16>
    %c12_454 = arith.constant 12 : index
    %c0_455 = arith.constant 0 : index
    %c0_456 = arith.constant 0 : index
    %447 = vector.load %arg11[%c12_454, %c0_455, %c0_456] : memref<18x8x112xbf16, #tpu.memory_space<vmem>>, vector<1x8x112xbf16>
    %448 = vector.shape_cast %447 : vector<1x8x112xbf16> to vector<8x112xbf16>
    %449 = vector.shape_cast %446 : vector<8x112xbf16> to vector<1x8x112xbf16>
    tpu.vector_store %arg11[%c12_454, %c0_455, %c0_456], %449 {strides = array<i32>} : memref<18x8x112xbf16, #tpu.memory_space<vmem>>, vector<1x8x112xbf16>,
    %c22_457 = arith.constant 22 : index
    %c0_458 = arith.constant 0 : index
    %c0_459 = arith.constant 0 : index
    %450 = vector.load %arg1[%c22_457, %c0_458, %c0_459] : memref<32x8x28xbf16, #tpu.memory_space<vmem>>, vector<1x8x28xbf16>
    %451 = vector.shape_cast %450 : vector<1x8x28xbf16> to vector<8x28xbf16>
    %c0_460 = arith.constant 0 : index
    %c0_461 = arith.constant 0 : index
    %c0_462 = arith.constant 0 : index
    %452 = vector.load %arg2[%c0_460, %c0_461, %c0_462] : memref<5x28x112xbf16, #tpu.memory_space<vmem>>, vector<1x28x112xbf16>
    %453 = vector.shape_cast %452 : vector<1x28x112xbf16> to vector<28x112xbf16>
    %cst_463 = arith.constant dense<0.000000e+00> : vector<8x112xf32>
    %454 = tpu.matmul %451, %453, %cst_463 {dimension_numbers = #tpu.dot_dimension_numbers<[1], [0], [0], [1], [0, 0, 1, 1], [], []>} : vector<8x28xbf16>, vector<28x112xbf16>, vector<8x112xf32> -> vector<8x112xf32>
    %c23_464 = arith.constant 23 : index
    %c0_465 = arith.constant 0 : index
    %c0_466 = arith.constant 0 : index
    %455 = vector.load %arg1[%c23_464, %c0_465, %c0_466] : memref<32x8x28xbf16, #tpu.memory_space<vmem>>, vector<1x8x28xbf16>
    %456 = vector.shape_cast %455 : vector<1x8x28xbf16> to vector<8x28xbf16>
    %c1_467 = arith.constant 1 : index
    %c0_468 = arith.constant 0 : index
    %c0_469 = arith.constant 0 : index
    %457 = vector.load %arg2[%c1_467, %c0_468, %c0_469] : memref<5x28x112xbf16, #tpu.memory_space<vmem>>, vector<1x28x112xbf16>
    %458 = vector.shape_cast %457 : vector<1x28x112xbf16> to vector<28x112xbf16>
    %cst_470 = arith.constant dense<0.000000e+00> : vector<8x112xf32>
    %459 = tpu.matmul %456, %458, %cst_470 {dimension_numbers = #tpu.dot_dimension_numbers<[1], [0], [0], [1], [0, 0, 1, 1], [], []>} : vector<8x28xbf16>, vector<28x112xbf16>, vector<8x112xf32> -> vector<8x112xf32>
    %460 = arith.addf %454, %459 : vector<8x112xf32>
    %c24_471 = arith.constant 24 : index
    %c0_472 = arith.constant 0 : index
    %c0_473 = arith.constant 0 : index
    %461 = vector.load %arg1[%c24_471, %c0_472, %c0_473] : memref<32x8x28xbf16, #tpu.memory_space<vmem>>, vector<1x8x28xbf16>
    %462 = vector.shape_cast %461 : vector<1x8x28xbf16> to vector<8x28xbf16>
    %c2_474 = arith.constant 2 : index
    %c0_475 = arith.constant 0 : index
    %c0_476 = arith.constant 0 : index
    %463 = vector.load %arg2[%c2_474, %c0_475, %c0_476] : memref<5x28x112xbf16, #tpu.memory_space<vmem>>, vector<1x28x112xbf16>
    %464 = vector.shape_cast %463 : vector<1x28x112xbf16> to vector<28x112xbf16>
    %cst_477 = arith.constant dense<0.000000e+00> : vector<8x112xf32>
    %465 = tpu.matmul %462, %464, %cst_477 {dimension_numbers = #tpu.dot_dimension_numbers<[1], [0], [0], [1], [0, 0, 1, 1], [], []>} : vector<8x28xbf16>, vector<28x112xbf16>, vector<8x112xf32> -> vector<8x112xf32>
    %466 = arith.addf %460, %465 : vector<8x112xf32>
    %c25 = arith.constant 25 : index
    %c0_478 = arith.constant 0 : index
    %c0_479 = arith.constant 0 : index
    %467 = vector.load %arg1[%c25, %c0_478, %c0_479] : memref<32x8x28xbf16, #tpu.memory_space<vmem>>, vector<1x8x28xbf16>
    %468 = vector.shape_cast %467 : vector<1x8x28xbf16> to vector<8x28xbf16>
    %c3_480 = arith.constant 3 : index
    %c0_481 = arith.constant 0 : index
    %c0_482 = arith.constant 0 : index
    %469 = vector.load %arg2[%c3_480, %c0_481, %c0_482] : memref<5x28x112xbf16, #tpu.memory_space<vmem>>, vector<1x28x112xbf16>
    %470 = vector.shape_cast %469 : vector<1x28x112xbf16> to vector<28x112xbf16>
    %cst_483 = arith.constant dense<0.000000e+00> : vector<8x112xf32>
    %471 = tpu.matmul %468, %470, %cst_483 {dimension_numbers = #tpu.dot_dimension_numbers<[1], [0], [0], [1], [0, 0, 1, 1], [], []>} : vector<8x28xbf16>, vector<28x112xbf16>, vector<8x112xf32> -> vector<8x112xf32>
    %472 = arith.addf %466, %471 : vector<8x112xf32>
    %c26 = arith.constant 26 : index
    %c0_484 = arith.constant 0 : index
    %c0_485 = arith.constant 0 : index
    %473 = vector.load %arg1[%c26, %c0_484, %c0_485] : memref<32x8x28xbf16, #tpu.memory_space<vmem>>, vector<1x8x28xbf16>
    %474 = vector.shape_cast %473 : vector<1x8x28xbf16> to vector<8x28xbf16>
    %c4_486 = arith.constant 4 : index
    %c0_487 = arith.constant 0 : index
    %c0_488 = arith.constant 0 : index
    %475 = vector.load %arg2[%c4_486, %c0_487, %c0_488] : memref<5x28x112xbf16, #tpu.memory_space<vmem>>, vector<1x28x112xbf16>
    %476 = vector.shape_cast %475 : vector<1x28x112xbf16> to vector<28x112xbf16>
    %cst_489 = arith.constant dense<0.000000e+00> : vector<8x112xf32>
    %477 = tpu.matmul %474, %476, %cst_489 {dimension_numbers = #tpu.dot_dimension_numbers<[1], [0], [0], [1], [0, 0, 1, 1], [], []>} : vector<8x28xbf16>, vector<28x112xbf16>, vector<8x112xf32> -> vector<8x112xf32>
    %478 = arith.addf %472, %477 : vector<8x112xf32>
    %c0_490 = arith.constant 0 : index
    %c0_491 = arith.constant 0 : index
    %479 = vector.load %arg3[%c0_490, %c0_491] : memref<1x112xf32, #tpu.memory_space<vmem>>, vector<1x112xf32>
    %480 = vector.broadcast %479 : vector<1x112xf32> to vector<8x112xf32>
    %481 = arith.addf %478, %480 : vector<8x112xf32>
    %cst_492 = arith.constant 0.000000e+00 : f32
    %482 = vector.broadcast %cst_492 : f32 to vector<8x112xf32>
    %483 = arith.maximumf %481, %482 : vector<8x112xf32>
    %484 = arith.truncf %483 : vector<8x112xf32> to vector<8x112xbf16>
    %c13_493 = arith.constant 13 : index
    %c0_494 = arith.constant 0 : index
    %c0_495 = arith.constant 0 : index
    %485 = vector.load %arg11[%c13_493, %c0_494, %c0_495] : memref<18x8x112xbf16, #tpu.memory_space<vmem>>, vector<1x8x112xbf16>
    %486 = vector.shape_cast %485 : vector<1x8x112xbf16> to vector<8x112xbf16>
    %487 = vector.shape_cast %484 : vector<8x112xbf16> to vector<1x8x112xbf16>
    tpu.vector_store %arg11[%c13_493, %c0_494, %c0_495], %487 {strides = array<i32>} : memref<18x8x112xbf16, #tpu.memory_space<vmem>>, vector<1x8x112xbf16>,
    %c24_496 = arith.constant 24 : index
    %c0_497 = arith.constant 0 : index
    %c0_498 = arith.constant 0 : index
    %488 = vector.load %arg1[%c24_496, %c0_497, %c0_498] : memref<32x8x28xbf16, #tpu.memory_space<vmem>>, vector<1x8x28xbf16>
    %489 = vector.shape_cast %488 : vector<1x8x28xbf16> to vector<8x28xbf16>
    %c0_499 = arith.constant 0 : index
    %c0_500 = arith.constant 0 : index
    %c0_501 = arith.constant 0 : index
    %490 = vector.load %arg2[%c0_499, %c0_500, %c0_501] : memref<5x28x112xbf16, #tpu.memory_space<vmem>>, vector<1x28x112xbf16>
    %491 = vector.shape_cast %490 : vector<1x28x112xbf16> to vector<28x112xbf16>
    %cst_502 = arith.constant dense<0.000000e+00> : vector<8x112xf32>
    %492 = tpu.matmul %489, %491, %cst_502 {dimension_numbers = #tpu.dot_dimension_numbers<[1], [0], [0], [1], [0, 0, 1, 1], [], []>} : vector<8x28xbf16>, vector<28x112xbf16>, vector<8x112xf32> -> vector<8x112xf32>
    %c25_503 = arith.constant 25 : index
    %c0_504 = arith.constant 0 : index
    %c0_505 = arith.constant 0 : index
    %493 = vector.load %arg1[%c25_503, %c0_504, %c0_505] : memref<32x8x28xbf16, #tpu.memory_space<vmem>>, vector<1x8x28xbf16>
    %494 = vector.shape_cast %493 : vector<1x8x28xbf16> to vector<8x28xbf16>
    %c1_506 = arith.constant 1 : index
    %c0_507 = arith.constant 0 : index
    %c0_508 = arith.constant 0 : index
    %495 = vector.load %arg2[%c1_506, %c0_507, %c0_508] : memref<5x28x112xbf16, #tpu.memory_space<vmem>>, vector<1x28x112xbf16>
    %496 = vector.shape_cast %495 : vector<1x28x112xbf16> to vector<28x112xbf16>
    %cst_509 = arith.constant dense<0.000000e+00> : vector<8x112xf32>
    %497 = tpu.matmul %494, %496, %cst_509 {dimension_numbers = #tpu.dot_dimension_numbers<[1], [0], [0], [1], [0, 0, 1, 1], [], []>} : vector<8x28xbf16>, vector<28x112xbf16>, vector<8x112xf32> -> vector<8x112xf32>
    %498 = arith.addf %492, %497 : vector<8x112xf32>
    %c26_510 = arith.constant 26 : index
    %c0_511 = arith.constant 0 : index
    %c0_512 = arith.constant 0 : index
    %499 = vector.load %arg1[%c26_510, %c0_511, %c0_512] : memref<32x8x28xbf16, #tpu.memory_space<vmem>>, vector<1x8x28xbf16>
    %500 = vector.shape_cast %499 : vector<1x8x28xbf16> to vector<8x28xbf16>
    %c2_513 = arith.constant 2 : index
    %c0_514 = arith.constant 0 : index
    %c0_515 = arith.constant 0 : index
    %501 = vector.load %arg2[%c2_513, %c0_514, %c0_515] : memref<5x28x112xbf16, #tpu.memory_space<vmem>>, vector<1x28x112xbf16>
    %502 = vector.shape_cast %501 : vector<1x28x112xbf16> to vector<28x112xbf16>
    %cst_516 = arith.constant dense<0.000000e+00> : vector<8x112xf32>
    %503 = tpu.matmul %500, %502, %cst_516 {dimension_numbers = #tpu.dot_dimension_numbers<[1], [0], [0], [1], [0, 0, 1, 1], [], []>} : vector<8x28xbf16>, vector<28x112xbf16>, vector<8x112xf32> -> vector<8x112xf32>
    %504 = arith.addf %498, %503 : vector<8x112xf32>
    %c27 = arith.constant 27 : index
    %c0_517 = arith.constant 0 : index
    %c0_518 = arith.constant 0 : index
    %505 = vector.load %arg1[%c27, %c0_517, %c0_518] : memref<32x8x28xbf16, #tpu.memory_space<vmem>>, vector<1x8x28xbf16>
    %506 = vector.shape_cast %505 : vector<1x8x28xbf16> to vector<8x28xbf16>
    %c3_519 = arith.constant 3 : index
    %c0_520 = arith.constant 0 : index
    %c0_521 = arith.constant 0 : index
    %507 = vector.load %arg2[%c3_519, %c0_520, %c0_521] : memref<5x28x112xbf16, #tpu.memory_space<vmem>>, vector<1x28x112xbf16>
    %508 = vector.shape_cast %507 : vector<1x28x112xbf16> to vector<28x112xbf16>
    %cst_522 = arith.constant dense<0.000000e+00> : vector<8x112xf32>
    %509 = tpu.matmul %506, %508, %cst_522 {dimension_numbers = #tpu.dot_dimension_numbers<[1], [0], [0], [1], [0, 0, 1, 1], [], []>} : vector<8x28xbf16>, vector<28x112xbf16>, vector<8x112xf32> -> vector<8x112xf32>
    %510 = arith.addf %504, %509 : vector<8x112xf32>
    %c28 = arith.constant 28 : index
    %c0_523 = arith.constant 0 : index
    %c0_524 = arith.constant 0 : index
    %511 = vector.load %arg1[%c28, %c0_523, %c0_524] : memref<32x8x28xbf16, #tpu.memory_space<vmem>>, vector<1x8x28xbf16>
    %512 = vector.shape_cast %511 : vector<1x8x28xbf16> to vector<8x28xbf16>
    %c4_525 = arith.constant 4 : index
    %c0_526 = arith.constant 0 : index
    %c0_527 = arith.constant 0 : index
    %513 = vector.load %arg2[%c4_525, %c0_526, %c0_527] : memref<5x28x112xbf16, #tpu.memory_space<vmem>>, vector<1x28x112xbf16>
    %514 = vector.shape_cast %513 : vector<1x28x112xbf16> to vector<28x112xbf16>
    %cst_528 = arith.constant dense<0.000000e+00> : vector<8x112xf32>
    %515 = tpu.matmul %512, %514, %cst_528 {dimension_numbers = #tpu.dot_dimension_numbers<[1], [0], [0], [1], [0, 0, 1, 1], [], []>} : vector<8x28xbf16>, vector<28x112xbf16>, vector<8x112xf32> -> vector<8x112xf32>
    %516 = arith.addf %510, %515 : vector<8x112xf32>
    %c0_529 = arith.constant 0 : index
    %c0_530 = arith.constant 0 : index
    %517 = vector.load %arg3[%c0_529, %c0_530] : memref<1x112xf32, #tpu.memory_space<vmem>>, vector<1x112xf32>
    %518 = vector.broadcast %517 : vector<1x112xf32> to vector<8x112xf32>
    %519 = arith.addf %516, %518 : vector<8x112xf32>
    %cst_531 = arith.constant 0.000000e+00 : f32
    %520 = vector.broadcast %cst_531 : f32 to vector<8x112xf32>
    %521 = arith.maximumf %519, %520 : vector<8x112xf32>
    %522 = arith.truncf %521 : vector<8x112xf32> to vector<8x112xbf16>
    %c14_532 = arith.constant 14 : index
    %c0_533 = arith.constant 0 : index
    %c0_534 = arith.constant 0 : index
    %523 = vector.load %arg11[%c14_532, %c0_533, %c0_534] : memref<18x8x112xbf16, #tpu.memory_space<vmem>>, vector<1x8x112xbf16>
    %524 = vector.shape_cast %523 : vector<1x8x112xbf16> to vector<8x112xbf16>
    %525 = vector.shape_cast %522 : vector<8x112xbf16> to vector<1x8x112xbf16>
    tpu.vector_store %arg11[%c14_532, %c0_533, %c0_534], %525 {strides = array<i32>} : memref<18x8x112xbf16, #tpu.memory_space<vmem>>, vector<1x8x112xbf16>,
    %c26_535 = arith.constant 26 : index
    %c0_536 = arith.constant 0 : index
    %c0_537 = arith.constant 0 : index
    %526 = vector.load %arg1[%c26_535, %c0_536, %c0_537] : memref<32x8x28xbf16, #tpu.memory_space<vmem>>, vector<1x8x28xbf16>
    %527 = vector.shape_cast %526 : vector<1x8x28xbf16> to vector<8x28xbf16>
    %c0_538 = arith.constant 0 : index
    %c0_539 = arith.constant 0 : index
    %c0_540 = arith.constant 0 : index
    %528 = vector.load %arg2[%c0_538, %c0_539, %c0_540] : memref<5x28x112xbf16, #tpu.memory_space<vmem>>, vector<1x28x112xbf16>
    %529 = vector.shape_cast %528 : vector<1x28x112xbf16> to vector<28x112xbf16>
    %cst_541 = arith.constant dense<0.000000e+00> : vector<8x112xf32>
    %530 = tpu.matmul %527, %529, %cst_541 {dimension_numbers = #tpu.dot_dimension_numbers<[1], [0], [0], [1], [0, 0, 1, 1], [], []>} : vector<8x28xbf16>, vector<28x112xbf16>, vector<8x112xf32> -> vector<8x112xf32>
    %c27_542 = arith.constant 27 : index
    %c0_543 = arith.constant 0 : index
    %c0_544 = arith.constant 0 : index
    %531 = vector.load %arg1[%c27_542, %c0_543, %c0_544] : memref<32x8x28xbf16, #tpu.memory_space<vmem>>, vector<1x8x28xbf16>
    %532 = vector.shape_cast %531 : vector<1x8x28xbf16> to vector<8x28xbf16>
    %c1_545 = arith.constant 1 : index
    %c0_546 = arith.constant 0 : index
    %c0_547 = arith.constant 0 : index
    %533 = vector.load %arg2[%c1_545, %c0_546, %c0_547] : memref<5x28x112xbf16, #tpu.memory_space<vmem>>, vector<1x28x112xbf16>
    %534 = vector.shape_cast %533 : vector<1x28x112xbf16> to vector<28x112xbf16>
    %cst_548 = arith.constant dense<0.000000e+00> : vector<8x112xf32>
    %535 = tpu.matmul %532, %534, %cst_548 {dimension_numbers = #tpu.dot_dimension_numbers<[1], [0], [0], [1], [0, 0, 1, 1], [], []>} : vector<8x28xbf16>, vector<28x112xbf16>, vector<8x112xf32> -> vector<8x112xf32>
    %536 = arith.addf %530, %535 : vector<8x112xf32>
    %c28_549 = arith.constant 28 : index
    %c0_550 = arith.constant 0 : index
    %c0_551 = arith.constant 0 : index
    %537 = vector.load %arg1[%c28_549, %c0_550, %c0_551] : memref<32x8x28xbf16, #tpu.memory_space<vmem>>, vector<1x8x28xbf16>
    %538 = vector.shape_cast %537 : vector<1x8x28xbf16> to vector<8x28xbf16>
    %c2_552 = arith.constant 2 : index
    %c0_553 = arith.constant 0 : index
    %c0_554 = arith.constant 0 : index
    %539 = vector.load %arg2[%c2_552, %c0_553, %c0_554] : memref<5x28x112xbf16, #tpu.memory_space<vmem>>, vector<1x28x112xbf16>
    %540 = vector.shape_cast %539 : vector<1x28x112xbf16> to vector<28x112xbf16>
    %cst_555 = arith.constant dense<0.000000e+00> : vector<8x112xf32>
    %541 = tpu.matmul %538, %540, %cst_555 {dimension_numbers = #tpu.dot_dimension_numbers<[1], [0], [0], [1], [0, 0, 1, 1], [], []>} : vector<8x28xbf16>, vector<28x112xbf16>, vector<8x112xf32> -> vector<8x112xf32>
    %542 = arith.addf %536, %541 : vector<8x112xf32>
    %c29 = arith.constant 29 : index
    %c0_556 = arith.constant 0 : index
    %c0_557 = arith.constant 0 : index
    %543 = vector.load %arg1[%c29, %c0_556, %c0_557] : memref<32x8x28xbf16, #tpu.memory_space<vmem>>, vector<1x8x28xbf16>
    %544 = vector.shape_cast %543 : vector<1x8x28xbf16> to vector<8x28xbf16>
    %c3_558 = arith.constant 3 : index
    %c0_559 = arith.constant 0 : index
    %c0_560 = arith.constant 0 : index
    %545 = vector.load %arg2[%c3_558, %c0_559, %c0_560] : memref<5x28x112xbf16, #tpu.memory_space<vmem>>, vector<1x28x112xbf16>
    %546 = vector.shape_cast %545 : vector<1x28x112xbf16> to vector<28x112xbf16>
    %cst_561 = arith.constant dense<0.000000e+00> : vector<8x112xf32>
    %547 = tpu.matmul %544, %546, %cst_561 {dimension_numbers = #tpu.dot_dimension_numbers<[1], [0], [0], [1], [0, 0, 1, 1], [], []>} : vector<8x28xbf16>, vector<28x112xbf16>, vector<8x112xf32> -> vector<8x112xf32>
    %548 = arith.addf %542, %547 : vector<8x112xf32>
    %c30 = arith.constant 30 : index
    %c0_562 = arith.constant 0 : index
    %c0_563 = arith.constant 0 : index
    %549 = vector.load %arg1[%c30, %c0_562, %c0_563] : memref<32x8x28xbf16, #tpu.memory_space<vmem>>, vector<1x8x28xbf16>
    %550 = vector.shape_cast %549 : vector<1x8x28xbf16> to vector<8x28xbf16>
    %c4_564 = arith.constant 4 : index
    %c0_565 = arith.constant 0 : index
    %c0_566 = arith.constant 0 : index
    %551 = vector.load %arg2[%c4_564, %c0_565, %c0_566] : memref<5x28x112xbf16, #tpu.memory_space<vmem>>, vector<1x28x112xbf16>
    %552 = vector.shape_cast %551 : vector<1x28x112xbf16> to vector<28x112xbf16>
    %cst_567 = arith.constant dense<0.000000e+00> : vector<8x112xf32>
    %553 = tpu.matmul %550, %552, %cst_567 {dimension_numbers = #tpu.dot_dimension_numbers<[1], [0], [0], [1], [0, 0, 1, 1], [], []>} : vector<8x28xbf16>, vector<28x112xbf16>, vector<8x112xf32> -> vector<8x112xf32>
    %554 = arith.addf %548, %553 : vector<8x112xf32>
    %c0_568 = arith.constant 0 : index
    %c0_569 = arith.constant 0 : index
    %555 = vector.load %arg3[%c0_568, %c0_569] : memref<1x112xf32, #tpu.memory_space<vmem>>, vector<1x112xf32>
    %556 = vector.broadcast %555 : vector<1x112xf32> to vector<8x112xf32>
    %557 = arith.addf %554, %556 : vector<8x112xf32>
    %cst_570 = arith.constant 0.000000e+00 : f32
    %558 = vector.broadcast %cst_570 : f32 to vector<8x112xf32>
    %559 = arith.maximumf %557, %558 : vector<8x112xf32>
    %560 = arith.truncf %559 : vector<8x112xf32> to vector<8x112xbf16>
    %c15_571 = arith.constant 15 : index
    %c0_572 = arith.constant 0 : index
    %c0_573 = arith.constant 0 : index
    %561 = vector.load %arg11[%c15_571, %c0_572, %c0_573] : memref<18x8x112xbf16, #tpu.memory_space<vmem>>, vector<1x8x112xbf16>
    %562 = vector.shape_cast %561 : vector<1x8x112xbf16> to vector<8x112xbf16>
    %563 = vector.shape_cast %560 : vector<8x112xbf16> to vector<1x8x112xbf16>
    tpu.vector_store %arg11[%c15_571, %c0_572, %c0_573], %563 {strides = array<i32>} : memref<18x8x112xbf16, #tpu.memory_space<vmem>>, vector<1x8x112xbf16>,
    %c0_574 = arith.constant 0 : index
    %c0_575 = arith.constant 0 : index
    %c0_576 = arith.constant 0 : index
    %564 = vector.load %arg11[%c0_574, %c0_575, %c0_576] : memref<18x8x112xbf16, #tpu.memory_space<vmem>>, vector<1x8x112xbf16>
    %565 = vector.shape_cast %564 : vector<1x8x112xbf16> to vector<8x112xbf16>
    %c0_577 = arith.constant 0 : index
    %c0_578 = arith.constant 0 : index
    %c0_579 = arith.constant 0 : index
    %566 = vector.load %arg4[%c0_577, %c0_578, %c0_579] : memref<5x112x112xbf16, #tpu.memory_space<vmem>>, vector<1x112x112xbf16>
    %567 = vector.shape_cast %566 : vector<1x112x112xbf16> to vector<112x112xbf16>
    %cst_580 = arith.constant dense<0.000000e+00> : vector<8x112xf32>
    %568 = tpu.matmul %565, %567, %cst_580 {dimension_numbers = #tpu.dot_dimension_numbers<[1], [0], [0], [1], [0, 0, 1, 1], [], []>} : vector<8x112xbf16>, vector<112x112xbf16>, vector<8x112xf32> -> vector<8x112xf32>
    %c1_581 = arith.constant 1 : index
    %c0_582 = arith.constant 0 : index
    %c0_583 = arith.constant 0 : index
    %569 = vector.load %arg11[%c1_581, %c0_582, %c0_583] : memref<18x8x112xbf16, #tpu.memory_space<vmem>>, vector<1x8x112xbf16>
    %570 = vector.shape_cast %569 : vector<1x8x112xbf16> to vector<8x112xbf16>
    %c1_584 = arith.constant 1 : index
    %c0_585 = arith.constant 0 : index
    %c0_586 = arith.constant 0 : index
    %571 = vector.load %arg4[%c1_584, %c0_585, %c0_586] : memref<5x112x112xbf16, #tpu.memory_space<vmem>>, vector<1x112x112xbf16>
    %572 = vector.shape_cast %571 : vector<1x112x112xbf16> to vector<112x112xbf16>
    %cst_587 = arith.constant dense<0.000000e+00> : vector<8x112xf32>
    %573 = tpu.matmul %570, %572, %cst_587 {dimension_numbers = #tpu.dot_dimension_numbers<[1], [0], [0], [1], [0, 0, 1, 1], [], []>} : vector<8x112xbf16>, vector<112x112xbf16>, vector<8x112xf32> -> vector<8x112xf32>
    %574 = arith.addf %568, %573 : vector<8x112xf32>
    %c2_588 = arith.constant 2 : index
    %c0_589 = arith.constant 0 : index
    %c0_590 = arith.constant 0 : index
    %575 = vector.load %arg11[%c2_588, %c0_589, %c0_590] : memref<18x8x112xbf16, #tpu.memory_space<vmem>>, vector<1x8x112xbf16>
    %576 = vector.shape_cast %575 : vector<1x8x112xbf16> to vector<8x112xbf16>
    %c2_591 = arith.constant 2 : index
    %c0_592 = arith.constant 0 : index
    %c0_593 = arith.constant 0 : index
    %577 = vector.load %arg4[%c2_591, %c0_592, %c0_593] : memref<5x112x112xbf16, #tpu.memory_space<vmem>>, vector<1x112x112xbf16>
    %578 = vector.shape_cast %577 : vector<1x112x112xbf16> to vector<112x112xbf16>
    %cst_594 = arith.constant dense<0.000000e+00> : vector<8x112xf32>
    %579 = tpu.matmul %576, %578, %cst_594 {dimension_numbers = #tpu.dot_dimension_numbers<[1], [0], [0], [1], [0, 0, 1, 1], [], []>} : vector<8x112xbf16>, vector<112x112xbf16>, vector<8x112xf32> -> vector<8x112xf32>
    %580 = arith.addf %574, %579 : vector<8x112xf32>
    %c3_595 = arith.constant 3 : index
    %c0_596 = arith.constant 0 : index
    %c0_597 = arith.constant 0 : index
    %581 = vector.load %arg11[%c3_595, %c0_596, %c0_597] : memref<18x8x112xbf16, #tpu.memory_space<vmem>>, vector<1x8x112xbf16>
    %582 = vector.shape_cast %581 : vector<1x8x112xbf16> to vector<8x112xbf16>
    %c3_598 = arith.constant 3 : index
    %c0_599 = arith.constant 0 : index
    %c0_600 = arith.constant 0 : index
    %583 = vector.load %arg4[%c3_598, %c0_599, %c0_600] : memref<5x112x112xbf16, #tpu.memory_space<vmem>>, vector<1x112x112xbf16>
    %584 = vector.shape_cast %583 : vector<1x112x112xbf16> to vector<112x112xbf16>
    %cst_601 = arith.constant dense<0.000000e+00> : vector<8x112xf32>
    %585 = tpu.matmul %582, %584, %cst_601 {dimension_numbers = #tpu.dot_dimension_numbers<[1], [0], [0], [1], [0, 0, 1, 1], [], []>} : vector<8x112xbf16>, vector<112x112xbf16>, vector<8x112xf32> -> vector<8x112xf32>
    %586 = arith.addf %580, %585 : vector<8x112xf32>
    %c4_602 = arith.constant 4 : index
    %c0_603 = arith.constant 0 : index
    %c0_604 = arith.constant 0 : index
    %587 = vector.load %arg11[%c4_602, %c0_603, %c0_604] : memref<18x8x112xbf16, #tpu.memory_space<vmem>>, vector<1x8x112xbf16>
    %588 = vector.shape_cast %587 : vector<1x8x112xbf16> to vector<8x112xbf16>
    %c4_605 = arith.constant 4 : index
    %c0_606 = arith.constant 0 : index
    %c0_607 = arith.constant 0 : index
    %589 = vector.load %arg4[%c4_605, %c0_606, %c0_607] : memref<5x112x112xbf16, #tpu.memory_space<vmem>>, vector<1x112x112xbf16>
    %590 = vector.shape_cast %589 : vector<1x112x112xbf16> to vector<112x112xbf16>
    %cst_608 = arith.constant dense<0.000000e+00> : vector<8x112xf32>
    %591 = tpu.matmul %588, %590, %cst_608 {dimension_numbers = #tpu.dot_dimension_numbers<[1], [0], [0], [1], [0, 0, 1, 1], [], []>} : vector<8x112xbf16>, vector<112x112xbf16>, vector<8x112xf32> -> vector<8x112xf32>
    %592 = arith.addf %586, %591 : vector<8x112xf32>
    %c0_609 = arith.constant 0 : index
    %c0_610 = arith.constant 0 : index
    %593 = vector.load %arg5[%c0_609, %c0_610] : memref<1x112xf32, #tpu.memory_space<vmem>>, vector<1x112xf32>
    %594 = vector.broadcast %593 : vector<1x112xf32> to vector<8x112xf32>
    %595 = arith.addf %592, %594 : vector<8x112xf32>
    %cst_611 = arith.constant 0.000000e+00 : f32
    %596 = vector.broadcast %cst_611 : f32 to vector<8x112xf32>
    %597 = arith.maximumf %595, %596 : vector<8x112xf32>
    %598 = arith.truncf %597 : vector<8x112xf32> to vector<8x112xbf16>
    %c2_612 = arith.constant 2 : index
    %c0_613 = arith.constant 0 : index
    %c0_614 = arith.constant 0 : index
    %599 = vector.load %arg12[%c2_612, %c0_613, %c0_614] : memref<11x8x112xbf16, #tpu.memory_space<vmem>>, vector<1x8x112xbf16>
    %600 = vector.shape_cast %599 : vector<1x8x112xbf16> to vector<8x112xbf16>
    %601 = vector.shape_cast %598 : vector<8x112xbf16> to vector<1x8x112xbf16>
    tpu.vector_store %arg12[%c2_612, %c0_613, %c0_614], %601 {strides = array<i32>} : memref<11x8x112xbf16, #tpu.memory_space<vmem>>, vector<1x8x112xbf16>,
    %c2_615 = arith.constant 2 : index
    %c0_616 = arith.constant 0 : index
    %c0_617 = arith.constant 0 : index
    %602 = vector.load %arg11[%c2_615, %c0_616, %c0_617] : memref<18x8x112xbf16, #tpu.memory_space<vmem>>, vector<1x8x112xbf16>
    %603 = vector.shape_cast %602 : vector<1x8x112xbf16> to vector<8x112xbf16>
    %c0_618 = arith.constant 0 : index
    %c0_619 = arith.constant 0 : index
    %c0_620 = arith.constant 0 : index
    %604 = vector.load %arg4[%c0_618, %c0_619, %c0_620] : memref<5x112x112xbf16, #tpu.memory_space<vmem>>, vector<1x112x112xbf16>
    %605 = vector.shape_cast %604 : vector<1x112x112xbf16> to vector<112x112xbf16>
    %cst_621 = arith.constant dense<0.000000e+00> : vector<8x112xf32>
    %606 = tpu.matmul %603, %605, %cst_621 {dimension_numbers = #tpu.dot_dimension_numbers<[1], [0], [0], [1], [0, 0, 1, 1], [], []>} : vector<8x112xbf16>, vector<112x112xbf16>, vector<8x112xf32> -> vector<8x112xf32>
    %c3_622 = arith.constant 3 : index
    %c0_623 = arith.constant 0 : index
    %c0_624 = arith.constant 0 : index
    %607 = vector.load %arg11[%c3_622, %c0_623, %c0_624] : memref<18x8x112xbf16, #tpu.memory_space<vmem>>, vector<1x8x112xbf16>
    %608 = vector.shape_cast %607 : vector<1x8x112xbf16> to vector<8x112xbf16>
    %c1_625 = arith.constant 1 : index
    %c0_626 = arith.constant 0 : index
    %c0_627 = arith.constant 0 : index
    %609 = vector.load %arg4[%c1_625, %c0_626, %c0_627] : memref<5x112x112xbf16, #tpu.memory_space<vmem>>, vector<1x112x112xbf16>
    %610 = vector.shape_cast %609 : vector<1x112x112xbf16> to vector<112x112xbf16>
    %cst_628 = arith.constant dense<0.000000e+00> : vector<8x112xf32>
    %611 = tpu.matmul %608, %610, %cst_628 {dimension_numbers = #tpu.dot_dimension_numbers<[1], [0], [0], [1], [0, 0, 1, 1], [], []>} : vector<8x112xbf16>, vector<112x112xbf16>, vector<8x112xf32> -> vector<8x112xf32>
    %612 = arith.addf %606, %611 : vector<8x112xf32>
    %c4_629 = arith.constant 4 : index
    %c0_630 = arith.constant 0 : index
    %c0_631 = arith.constant 0 : index
    %613 = vector.load %arg11[%c4_629, %c0_630, %c0_631] : memref<18x8x112xbf16, #tpu.memory_space<vmem>>, vector<1x8x112xbf16>
    %614 = vector.shape_cast %613 : vector<1x8x112xbf16> to vector<8x112xbf16>
    %c2_632 = arith.constant 2 : index
    %c0_633 = arith.constant 0 : index
    %c0_634 = arith.constant 0 : index
    %615 = vector.load %arg4[%c2_632, %c0_633, %c0_634] : memref<5x112x112xbf16, #tpu.memory_space<vmem>>, vector<1x112x112xbf16>
    %616 = vector.shape_cast %615 : vector<1x112x112xbf16> to vector<112x112xbf16>
    %cst_635 = arith.constant dense<0.000000e+00> : vector<8x112xf32>
    %617 = tpu.matmul %614, %616, %cst_635 {dimension_numbers = #tpu.dot_dimension_numbers<[1], [0], [0], [1], [0, 0, 1, 1], [], []>} : vector<8x112xbf16>, vector<112x112xbf16>, vector<8x112xf32> -> vector<8x112xf32>
    %618 = arith.addf %612, %617 : vector<8x112xf32>
    %c5_636 = arith.constant 5 : index
    %c0_637 = arith.constant 0 : index
    %c0_638 = arith.constant 0 : index
    %619 = vector.load %arg11[%c5_636, %c0_637, %c0_638] : memref<18x8x112xbf16, #tpu.memory_space<vmem>>, vector<1x8x112xbf16>
    %620 = vector.shape_cast %619 : vector<1x8x112xbf16> to vector<8x112xbf16>
    %c3_639 = arith.constant 3 : index
    %c0_640 = arith.constant 0 : index
    %c0_641 = arith.constant 0 : index
    %621 = vector.load %arg4[%c3_639, %c0_640, %c0_641] : memref<5x112x112xbf16, #tpu.memory_space<vmem>>, vector<1x112x112xbf16>
    %622 = vector.shape_cast %621 : vector<1x112x112xbf16> to vector<112x112xbf16>
    %cst_642 = arith.constant dense<0.000000e+00> : vector<8x112xf32>
    %623 = tpu.matmul %620, %622, %cst_642 {dimension_numbers = #tpu.dot_dimension_numbers<[1], [0], [0], [1], [0, 0, 1, 1], [], []>} : vector<8x112xbf16>, vector<112x112xbf16>, vector<8x112xf32> -> vector<8x112xf32>
    %624 = arith.addf %618, %623 : vector<8x112xf32>
    %c6_643 = arith.constant 6 : index
    %c0_644 = arith.constant 0 : index
    %c0_645 = arith.constant 0 : index
    %625 = vector.load %arg11[%c6_643, %c0_644, %c0_645] : memref<18x8x112xbf16, #tpu.memory_space<vmem>>, vector<1x8x112xbf16>
    %626 = vector.shape_cast %625 : vector<1x8x112xbf16> to vector<8x112xbf16>
    %c4_646 = arith.constant 4 : index
    %c0_647 = arith.constant 0 : index
    %c0_648 = arith.constant 0 : index
    %627 = vector.load %arg4[%c4_646, %c0_647, %c0_648] : memref<5x112x112xbf16, #tpu.memory_space<vmem>>, vector<1x112x112xbf16>
    %628 = vector.shape_cast %627 : vector<1x112x112xbf16> to vector<112x112xbf16>
    %cst_649 = arith.constant dense<0.000000e+00> : vector<8x112xf32>
    %629 = tpu.matmul %626, %628, %cst_649 {dimension_numbers = #tpu.dot_dimension_numbers<[1], [0], [0], [1], [0, 0, 1, 1], [], []>} : vector<8x112xbf16>, vector<112x112xbf16>, vector<8x112xf32> -> vector<8x112xf32>
    %630 = arith.addf %624, %629 : vector<8x112xf32>
    %c0_650 = arith.constant 0 : index
    %c0_651 = arith.constant 0 : index
    %631 = vector.load %arg5[%c0_650, %c0_651] : memref<1x112xf32, #tpu.memory_space<vmem>>, vector<1x112xf32>
    %632 = vector.broadcast %631 : vector<1x112xf32> to vector<8x112xf32>
    %633 = arith.addf %630, %632 : vector<8x112xf32>
    %cst_652 = arith.constant 0.000000e+00 : f32
    %634 = vector.broadcast %cst_652 : f32 to vector<8x112xf32>
    %635 = arith.maximumf %633, %634 : vector<8x112xf32>
    %636 = arith.truncf %635 : vector<8x112xf32> to vector<8x112xbf16>
    %c3_653 = arith.constant 3 : index
    %c0_654 = arith.constant 0 : index
    %c0_655 = arith.constant 0 : index
    %637 = vector.load %arg12[%c3_653, %c0_654, %c0_655] : memref<11x8x112xbf16, #tpu.memory_space<vmem>>, vector<1x8x112xbf16>
    %638 = vector.shape_cast %637 : vector<1x8x112xbf16> to vector<8x112xbf16>
    %639 = vector.shape_cast %636 : vector<8x112xbf16> to vector<1x8x112xbf16>
    tpu.vector_store %arg12[%c3_653, %c0_654, %c0_655], %639 {strides = array<i32>} : memref<11x8x112xbf16, #tpu.memory_space<vmem>>, vector<1x8x112xbf16>,
    %c4_656 = arith.constant 4 : index
    %c0_657 = arith.constant 0 : index
    %c0_658 = arith.constant 0 : index
    %640 = vector.load %arg11[%c4_656, %c0_657, %c0_658] : memref<18x8x112xbf16, #tpu.memory_space<vmem>>, vector<1x8x112xbf16>
    %641 = vector.shape_cast %640 : vector<1x8x112xbf16> to vector<8x112xbf16>
    %c0_659 = arith.constant 0 : index
    %c0_660 = arith.constant 0 : index
    %c0_661 = arith.constant 0 : index
    %642 = vector.load %arg4[%c0_659, %c0_660, %c0_661] : memref<5x112x112xbf16, #tpu.memory_space<vmem>>, vector<1x112x112xbf16>
    %643 = vector.shape_cast %642 : vector<1x112x112xbf16> to vector<112x112xbf16>
    %cst_662 = arith.constant dense<0.000000e+00> : vector<8x112xf32>
    %644 = tpu.matmul %641, %643, %cst_662 {dimension_numbers = #tpu.dot_dimension_numbers<[1], [0], [0], [1], [0, 0, 1, 1], [], []>} : vector<8x112xbf16>, vector<112x112xbf16>, vector<8x112xf32> -> vector<8x112xf32>
    %c5_663 = arith.constant 5 : index
    %c0_664 = arith.constant 0 : index
    %c0_665 = arith.constant 0 : index
    %645 = vector.load %arg11[%c5_663, %c0_664, %c0_665] : memref<18x8x112xbf16, #tpu.memory_space<vmem>>, vector<1x8x112xbf16>
    %646 = vector.shape_cast %645 : vector<1x8x112xbf16> to vector<8x112xbf16>
    %c1_666 = arith.constant 1 : index
    %c0_667 = arith.constant 0 : index
    %c0_668 = arith.constant 0 : index
    %647 = vector.load %arg4[%c1_666, %c0_667, %c0_668] : memref<5x112x112xbf16, #tpu.memory_space<vmem>>, vector<1x112x112xbf16>
    %648 = vector.shape_cast %647 : vector<1x112x112xbf16> to vector<112x112xbf16>
    %cst_669 = arith.constant dense<0.000000e+00> : vector<8x112xf32>
    %649 = tpu.matmul %646, %648, %cst_669 {dimension_numbers = #tpu.dot_dimension_numbers<[1], [0], [0], [1], [0, 0, 1, 1], [], []>} : vector<8x112xbf16>, vector<112x112xbf16>, vector<8x112xf32> -> vector<8x112xf32>
    %650 = arith.addf %644, %649 : vector<8x112xf32>
    %c6_670 = arith.constant 6 : index
    %c0_671 = arith.constant 0 : index
    %c0_672 = arith.constant 0 : index
    %651 = vector.load %arg11[%c6_670, %c0_671, %c0_672] : memref<18x8x112xbf16, #tpu.memory_space<vmem>>, vector<1x8x112xbf16>
    %652 = vector.shape_cast %651 : vector<1x8x112xbf16> to vector<8x112xbf16>
    %c2_673 = arith.constant 2 : index
    %c0_674 = arith.constant 0 : index
    %c0_675 = arith.constant 0 : index
    %653 = vector.load %arg4[%c2_673, %c0_674, %c0_675] : memref<5x112x112xbf16, #tpu.memory_space<vmem>>, vector<1x112x112xbf16>
    %654 = vector.shape_cast %653 : vector<1x112x112xbf16> to vector<112x112xbf16>
    %cst_676 = arith.constant dense<0.000000e+00> : vector<8x112xf32>
    %655 = tpu.matmul %652, %654, %cst_676 {dimension_numbers = #tpu.dot_dimension_numbers<[1], [0], [0], [1], [0, 0, 1, 1], [], []>} : vector<8x112xbf16>, vector<112x112xbf16>, vector<8x112xf32> -> vector<8x112xf32>
    %656 = arith.addf %650, %655 : vector<8x112xf32>
    %c7_677 = arith.constant 7 : index
    %c0_678 = arith.constant 0 : index
    %c0_679 = arith.constant 0 : index
    %657 = vector.load %arg11[%c7_677, %c0_678, %c0_679] : memref<18x8x112xbf16, #tpu.memory_space<vmem>>, vector<1x8x112xbf16>
    %658 = vector.shape_cast %657 : vector<1x8x112xbf16> to vector<8x112xbf16>
    %c3_680 = arith.constant 3 : index
    %c0_681 = arith.constant 0 : index
    %c0_682 = arith.constant 0 : index
    %659 = vector.load %arg4[%c3_680, %c0_681, %c0_682] : memref<5x112x112xbf16, #tpu.memory_space<vmem>>, vector<1x112x112xbf16>
    %660 = vector.shape_cast %659 : vector<1x112x112xbf16> to vector<112x112xbf16>
    %cst_683 = arith.constant dense<0.000000e+00> : vector<8x112xf32>
    %661 = tpu.matmul %658, %660, %cst_683 {dimension_numbers = #tpu.dot_dimension_numbers<[1], [0], [0], [1], [0, 0, 1, 1], [], []>} : vector<8x112xbf16>, vector<112x112xbf16>, vector<8x112xf32> -> vector<8x112xf32>
    %662 = arith.addf %656, %661 : vector<8x112xf32>
    %c8_684 = arith.constant 8 : index
    %c0_685 = arith.constant 0 : index
    %c0_686 = arith.constant 0 : index
    %663 = vector.load %arg11[%c8_684, %c0_685, %c0_686] : memref<18x8x112xbf16, #tpu.memory_space<vmem>>, vector<1x8x112xbf16>
    %664 = vector.shape_cast %663 : vector<1x8x112xbf16> to vector<8x112xbf16>
    %c4_687 = arith.constant 4 : index
    %c0_688 = arith.constant 0 : index
    %c0_689 = arith.constant 0 : index
    %665 = vector.load %arg4[%c4_687, %c0_688, %c0_689] : memref<5x112x112xbf16, #tpu.memory_space<vmem>>, vector<1x112x112xbf16>
    %666 = vector.shape_cast %665 : vector<1x112x112xbf16> to vector<112x112xbf16>
    %cst_690 = arith.constant dense<0.000000e+00> : vector<8x112xf32>
    %667 = tpu.matmul %664, %666, %cst_690 {dimension_numbers = #tpu.dot_dimension_numbers<[1], [0], [0], [1], [0, 0, 1, 1], [], []>} : vector<8x112xbf16>, vector<112x112xbf16>, vector<8x112xf32> -> vector<8x112xf32>
    %668 = arith.addf %662, %667 : vector<8x112xf32>
    %c0_691 = arith.constant 0 : index
    %c0_692 = arith.constant 0 : index
    %669 = vector.load %arg5[%c0_691, %c0_692] : memref<1x112xf32, #tpu.memory_space<vmem>>, vector<1x112xf32>
    %670 = vector.broadcast %669 : vector<1x112xf32> to vector<8x112xf32>
    %671 = arith.addf %668, %670 : vector<8x112xf32>
    %cst_693 = arith.constant 0.000000e+00 : f32
    %672 = vector.broadcast %cst_693 : f32 to vector<8x112xf32>
    %673 = arith.maximumf %671, %672 : vector<8x112xf32>
    %674 = arith.truncf %673 : vector<8x112xf32> to vector<8x112xbf16>
    %c4_694 = arith.constant 4 : index
    %c0_695 = arith.constant 0 : index
    %c0_696 = arith.constant 0 : index
    %675 = vector.load %arg12[%c4_694, %c0_695, %c0_696] : memref<11x8x112xbf16, #tpu.memory_space<vmem>>, vector<1x8x112xbf16>
    %676 = vector.shape_cast %675 : vector<1x8x112xbf16> to vector<8x112xbf16>
    %677 = vector.shape_cast %674 : vector<8x112xbf16> to vector<1x8x112xbf16>
    tpu.vector_store %arg12[%c4_694, %c0_695, %c0_696], %677 {strides = array<i32>} : memref<11x8x112xbf16, #tpu.memory_space<vmem>>, vector<1x8x112xbf16>,
    %c6_697 = arith.constant 6 : index
    %c0_698 = arith.constant 0 : index
    %c0_699 = arith.constant 0 : index
    %678 = vector.load %arg11[%c6_697, %c0_698, %c0_699] : memref<18x8x112xbf16, #tpu.memory_space<vmem>>, vector<1x8x112xbf16>
    %679 = vector.shape_cast %678 : vector<1x8x112xbf16> to vector<8x112xbf16>
    %c0_700 = arith.constant 0 : index
    %c0_701 = arith.constant 0 : index
    %c0_702 = arith.constant 0 : index
    %680 = vector.load %arg4[%c0_700, %c0_701, %c0_702] : memref<5x112x112xbf16, #tpu.memory_space<vmem>>, vector<1x112x112xbf16>
    %681 = vector.shape_cast %680 : vector<1x112x112xbf16> to vector<112x112xbf16>
    %cst_703 = arith.constant dense<0.000000e+00> : vector<8x112xf32>
    %682 = tpu.matmul %679, %681, %cst_703 {dimension_numbers = #tpu.dot_dimension_numbers<[1], [0], [0], [1], [0, 0, 1, 1], [], []>} : vector<8x112xbf16>, vector<112x112xbf16>, vector<8x112xf32> -> vector<8x112xf32>
    %c7_704 = arith.constant 7 : index
    %c0_705 = arith.constant 0 : index
    %c0_706 = arith.constant 0 : index
    %683 = vector.load %arg11[%c7_704, %c0_705, %c0_706] : memref<18x8x112xbf16, #tpu.memory_space<vmem>>, vector<1x8x112xbf16>
    %684 = vector.shape_cast %683 : vector<1x8x112xbf16> to vector<8x112xbf16>
    %c1_707 = arith.constant 1 : index
    %c0_708 = arith.constant 0 : index
    %c0_709 = arith.constant 0 : index
    %685 = vector.load %arg4[%c1_707, %c0_708, %c0_709] : memref<5x112x112xbf16, #tpu.memory_space<vmem>>, vector<1x112x112xbf16>
    %686 = vector.shape_cast %685 : vector<1x112x112xbf16> to vector<112x112xbf16>
    %cst_710 = arith.constant dense<0.000000e+00> : vector<8x112xf32>
    %687 = tpu.matmul %684, %686, %cst_710 {dimension_numbers = #tpu.dot_dimension_numbers<[1], [0], [0], [1], [0, 0, 1, 1], [], []>} : vector<8x112xbf16>, vector<112x112xbf16>, vector<8x112xf32> -> vector<8x112xf32>
    %688 = arith.addf %682, %687 : vector<8x112xf32>
    %c8_711 = arith.constant 8 : index
    %c0_712 = arith.constant 0 : index
    %c0_713 = arith.constant 0 : index
    %689 = vector.load %arg11[%c8_711, %c0_712, %c0_713] : memref<18x8x112xbf16, #tpu.memory_space<vmem>>, vector<1x8x112xbf16>
    %690 = vector.shape_cast %689 : vector<1x8x112xbf16> to vector<8x112xbf16>
    %c2_714 = arith.constant 2 : index
    %c0_715 = arith.constant 0 : index
    %c0_716 = arith.constant 0 : index
    %691 = vector.load %arg4[%c2_714, %c0_715, %c0_716] : memref<5x112x112xbf16, #tpu.memory_space<vmem>>, vector<1x112x112xbf16>
    %692 = vector.shape_cast %691 : vector<1x112x112xbf16> to vector<112x112xbf16>
    %cst_717 = arith.constant dense<0.000000e+00> : vector<8x112xf32>
    %693 = tpu.matmul %690, %692, %cst_717 {dimension_numbers = #tpu.dot_dimension_numbers<[1], [0], [0], [1], [0, 0, 1, 1], [], []>} : vector<8x112xbf16>, vector<112x112xbf16>, vector<8x112xf32> -> vector<8x112xf32>
    %694 = arith.addf %688, %693 : vector<8x112xf32>
    %c9_718 = arith.constant 9 : index
    %c0_719 = arith.constant 0 : index
    %c0_720 = arith.constant 0 : index
    %695 = vector.load %arg11[%c9_718, %c0_719, %c0_720] : memref<18x8x112xbf16, #tpu.memory_space<vmem>>, vector<1x8x112xbf16>
    %696 = vector.shape_cast %695 : vector<1x8x112xbf16> to vector<8x112xbf16>
    %c3_721 = arith.constant 3 : index
    %c0_722 = arith.constant 0 : index
    %c0_723 = arith.constant 0 : index
    %697 = vector.load %arg4[%c3_721, %c0_722, %c0_723] : memref<5x112x112xbf16, #tpu.memory_space<vmem>>, vector<1x112x112xbf16>
    %698 = vector.shape_cast %697 : vector<1x112x112xbf16> to vector<112x112xbf16>
    %cst_724 = arith.constant dense<0.000000e+00> : vector<8x112xf32>
    %699 = tpu.matmul %696, %698, %cst_724 {dimension_numbers = #tpu.dot_dimension_numbers<[1], [0], [0], [1], [0, 0, 1, 1], [], []>} : vector<8x112xbf16>, vector<112x112xbf16>, vector<8x112xf32> -> vector<8x112xf32>
    %700 = arith.addf %694, %699 : vector<8x112xf32>
    %c10_725 = arith.constant 10 : index
    %c0_726 = arith.constant 0 : index
    %c0_727 = arith.constant 0 : index
    %701 = vector.load %arg11[%c10_725, %c0_726, %c0_727] : memref<18x8x112xbf16, #tpu.memory_space<vmem>>, vector<1x8x112xbf16>
    %702 = vector.shape_cast %701 : vector<1x8x112xbf16> to vector<8x112xbf16>
    %c4_728 = arith.constant 4 : index
    %c0_729 = arith.constant 0 : index
    %c0_730 = arith.constant 0 : index
    %703 = vector.load %arg4[%c4_728, %c0_729, %c0_730] : memref<5x112x112xbf16, #tpu.memory_space<vmem>>, vector<1x112x112xbf16>
    %704 = vector.shape_cast %703 : vector<1x112x112xbf16> to vector<112x112xbf16>
    %cst_731 = arith.constant dense<0.000000e+00> : vector<8x112xf32>
    %705 = tpu.matmul %702, %704, %cst_731 {dimension_numbers = #tpu.dot_dimension_numbers<[1], [0], [0], [1], [0, 0, 1, 1], [], []>} : vector<8x112xbf16>, vector<112x112xbf16>, vector<8x112xf32> -> vector<8x112xf32>
    %706 = arith.addf %700, %705 : vector<8x112xf32>
    %c0_732 = arith.constant 0 : index
    %c0_733 = arith.constant 0 : index
    %707 = vector.load %arg5[%c0_732, %c0_733] : memref<1x112xf32, #tpu.memory_space<vmem>>, vector<1x112xf32>
    %708 = vector.broadcast %707 : vector<1x112xf32> to vector<8x112xf32>
    %709 = arith.addf %706, %708 : vector<8x112xf32>
    %cst_734 = arith.constant 0.000000e+00 : f32
    %710 = vector.broadcast %cst_734 : f32 to vector<8x112xf32>
    %711 = arith.maximumf %709, %710 : vector<8x112xf32>
    %712 = arith.truncf %711 : vector<8x112xf32> to vector<8x112xbf16>
    %c5_735 = arith.constant 5 : index
    %c0_736 = arith.constant 0 : index
    %c0_737 = arith.constant 0 : index
    %713 = vector.load %arg12[%c5_735, %c0_736, %c0_737] : memref<11x8x112xbf16, #tpu.memory_space<vmem>>, vector<1x8x112xbf16>
    %714 = vector.shape_cast %713 : vector<1x8x112xbf16> to vector<8x112xbf16>
    %715 = vector.shape_cast %712 : vector<8x112xbf16> to vector<1x8x112xbf16>
    tpu.vector_store %arg12[%c5_735, %c0_736, %c0_737], %715 {strides = array<i32>} : memref<11x8x112xbf16, #tpu.memory_space<vmem>>, vector<1x8x112xbf16>,
    %c8_738 = arith.constant 8 : index
    %c0_739 = arith.constant 0 : index
    %c0_740 = arith.constant 0 : index
    %716 = vector.load %arg11[%c8_738, %c0_739, %c0_740] : memref<18x8x112xbf16, #tpu.memory_space<vmem>>, vector<1x8x112xbf16>
    %717 = vector.shape_cast %716 : vector<1x8x112xbf16> to vector<8x112xbf16>
    %c0_741 = arith.constant 0 : index
    %c0_742 = arith.constant 0 : index
    %c0_743 = arith.constant 0 : index
    %718 = vector.load %arg4[%c0_741, %c0_742, %c0_743] : memref<5x112x112xbf16, #tpu.memory_space<vmem>>, vector<1x112x112xbf16>
    %719 = vector.shape_cast %718 : vector<1x112x112xbf16> to vector<112x112xbf16>
    %cst_744 = arith.constant dense<0.000000e+00> : vector<8x112xf32>
    %720 = tpu.matmul %717, %719, %cst_744 {dimension_numbers = #tpu.dot_dimension_numbers<[1], [0], [0], [1], [0, 0, 1, 1], [], []>} : vector<8x112xbf16>, vector<112x112xbf16>, vector<8x112xf32> -> vector<8x112xf32>
    %c9_745 = arith.constant 9 : index
    %c0_746 = arith.constant 0 : index
    %c0_747 = arith.constant 0 : index
    %721 = vector.load %arg11[%c9_745, %c0_746, %c0_747] : memref<18x8x112xbf16, #tpu.memory_space<vmem>>, vector<1x8x112xbf16>
    %722 = vector.shape_cast %721 : vector<1x8x112xbf16> to vector<8x112xbf16>
    %c1_748 = arith.constant 1 : index
    %c0_749 = arith.constant 0 : index
    %c0_750 = arith.constant 0 : index
    %723 = vector.load %arg4[%c1_748, %c0_749, %c0_750] : memref<5x112x112xbf16, #tpu.memory_space<vmem>>, vector<1x112x112xbf16>
    %724 = vector.shape_cast %723 : vector<1x112x112xbf16> to vector<112x112xbf16>
    %cst_751 = arith.constant dense<0.000000e+00> : vector<8x112xf32>
    %725 = tpu.matmul %722, %724, %cst_751 {dimension_numbers = #tpu.dot_dimension_numbers<[1], [0], [0], [1], [0, 0, 1, 1], [], []>} : vector<8x112xbf16>, vector<112x112xbf16>, vector<8x112xf32> -> vector<8x112xf32>
    %726 = arith.addf %720, %725 : vector<8x112xf32>
    %c10_752 = arith.constant 10 : index
    %c0_753 = arith.constant 0 : index
    %c0_754 = arith.constant 0 : index
    %727 = vector.load %arg11[%c10_752, %c0_753, %c0_754] : memref<18x8x112xbf16, #tpu.memory_space<vmem>>, vector<1x8x112xbf16>
    %728 = vector.shape_cast %727 : vector<1x8x112xbf16> to vector<8x112xbf16>
    %c2_755 = arith.constant 2 : index
    %c0_756 = arith.constant 0 : index
    %c0_757 = arith.constant 0 : index
    %729 = vector.load %arg4[%c2_755, %c0_756, %c0_757] : memref<5x112x112xbf16, #tpu.memory_space<vmem>>, vector<1x112x112xbf16>
    %730 = vector.shape_cast %729 : vector<1x112x112xbf16> to vector<112x112xbf16>
    %cst_758 = arith.constant dense<0.000000e+00> : vector<8x112xf32>
    %731 = tpu.matmul %728, %730, %cst_758 {dimension_numbers = #tpu.dot_dimension_numbers<[1], [0], [0], [1], [0, 0, 1, 1], [], []>} : vector<8x112xbf16>, vector<112x112xbf16>, vector<8x112xf32> -> vector<8x112xf32>
    %732 = arith.addf %726, %731 : vector<8x112xf32>
    %c11_759 = arith.constant 11 : index
    %c0_760 = arith.constant 0 : index
    %c0_761 = arith.constant 0 : index
    %733 = vector.load %arg11[%c11_759, %c0_760, %c0_761] : memref<18x8x112xbf16, #tpu.memory_space<vmem>>, vector<1x8x112xbf16>
    %734 = vector.shape_cast %733 : vector<1x8x112xbf16> to vector<8x112xbf16>
    %c3_762 = arith.constant 3 : index
    %c0_763 = arith.constant 0 : index
    %c0_764 = arith.constant 0 : index
    %735 = vector.load %arg4[%c3_762, %c0_763, %c0_764] : memref<5x112x112xbf16, #tpu.memory_space<vmem>>, vector<1x112x112xbf16>
    %736 = vector.shape_cast %735 : vector<1x112x112xbf16> to vector<112x112xbf16>
    %cst_765 = arith.constant dense<0.000000e+00> : vector<8x112xf32>
    %737 = tpu.matmul %734, %736, %cst_765 {dimension_numbers = #tpu.dot_dimension_numbers<[1], [0], [0], [1], [0, 0, 1, 1], [], []>} : vector<8x112xbf16>, vector<112x112xbf16>, vector<8x112xf32> -> vector<8x112xf32>
    %738 = arith.addf %732, %737 : vector<8x112xf32>
    %c12_766 = arith.constant 12 : index
    %c0_767 = arith.constant 0 : index
    %c0_768 = arith.constant 0 : index
    %739 = vector.load %arg11[%c12_766, %c0_767, %c0_768] : memref<18x8x112xbf16, #tpu.memory_space<vmem>>, vector<1x8x112xbf16>
    %740 = vector.shape_cast %739 : vector<1x8x112xbf16> to vector<8x112xbf16>
    %c4_769 = arith.constant 4 : index
    %c0_770 = arith.constant 0 : index
    %c0_771 = arith.constant 0 : index
    %741 = vector.load %arg4[%c4_769, %c0_770, %c0_771] : memref<5x112x112xbf16, #tpu.memory_space<vmem>>, vector<1x112x112xbf16>
    %742 = vector.shape_cast %741 : vector<1x112x112xbf16> to vector<112x112xbf16>
    %cst_772 = arith.constant dense<0.000000e+00> : vector<8x112xf32>
    %743 = tpu.matmul %740, %742, %cst_772 {dimension_numbers = #tpu.dot_dimension_numbers<[1], [0], [0], [1], [0, 0, 1, 1], [], []>} : vector<8x112xbf16>, vector<112x112xbf16>, vector<8x112xf32> -> vector<8x112xf32>
    %744 = arith.addf %738, %743 : vector<8x112xf32>
    %c0_773 = arith.constant 0 : index
    %c0_774 = arith.constant 0 : index
    %745 = vector.load %arg5[%c0_773, %c0_774] : memref<1x112xf32, #tpu.memory_space<vmem>>, vector<1x112xf32>
    %746 = vector.broadcast %745 : vector<1x112xf32> to vector<8x112xf32>
    %747 = arith.addf %744, %746 : vector<8x112xf32>
    %cst_775 = arith.constant 0.000000e+00 : f32
    %748 = vector.broadcast %cst_775 : f32 to vector<8x112xf32>
    %749 = arith.maximumf %747, %748 : vector<8x112xf32>
    %750 = arith.truncf %749 : vector<8x112xf32> to vector<8x112xbf16>
    %c6_776 = arith.constant 6 : index
    %c0_777 = arith.constant 0 : index
    %c0_778 = arith.constant 0 : index
    %751 = vector.load %arg12[%c6_776, %c0_777, %c0_778] : memref<11x8x112xbf16, #tpu.memory_space<vmem>>, vector<1x8x112xbf16>
    %752 = vector.shape_cast %751 : vector<1x8x112xbf16> to vector<8x112xbf16>
    %753 = vector.shape_cast %750 : vector<8x112xbf16> to vector<1x8x112xbf16>
    tpu.vector_store %arg12[%c6_776, %c0_777, %c0_778], %753 {strides = array<i32>} : memref<11x8x112xbf16, #tpu.memory_space<vmem>>, vector<1x8x112xbf16>,
    %c10_779 = arith.constant 10 : index
    %c0_780 = arith.constant 0 : index
    %c0_781 = arith.constant 0 : index
    %754 = vector.load %arg11[%c10_779, %c0_780, %c0_781] : memref<18x8x112xbf16, #tpu.memory_space<vmem>>, vector<1x8x112xbf16>
    %755 = vector.shape_cast %754 : vector<1x8x112xbf16> to vector<8x112xbf16>
    %c0_782 = arith.constant 0 : index
    %c0_783 = arith.constant 0 : index
    %c0_784 = arith.constant 0 : index
    %756 = vector.load %arg4[%c0_782, %c0_783, %c0_784] : memref<5x112x112xbf16, #tpu.memory_space<vmem>>, vector<1x112x112xbf16>
    %757 = vector.shape_cast %756 : vector<1x112x112xbf16> to vector<112x112xbf16>
    %cst_785 = arith.constant dense<0.000000e+00> : vector<8x112xf32>
    %758 = tpu.matmul %755, %757, %cst_785 {dimension_numbers = #tpu.dot_dimension_numbers<[1], [0], [0], [1], [0, 0, 1, 1], [], []>} : vector<8x112xbf16>, vector<112x112xbf16>, vector<8x112xf32> -> vector<8x112xf32>
    %c11_786 = arith.constant 11 : index
    %c0_787 = arith.constant 0 : index
    %c0_788 = arith.constant 0 : index
    %759 = vector.load %arg11[%c11_786, %c0_787, %c0_788] : memref<18x8x112xbf16, #tpu.memory_space<vmem>>, vector<1x8x112xbf16>
    %760 = vector.shape_cast %759 : vector<1x8x112xbf16> to vector<8x112xbf16>
    %c1_789 = arith.constant 1 : index
    %c0_790 = arith.constant 0 : index
    %c0_791 = arith.constant 0 : index
    %761 = vector.load %arg4[%c1_789, %c0_790, %c0_791] : memref<5x112x112xbf16, #tpu.memory_space<vmem>>, vector<1x112x112xbf16>
    %762 = vector.shape_cast %761 : vector<1x112x112xbf16> to vector<112x112xbf16>
    %cst_792 = arith.constant dense<0.000000e+00> : vector<8x112xf32>
    %763 = tpu.matmul %760, %762, %cst_792 {dimension_numbers = #tpu.dot_dimension_numbers<[1], [0], [0], [1], [0, 0, 1, 1], [], []>} : vector<8x112xbf16>, vector<112x112xbf16>, vector<8x112xf32> -> vector<8x112xf32>
    %764 = arith.addf %758, %763 : vector<8x112xf32>
    %c12_793 = arith.constant 12 : index
    %c0_794 = arith.constant 0 : index
    %c0_795 = arith.constant 0 : index
    %765 = vector.load %arg11[%c12_793, %c0_794, %c0_795] : memref<18x8x112xbf16, #tpu.memory_space<vmem>>, vector<1x8x112xbf16>
    %766 = vector.shape_cast %765 : vector<1x8x112xbf16> to vector<8x112xbf16>
    %c2_796 = arith.constant 2 : index
    %c0_797 = arith.constant 0 : index
    %c0_798 = arith.constant 0 : index
    %767 = vector.load %arg4[%c2_796, %c0_797, %c0_798] : memref<5x112x112xbf16, #tpu.memory_space<vmem>>, vector<1x112x112xbf16>
    %768 = vector.shape_cast %767 : vector<1x112x112xbf16> to vector<112x112xbf16>
    %cst_799 = arith.constant dense<0.000000e+00> : vector<8x112xf32>
    %769 = tpu.matmul %766, %768, %cst_799 {dimension_numbers = #tpu.dot_dimension_numbers<[1], [0], [0], [1], [0, 0, 1, 1], [], []>} : vector<8x112xbf16>, vector<112x112xbf16>, vector<8x112xf32> -> vector<8x112xf32>
    %770 = arith.addf %764, %769 : vector<8x112xf32>
    %c13_800 = arith.constant 13 : index
    %c0_801 = arith.constant 0 : index
    %c0_802 = arith.constant 0 : index
    %771 = vector.load %arg11[%c13_800, %c0_801, %c0_802] : memref<18x8x112xbf16, #tpu.memory_space<vmem>>, vector<1x8x112xbf16>
    %772 = vector.shape_cast %771 : vector<1x8x112xbf16> to vector<8x112xbf16>
    %c3_803 = arith.constant 3 : index
    %c0_804 = arith.constant 0 : index
    %c0_805 = arith.constant 0 : index
    %773 = vector.load %arg4[%c3_803, %c0_804, %c0_805] : memref<5x112x112xbf16, #tpu.memory_space<vmem>>, vector<1x112x112xbf16>
    %774 = vector.shape_cast %773 : vector<1x112x112xbf16> to vector<112x112xbf16>
    %cst_806 = arith.constant dense<0.000000e+00> : vector<8x112xf32>
    %775 = tpu.matmul %772, %774, %cst_806 {dimension_numbers = #tpu.dot_dimension_numbers<[1], [0], [0], [1], [0, 0, 1, 1], [], []>} : vector<8x112xbf16>, vector<112x112xbf16>, vector<8x112xf32> -> vector<8x112xf32>
    %776 = arith.addf %770, %775 : vector<8x112xf32>
    %c14_807 = arith.constant 14 : index
    %c0_808 = arith.constant 0 : index
    %c0_809 = arith.constant 0 : index
    %777 = vector.load %arg11[%c14_807, %c0_808, %c0_809] : memref<18x8x112xbf16, #tpu.memory_space<vmem>>, vector<1x8x112xbf16>
    %778 = vector.shape_cast %777 : vector<1x8x112xbf16> to vector<8x112xbf16>
    %c4_810 = arith.constant 4 : index
    %c0_811 = arith.constant 0 : index
    %c0_812 = arith.constant 0 : index
    %779 = vector.load %arg4[%c4_810, %c0_811, %c0_812] : memref<5x112x112xbf16, #tpu.memory_space<vmem>>, vector<1x112x112xbf16>
    %780 = vector.shape_cast %779 : vector<1x112x112xbf16> to vector<112x112xbf16>
    %cst_813 = arith.constant dense<0.000000e+00> : vector<8x112xf32>
    %781 = tpu.matmul %778, %780, %cst_813 {dimension_numbers = #tpu.dot_dimension_numbers<[1], [0], [0], [1], [0, 0, 1, 1], [], []>} : vector<8x112xbf16>, vector<112x112xbf16>, vector<8x112xf32> -> vector<8x112xf32>
    %782 = arith.addf %776, %781 : vector<8x112xf32>
    %c0_814 = arith.constant 0 : index
    %c0_815 = arith.constant 0 : index
    %783 = vector.load %arg5[%c0_814, %c0_815] : memref<1x112xf32, #tpu.memory_space<vmem>>, vector<1x112xf32>
    %784 = vector.broadcast %783 : vector<1x112xf32> to vector<8x112xf32>
    %785 = arith.addf %782, %784 : vector<8x112xf32>
    %cst_816 = arith.constant 0.000000e+00 : f32
    %786 = vector.broadcast %cst_816 : f32 to vector<8x112xf32>
    %787 = arith.maximumf %785, %786 : vector<8x112xf32>
    %788 = arith.truncf %787 : vector<8x112xf32> to vector<8x112xbf16>
    %c7_817 = arith.constant 7 : index
    %c0_818 = arith.constant 0 : index
    %c0_819 = arith.constant 0 : index
    %789 = vector.load %arg12[%c7_817, %c0_818, %c0_819] : memref<11x8x112xbf16, #tpu.memory_space<vmem>>, vector<1x8x112xbf16>
    %790 = vector.shape_cast %789 : vector<1x8x112xbf16> to vector<8x112xbf16>
    %791 = vector.shape_cast %788 : vector<8x112xbf16> to vector<1x8x112xbf16>
    tpu.vector_store %arg12[%c7_817, %c0_818, %c0_819], %791 {strides = array<i32>} : memref<11x8x112xbf16, #tpu.memory_space<vmem>>, vector<1x8x112xbf16>,
    %c12_820 = arith.constant 12 : index
    %c0_821 = arith.constant 0 : index
    %c0_822 = arith.constant 0 : index
    %792 = vector.load %arg11[%c12_820, %c0_821, %c0_822] : memref<18x8x112xbf16, #tpu.memory_space<vmem>>, vector<1x8x112xbf16>
    %793 = vector.shape_cast %792 : vector<1x8x112xbf16> to vector<8x112xbf16>
    %c0_823 = arith.constant 0 : index
    %c0_824 = arith.constant 0 : index
    %c0_825 = arith.constant 0 : index
    %794 = vector.load %arg4[%c0_823, %c0_824, %c0_825] : memref<5x112x112xbf16, #tpu.memory_space<vmem>>, vector<1x112x112xbf16>
    %795 = vector.shape_cast %794 : vector<1x112x112xbf16> to vector<112x112xbf16>
    %cst_826 = arith.constant dense<0.000000e+00> : vector<8x112xf32>
    %796 = tpu.matmul %793, %795, %cst_826 {dimension_numbers = #tpu.dot_dimension_numbers<[1], [0], [0], [1], [0, 0, 1, 1], [], []>} : vector<8x112xbf16>, vector<112x112xbf16>, vector<8x112xf32> -> vector<8x112xf32>
    %c13_827 = arith.constant 13 : index
    %c0_828 = arith.constant 0 : index
    %c0_829 = arith.constant 0 : index
    %797 = vector.load %arg11[%c13_827, %c0_828, %c0_829] : memref<18x8x112xbf16, #tpu.memory_space<vmem>>, vector<1x8x112xbf16>
    %798 = vector.shape_cast %797 : vector<1x8x112xbf16> to vector<8x112xbf16>
    %c1_830 = arith.constant 1 : index
    %c0_831 = arith.constant 0 : index
    %c0_832 = arith.constant 0 : index
    %799 = vector.load %arg4[%c1_830, %c0_831, %c0_832] : memref<5x112x112xbf16, #tpu.memory_space<vmem>>, vector<1x112x112xbf16>
    %800 = vector.shape_cast %799 : vector<1x112x112xbf16> to vector<112x112xbf16>
    %cst_833 = arith.constant dense<0.000000e+00> : vector<8x112xf32>
    %801 = tpu.matmul %798, %800, %cst_833 {dimension_numbers = #tpu.dot_dimension_numbers<[1], [0], [0], [1], [0, 0, 1, 1], [], []>} : vector<8x112xbf16>, vector<112x112xbf16>, vector<8x112xf32> -> vector<8x112xf32>
    %802 = arith.addf %796, %801 : vector<8x112xf32>
    %c14_834 = arith.constant 14 : index
    %c0_835 = arith.constant 0 : index
    %c0_836 = arith.constant 0 : index
    %803 = vector.load %arg11[%c14_834, %c0_835, %c0_836] : memref<18x8x112xbf16, #tpu.memory_space<vmem>>, vector<1x8x112xbf16>
    %804 = vector.shape_cast %803 : vector<1x8x112xbf16> to vector<8x112xbf16>
    %c2_837 = arith.constant 2 : index
    %c0_838 = arith.constant 0 : index
    %c0_839 = arith.constant 0 : index
    %805 = vector.load %arg4[%c2_837, %c0_838, %c0_839] : memref<5x112x112xbf16, #tpu.memory_space<vmem>>, vector<1x112x112xbf16>
    %806 = vector.shape_cast %805 : vector<1x112x112xbf16> to vector<112x112xbf16>
    %cst_840 = arith.constant dense<0.000000e+00> : vector<8x112xf32>
    %807 = tpu.matmul %804, %806, %cst_840 {dimension_numbers = #tpu.dot_dimension_numbers<[1], [0], [0], [1], [0, 0, 1, 1], [], []>} : vector<8x112xbf16>, vector<112x112xbf16>, vector<8x112xf32> -> vector<8x112xf32>
    %808 = arith.addf %802, %807 : vector<8x112xf32>
    %c15_841 = arith.constant 15 : index
    %c0_842 = arith.constant 0 : index
    %c0_843 = arith.constant 0 : index
    %809 = vector.load %arg11[%c15_841, %c0_842, %c0_843] : memref<18x8x112xbf16, #tpu.memory_space<vmem>>, vector<1x8x112xbf16>
    %810 = vector.shape_cast %809 : vector<1x8x112xbf16> to vector<8x112xbf16>
    %c3_844 = arith.constant 3 : index
    %c0_845 = arith.constant 0 : index
    %c0_846 = arith.constant 0 : index
    %811 = vector.load %arg4[%c3_844, %c0_845, %c0_846] : memref<5x112x112xbf16, #tpu.memory_space<vmem>>, vector<1x112x112xbf16>
    %812 = vector.shape_cast %811 : vector<1x112x112xbf16> to vector<112x112xbf16>
    %cst_847 = arith.constant dense<0.000000e+00> : vector<8x112xf32>
    %813 = tpu.matmul %810, %812, %cst_847 {dimension_numbers = #tpu.dot_dimension_numbers<[1], [0], [0], [1], [0, 0, 1, 1], [], []>} : vector<8x112xbf16>, vector<112x112xbf16>, vector<8x112xf32> -> vector<8x112xf32>
    %814 = arith.addf %808, %813 : vector<8x112xf32>
    %c16_848 = arith.constant 16 : index
    %c0_849 = arith.constant 0 : index
    %c0_850 = arith.constant 0 : index
    %815 = vector.load %arg11[%c16_848, %c0_849, %c0_850] : memref<18x8x112xbf16, #tpu.memory_space<vmem>>, vector<1x8x112xbf16>
    %816 = vector.shape_cast %815 : vector<1x8x112xbf16> to vector<8x112xbf16>
    %c4_851 = arith.constant 4 : index
    %c0_852 = arith.constant 0 : index
    %c0_853 = arith.constant 0 : index
    %817 = vector.load %arg4[%c4_851, %c0_852, %c0_853] : memref<5x112x112xbf16, #tpu.memory_space<vmem>>, vector<1x112x112xbf16>
    %818 = vector.shape_cast %817 : vector<1x112x112xbf16> to vector<112x112xbf16>
    %cst_854 = arith.constant dense<0.000000e+00> : vector<8x112xf32>
    %819 = tpu.matmul %816, %818, %cst_854 {dimension_numbers = #tpu.dot_dimension_numbers<[1], [0], [0], [1], [0, 0, 1, 1], [], []>} : vector<8x112xbf16>, vector<112x112xbf16>, vector<8x112xf32> -> vector<8x112xf32>
    %820 = arith.addf %814, %819 : vector<8x112xf32>
    %c0_855 = arith.constant 0 : index
    %c0_856 = arith.constant 0 : index
    %821 = vector.load %arg5[%c0_855, %c0_856] : memref<1x112xf32, #tpu.memory_space<vmem>>, vector<1x112xf32>
    %822 = vector.broadcast %821 : vector<1x112xf32> to vector<8x112xf32>
    %823 = arith.addf %820, %822 : vector<8x112xf32>
    %cst_857 = arith.constant 0.000000e+00 : f32
    %824 = vector.broadcast %cst_857 : f32 to vector<8x112xf32>
    %825 = arith.maximumf %823, %824 : vector<8x112xf32>
    %826 = arith.truncf %825 : vector<8x112xf32> to vector<8x112xbf16>
    %c8_858 = arith.constant 8 : index
    %c0_859 = arith.constant 0 : index
    %c0_860 = arith.constant 0 : index
    %827 = vector.load %arg12[%c8_858, %c0_859, %c0_860] : memref<11x8x112xbf16, #tpu.memory_space<vmem>>, vector<1x8x112xbf16>
    %828 = vector.shape_cast %827 : vector<1x8x112xbf16> to vector<8x112xbf16>
    %829 = vector.shape_cast %826 : vector<8x112xbf16> to vector<1x8x112xbf16>
    tpu.vector_store %arg12[%c8_858, %c0_859, %c0_860], %829 {strides = array<i32>} : memref<11x8x112xbf16, #tpu.memory_space<vmem>>, vector<1x8x112xbf16>,
    %cst_861 = arith.constant 0.000000e+00 : f32
    %830 = vector.broadcast %cst_861 : f32 to vector<8x1xf32>
    %c0_862 = arith.constant 0 : index
    %c0_863 = arith.constant 0 : index
    %c0_864 = arith.constant 0 : index
    %831 = vector.load %arg12[%c0_862, %c0_863, %c0_864] : memref<11x8x112xbf16, #tpu.memory_space<vmem>>, vector<1x8x112xbf16>
    %832 = vector.shape_cast %831 : vector<1x8x112xbf16> to vector<8x112xbf16>
    %c0_865 = arith.constant 0 : index
    %c0_866 = arith.constant 0 : index
    %c0_867 = arith.constant 0 : index
    %833 = vector.load %arg6[%c0_865, %c0_866, %c0_867] : memref<5x112x128xbf16, #tpu.memory_space<vmem>>, vector<1x112x128xbf16>
    %834 = vector.shape_cast %833 : vector<1x112x128xbf16> to vector<112x128xbf16>
    %cst_868 = arith.constant dense<0.000000e+00> : vector<8x128xf32>
    %835 = tpu.matmul %832, %834, %cst_868 {dimension_numbers = #tpu.dot_dimension_numbers<[1], [0], [0], [1], [0, 0, 1, 1], [], []>} : vector<8x112xbf16>, vector<112x128xbf16>, vector<8x128xf32> -> vector<8x128xf32>
    %c1_869 = arith.constant 1 : index
    %c0_870 = arith.constant 0 : index
    %c0_871 = arith.constant 0 : index
    %836 = vector.load %arg12[%c1_869, %c0_870, %c0_871] : memref<11x8x112xbf16, #tpu.memory_space<vmem>>, vector<1x8x112xbf16>
    %837 = vector.shape_cast %836 : vector<1x8x112xbf16> to vector<8x112xbf16>
    %c1_872 = arith.constant 1 : index
    %c0_873 = arith.constant 0 : index
    %c0_874 = arith.constant 0 : index
    %838 = vector.load %arg6[%c1_872, %c0_873, %c0_874] : memref<5x112x128xbf16, #tpu.memory_space<vmem>>, vector<1x112x128xbf16>
    %839 = vector.shape_cast %838 : vector<1x112x128xbf16> to vector<112x128xbf16>
    %cst_875 = arith.constant dense<0.000000e+00> : vector<8x128xf32>
    %840 = tpu.matmul %837, %839, %cst_875 {dimension_numbers = #tpu.dot_dimension_numbers<[1], [0], [0], [1], [0, 0, 1, 1], [], []>} : vector<8x112xbf16>, vector<112x128xbf16>, vector<8x128xf32> -> vector<8x128xf32>
    %841 = arith.addf %835, %840 : vector<8x128xf32>
    %c2_876 = arith.constant 2 : index
    %c0_877 = arith.constant 0 : index
    %c0_878 = arith.constant 0 : index
    %842 = vector.load %arg12[%c2_876, %c0_877, %c0_878] : memref<11x8x112xbf16, #tpu.memory_space<vmem>>, vector<1x8x112xbf16>
    %843 = vector.shape_cast %842 : vector<1x8x112xbf16> to vector<8x112xbf16>
    %c2_879 = arith.constant 2 : index
    %c0_880 = arith.constant 0 : index
    %c0_881 = arith.constant 0 : index
    %844 = vector.load %arg6[%c2_879, %c0_880, %c0_881] : memref<5x112x128xbf16, #tpu.memory_space<vmem>>, vector<1x112x128xbf16>
    %845 = vector.shape_cast %844 : vector<1x112x128xbf16> to vector<112x128xbf16>
    %cst_882 = arith.constant dense<0.000000e+00> : vector<8x128xf32>
    %846 = tpu.matmul %843, %845, %cst_882 {dimension_numbers = #tpu.dot_dimension_numbers<[1], [0], [0], [1], [0, 0, 1, 1], [], []>} : vector<8x112xbf16>, vector<112x128xbf16>, vector<8x128xf32> -> vector<8x128xf32>
    %847 = arith.addf %841, %846 : vector<8x128xf32>
    %c3_883 = arith.constant 3 : index
    %c0_884 = arith.constant 0 : index
    %c0_885 = arith.constant 0 : index
    %848 = vector.load %arg12[%c3_883, %c0_884, %c0_885] : memref<11x8x112xbf16, #tpu.memory_space<vmem>>, vector<1x8x112xbf16>
    %849 = vector.shape_cast %848 : vector<1x8x112xbf16> to vector<8x112xbf16>
    %c3_886 = arith.constant 3 : index
    %c0_887 = arith.constant 0 : index
    %c0_888 = arith.constant 0 : index
    %850 = vector.load %arg6[%c3_886, %c0_887, %c0_888] : memref<5x112x128xbf16, #tpu.memory_space<vmem>>, vector<1x112x128xbf16>
    %851 = vector.shape_cast %850 : vector<1x112x128xbf16> to vector<112x128xbf16>
    %cst_889 = arith.constant dense<0.000000e+00> : vector<8x128xf32>
    %852 = tpu.matmul %849, %851, %cst_889 {dimension_numbers = #tpu.dot_dimension_numbers<[1], [0], [0], [1], [0, 0, 1, 1], [], []>} : vector<8x112xbf16>, vector<112x128xbf16>, vector<8x128xf32> -> vector<8x128xf32>
    %853 = arith.addf %847, %852 : vector<8x128xf32>
    %c4_890 = arith.constant 4 : index
    %c0_891 = arith.constant 0 : index
    %c0_892 = arith.constant 0 : index
    %854 = vector.load %arg12[%c4_890, %c0_891, %c0_892] : memref<11x8x112xbf16, #tpu.memory_space<vmem>>, vector<1x8x112xbf16>
    %855 = vector.shape_cast %854 : vector<1x8x112xbf16> to vector<8x112xbf16>
    %c4_893 = arith.constant 4 : index
    %c0_894 = arith.constant 0 : index
    %c0_895 = arith.constant 0 : index
    %856 = vector.load %arg6[%c4_893, %c0_894, %c0_895] : memref<5x112x128xbf16, #tpu.memory_space<vmem>>, vector<1x112x128xbf16>
    %857 = vector.shape_cast %856 : vector<1x112x128xbf16> to vector<112x128xbf16>
    %cst_896 = arith.constant dense<0.000000e+00> : vector<8x128xf32>
    %858 = tpu.matmul %855, %857, %cst_896 {dimension_numbers = #tpu.dot_dimension_numbers<[1], [0], [0], [1], [0, 0, 1, 1], [], []>} : vector<8x112xbf16>, vector<112x128xbf16>, vector<8x128xf32> -> vector<8x128xf32>
    %859 = arith.addf %853, %858 : vector<8x128xf32>
    %c0_897 = arith.constant 0 : index
    %c0_898 = arith.constant 0 : index
    %860 = vector.load %arg7[%c0_897, %c0_898] : memref<1x128xf32, #tpu.memory_space<vmem>>, vector<1x128xf32>
    %861 = vector.broadcast %860 : vector<1x128xf32> to vector<8x128xf32>
    %862 = arith.addf %859, %861 : vector<8x128xf32>
    %cst_899 = arith.constant 0.000000e+00 : f32
    %863 = vector.broadcast %cst_899 : f32 to vector<8x128xf32>
    %864 = arith.maximumf %862, %863 : vector<8x128xf32>
    %c0_900 = arith.constant 0 : index
    %c0_901 = arith.constant 0 : index
    %c0_902 = arith.constant 0 : index
    %865 = vector.load %arg8[%c0_900, %c0_901, %c0_902] : memref<4x1x128xf32, #tpu.memory_space<vmem>>, vector<1x1x128xf32>
    %866 = vector.shape_cast %865 : vector<1x1x128xf32> to vector<1x128xf32>
    %867 = vector.broadcast %866 : vector<1x128xf32> to vector<8x128xf32>
    %868 = arith.mulf %864, %867 : vector<8x128xf32>
    %cst_903 = arith.constant dense<0.000000e+00> : vector<8xf32>
    %869 = vector.multi_reduction <add>, %868, %cst_903 [1] : vector<8x128xf32> to vector<8xf32>
    %870 = vector.shape_cast %869 : vector<8xf32> to vector<8x1xf32>
    %871 = arith.addf %830, %870 : vector<8x1xf32>
    %c2_904 = arith.constant 2 : index
    %c0_905 = arith.constant 0 : index
    %c0_906 = arith.constant 0 : index
    %872 = vector.load %arg12[%c2_904, %c0_905, %c0_906] : memref<11x8x112xbf16, #tpu.memory_space<vmem>>, vector<1x8x112xbf16>
    %873 = vector.shape_cast %872 : vector<1x8x112xbf16> to vector<8x112xbf16>
    %c0_907 = arith.constant 0 : index
    %c0_908 = arith.constant 0 : index
    %c0_909 = arith.constant 0 : index
    %874 = vector.load %arg6[%c0_907, %c0_908, %c0_909] : memref<5x112x128xbf16, #tpu.memory_space<vmem>>, vector<1x112x128xbf16>
    %875 = vector.shape_cast %874 : vector<1x112x128xbf16> to vector<112x128xbf16>
    %cst_910 = arith.constant dense<0.000000e+00> : vector<8x128xf32>
    %876 = tpu.matmul %873, %875, %cst_910 {dimension_numbers = #tpu.dot_dimension_numbers<[1], [0], [0], [1], [0, 0, 1, 1], [], []>} : vector<8x112xbf16>, vector<112x128xbf16>, vector<8x128xf32> -> vector<8x128xf32>
    %c3_911 = arith.constant 3 : index
    %c0_912 = arith.constant 0 : index
    %c0_913 = arith.constant 0 : index
    %877 = vector.load %arg12[%c3_911, %c0_912, %c0_913] : memref<11x8x112xbf16, #tpu.memory_space<vmem>>, vector<1x8x112xbf16>
    %878 = vector.shape_cast %877 : vector<1x8x112xbf16> to vector<8x112xbf16>
    %c1_914 = arith.constant 1 : index
    %c0_915 = arith.constant 0 : index
    %c0_916 = arith.constant 0 : index
    %879 = vector.load %arg6[%c1_914, %c0_915, %c0_916] : memref<5x112x128xbf16, #tpu.memory_space<vmem>>, vector<1x112x128xbf16>
    %880 = vector.shape_cast %879 : vector<1x112x128xbf16> to vector<112x128xbf16>
    %cst_917 = arith.constant dense<0.000000e+00> : vector<8x128xf32>
    %881 = tpu.matmul %878, %880, %cst_917 {dimension_numbers = #tpu.dot_dimension_numbers<[1], [0], [0], [1], [0, 0, 1, 1], [], []>} : vector<8x112xbf16>, vector<112x128xbf16>, vector<8x128xf32> -> vector<8x128xf32>
    %882 = arith.addf %876, %881 : vector<8x128xf32>
    %c4_918 = arith.constant 4 : index
    %c0_919 = arith.constant 0 : index
    %c0_920 = arith.constant 0 : index
    %883 = vector.load %arg12[%c4_918, %c0_919, %c0_920] : memref<11x8x112xbf16, #tpu.memory_space<vmem>>, vector<1x8x112xbf16>
    %884 = vector.shape_cast %883 : vector<1x8x112xbf16> to vector<8x112xbf16>
    %c2_921 = arith.constant 2 : index
    %c0_922 = arith.constant 0 : index
    %c0_923 = arith.constant 0 : index
    %885 = vector.load %arg6[%c2_921, %c0_922, %c0_923] : memref<5x112x128xbf16, #tpu.memory_space<vmem>>, vector<1x112x128xbf16>
    %886 = vector.shape_cast %885 : vector<1x112x128xbf16> to vector<112x128xbf16>
    %cst_924 = arith.constant dense<0.000000e+00> : vector<8x128xf32>
    %887 = tpu.matmul %884, %886, %cst_924 {dimension_numbers = #tpu.dot_dimension_numbers<[1], [0], [0], [1], [0, 0, 1, 1], [], []>} : vector<8x112xbf16>, vector<112x128xbf16>, vector<8x128xf32> -> vector<8x128xf32>
    %888 = arith.addf %882, %887 : vector<8x128xf32>
    %c5_925 = arith.constant 5 : index
    %c0_926 = arith.constant 0 : index
    %c0_927 = arith.constant 0 : index
    %889 = vector.load %arg12[%c5_925, %c0_926, %c0_927] : memref<11x8x112xbf16, #tpu.memory_space<vmem>>, vector<1x8x112xbf16>
    %890 = vector.shape_cast %889 : vector<1x8x112xbf16> to vector<8x112xbf16>
    %c3_928 = arith.constant 3 : index
    %c0_929 = arith.constant 0 : index
    %c0_930 = arith.constant 0 : index
    %891 = vector.load %arg6[%c3_928, %c0_929, %c0_930] : memref<5x112x128xbf16, #tpu.memory_space<vmem>>, vector<1x112x128xbf16>
    %892 = vector.shape_cast %891 : vector<1x112x128xbf16> to vector<112x128xbf16>
    %cst_931 = arith.constant dense<0.000000e+00> : vector<8x128xf32>
    %893 = tpu.matmul %890, %892, %cst_931 {dimension_numbers = #tpu.dot_dimension_numbers<[1], [0], [0], [1], [0, 0, 1, 1], [], []>} : vector<8x112xbf16>, vector<112x128xbf16>, vector<8x128xf32> -> vector<8x128xf32>
    %894 = arith.addf %888, %893 : vector<8x128xf32>
    %c6_932 = arith.constant 6 : index
    %c0_933 = arith.constant 0 : index
    %c0_934 = arith.constant 0 : index
    %895 = vector.load %arg12[%c6_932, %c0_933, %c0_934] : memref<11x8x112xbf16, #tpu.memory_space<vmem>>, vector<1x8x112xbf16>
    %896 = vector.shape_cast %895 : vector<1x8x112xbf16> to vector<8x112xbf16>
    %c4_935 = arith.constant 4 : index
    %c0_936 = arith.constant 0 : index
    %c0_937 = arith.constant 0 : index
    %897 = vector.load %arg6[%c4_935, %c0_936, %c0_937] : memref<5x112x128xbf16, #tpu.memory_space<vmem>>, vector<1x112x128xbf16>
    %898 = vector.shape_cast %897 : vector<1x112x128xbf16> to vector<112x128xbf16>
    %cst_938 = arith.constant dense<0.000000e+00> : vector<8x128xf32>
    %899 = tpu.matmul %896, %898, %cst_938 {dimension_numbers = #tpu.dot_dimension_numbers<[1], [0], [0], [1], [0, 0, 1, 1], [], []>} : vector<8x112xbf16>, vector<112x128xbf16>, vector<8x128xf32> -> vector<8x128xf32>
    %900 = arith.addf %894, %899 : vector<8x128xf32>
    %c0_939 = arith.constant 0 : index
    %c0_940 = arith.constant 0 : index
    %901 = vector.load %arg7[%c0_939, %c0_940] : memref<1x128xf32, #tpu.memory_space<vmem>>, vector<1x128xf32>
    %902 = vector.broadcast %901 : vector<1x128xf32> to vector<8x128xf32>
    %903 = arith.addf %900, %902 : vector<8x128xf32>
    %cst_941 = arith.constant 0.000000e+00 : f32
    %904 = vector.broadcast %cst_941 : f32 to vector<8x128xf32>
    %905 = arith.maximumf %903, %904 : vector<8x128xf32>
    %c1_942 = arith.constant 1 : index
    %c0_943 = arith.constant 0 : index
    %c0_944 = arith.constant 0 : index
    %906 = vector.load %arg8[%c1_942, %c0_943, %c0_944] : memref<4x1x128xf32, #tpu.memory_space<vmem>>, vector<1x1x128xf32>
    %907 = vector.shape_cast %906 : vector<1x1x128xf32> to vector<1x128xf32>
    %908 = vector.broadcast %907 : vector<1x128xf32> to vector<8x128xf32>
    %909 = arith.mulf %905, %908 : vector<8x128xf32>
    %cst_945 = arith.constant dense<0.000000e+00> : vector<8xf32>
    %910 = vector.multi_reduction <add>, %909, %cst_945 [1] : vector<8x128xf32> to vector<8xf32>
    %911 = vector.shape_cast %910 : vector<8xf32> to vector<8x1xf32>
    %912 = arith.addf %871, %911 : vector<8x1xf32>
    %c4_946 = arith.constant 4 : index
    %c0_947 = arith.constant 0 : index
    %c0_948 = arith.constant 0 : index
    %913 = vector.load %arg12[%c4_946, %c0_947, %c0_948] : memref<11x8x112xbf16, #tpu.memory_space<vmem>>, vector<1x8x112xbf16>
    %914 = vector.shape_cast %913 : vector<1x8x112xbf16> to vector<8x112xbf16>
    %c0_949 = arith.constant 0 : index
    %c0_950 = arith.constant 0 : index
    %c0_951 = arith.constant 0 : index
    %915 = vector.load %arg6[%c0_949, %c0_950, %c0_951] : memref<5x112x128xbf16, #tpu.memory_space<vmem>>, vector<1x112x128xbf16>
    %916 = vector.shape_cast %915 : vector<1x112x128xbf16> to vector<112x128xbf16>
    %cst_952 = arith.constant dense<0.000000e+00> : vector<8x128xf32>
    %917 = tpu.matmul %914, %916, %cst_952 {dimension_numbers = #tpu.dot_dimension_numbers<[1], [0], [0], [1], [0, 0, 1, 1], [], []>} : vector<8x112xbf16>, vector<112x128xbf16>, vector<8x128xf32> -> vector<8x128xf32>
    %c5_953 = arith.constant 5 : index
    %c0_954 = arith.constant 0 : index
    %c0_955 = arith.constant 0 : index
    %918 = vector.load %arg12[%c5_953, %c0_954, %c0_955] : memref<11x8x112xbf16, #tpu.memory_space<vmem>>, vector<1x8x112xbf16>
    %919 = vector.shape_cast %918 : vector<1x8x112xbf16> to vector<8x112xbf16>
    %c1_956 = arith.constant 1 : index
    %c0_957 = arith.constant 0 : index
    %c0_958 = arith.constant 0 : index
    %920 = vector.load %arg6[%c1_956, %c0_957, %c0_958] : memref<5x112x128xbf16, #tpu.memory_space<vmem>>, vector<1x112x128xbf16>
    %921 = vector.shape_cast %920 : vector<1x112x128xbf16> to vector<112x128xbf16>
    %cst_959 = arith.constant dense<0.000000e+00> : vector<8x128xf32>
    %922 = tpu.matmul %919, %921, %cst_959 {dimension_numbers = #tpu.dot_dimension_numbers<[1], [0], [0], [1], [0, 0, 1, 1], [], []>} : vector<8x112xbf16>, vector<112x128xbf16>, vector<8x128xf32> -> vector<8x128xf32>
    %923 = arith.addf %917, %922 : vector<8x128xf32>
    %c6_960 = arith.constant 6 : index
    %c0_961 = arith.constant 0 : index
    %c0_962 = arith.constant 0 : index
    %924 = vector.load %arg12[%c6_960, %c0_961, %c0_962] : memref<11x8x112xbf16, #tpu.memory_space<vmem>>, vector<1x8x112xbf16>
    %925 = vector.shape_cast %924 : vector<1x8x112xbf16> to vector<8x112xbf16>
    %c2_963 = arith.constant 2 : index
    %c0_964 = arith.constant 0 : index
    %c0_965 = arith.constant 0 : index
    %926 = vector.load %arg6[%c2_963, %c0_964, %c0_965] : memref<5x112x128xbf16, #tpu.memory_space<vmem>>, vector<1x112x128xbf16>
    %927 = vector.shape_cast %926 : vector<1x112x128xbf16> to vector<112x128xbf16>
    %cst_966 = arith.constant dense<0.000000e+00> : vector<8x128xf32>
    %928 = tpu.matmul %925, %927, %cst_966 {dimension_numbers = #tpu.dot_dimension_numbers<[1], [0], [0], [1], [0, 0, 1, 1], [], []>} : vector<8x112xbf16>, vector<112x128xbf16>, vector<8x128xf32> -> vector<8x128xf32>
    %929 = arith.addf %923, %928 : vector<8x128xf32>
    %c7_967 = arith.constant 7 : index
    %c0_968 = arith.constant 0 : index
    %c0_969 = arith.constant 0 : index
    %930 = vector.load %arg12[%c7_967, %c0_968, %c0_969] : memref<11x8x112xbf16, #tpu.memory_space<vmem>>, vector<1x8x112xbf16>
    %931 = vector.shape_cast %930 : vector<1x8x112xbf16> to vector<8x112xbf16>
    %c3_970 = arith.constant 3 : index
    %c0_971 = arith.constant 0 : index
    %c0_972 = arith.constant 0 : index
    %932 = vector.load %arg6[%c3_970, %c0_971, %c0_972] : memref<5x112x128xbf16, #tpu.memory_space<vmem>>, vector<1x112x128xbf16>
    %933 = vector.shape_cast %932 : vector<1x112x128xbf16> to vector<112x128xbf16>
    %cst_973 = arith.constant dense<0.000000e+00> : vector<8x128xf32>
    %934 = tpu.matmul %931, %933, %cst_973 {dimension_numbers = #tpu.dot_dimension_numbers<[1], [0], [0], [1], [0, 0, 1, 1], [], []>} : vector<8x112xbf16>, vector<112x128xbf16>, vector<8x128xf32> -> vector<8x128xf32>
    %935 = arith.addf %929, %934 : vector<8x128xf32>
    %c8_974 = arith.constant 8 : index
    %c0_975 = arith.constant 0 : index
    %c0_976 = arith.constant 0 : index
    %936 = vector.load %arg12[%c8_974, %c0_975, %c0_976] : memref<11x8x112xbf16, #tpu.memory_space<vmem>>, vector<1x8x112xbf16>
    %937 = vector.shape_cast %936 : vector<1x8x112xbf16> to vector<8x112xbf16>
    %c4_977 = arith.constant 4 : index
    %c0_978 = arith.constant 0 : index
    %c0_979 = arith.constant 0 : index
    %938 = vector.load %arg6[%c4_977, %c0_978, %c0_979] : memref<5x112x128xbf16, #tpu.memory_space<vmem>>, vector<1x112x128xbf16>
    %939 = vector.shape_cast %938 : vector<1x112x128xbf16> to vector<112x128xbf16>
    %cst_980 = arith.constant dense<0.000000e+00> : vector<8x128xf32>
    %940 = tpu.matmul %937, %939, %cst_980 {dimension_numbers = #tpu.dot_dimension_numbers<[1], [0], [0], [1], [0, 0, 1, 1], [], []>} : vector<8x112xbf16>, vector<112x128xbf16>, vector<8x128xf32> -> vector<8x128xf32>
    %941 = arith.addf %935, %940 : vector<8x128xf32>
    %c0_981 = arith.constant 0 : index
    %c0_982 = arith.constant 0 : index
    %942 = vector.load %arg7[%c0_981, %c0_982] : memref<1x128xf32, #tpu.memory_space<vmem>>, vector<1x128xf32>
    %943 = vector.broadcast %942 : vector<1x128xf32> to vector<8x128xf32>
    %944 = arith.addf %941, %943 : vector<8x128xf32>
    %cst_983 = arith.constant 0.000000e+00 : f32
    %945 = vector.broadcast %cst_983 : f32 to vector<8x128xf32>
    %946 = arith.maximumf %944, %945 : vector<8x128xf32>
    %c2_984 = arith.constant 2 : index
    %c0_985 = arith.constant 0 : index
    %c0_986 = arith.constant 0 : index
    %947 = vector.load %arg8[%c2_984, %c0_985, %c0_986] : memref<4x1x128xf32, #tpu.memory_space<vmem>>, vector<1x1x128xf32>
    %948 = vector.shape_cast %947 : vector<1x1x128xf32> to vector<1x128xf32>
    %949 = vector.broadcast %948 : vector<1x128xf32> to vector<8x128xf32>
    %950 = arith.mulf %946, %949 : vector<8x128xf32>
    %cst_987 = arith.constant dense<0.000000e+00> : vector<8xf32>
    %951 = vector.multi_reduction <add>, %950, %cst_987 [1] : vector<8x128xf32> to vector<8xf32>
    %952 = vector.shape_cast %951 : vector<8xf32> to vector<8x1xf32>
    %953 = arith.addf %912, %952 : vector<8x1xf32>
    %c6_988 = arith.constant 6 : index
    %c0_989 = arith.constant 0 : index
    %c0_990 = arith.constant 0 : index
    %954 = vector.load %arg12[%c6_988, %c0_989, %c0_990] : memref<11x8x112xbf16, #tpu.memory_space<vmem>>, vector<1x8x112xbf16>
    %955 = vector.shape_cast %954 : vector<1x8x112xbf16> to vector<8x112xbf16>
    %c0_991 = arith.constant 0 : index
    %c0_992 = arith.constant 0 : index
    %c0_993 = arith.constant 0 : index
    %956 = vector.load %arg6[%c0_991, %c0_992, %c0_993] : memref<5x112x128xbf16, #tpu.memory_space<vmem>>, vector<1x112x128xbf16>
    %957 = vector.shape_cast %956 : vector<1x112x128xbf16> to vector<112x128xbf16>
    %cst_994 = arith.constant dense<0.000000e+00> : vector<8x128xf32>
    %958 = tpu.matmul %955, %957, %cst_994 {dimension_numbers = #tpu.dot_dimension_numbers<[1], [0], [0], [1], [0, 0, 1, 1], [], []>} : vector<8x112xbf16>, vector<112x128xbf16>, vector<8x128xf32> -> vector<8x128xf32>
    %c7_995 = arith.constant 7 : index
    %c0_996 = arith.constant 0 : index
    %c0_997 = arith.constant 0 : index
    %959 = vector.load %arg12[%c7_995, %c0_996, %c0_997] : memref<11x8x112xbf16, #tpu.memory_space<vmem>>, vector<1x8x112xbf16>
    %960 = vector.shape_cast %959 : vector<1x8x112xbf16> to vector<8x112xbf16>
    %c1_998 = arith.constant 1 : index
    %c0_999 = arith.constant 0 : index
    %c0_1000 = arith.constant 0 : index
    %961 = vector.load %arg6[%c1_998, %c0_999, %c0_1000] : memref<5x112x128xbf16, #tpu.memory_space<vmem>>, vector<1x112x128xbf16>
    %962 = vector.shape_cast %961 : vector<1x112x128xbf16> to vector<112x128xbf16>
    %cst_1001 = arith.constant dense<0.000000e+00> : vector<8x128xf32>
    %963 = tpu.matmul %960, %962, %cst_1001 {dimension_numbers = #tpu.dot_dimension_numbers<[1], [0], [0], [1], [0, 0, 1, 1], [], []>} : vector<8x112xbf16>, vector<112x128xbf16>, vector<8x128xf32> -> vector<8x128xf32>
    %964 = arith.addf %958, %963 : vector<8x128xf32>
    %c8_1002 = arith.constant 8 : index
    %c0_1003 = arith.constant 0 : index
    %c0_1004 = arith.constant 0 : index
    %965 = vector.load %arg12[%c8_1002, %c0_1003, %c0_1004] : memref<11x8x112xbf16, #tpu.memory_space<vmem>>, vector<1x8x112xbf16>
    %966 = vector.shape_cast %965 : vector<1x8x112xbf16> to vector<8x112xbf16>
    %c2_1005 = arith.constant 2 : index
    %c0_1006 = arith.constant 0 : index
    %c0_1007 = arith.constant 0 : index
    %967 = vector.load %arg6[%c2_1005, %c0_1006, %c0_1007] : memref<5x112x128xbf16, #tpu.memory_space<vmem>>, vector<1x112x128xbf16>
    %968 = vector.shape_cast %967 : vector<1x112x128xbf16> to vector<112x128xbf16>
    %cst_1008 = arith.constant dense<0.000000e+00> : vector<8x128xf32>
    %969 = tpu.matmul %966, %968, %cst_1008 {dimension_numbers = #tpu.dot_dimension_numbers<[1], [0], [0], [1], [0, 0, 1, 1], [], []>} : vector<8x112xbf16>, vector<112x128xbf16>, vector<8x128xf32> -> vector<8x128xf32>
    %970 = arith.addf %964, %969 : vector<8x128xf32>
    %c9_1009 = arith.constant 9 : index
    %c0_1010 = arith.constant 0 : index
    %c0_1011 = arith.constant 0 : index
    %971 = vector.load %arg12[%c9_1009, %c0_1010, %c0_1011] : memref<11x8x112xbf16, #tpu.memory_space<vmem>>, vector<1x8x112xbf16>
    %972 = vector.shape_cast %971 : vector<1x8x112xbf16> to vector<8x112xbf16>
    %c3_1012 = arith.constant 3 : index
    %c0_1013 = arith.constant 0 : index
    %c0_1014 = arith.constant 0 : index
    %973 = vector.load %arg6[%c3_1012, %c0_1013, %c0_1014] : memref<5x112x128xbf16, #tpu.memory_space<vmem>>, vector<1x112x128xbf16>
    %974 = vector.shape_cast %973 : vector<1x112x128xbf16> to vector<112x128xbf16>
    %cst_1015 = arith.constant dense<0.000000e+00> : vector<8x128xf32>
    %975 = tpu.matmul %972, %974, %cst_1015 {dimension_numbers = #tpu.dot_dimension_numbers<[1], [0], [0], [1], [0, 0, 1, 1], [], []>} : vector<8x112xbf16>, vector<112x128xbf16>, vector<8x128xf32> -> vector<8x128xf32>
    %976 = arith.addf %970, %975 : vector<8x128xf32>
    %c10_1016 = arith.constant 10 : index
    %c0_1017 = arith.constant 0 : index
    %c0_1018 = arith.constant 0 : index
    %977 = vector.load %arg12[%c10_1016, %c0_1017, %c0_1018] : memref<11x8x112xbf16, #tpu.memory_space<vmem>>, vector<1x8x112xbf16>
    %978 = vector.shape_cast %977 : vector<1x8x112xbf16> to vector<8x112xbf16>
    %c4_1019 = arith.constant 4 : index
    %c0_1020 = arith.constant 0 : index
    %c0_1021 = arith.constant 0 : index
    %979 = vector.load %arg6[%c4_1019, %c0_1020, %c0_1021] : memref<5x112x128xbf16, #tpu.memory_space<vmem>>, vector<1x112x128xbf16>
    %980 = vector.shape_cast %979 : vector<1x112x128xbf16> to vector<112x128xbf16>
    %cst_1022 = arith.constant dense<0.000000e+00> : vector<8x128xf32>
    %981 = tpu.matmul %978, %980, %cst_1022 {dimension_numbers = #tpu.dot_dimension_numbers<[1], [0], [0], [1], [0, 0, 1, 1], [], []>} : vector<8x112xbf16>, vector<112x128xbf16>, vector<8x128xf32> -> vector<8x128xf32>
    %982 = arith.addf %976, %981 : vector<8x128xf32>
    %c0_1023 = arith.constant 0 : index
    %c0_1024 = arith.constant 0 : index
    %983 = vector.load %arg7[%c0_1023, %c0_1024] : memref<1x128xf32, #tpu.memory_space<vmem>>, vector<1x128xf32>
    %984 = vector.broadcast %983 : vector<1x128xf32> to vector<8x128xf32>
    %985 = arith.addf %982, %984 : vector<8x128xf32>
    %cst_1025 = arith.constant 0.000000e+00 : f32
    %986 = vector.broadcast %cst_1025 : f32 to vector<8x128xf32>
    %987 = arith.maximumf %985, %986 : vector<8x128xf32>
    %c3_1026 = arith.constant 3 : index
    %c0_1027 = arith.constant 0 : index
    %c0_1028 = arith.constant 0 : index
    %988 = vector.load %arg8[%c3_1026, %c0_1027, %c0_1028] : memref<4x1x128xf32, #tpu.memory_space<vmem>>, vector<1x1x128xf32>
    %989 = vector.shape_cast %988 : vector<1x1x128xf32> to vector<1x128xf32>
    %990 = vector.broadcast %989 : vector<1x128xf32> to vector<8x128xf32>
    %991 = arith.mulf %987, %990 : vector<8x128xf32>
    %cst_1029 = arith.constant dense<0.000000e+00> : vector<8xf32>
    %992 = vector.multi_reduction <add>, %991, %cst_1029 [1] : vector<8x128xf32> to vector<8xf32>
    %993 = vector.shape_cast %992 : vector<8xf32> to vector<8x1xf32>
    %994 = arith.addf %953, %993 : vector<8x1xf32>
    %c0_1030 = arith.constant 0 : index
    %c0_1031 = arith.constant 0 : index
    %995 = memref.load %arg9[%c0_1030, %c0_1031] : memref<1x1xf32, #tpu.memory_space<smem>>
    %996 = vector.broadcast %995 : f32 to vector<8x1xf32>
    %997 = arith.addf %994, %996 : vector<8x1xf32>
    %c0_1032 = arith.constant 0 : index
    %c0_1033 = arith.constant 0 : index
    %998 = vector.load %arg10[%c0_1032, %c0_1033] : memref<8x1xf32, #tpu.memory_space<vmem>>, vector<8x1xf32>
    tpu.vector_store %arg10[%c0_1032, %c0_1033], %997 {strides = array<i32>} : memref<8x1xf32, #tpu.memory_space<vmem>>, vector<8x1xf32>,
    return
  }
  func.func @transform_0(%arg0: i32) -> (i32, i32, i32) {
    %c0_i32 = arith.constant 0 : i32
    %c0_i32_0 = arith.constant 0 : i32
    %c0_i32_1 = arith.constant 0 : i32
    return %c0_i32, %arg0, %c0_i32_0 : i32, i32, i32
  }
  func.func @transform_1(%arg0: i32) -> (i32, i32, i32) {
    %c0_i32 = arith.constant 0 : i32
    %c0_i32_0 = arith.constant 0 : i32
    %c0_i32_1 = arith.constant 0 : i32
    %c0_i32_2 = arith.constant 0 : i32
    return %c0_i32, %c0_i32_0, %c0_i32_1 : i32, i32, i32
  }
  func.func @transform_2(%arg0: i32) -> (i32, i32) {
    %c0_i32 = arith.constant 0 : i32
    %c0_i32_0 = arith.constant 0 : i32
    %c0_i32_1 = arith.constant 0 : i32
    return %c0_i32, %c0_i32_0 : i32, i32
  }
  func.func @transform_3(%arg0: i32) -> (i32, i32, i32) {
    %c0_i32 = arith.constant 0 : i32
    %c0_i32_0 = arith.constant 0 : i32
    %c0_i32_1 = arith.constant 0 : i32
    %c0_i32_2 = arith.constant 0 : i32
    return %c0_i32, %c0_i32_0, %c0_i32_1 : i32, i32, i32
  }
  func.func @transform_4(%arg0: i32) -> (i32, i32) {
    %c0_i32 = arith.constant 0 : i32
    %c0_i32_0 = arith.constant 0 : i32
    %c0_i32_1 = arith.constant 0 : i32
    return %c0_i32, %c0_i32_0 : i32, i32
  }
  func.func @transform_5(%arg0: i32) -> (i32, i32, i32) {
    %c0_i32 = arith.constant 0 : i32
    %c0_i32_0 = arith.constant 0 : i32
    %c0_i32_1 = arith.constant 0 : i32
    %c0_i32_2 = arith.constant 0 : i32
    return %c0_i32, %c0_i32_0, %c0_i32_1 : i32, i32, i32
  }
  func.func @transform_6(%arg0: i32) -> (i32, i32) {
    %c0_i32 = arith.constant 0 : i32
    %c0_i32_0 = arith.constant 0 : i32
    %c0_i32_1 = arith.constant 0 : i32
    return %c0_i32, %c0_i32_0 : i32, i32
  }
  func.func @transform_7(%arg0: i32) -> (i32, i32, i32) {
    %c0_i32 = arith.constant 0 : i32
    %c0_i32_0 = arith.constant 0 : i32
    %c0_i32_1 = arith.constant 0 : i32
    %c0_i32_2 = arith.constant 0 : i32
    return %c0_i32, %c0_i32_0, %c0_i32_1 : i32, i32, i32
  }
  func.func @transform_8(%arg0: i32) -> (i32, i32) {
    %c0_i32 = arith.constant 0 : i32
    %c0_i32_0 = arith.constant 0 : i32
    %c0_i32_1 = arith.constant 0 : i32
    return %c0_i32, %c0_i32_0 : i32, i32
  }
  func.func @transform_9(%arg0: i32) -> (i32, i32) {
    %c0_i32 = arith.constant 0 : i32
    %c0_i32_0 = arith.constant 0 : i32
    return %arg0, %c0_i32 : i32, i32
  }
}

</mosaic_0001>

<llo_original>
// kernel: tile.18
$region0: #{tile.18}
  #allocation0 [shape = 's32[1]{0}', space=sflag, size = 0x4, scoped, tag = 'scoped memory for tile.18']
  %s0 = inlined_call_operand.vmem [shape: f32[8], index: 0, kind: input, shape index: {}]
  %s1 = inlined_call_operand.vmem [shape: f32[14,8], index: 1, kind: output, shape index: {}]
  // Predicated region
  $region2: #{tile.18} parent=0 // pred_check
    _
  $region3: #{tile.18} parent=0 // pred_check_branch
    %3 = sbr.rel (0) target = $region5
  $region4: #{tile.18} parent=0 // pred_region
    _
  $region5: #{tile.18} parent=0 // pred_fallthru
    _
  %v4 = vld [vmem:[%s0] ss:$0 sm:$0xff]
  %5 = vst [vmem:[%s1] sm:$0xff] %v4
  %s6 = scalar_lea.vmem %s1, 8
  %7 = vst [vmem:[%s6] sm:$0xff] %v4

// kernel: tile.19
$region0: #{tile.19}
  %s0 = inlined_call_operand.vmem [shape: f32[14,8], index: 0, kind: input, shape index: {}]
  %s1 = inlined_call_operand.vmem [shape: f32[1,112], index: 1, kind: output, shape index: {}]
  $region1: #{tile.19} parent=0
    #allocation0 [shape = 'u8[4096]{0}', space=vmem, size = 0x1000, scoped, tag = 'scoped mem for output reshape']
    %v2 = vld [vmem:[%s0] sm:$0x1]
    %vm3 = vcmask 64512
    %4 = vst.msk [vmem:[#allocation0] sm:$0x1] %vm3, %v2
    %s5 = scalar_lea.vmem %s0, 13
    %v6 = vld [vmem:[%s5] sm:$0x1]
    %7 = vrot.lane.b32.xlu0 %v6, 104
    %v8 = vpop.permute.xlu0 %7
    %vm9 = vcmask 917312
    %10 = vst.msk [vmem:[#allocation0] sm:$0x1] %vm9, %v8
    %s11 = scalar_lea.vmem %s0, 12
    %v12 = vld [vmem:[%s11] sm:$0x1]
    %13 = vrot.lane.b32.xlu0 %v12, 96
    %v14 = vpop.permute.xlu0 %13
    %vm15 = vcmask 851712
    %16 = vst.msk [vmem:[#allocation0] sm:$0x1] %vm15, %v14
    %s17 = scalar_lea.vmem %s0, 11
    %v18 = vld [vmem:[%s17] sm:$0x1]
    %19 = vrot.lane.b32.xlu0 %v18, 88
    %v20 = vpop.permute.xlu0 %19
    %vm21 = vcmask 786112
    %22 = vst.msk [vmem:[#allocation0] sm:$0x1] %vm21, %v20
    %s23 = scalar_lea.vmem %s0, 10
    %v24 = vld [vmem:[%s23] sm:$0x1]
    %25 = vrot.lane.b32.xlu0 %v24, 80
    %v26 = vpop.permute.xlu0 %25
    %vm27 = vcmask 720512
    %28 = vst.msk [vmem:[#allocation0] sm:$0x1] %vm27, %v26
    %s29 = scalar_lea.vmem %s0, 9
    %v30 = vld [vmem:[%s29] sm:$0x1]
    %31 = vrot.lane.b32.xlu0 %v30, 72
    %v32 = vpop.permute.xlu0 %31
    %vm33 = vcmask 654912
    %34 = vst.msk [vmem:[#allocation0] sm:$0x1] %vm33, %v32
    %s35 = scalar_lea.vmem %s0, 8
    %v36 = vld [vmem:[%s35] sm:$0x1]
    %37 = vrot.lane.b32.xlu0 %v36, 64
    %v38 = vpop.permute.xlu0 %37
    %vm39 = vcmask 589312
    %40 = vst.msk [vmem:[#allocation0] sm:$0x1] %vm39, %v38
    %s41 = scalar_lea.vmem %s0, 7
    %v42 = vld [vmem:[%s41] sm:$0x1]
    %43 = vrot.lane.b32.xlu0 %v42, 56
    %v44 = vpop.permute.xlu0 %43
    %vm45 = vcmask 523712
    %46 = vst.msk [vmem:[#allocation0] sm:$0x1] %vm45, %v44
    %s47 = scalar_lea.vmem %s0, 6
    %v48 = vld [vmem:[%s47] sm:$0x1]
    %49 = vrot.lane.b32.xlu0 %v48, 48
    %v50 = vpop.permute.xlu0 %49
    %vm51 = vcmask 458112
    %52 = vst.msk [vmem:[#allocation0] sm:$0x1] %vm51, %v50
    %s53 = scalar_lea.vmem %s0, 5
    %v54 = vld [vmem:[%s53] sm:$0x1]
    %55 = vrot.lane.b32.xlu0 %v54, 40
    %v56 = vpop.permute.xlu0 %55
    %vm57 = vcmask 392512
    %58 = vst.msk [vmem:[#allocation0] sm:$0x1] %vm57, %v56
    %s59 = scalar_lea.vmem %s0, 4
    %v60 = vld [vmem:[%s59] sm:$0x1]
    %61 = vrot.lane.b32.xlu0 %v60, 32
    %v62 = vpop.permute.xlu0 %61
    %vm63 = vcmask 326912
    %64 = vst.msk [vmem:[#allocation0] sm:$0x1] %vm63, %v62
    %s65 = scalar_lea.vmem %s0, 3
    %v66 = vld [vmem:[%s65] sm:$0x1]
    %67 = vrot.lane.b32.xlu0 %v66, 24
    %v68 = vpop.permute.xlu0 %67
    %vm69 = vcmask 261312
    %70 = vst.msk [vmem:[#allocation0] sm:$0x1] %vm69, %v68
    %s71 = scalar_lea.vmem %s0, 2
    %v72 = vld [vmem:[%s71] sm:$0x1]
    %73 = vrot.lane.b32.xlu0 %v72, 16
    %v74 = vpop.permute.xlu0 %73
    %vm75 = vcmask 195712
    %76 = vst.msk [vmem:[#allocation0] sm:$0x1] %vm75, %v74
    %s77 = scalar_lea.vmem %s0, 1
    %v78 = vld [vmem:[%s77] sm:$0x1]
    %79 = vrot.lane.b32.xlu0 %v78, 8
    %v80 = vpop.permute.xlu0 %79
    %vm81 = vcmask 130112
    %82 = vst.msk [vmem:[#allocation0] sm:$0x1] %vm81, %v80
    %s84 = ssub.s32 2, 1
    %v85 = vld [vmem:[#allocation0] sm:%s84]
    %s87 = ssub.s32 2, 1
    %88 = vst [vmem:[%s1] sm:%s87] %v85

// kernel: tile.23
$region0: #{tile.23}
  #allocation0 [shape = 's32[1]{0}', space=sflag, size = 0x4, scoped, tag = 'scoped memory for tile.23']
  %s0 = inlined_call_operand.vmem [shape: f32[16], index: 0, kind: input, shape index: {}]
  %s1 = inlined_call_operand.vmem [shape: f32[7,16], index: 1, kind: output, shape index: {}]
  // Predicated region
  $region2: #{tile.23} parent=0 // pred_check
    _
  $region3: #{tile.23} parent=0 // pred_check_branch
    %3 = sbr.rel (0) target = $region5
  $region4: #{tile.23} parent=0 // pred_region
    _
  $region5: #{tile.23} parent=0 // pred_fallthru
    _
  %v4 = vld [vmem:[%s0] ss:$0 sm:$0xff]
  %5 = vst [vmem:[%s1] sm:$0xff] %v4

// kernel: tile.24
$region0: #{tile.24}
  %s0 = inlined_call_operand.vmem [shape: f32[7,16], index: 0, kind: input, shape index: {}]
  %s1 = inlined_call_operand.vmem [shape: f32[1,112], index: 1, kind: output, shape index: {}]
  $region1: #{tile.24} parent=0
    #allocation0 [shape = 'u8[4096]{0}', space=vmem, size = 0x1000, scoped, tag = 'scoped mem for output reshape']
    %v2 = vld [vmem:[%s0] sm:$0x1]
    %vm3 = vcmask 130048
    %4 = vst.msk [vmem:[#allocation0] sm:$0x1] %vm3, %v2
    %s5 = scalar_lea.vmem %s0, 6
    %v6 = vld [vmem:[%s5] sm:$0x1]
    %7 = vrot.lane.b32.xlu0 %v6, 96
    %v8 = vpop.permute.xlu0 %7
    %vm9 = vcmask 917248
    %10 = vst.msk [vmem:[#allocation0] sm:$0x1] %vm9, %v8
    %s11 = scalar_lea.vmem %s0, 5
    %v12 = vld [vmem:[%s11] sm:$0x1]
    %13 = vrot.lane.b32.xlu0 %v12, 80
    %v14 = vpop.permute.xlu0 %13
    %vm15 = vcmask 786048
    %16 = vst.msk [vmem:[#allocation0] sm:$0x1] %vm15, %v14
    %s17 = scalar_lea.vmem %s0, 4
    %v18 = vld [vmem:[%s17] sm:$0x1]
    %19 = vrot.lane.b32.xlu0 %v18, 64
    %v20 = vpop.permute.xlu0 %19
    %vm21 = vcmask 654848
    %22 = vst.msk [vmem:[#allocation0] sm:$0x1] %vm21, %v20
    %s23 = scalar_lea.vmem %s0, 3
    %v24 = vld [vmem:[%s23] sm:$0x1]
    %25 = vrot.lane.b32.xlu0 %v24, 48
    %v26 = vpop.permute.xlu0 %25
    %vm27 = vcmask 523648
    %28 = vst.msk [vmem:[#allocation0] sm:$0x1] %vm27, %v26
    %s29 = scalar_lea.vmem %s0, 2
    %v30 = vld [vmem:[%s29] sm:$0x1]
    %31 = vrot.lane.b32.xlu0 %v30, 32
    %v32 = vpop.permute.xlu0 %31
    %vm33 = vcmask 392448
    %34 = vst.msk [vmem:[#allocation0] sm:$0x1] %vm33, %v32
    %s35 = scalar_lea.vmem %s0, 1
    %v36 = vld [vmem:[%s35] sm:$0x1]
    %37 = vrot.lane.b32.xlu0 %v36, 16
    %v38 = vpop.permute.xlu0 %37
    %vm39 = vcmask 261248
    %40 = vst.msk [vmem:[#allocation0] sm:$0x1] %vm39, %v38
    %s42 = ssub.s32 2, 1
    %v43 = vld [vmem:[#allocation0] sm:%s42]
    %s45 = ssub.s32 2, 1
    %46 = vst [vmem:[%s1] sm:%s45] %v43

// kernel: tile.28
$region0: #{tile.28}
  #allocation0 [shape = 's32[1]{0}', space=sflag, size = 0x4, scoped, tag = 'scoped memory for tile.28']
  %s0 = inlined_call_operand.vmem [shape: f32[32], index: 0, kind: input, shape index: {}]
  %s1 = inlined_call_operand.vmem [shape: f32[4,32], index: 1, kind: output, shape index: {}]
  // Predicated region
  $region2: #{tile.28} parent=0 // pred_check
    _
  $region3: #{tile.28} parent=0 // pred_check_branch
    %3 = sbr.rel (0) target = $region5
  $region4: #{tile.28} parent=0 // pred_region
    _
  $region5: #{tile.28} parent=0 // pred_fallthru
    _
  %v4 = vld [vmem:[%s0] ss:$0 sm:$0xff]
  %5 = vst [vmem:[%s1] sm:$0xf] %v4

// kernel: tile.29
$region0: #{tile.29}
  %s0 = inlined_call_operand.vmem [shape: f32[4,32], index: 0, kind: input, shape index: {}]
  %s1 = inlined_call_operand.vmem [shape: f32[1,128], index: 1, kind: output, shape index: {}]
  $region1: #{tile.29} parent=0
    #allocation0 [shape = 'u8[4096]{0}', space=vmem, size = 0x1000, scoped, tag = 'scoped mem for output reshape']
    #allocation1 [shape = 'u8[4096]{0}', space=vmem, size = 0x1000, scoped, tag = 'scoped mem for input reshape']
    %s3 = ssub.s32 16, 1
    %v4 = vld [vmem:[%s0] sm:%s3]
    %5 = vst [vmem:[#allocation1] sm:%s3] %v4
    %v6 = vld [vmem:[#allocation1] sm:$0x1]
    %vm7 = vcmask 261120
    %8 = vst.msk [vmem:[#allocation0] sm:$0x1] %vm7, %v6
    %s9 = scalar_lea.vmem [#allocation1], 3
    %v10 = vld [vmem:[%s9] sm:$0x1]
    %11 = vrot.lane.b32.xlu0 %v10, 96
    %v12 = vpop.permute.xlu0 %11
    %vm13 = vcmask 1048320
    %14 = vst.msk [vmem:[#allocation0] sm:$0x1] %vm13, %v12
    %s15 = scalar_lea.vmem [#allocation1], 2
    %v16 = vld [vmem:[%s15] sm:$0x1]
    %17 = vrot.lane.b32.xlu0 %v16, 64
    %v18 = vpop.permute.xlu0 %17
    %vm19 = vcmask 785920
    %20 = vst.msk [vmem:[#allocation0] sm:$0x1] %vm19, %v18
    %s21 = scalar_lea.vmem [#allocation1], 1
    %v22 = vld [vmem:[%s21] sm:$0x1]
    %23 = vrot.lane.b32.xlu0 %v22, 32
    %v24 = vpop.permute.xlu0 %23
    %vm25 = vcmask 523520
    %26 = vst.msk [vmem:[#allocation0] sm:$0x1] %vm25, %v24
    %s28 = ssub.s32 2, 1
    %v29 = vld [vmem:[#allocation0] sm:%s28]
    %s31 = ssub.s32 2, 1
    %32 = vst [vmem:[%s1] sm:%s31] %v29

// kernel: mnist_discriminator_forward.1
$region0: #{mnist_discriminator_forward.1}
  #allocation0 [shape = 'u32[]', space=smem, size = 0x4, offset = 0x4, fixed_abs, tag = 'smem constant byte address 0x4 - core index']
  #allocation1 [shape = 'u32[72,128]{1,0:T(1,128)}', space=vmem, size = 0x9000, scoped, tag = 'internal scratch']
  #allocation2 [shape = 'bf16[18,8,112]{2,1,0:T(8,128)(2,1)}', space=vmem, size = 0x9000, scoped, tag = 'scratch operand']
  #allocation3 [shape = 'bf16[11,8,112]{2,1,0:T(8,128)(2,1)}', space=vmem, size = 0x5800, scoped, tag = 'scratch operand']
  #allocation4 [shape = 'f32[1,1]{1,0:T(1,128)S(6)}', space=smem, size = 0x200, scoped, tag = 'scoped memory for mnist_discriminator_forward.1']
  %s0 = inlined_call_operand.vmem [shape: bf16[32,8,28], index: 0, kind: input, shape index: {}]
  %s1 = inlined_call_operand.vmem [shape: bf16[5,28,112], index: 1, kind: input, shape index: {}]
  %s2 = inlined_call_operand.vmem [shape: f32[1,112], index: 2, kind: input, shape index: {}]
  %s3 = inlined_call_operand.vmem [shape: bf16[5,112,112], index: 3, kind: input, shape index: {}]
  %s4 = inlined_call_operand.vmem [shape: f32[1,112], index: 4, kind: input, shape index: {}]
  %s5 = inlined_call_operand.vmem [shape: bf16[5,112,128], index: 5, kind: input, shape index: {}]
  %s6 = inlined_call_operand.vmem [shape: f32[1,128], index: 6, kind: input, shape index: {}]
  %s7 = inlined_call_operand.vmem [shape: f32[4,1,128], index: 7, kind: input, shape index: {}]
  %s8 = inlined_call_operand.<no memory space> [shape: f32[1,1], index: 8, kind: input, shape index: {}]
  %s9 = inlined_call_operand.vmem [shape: f32[8,1], index: 9, kind: output, shape index: {}]
  %s10 = sld [smem:[#allocation0]]
  $region46: #{mnist_discriminator_forward.1} parent=0
    _
  %s12 = ssub.s32 1, %s10
  %s13 = scalar_select 0, %s12, %s10
  %14 = sst [smem:[#allocation4]] %s8
  // Predicated region
  $region2: #{mnist_discriminator_forward.1} parent=0 // pred_check
    _
  $region3: #{mnist_discriminator_forward.1} parent=0 // pred_check_branch
    %16 = sbr.rel (0) target = $region5
  $region4: #{mnist_discriminator_forward.1} parent=0 // pred_region
    _
  $region5: #{mnist_discriminator_forward.1} parent=0 // pred_fallthru
    _
  // Predicated region
  $region6: #{mnist_discriminator_forward.1} parent=0 // pred_check
    _
  $region7: #{mnist_discriminator_forward.1} parent=0 // pred_check_branch
    %18 = sbr.rel (0) target = $region9
  $region8: #{mnist_discriminator_forward.1} parent=0 // pred_region
    _
  $region9: #{mnist_discriminator_forward.1} parent=0 // pred_fallthru
    _
  // Predicated region
  $region10: #{mnist_discriminator_forward.1} parent=0 // pred_check
    _
  $region11: #{mnist_discriminator_forward.1} parent=0 // pred_check_branch
    %20 = sbr.rel (0) target = $region13
  $region12: #{mnist_discriminator_forward.1} parent=0 // pred_region
    _
  $region13: #{mnist_discriminator_forward.1} parent=0 // pred_fallthru
    _
  // Predicated region
  $region14: #{mnist_discriminator_forward.1} parent=0 // pred_check
    _
  $region15: #{mnist_discriminator_forward.1} parent=0 // pred_check_branch
    %22 = sbr.rel (0) target = $region17
  $region16: #{mnist_discriminator_forward.1} parent=0 // pred_region
    _
  $region17: #{mnist_discriminator_forward.1} parent=0 // pred_fallthru
    _
  // Predicated region
  $region18: #{mnist_discriminator_forward.1} parent=0 // pred_check
    _
  $region19: #{mnist_discriminator_forward.1} parent=0 // pred_check_branch
    %24 = sbr.rel (0) target = $region21
  $region20: #{mnist_discriminator_forward.1} parent=0 // pred_region
    _
  $region21: #{mnist_discriminator_forward.1} parent=0 // pred_fallthru
    _
  // Predicated region
  $region22: #{mnist_discriminator_forward.1} parent=0 // pred_check
    _
  $region23: #{mnist_discriminator_forward.1} parent=0 // pred_check_branch
    %26 = sbr.rel (0) target = $region25
  $region24: #{mnist_discriminator_forward.1} parent=0 // pred_region
    _
  $region25: #{mnist_discriminator_forward.1} parent=0 // pred_fallthru
    _
  // Predicated region
  $region26: #{mnist_discriminator_forward.1} parent=0 // pred_check
    _
  $region27: #{mnist_discriminator_forward.1} parent=0 // pred_check_branch
    %28 = sbr.rel (0) target = $region29
  $region28: #{mnist_discriminator_forward.1} parent=0 // pred_region
    _
  $region29: #{mnist_discriminator_forward.1} parent=0 // pred_fallthru
    _
  // Predicated region
  $region30: #{mnist_discriminator_forward.1} parent=0 // pred_check
    _
  $region31: #{mnist_discriminator_forward.1} parent=0 // pred_check_branch
    %30 = sbr.rel (0) target = $region33
  $region32: #{mnist_discriminator_forward.1} parent=0 // pred_region
    _
  $region33: #{mnist_discriminator_forward.1} parent=0 // pred_fallthru
    _
  // Predicated region
  $region34: #{mnist_discriminator_forward.1} parent=0 // pred_check
    _
  $region35: #{mnist_discriminator_forward.1} parent=0 // pred_check_branch
    %32 = sbr.rel (0) target = $region37
  $region36: #{mnist_discriminator_forward.1} parent=0 // pred_region
    _
  $region37: #{mnist_discriminator_forward.1} parent=0 // pred_fallthru
    _
  %vm34 = vcmask 912384
  %35 = vst.msk [vmem:[#allocation2] sm:$0xf] %vm34, 0
  %s36 = scalar_lea.vmem [#allocation2], 4
  %37 = vst.msk [vmem:[%s36] sm:$0xf] %vm34, 0
  %s38 = scalar_lea.vmem [#allocation2], 64
  %39 = vst.msk [vmem:[%s38] sm:$0xf] %vm34, 0
  %s40 = scalar_lea.vmem [#allocation2], 68
  %41 = vst.msk [vmem:[%s40] sm:$0xf] %vm34, 0
  %42 = vst.msk [vmem:[#allocation3] sm:$0xf] %vm34, 0
  %s43 = scalar_lea.vmem [#allocation3], 4
  %44 = vst.msk [vmem:[%s43] sm:$0xf] %vm34, 0
  %s45 = scalar_lea.vmem [#allocation3], 36
  %46 = vst.msk [vmem:[%s45] sm:$0xf] %vm34, 0
  %s47 = scalar_lea.vmem [#allocation3], 40
  %48 = vst.msk [vmem:[%s47] sm:$0xf] %vm34, 0
  %v49 = vld [vmem:[%s0] sm:$0xf]
  %v50 = vld [vmem:[%s1] sm:$0xf]
  %v51 = vld [vmem:[%s1 + $0x4] sm:$0xf]
  %v52 = vld [vmem:[%s1 + $0x8] sm:$0xf]
  %v53 = vld [vmem:[%s1 + $0xc] sm:$0x3]
  %s54 = scalar_lea.vmem %s0, 4
  %v55 = vld [vmem:[%s54] sm:$0xf]
  %s56 = scalar_lea.vmem %s1, 16
  %v57 = vld [vmem:[%s56] sm:$0xf]
  %v58 = vld [vmem:[%s56 + $0x4] sm:$0xf]
  %v59 = vld [vmem:[%s56 + $0x8] sm:$0xf]
  %v60 = vld [vmem:[%s56 + $0xc] sm:$0x3]
  %v65 = vunpack.c.l.b16 %v57
  %v66 = vunpack.c.l.b16 %v58
  %v67 = vunpack.c.l.b16 %v59
  %v68 = vunpack.c.l.b16 %v60
  %v69 = vpack.c.b16 %v66, %v65
  %v70 = vpack.c.b16 %v68, %v67
  %vm72 = vcmask 228352
  %v74 = vsel %vm72, %v55, 0
  %vm76 = vcmask 1045504
  %v78 = vsel %vm76, %v70, 0
  %80 = vmatpush.bf16.msra.mxu0 0
  %81 = vmatpush.bf16.msra.mxu0 0
  %82 = vmatpush.bf16.msra.mxu0 0
  %83 = vmatpush.bf16.msra.mxu0 0
  %84 = vmatpush.bf16.msra.mxu0 0
  %85 = vmatpush.bf16.msra.mxu0 0
  %86 = vmatpush.bf16.msra.mxu0 %v78
  %87 = vmatpush.bf16.msra.mxu0 %v69
  %88 = vmatmul.bf16.gmra.mxu0 %v74
  %v89 = vpop.f32.mrf.mxu0
  %v90 = vadd.f32 0.0, %v89
  %v91 = vpop.f32.mrf.mxu0
  %92 = vdwg.mxu0
  %v97 = vunpack.c.l.b16 %v50
  %v98 = vunpack.c.l.b16 %v51
  %v99 = vunpack.c.l.b16 %v52
  %v100 = vunpack.c.l.b16 %v53
  %v101 = vpack.c.b16 %v98, %v97
  %v102 = vpack.c.b16 %v100, %v99
  %v105 = vsel %vm72, %v49, 0
  %v108 = vsel %vm76, %v102, 0
  %110 = vmatpush.bf16.msra.mxu0 0
  %111 = vmatpush.bf16.msra.mxu0 0
  %112 = vmatpush.bf16.msra.mxu0 0
  %113 = vmatpush.bf16.msra.mxu0 0
  %114 = vmatpush.bf16.msra.mxu0 0
  %115 = vmatpush.bf16.msra.mxu0 0
  %116 = vmatpush.bf16.msra.mxu0 %v108
  %117 = vmatpush.bf16.msra.mxu0 %v101
  %118 = vmatmul.bf16.gmra.mxu0 %v105
  %v119 = vpop.f32.mrf.mxu0
  %v120 = vadd.f32 %v90, %v119
  %v121 = vpop.f32.mrf.mxu0
  %122 = vdwg.mxu0
  %s123 = scalar_lea.vmem %s0, 8
  %v124 = vld [vmem:[%s123] sm:$0xf]
  %s125 = scalar_lea.vmem %s1, 32
  %v126 = vld [vmem:[%s125] sm:$0xf]
  %v127 = vld [vmem:[%s125 + $0x4] sm:$0xf]
  %v128 = vld [vmem:[%s125 + $0x8] sm:$0xf]
  %v129 = vld [vmem:[%s125 + $0xc] sm:$0x3]
  %v134 = vunpack.c.l.b16 %v126
  %v135 = vunpack.c.l.b16 %v127
  %v136 = vunpack.c.l.b16 %v128
  %v137 = vunpack.c.l.b16 %v129
  %v138 = vpack.c.b16 %v135, %v134
  %v139 = vpack.c.b16 %v137, %v136
  %v142 = vsel %vm72, %v124, 0
  %v145 = vsel %vm76, %v139, 0
  %147 = vmatpush.bf16.msra.mxu0 0
  %148 = vmatpush.bf16.msra.mxu0 0
  %149 = vmatpush.bf16.msra.mxu0 0
  %150 = vmatpush.bf16.msra.mxu0 0
  %151 = vmatpush.bf16.msra.mxu0 0
  %152 = vmatpush.bf16.msra.mxu0 0
  %153 = vmatpush.bf16.msra.mxu0 %v145
  %154 = vmatpush.bf16.msra.mxu0 %v138
  %155 = vmatmul.bf16.gmra.mxu0 %v142
  %v156 = vpop.f32.mrf.mxu0
  %v157 = vadd.f32 0.0, %v156
  %v158 = vpop.f32.mrf.mxu0
  %159 = vdwg.mxu0
  %v160 = vadd.f32 %v120, %v157
  %s161 = scalar_lea.vmem %s0, 12
  %v162 = vld [vmem:[%s161] sm:$0xf]
  %s163 = scalar_lea.vmem %s1, 48
  %v164 = vld [vmem:[%s163] sm:$0xf]
  %v165 = vld [vmem:[%s163 + $0x4] sm:$0xf]
  %v166 = vld [vmem:[%s163 + $0x8] sm:$0xf]
  %v167 = vld [vmem:[%s163 + $0xc] sm:$0x3]
  %v172 = vunpack.c.l.b16 %v164
  %v173 = vunpack.c.l.b16 %v165
  %v174 = vunpack.c.l.b16 %v166
  %v175 = vunpack.c.l.b16 %v167
  %v176 = vpack.c.b16 %v173, %v172
  %v177 = vpack.c.b16 %v175, %v174
  %v180 = vsel %vm72, %v162, 0
  %v183 = vsel %vm76, %v177, 0
  %185 = vmatpush.bf16.msra.mxu0 0
  %186 = vmatpush.bf16.msra.mxu0 0
  %187 = vmatpush.bf16.msra.mxu0 0
  %188 = vmatpush.bf16.msra.mxu0 0
  %189 = vmatpush.bf16.msra.mxu0 0
  %190 = vmatpush.bf16.msra.mxu0 0
  %191 = vmatpush.bf16.msra.mxu0 %v183
  %192 = vmatpush.bf16.msra.mxu0 %v176
  %193 = vmatmul.bf16.gmra.mxu0 %v180
  %v194 = vpop.f32.mrf.mxu0
  %v195 = vadd.f32 0.0, %v194
  %v196 = vpop.f32.mrf.mxu0
  %197 = vdwg.mxu0
  %v198 = vadd.f32 %v160, %v195
  %s199 = scalar_lea.vmem %s0, 16
  %v200 = vld [vmem:[%s199] sm:$0xf]
  %s201 = scalar_lea.vmem %s1, 64
  %v202 = vld [vmem:[%s201] sm:$0xf]
  %v203 = vld [vmem:[%s201 + $0x4] sm:$0xf]
  %v204 = vld [vmem:[%s201 + $0x8] sm:$0xf]
  %v205 = vld [vmem:[%s201 + $0xc] sm:$0x3]
  %v210 = vunpack.c.l.b16 %v202
  %v211 = vunpack.c.l.b16 %v203
  %v212 = vunpack.c.l.b16 %v204
  %v213 = vunpack.c.l.b16 %v205
  %v214 = vpack.c.b16 %v211, %v210
  %v215 = vpack.c.b16 %v213, %v212
  %v218 = vsel %vm72, %v200, 0
  %v221 = vsel %vm76, %v215, 0
  %223 = vmatpush.bf16.msra.mxu0 0
  %224 = vmatpush.bf16.msra.mxu0 0
  %225 = vmatpush.bf16.msra.mxu0 0
  %226 = vmatpush.bf16.msra.mxu0 0
  %227 = vmatpush.bf16.msra.mxu0 0
  %228 = vmatpush.bf16.msra.mxu0 0
  %229 = vmatpush.bf16.msra.mxu0 %v221
  %230 = vmatpush.bf16.msra.mxu0 %v214
  %231 = vmatmul.bf16.gmra.mxu0 %v218
  %v232 = vpop.f32.mrf.mxu0
  %v233 = vadd.f32 0.0, %v232
  %v234 = vpop.f32.mrf.mxu0
  %235 = vdwg.mxu0
  %v236 = vadd.f32 %v198, %v233
  %v237 = vld [vmem:[%s2] sm:$0x1]
  %v239 = vperm.slane %v237, 0
  %v241 = vadd.f32 %v236, %v239
  %v242 = vmax.f32 %v241, 0.0
  %v243 = vpack.c.bf16 %v242, %v242
  %s244 = scalar_lea.vmem [#allocation2], 8
  %245 = vst.msk [vmem:[%s244] sm:$0xf] %vm34, %v243
  %v246 = vld [vmem:[%s123] sm:$0xf]
  %v247 = vld [vmem:[%s1] sm:$0xf]
  %v248 = vld [vmem:[%s1 + $0x4] sm:$0xf]
  %v249 = vld [vmem:[%s1 + $0x8] sm:$0xf]
  %v250 = vld [vmem:[%s1 + $0xc] sm:$0x3]
  %v251 = vld [vmem:[%s161] sm:$0xf]
  %v252 = vld [vmem:[%s56] sm:$0xf]
  %v253 = vld [vmem:[%s56 + $0x4] sm:$0xf]
  %v254 = vld [vmem:[%s56 + $0x8] sm:$0xf]
  %v255 = vld [vmem:[%s56 + $0xc] sm:$0x3]
  %v260 = vunpack.c.l.b16 %v252
  %v261 = vunpack.c.l.b16 %v253
  %v262 = vunpack.c.l.b16 %v254
  %v263 = vunpack.c.l.b16 %v255
  %v264 = vpack.c.b16 %v261, %v260
  %v265 = vpack.c.b16 %v263, %v262
  %v268 = vsel %vm72, %v251, 0
  %v271 = vsel %vm76, %v265, 0
  %273 = vmatpush.bf16.msra.mxu0 0
  %274 = vmatpush.bf16.msra.mxu0 0
  %275 = vmatpush.bf16.msra.mxu0 0
  %276 = vmatpush.bf16.msra.mxu0 0
  %277 = vmatpush.bf16.msra.mxu0 0
  %278 = vmatpush.bf16.msra.mxu0 0
  %279 = vmatpush.bf16.msra.mxu0 %v271
  %280 = vmatpush.bf16.msra.mxu0 %v264
  %281 = vmatmul.bf16.gmra.mxu0 %v268
  %v282 = vpop.f32.mrf.mxu0
  %v283 = vadd.f32 0.0, %v282
  %v284 = vpop.f32.mrf.mxu0
  %285 = vdwg.mxu0
  %v290 = vunpack.c.l.b16 %v247
  %v291 = vunpack.c.l.b16 %v248
  %v292 = vunpack.c.l.b16 %v249
  %v293 = vunpack.c.l.b16 %v250
  %v294 = vpack.c.b16 %v291, %v290
  %v295 = vpack.c.b16 %v293, %v292
  %v298 = vsel %vm72, %v246, 0
  %v301 = vsel %vm76, %v295, 0
  %303 = vmatpush.bf16.msra.mxu0 0
  %304 = vmatpush.bf16.msra.mxu0 0
  %305 = vmatpush.bf16.msra.mxu0 0
  %306 = vmatpush.bf16.msra.mxu0 0
  %307 = vmatpush.bf16.msra.mxu0 0
  %308 = vmatpush.bf16.msra.mxu0 0
  %309 = vmatpush.bf16.msra.mxu0 %v301
  %310 = vmatpush.bf16.msra.mxu0 %v294
  %311 = vmatmul.bf16.gmra.mxu0 %v298
  %v312 = vpop.f32.mrf.mxu0
  %v313 = vadd.f32 %v283, %v312
  %v314 = vpop.f32.mrf.mxu0
  %315 = vdwg.mxu0
  %v316 = vld [vmem:[%s199] sm:$0xf]
  %v317 = vld [vmem:[%s125] sm:$0xf]
  %v318 = vld [vmem:[%s125 + $0x4] sm:$0xf]
  %v319 = vld [vmem:[%s125 + $0x8] sm:$0xf]
  %v320 = vld [vmem:[%s125 + $0xc] sm:$0x3]
  %v325 = vunpack.c.l.b16 %v317
  %v326 = vunpack.c.l.b16 %v318
  %v327 = vunpack.c.l.b16 %v319
  %v328 = vunpack.c.l.b16 %v320
  %v329 = vpack.c.b16 %v326, %v325
  %v330 = vpack.c.b16 %v328, %v327
  %v333 = vsel %vm72, %v316, 0
  %v336 = vsel %vm76, %v330, 0
  %338 = vmatpush.bf16.msra.mxu0 0
  %339 = vmatpush.bf16.msra.mxu0 0
  %340 = vmatpush.bf16.msra.mxu0 0
  %341 = vmatpush.bf16.msra.mxu0 0
  %342 = vmatpush.bf16.msra.mxu0 0
  %343 = vmatpush.bf16.msra.mxu0 0
  %344 = vmatpush.bf16.msra.mxu0 %v336
  %345 = vmatpush.bf16.msra.mxu0 %v329
  %346 = vmatmul.bf16.gmra.mxu0 %v333
  %v347 = vpop.f32.mrf.mxu0
  %v348 = vadd.f32 0.0, %v347
  %v349 = vpop.f32.mrf.mxu0
  %350 = vdwg.mxu0
  %v351 = vadd.f32 %v313, %v348
  %s352 = scalar_lea.vmem %s0, 20
  %v353 = vld [vmem:[%s352] sm:$0xf]
  %v354 = vld [vmem:[%s163] sm:$0xf]
  %v355 = vld [vmem:[%s163 + $0x4] sm:$0xf]
  %v356 = vld [vmem:[%s163 + $0x8] sm:$0xf]
  %v357 = vld [vmem:[%s163 + $0xc] sm:$0x3]
  %v362 = vunpack.c.l.b16 %v354
  %v363 = vunpack.c.l.b16 %v355
  %v364 = vunpack.c.l.b16 %v356
  %v365 = vunpack.c.l.b16 %v357
  %v366 = vpack.c.b16 %v363, %v362
  %v367 = vpack.c.b16 %v365, %v364
  %v370 = vsel %vm72, %v353, 0
  %v373 = vsel %vm76, %v367, 0
  %375 = vmatpush.bf16.msra.mxu0 0
  %376 = vmatpush.bf16.msra.mxu0 0
  %377 = vmatpush.bf16.msra.mxu0 0
  %378 = vmatpush.bf16.msra.mxu0 0
  %379 = vmatpush.bf16.msra.mxu0 0
  %380 = vmatpush.bf16.msra.mxu0 0
  %381 = vmatpush.bf16.msra.mxu0 %v373
  %382 = vmatpush.bf16.msra.mxu0 %v366
  %383 = vmatmul.bf16.gmra.mxu0 %v370
  %v384 = vpop.f32.mrf.mxu0
  %v385 = vadd.f32 0.0, %v384
  %v386 = vpop.f32.mrf.mxu0
  %387 = vdwg.mxu0
  %v388 = vadd.f32 %v351, %v385
  %s389 = scalar_lea.vmem %s0, 24
  %v390 = vld [vmem:[%s389] sm:$0xf]
  %v391 = vld [vmem:[%s201] sm:$0xf]
  %v392 = vld [vmem:[%s201 + $0x4] sm:$0xf]
  %v393 = vld [vmem:[%s201 + $0x8] sm:$0xf]
  %v394 = vld [vmem:[%s201 + $0xc] sm:$0x3]
  %v399 = vunpack.c.l.b16 %v391
  %v400 = vunpack.c.l.b16 %v392
  %v401 = vunpack.c.l.b16 %v393
  %v402 = vunpack.c.l.b16 %v394
  %v403 = vpack.c.b16 %v400, %v399
  %v404 = vpack.c.b16 %v402, %v401
  %v407 = vsel %vm72, %v390, 0
  %v410 = vsel %vm76, %v404, 0
  %412 = vmatpush.bf16.msra.mxu0 0
  %413 = vmatpush.bf16.msra.mxu0 0
  %414 = vmatpush.bf16.msra.mxu0 0
  %415 = vmatpush.bf16.msra.mxu0 0
  %416 = vmatpush.bf16.msra.mxu0 0
  %417 = vmatpush.bf16.msra.mxu0 0
  %418 = vmatpush.bf16.msra.mxu0 %v410
  %419 = vmatpush.bf16.msra.mxu0 %v403
  %420 = vmatmul.bf16.gmra.mxu0 %v407
  %v421 = vpop.f32.mrf.mxu0
  %v422 = vadd.f32 0.0, %v421
  %v423 = vpop.f32.mrf.mxu0
  %424 = vdwg.mxu0
  %v425 = vadd.f32 %v388, %v422
  %v426 = vld [vmem:[%s2] sm:$0x1]
  %v428 = vperm.slane %v426, 0
  %v430 = vadd.f32 %v425, %v428
  %v431 = vmax.f32 %v430, 0.0
  %v432 = vpack.c.bf16 %v431, %v431
  %s433 = scalar_lea.vmem [#allocation2], 12
  %434 = vst.msk [vmem:[%s433] sm:$0xf] %vm34, %v432
  %v435 = vld [vmem:[%s199] sm:$0xf]
  %v436 = vld [vmem:[%s1] sm:$0xf]
  %v437 = vld [vmem:[%s1 + $0x4] sm:$0xf]
  %v438 = vld [vmem:[%s1 + $0x8] sm:$0xf]
  %v439 = vld [vmem:[%s1 + $0xc] sm:$0x3]
  %v440 = vld [vmem:[%s352] sm:$0xf]
  %v441 = vld [vmem:[%s56] sm:$0xf]
  %v442 = vld [vmem:[%s56 + $0x4] sm:$0xf]
  %v443 = vld [vmem:[%s56 + $0x8] sm:$0xf]
  %v444 = vld [vmem:[%s56 + $0xc] sm:$0x3]
  %v449 = vunpack.c.l.b16 %v441
  %v450 = vunpack.c.l.b16 %v442
  %v451 = vunpack.c.l.b16 %v443
  %v452 = vunpack.c.l.b16 %v444
  %v453 = vpack.c.b16 %v450, %v449
  %v454 = vpack.c.b16 %v452, %v451
  %v457 = vsel %vm72, %v440, 0
  %v460 = vsel %vm76, %v454, 0
  %462 = vmatpush.bf16.msra.mxu0 0
  %463 = vmatpush.bf16.msra.mxu0 0
  %464 = vmatpush.bf16.msra.mxu0 0
  %465 = vmatpush.bf16.msra.mxu0 0
  %466 = vmatpush.bf16.msra.mxu0 0
  %467 = vmatpush.bf16.msra.mxu0 0
  %468 = vmatpush.bf16.msra.mxu0 %v460
  %469 = vmatpush.bf16.msra.mxu0 %v453
  %470 = vmatmul.bf16.gmra.mxu0 %v457
  %v471 = vpop.f32.mrf.mxu0
  %v472 = vadd.f32 0.0, %v471
  %v473 = vpop.f32.mrf.mxu0
  %474 = vdwg.mxu0
  %v479 = vunpack.c.l.b16 %v436
  %v480 = vunpack.c.l.b16 %v437
  %v481 = vunpack.c.l.b16 %v438
  %v482 = vunpack.c.l.b16 %v439
  %v483 = vpack.c.b16 %v480, %v479
  %v484 = vpack.c.b16 %v482, %v481
  %v487 = vsel %vm72, %v435, 0
  %v490 = vsel %vm76, %v484, 0
  %492 = vmatpush.bf16.msra.mxu0 0
  %493 = vmatpush.bf16.msra.mxu0 0
  %494 = vmatpush.bf16.msra.mxu0 0
  %495 = vmatpush.bf16.msra.mxu0 0
  %496 = vmatpush.bf16.msra.mxu0 0
  %497 = vmatpush.bf16.msra.mxu0 0
  %498 = vmatpush.bf16.msra.mxu0 %v490
  %499 = vmatpush.bf16.msra.mxu0 %v483
  %500 = vmatmul.bf16.gmra.mxu0 %v487
  %v501 = vpop.f32.mrf.mxu0
  %v502 = vadd.f32 %v472, %v501
  %v503 = vpop.f32.mrf.mxu0
  %504 = vdwg.mxu0
  %v505 = vld [vmem:[%s389] sm:$0xf]
  %v506 = vld [vmem:[%s125] sm:$0xf]
  %v507 = vld [vmem:[%s125 + $0x4] sm:$0xf]
  %v508 = vld [vmem:[%s125 + $0x8] sm:$0xf]
  %v509 = vld [vmem:[%s125 + $0xc] sm:$0x3]
  %v514 = vunpack.c.l.b16 %v506
  %v515 = vunpack.c.l.b16 %v507
  %v516 = vunpack.c.l.b16 %v508
  %v517 = vunpack.c.l.b16 %v509
  %v518 = vpack.c.b16 %v515, %v514
  %v519 = vpack.c.b16 %v517, %v516
  %v522 = vsel %vm72, %v505, 0
  %v525 = vsel %vm76, %v519, 0
  %527 = vmatpush.bf16.msra.mxu0 0
  %528 = vmatpush.bf16.msra.mxu0 0
  %529 = vmatpush.bf16.msra.mxu0 0
  %530 = vmatpush.bf16.msra.mxu0 0
  %531 = vmatpush.bf16.msra.mxu0 0
  %532 = vmatpush.bf16.msra.mxu0 0
  %533 = vmatpush.bf16.msra.mxu0 %v525
  %534 = vmatpush.bf16.msra.mxu0 %v518
  %535 = vmatmul.bf16.gmra.mxu0 %v522
  %v536 = vpop.f32.mrf.mxu0
  %v537 = vadd.f32 0.0, %v536
  %v538 = vpop.f32.mrf.mxu0
  %539 = vdwg.mxu0
  %v540 = vadd.f32 %v502, %v537
  %s541 = scalar_lea.vmem %s0, 28
  %v542 = vld [vmem:[%s541] sm:$0xf]
  %v543 = vld [vmem:[%s163] sm:$0xf]
  %v544 = vld [vmem:[%s163 + $0x4] sm:$0xf]
  %v545 = vld [vmem:[%s163 + $0x8] sm:$0xf]
  %v546 = vld [vmem:[%s163 + $0xc] sm:$0x3]
  %v551 = vunpack.c.l.b16 %v543
  %v552 = vunpack.c.l.b16 %v544
  %v553 = vunpack.c.l.b16 %v545
  %v554 = vunpack.c.l.b16 %v546
  %v555 = vpack.c.b16 %v552, %v551
  %v556 = vpack.c.b16 %v554, %v553
  %v559 = vsel %vm72, %v542, 0
  %v562 = vsel %vm76, %v556, 0
  %564 = vmatpush.bf16.msra.mxu0 0
  %565 = vmatpush.bf16.msra.mxu0 0
  %566 = vmatpush.bf16.msra.mxu0 0
  %567 = vmatpush.bf16.msra.mxu0 0
  %568 = vmatpush.bf16.msra.mxu0 0
  %569 = vmatpush.bf16.msra.mxu0 0
  %570 = vmatpush.bf16.msra.mxu0 %v562
  %571 = vmatpush.bf16.msra.mxu0 %v555
  %572 = vmatmul.bf16.gmra.mxu0 %v559
  %v573 = vpop.f32.mrf.mxu0
  %v574 = vadd.f32 0.0, %v573
  %v575 = vpop.f32.mrf.mxu0
  %576 = vdwg.mxu0
  %v577 = vadd.f32 %v540, %v574
  %s578 = scalar_lea.vmem %s0, 32
  %v579 = vld [vmem:[%s578] sm:$0xf]
  %v580 = vld [vmem:[%s201] sm:$0xf]
  %v581 = vld [vmem:[%s201 + $0x4] sm:$0xf]
  %v582 = vld [vmem:[%s201 + $0x8] sm:$0xf]
  %v583 = vld [vmem:[%s201 + $0xc] sm:$0x3]
  %v588 = vunpack.c.l.b16 %v580
  %v589 = vunpack.c.l.b16 %v581
  %v590 = vunpack.c.l.b16 %v582
  %v591 = vunpack.c.l.b16 %v583
  %v592 = vpack.c.b16 %v589, %v588
  %v593 = vpack.c.b16 %v591, %v590
  %v596 = vsel %vm72, %v579, 0
  %v599 = vsel %vm76, %v593, 0
  %601 = vmatpush.bf16.msra.mxu0 0
  %602 = vmatpush.bf16.msra.mxu0 0
  %603 = vmatpush.bf16.msra.mxu0 0
  %604 = vmatpush.bf16.msra.mxu0 0
  %605 = vmatpush.bf16.msra.mxu0 0
  %606 = vmatpush.bf16.msra.mxu0 0
  %607 = vmatpush.bf16.msra.mxu0 %v599
  %608 = vmatpush.bf16.msra.mxu0 %v592
  %609 = vmatmul.bf16.gmra.mxu0 %v596
  %v610 = vpop.f32.mrf.mxu0
  %v611 = vadd.f32 0.0, %v610
  %v612 = vpop.f32.mrf.mxu0
  %613 = vdwg.mxu0
  %v614 = vadd.f32 %v577, %v611
  %v615 = vld [vmem:[%s2] sm:$0x1]
  %v617 = vperm.slane %v615, 0
  %v619 = vadd.f32 %v614, %v617
  %v620 = vmax.f32 %v619, 0.0
  %v621 = vpack.c.bf16 %v620, %v620
  %s622 = scalar_lea.vmem [#allocation2], 16
  %623 = vst.msk [vmem:[%s622] sm:$0xf] %vm34, %v621
  %v624 = vld [vmem:[%s389] sm:$0xf]
  %v625 = vld [vmem:[%s1] sm:$0xf]
  %v626 = vld [vmem:[%s1 + $0x4] sm:$0xf]
  %v627 = vld [vmem:[%s1 + $0x8] sm:$0xf]
  %v628 = vld [vmem:[%s1 + $0xc] sm:$0x3]
  %v629 = vld [vmem:[%s541] sm:$0xf]
  %v630 = vld [vmem:[%s56] sm:$0xf]
  %v631 = vld [vmem:[%s56 + $0x4] sm:$0xf]
  %v632 = vld [vmem:[%s56 + $0x8] sm:$0xf]
  %v633 = vld [vmem:[%s56 + $0xc] sm:$0x3]
  %v638 = vunpack.c.l.b16 %v630
  %v639 = vunpack.c.l.b16 %v631
  %v640 = vunpack.c.l.b16 %v632
  %v641 = vunpack.c.l.b16 %v633
  %v642 = vpack.c.b16 %v639, %v638
  %v643 = vpack.c.b16 %v641, %v640
  %v646 = vsel %vm72, %v629, 0
  %v649 = vsel %vm76, %v643, 0
  %651 = vmatpush.bf16.msra.mxu0 0
  %652 = vmatpush.bf16.msra.mxu0 0
  %653 = vmatpush.bf16.msra.mxu0 0
  %654 = vmatpush.bf16.msra.mxu0 0
  %655 = vmatpush.bf16.msra.mxu0 0
  %656 = vmatpush.bf16.msra.mxu0 0
  %657 = vmatpush.bf16.msra.mxu0 %v649
  %658 = vmatpush.bf16.msra.mxu0 %v642
  %659 = vmatmul.bf16.gmra.mxu0 %v646
  %v660 = vpop.f32.mrf.mxu0
  %v661 = vadd.f32 0.0, %v660
  %v662 = vpop.f32.mrf.mxu0
  %663 = vdwg.mxu0
  %v668 = vunpack.c.l.b16 %v625
  %v669 = vunpack.c.l.b16 %v626
  %v670 = vunpack.c.l.b16 %v627
  %v671 = vunpack.c.l.b16 %v628
  %v672 = vpack.c.b16 %v669, %v668
  %v673 = vpack.c.b16 %v671, %v670
  %v676 = vsel %vm72, %v624, 0
  %v679 = vsel %vm76, %v673, 0
  %681 = vmatpush.bf16.msra.mxu0 0
  %682 = vmatpush.bf16.msra.mxu0 0
  %683 = vmatpush.bf16.msra.mxu0 0
  %684 = vmatpush.bf16.msra.mxu0 0
  %685 = vmatpush.bf16.msra.mxu0 0
  %686 = vmatpush.bf16.msra.mxu0 0
  %687 = vmatpush.bf16.msra.mxu0 %v679
  %688 = vmatpush.bf16.msra.mxu0 %v672
  %689 = vmatmul.bf16.gmra.mxu0 %v676
  %v690 = vpop.f32.mrf.mxu0
  %v691 = vadd.f32 %v661, %v690
  %v692 = vpop.f32.mrf.mxu0
  %693 = vdwg.mxu0
  %v694 = vld [vmem:[%s578] sm:$0xf]
  %v695 = vld [vmem:[%s125] sm:$0xf]
  %v696 = vld [vmem:[%s125 + $0x4] sm:$0xf]
  %v697 = vld [vmem:[%s125 + $0x8] sm:$0xf]
  %v698 = vld [vmem:[%s125 + $0xc] sm:$0x3]
  %v703 = vunpack.c.l.b16 %v695
  %v704 = vunpack.c.l.b16 %v696
  %v705 = vunpack.c.l.b16 %v697
  %v706 = vunpack.c.l.b16 %v698
  %v707 = vpack.c.b16 %v704, %v703
  %v708 = vpack.c.b16 %v706, %v705
  %v711 = vsel %vm72, %v694, 0
  %v714 = vsel %vm76, %v708, 0
  %716 = vmatpush.bf16.msra.mxu0 0
  %717 = vmatpush.bf16.msra.mxu0 0
  %718 = vmatpush.bf16.msra.mxu0 0
  %719 = vmatpush.bf16.msra.mxu0 0
  %720 = vmatpush.bf16.msra.mxu0 0
  %721 = vmatpush.bf16.msra.mxu0 0
  %722 = vmatpush.bf16.msra.mxu0 %v714
  %723 = vmatpush.bf16.msra.mxu0 %v707
  %724 = vmatmul.bf16.gmra.mxu0 %v711
  %v725 = vpop.f32.mrf.mxu0
  %v726 = vadd.f32 0.0, %v725
  %v727 = vpop.f32.mrf.mxu0
  %728 = vdwg.mxu0
  %v729 = vadd.f32 %v691, %v726
  %s730 = scalar_lea.vmem %s0, 36
  %v731 = vld [vmem:[%s730] sm:$0xf]
  %v732 = vld [vmem:[%s163] sm:$0xf]
  %v733 = vld [vmem:[%s163 + $0x4] sm:$0xf]
  %v734 = vld [vmem:[%s163 + $0x8] sm:$0xf]
  %v735 = vld [vmem:[%s163 + $0xc] sm:$0x3]
  %v740 = vunpack.c.l.b16 %v732
  %v741 = vunpack.c.l.b16 %v733
  %v742 = vunpack.c.l.b16 %v734
  %v743 = vunpack.c.l.b16 %v735
  %v744 = vpack.c.b16 %v741, %v740
  %v745 = vpack.c.b16 %v743, %v742
  %v748 = vsel %vm72, %v731, 0
  %v751 = vsel %vm76, %v745, 0
  %753 = vmatpush.bf16.msra.mxu0 0
  %754 = vmatpush.bf16.msra.mxu0 0
  %755 = vmatpush.bf16.msra.mxu0 0
  %756 = vmatpush.bf16.msra.mxu0 0
  %757 = vmatpush.bf16.msra.mxu0 0
  %758 = vmatpush.bf16.msra.mxu0 0
  %759 = vmatpush.bf16.msra.mxu0 %v751
  %760 = vmatpush.bf16.msra.mxu0 %v744
  %761 = vmatmul.bf16.gmra.mxu0 %v748
  %v762 = vpop.f32.mrf.mxu0
  %v763 = vadd.f32 0.0, %v762
  %v764 = vpop.f32.mrf.mxu0
  %765 = vdwg.mxu0
  %v766 = vadd.f32 %v729, %v763
  %s767 = scalar_lea.vmem %s0, 40
  %v768 = vld [vmem:[%s767] sm:$0xf]
  %v769 = vld [vmem:[%s201] sm:$0xf]
  %v770 = vld [vmem:[%s201 + $0x4] sm:$0xf]
  %v771 = vld [vmem:[%s201 + $0x8] sm:$0xf]
  %v772 = vld [vmem:[%s201 + $0xc] sm:$0x3]
  %v777 = vunpack.c.l.b16 %v769
  %v778 = vunpack.c.l.b16 %v770
  %v779 = vunpack.c.l.b16 %v771
  %v780 = vunpack.c.l.b16 %v772
  %v781 = vpack.c.b16 %v778, %v777
  %v782 = vpack.c.b16 %v780, %v779
  %v785 = vsel %vm72, %v768, 0
  %v788 = vsel %vm76, %v782, 0
  %790 = vmatpush.bf16.msra.mxu0 0
  %791 = vmatpush.bf16.msra.mxu0 0
  %792 = vmatpush.bf16.msra.mxu0 0
  %793 = vmatpush.bf16.msra.mxu0 0
  %794 = vmatpush.bf16.msra.mxu0 0
  %795 = vmatpush.bf16.msra.mxu0 0
  %796 = vmatpush.bf16.msra.mxu0 %v788
  %797 = vmatpush.bf16.msra.mxu0 %v781
  %798 = vmatmul.bf16.gmra.mxu0 %v785
  %v799 = vpop.f32.mrf.mxu0
  %v800 = vadd.f32 0.0, %v799
  %v801 = vpop.f32.mrf.mxu0
  %802 = vdwg.mxu0
  %v803 = vadd.f32 %v766, %v800
  %v804 = vld [vmem:[%s2] sm:$0x1]
  %v806 = vperm.slane %v804, 0
  %v808 = vadd.f32 %v803, %v806
  %v809 = vmax.f32 %v808, 0.0
  %v810 = vpack.c.bf16 %v809, %v809
  %s811 = scalar_lea.vmem [#allocation2], 20
  %812 = vst.msk [vmem:[%s811] sm:$0xf] %vm34, %v810
  %v813 = vld [vmem:[%s578] sm:$0xf]
  %v814 = vld [vmem:[%s1] sm:$0xf]
  %v815 = vld [vmem:[%s1 + $0x4] sm:$0xf]
  %v816 = vld [vmem:[%s1 + $0x8] sm:$0xf]
  %v817 = vld [vmem:[%s1 + $0xc] sm:$0x3]
  %v818 = vld [vmem:[%s730] sm:$0xf]
  %v819 = vld [vmem:[%s56] sm:$0xf]
  %v820 = vld [vmem:[%s56 + $0x4] sm:$0xf]
  %v821 = vld [vmem:[%s56 + $0x8] sm:$0xf]
  %v822 = vld [vmem:[%s56 + $0xc] sm:$0x3]
  %v827 = vunpack.c.l.b16 %v819
  %v828 = vunpack.c.l.b16 %v820
  %v829 = vunpack.c.l.b16 %v821
  %v830 = vunpack.c.l.b16 %v822
  %v831 = vpack.c.b16 %v828, %v827
  %v832 = vpack.c.b16 %v830, %v829
  %v835 = vsel %vm72, %v818, 0
  %v838 = vsel %vm76, %v832, 0
  %840 = vmatpush.bf16.msra.mxu0 0
  %841 = vmatpush.bf16.msra.mxu0 0
  %842 = vmatpush.bf16.msra.mxu0 0
  %843 = vmatpush.bf16.msra.mxu0 0
  %844 = vmatpush.bf16.msra.mxu0 0
  %845 = vmatpush.bf16.msra.mxu0 0
  %846 = vmatpush.bf16.msra.mxu0 %v838
  %847 = vmatpush.bf16.msra.mxu0 %v831
  %848 = vmatmul.bf16.gmra.mxu0 %v835
  %v849 = vpop.f32.mrf.mxu0
  %v850 = vadd.f32 0.0, %v849
  %v851 = vpop.f32.mrf.mxu0
  %852 = vdwg.mxu0
  %v857 = vunpack.c.l.b16 %v814
  %v858 = vunpack.c.l.b16 %v815
  %v859 = vunpack.c.l.b16 %v816
  %v860 = vunpack.c.l.b16 %v817
  %v861 = vpack.c.b16 %v858, %v857
  %v862 = vpack.c.b16 %v860, %v859
  %v865 = vsel %vm72, %v813, 0
  %v868 = vsel %vm76, %v862, 0
  %870 = vmatpush.bf16.msra.mxu0 0
  %871 = vmatpush.bf16.msra.mxu0 0
  %872 = vmatpush.bf16.msra.mxu0 0
  %873 = vmatpush.bf16.msra.mxu0 0
  %874 = vmatpush.bf16.msra.mxu0 0
  %875 = vmatpush.bf16.msra.mxu0 0
  %876 = vmatpush.bf16.msra.mxu0 %v868
  %877 = vmatpush.bf16.msra.mxu0 %v861
  %878 = vmatmul.bf16.gmra.mxu0 %v865
  %v879 = vpop.f32.mrf.mxu0
  %v880 = vadd.f32 %v850, %v879
  %v881 = vpop.f32.mrf.mxu0
  %882 = vdwg.mxu0
  %v883 = vld [vmem:[%s767] sm:$0xf]
  %v884 = vld [vmem:[%s125] sm:$0xf]
  %v885 = vld [vmem:[%s125 + $0x4] sm:$0xf]
  %v886 = vld [vmem:[%s125 + $0x8] sm:$0xf]
  %v887 = vld [vmem:[%s125 + $0xc] sm:$0x3]
  %v892 = vunpack.c.l.b16 %v884
  %v893 = vunpack.c.l.b16 %v885
  %v894 = vunpack.c.l.b16 %v886
  %v895 = vunpack.c.l.b16 %v887
  %v896 = vpack.c.b16 %v893, %v892
  %v897 = vpack.c.b16 %v895, %v894
  %v900 = vsel %vm72, %v883, 0
  %v903 = vsel %vm76, %v897, 0
  %905 = vmatpush.bf16.msra.mxu0 0
  %906 = vmatpush.bf16.msra.mxu0 0
  %907 = vmatpush.bf16.msra.mxu0 0
  %908 = vmatpush.bf16.msra.mxu0 0
  %909 = vmatpush.bf16.msra.mxu0 0
  %910 = vmatpush.bf16.msra.mxu0 0
  %911 = vmatpush.bf16.msra.mxu0 %v903
  %912 = vmatpush.bf16.msra.mxu0 %v896
  %913 = vmatmul.bf16.gmra.mxu0 %v900
  %v914 = vpop.f32.mrf.mxu0
  %v915 = vadd.f32 0.0, %v914
  %v916 = vpop.f32.mrf.mxu0
  %917 = vdwg.mxu0
  %v918 = vadd.f32 %v880, %v915
  %s919 = scalar_lea.vmem %s0, 44
  %v920 = vld [vmem:[%s919] sm:$0xf]
  %v921 = vld [vmem:[%s163] sm:$0xf]
  %v922 = vld [vmem:[%s163 + $0x4] sm:$0xf]
  %v923 = vld [vmem:[%s163 + $0x8] sm:$0xf]
  %v924 = vld [vmem:[%s163 + $0xc] sm:$0x3]
  %v929 = vunpack.c.l.b16 %v921
  %v930 = vunpack.c.l.b16 %v922
  %v931 = vunpack.c.l.b16 %v923
  %v932 = vunpack.c.l.b16 %v924
  %v933 = vpack.c.b16 %v930, %v929
  %v934 = vpack.c.b16 %v932, %v931
  %v937 = vsel %vm72, %v920, 0
  %v940 = vsel %vm76, %v934, 0
  %942 = vmatpush.bf16.msra.mxu0 0
  %943 = vmatpush.bf16.msra.mxu0 0
  %944 = vmatpush.bf16.msra.mxu0 0
  %945 = vmatpush.bf16.msra.mxu0 0
  %946 = vmatpush.bf16.msra.mxu0 0
  %947 = vmatpush.bf16.msra.mxu0 0
  %948 = vmatpush.bf16.msra.mxu0 %v940
  %949 = vmatpush.bf16.msra.mxu0 %v933
  %950 = vmatmul.bf16.gmra.mxu0 %v937
  %v951 = vpop.f32.mrf.mxu0
  %v952 = vadd.f32 0.0, %v951
  %v953 = vpop.f32.mrf.mxu0
  %954 = vdwg.mxu0
  %v955 = vadd.f32 %v918, %v952
  %s956 = scalar_lea.vmem %s0, 48
  %v957 = vld [vmem:[%s956] sm:$0xf]
  %v958 = vld [vmem:[%s201] sm:$0xf]
  %v959 = vld [vmem:[%s201 + $0x4] sm:$0xf]
  %v960 = vld [vmem:[%s201 + $0x8] sm:$0xf]
  %v961 = vld [vmem:[%s201 + $0xc] sm:$0x3]
  %v966 = vunpack.c.l.b16 %v958
  %v967 = vunpack.c.l.b16 %v959
  %v968 = vunpack.c.l.b16 %v960
  %v969 = vunpack.c.l.b16 %v961
  %v970 = vpack.c.b16 %v967, %v966
  %v971 = vpack.c.b16 %v969, %v968
  %v974 = vsel %vm72, %v957, 0
  %v977 = vsel %vm76, %v971, 0
  %979 = vmatpush.bf16.msra.mxu0 0
  %980 = vmatpush.bf16.msra.mxu0 0
  %981 = vmatpush.bf16.msra.mxu0 0
  %982 = vmatpush.bf16.msra.mxu0 0
  %983 = vmatpush.bf16.msra.mxu0 0
  %984 = vmatpush.bf16.msra.mxu0 0
  %985 = vmatpush.bf16.msra.mxu0 %v977
  %986 = vmatpush.bf16.msra.mxu0 %v970
  %987 = vmatmul.bf16.gmra.mxu0 %v974
  %v988 = vpop.f32.mrf.mxu0
  %v989 = vadd.f32 0.0, %v988
  %v990 = vpop.f32.mrf.mxu0
  %991 = vdwg.mxu0
  %v992 = vadd.f32 %v955, %v989
  %v993 = vld [vmem:[%s2] sm:$0x1]
  %v995 = vperm.slane %v993, 0
  %v997 = vadd.f32 %v992, %v995
  %v998 = vmax.f32 %v997, 0.0
  %v999 = vpack.c.bf16 %v998, %v998
  %s1000 = scalar_lea.vmem [#allocation2], 24
  %1001 = vst.msk [vmem:[%s1000] sm:$0xf] %vm34, %v999
  %v1002 = vld [vmem:[%s767] sm:$0xf]
  %v1003 = vld [vmem:[%s1] sm:$0xf]
  %v1004 = vld [vmem:[%s1 + $0x4] sm:$0xf]
  %v1005 = vld [vmem:[%s1 + $0x8] sm:$0xf]
  %v1006 = vld [vmem:[%s1 + $0xc] sm:$0x3]
  %v1007 = vld [vmem:[%s919] sm:$0xf]
  %v1008 = vld [vmem:[%s56] sm:$0xf]
  %v1009 = vld [vmem:[%s56 + $0x4] sm:$0xf]
  %v1010 = vld [vmem:[%s56 + $0x8] sm:$0xf]
  %v1011 = vld [vmem:[%s56 + $0xc] sm:$0x3]
  %v1016 = vunpack.c.l.b16 %v1008
  %v1017 = vunpack.c.l.b16 %v1009
  %v1018 = vunpack.c.l.b16 %v1010
  %v1019 = vunpack.c.l.b16 %v1011
  %v1020 = vpack.c.b16 %v1017, %v1016
  %v1021 = vpack.c.b16 %v1019, %v1018
  %v1024 = vsel %vm72, %v1007, 0
  %v1027 = vsel %vm76, %v1021, 0
  %1029 = vmatpush.bf16.msra.mxu0 0
  %1030 = vmatpush.bf16.msra.mxu0 0
  %1031 = vmatpush.bf16.msra.mxu0 0
  %1032 = vmatpush.bf16.msra.mxu0 0
  %1033 = vmatpush.bf16.msra.mxu0 0
  %1034 = vmatpush.bf16.msra.mxu0 0
  %1035 = vmatpush.bf16.msra.mxu0 %v1027
  %1036 = vmatpush.bf16.msra.mxu0 %v1020
  %1037 = vmatmul.bf16.gmra.mxu0 %v1024
  %v1038 = vpop.f32.mrf.mxu0
  %v1039 = vadd.f32 0.0, %v1038
  %v1040 = vpop.f32.mrf.mxu0
  %1041 = vdwg.mxu0
  %v1046 = vunpack.c.l.b16 %v1003
  %v1047 = vunpack.c.l.b16 %v1004
  %v1048 = vunpack.c.l.b16 %v1005
  %v1049 = vunpack.c.l.b16 %v1006
  %v1050 = vpack.c.b16 %v1047, %v1046
  %v1051 = vpack.c.b16 %v1049, %v1048
  %v1054 = vsel %vm72, %v1002, 0
  %v1057 = vsel %vm76, %v1051, 0
  %1059 = vmatpush.bf16.msra.mxu0 0
  %1060 = vmatpush.bf16.msra.mxu0 0
  %1061 = vmatpush.bf16.msra.mxu0 0
  %1062 = vmatpush.bf16.msra.mxu0 0
  %1063 = vmatpush.bf16.msra.mxu0 0
  %1064 = vmatpush.bf16.msra.mxu0 0
  %1065 = vmatpush.bf16.msra.mxu0 %v1057
  %1066 = vmatpush.bf16.msra.mxu0 %v1050
  %1067 = vmatmul.bf16.gmra.mxu0 %v1054
  %v1068 = vpop.f32.mrf.mxu0
  %v1069 = vadd.f32 %v1039, %v1068
  %v1070 = vpop.f32.mrf.mxu0
  %1071 = vdwg.mxu0
  %v1072 = vld [vmem:[%s956] sm:$0xf]
  %v1073 = vld [vmem:[%s125] sm:$0xf]
  %v1074 = vld [vmem:[%s125 + $0x4] sm:$0xf]
  %v1075 = vld [vmem:[%s125 + $0x8] sm:$0xf]
  %v1076 = vld [vmem:[%s125 + $0xc] sm:$0x3]
  %v1081 = vunpack.c.l.b16 %v1073
  %v1082 = vunpack.c.l.b16 %v1074
  %v1083 = vunpack.c.l.b16 %v1075
  %v1084 = vunpack.c.l.b16 %v1076
  %v1085 = vpack.c.b16 %v1082, %v1081
  %v1086 = vpack.c.b16 %v1084, %v1083
  %v1089 = vsel %vm72, %v1072, 0
  %v1092 = vsel %vm76, %v1086, 0
  %1094 = vmatpush.bf16.msra.mxu0 0
  %1095 = vmatpush.bf16.msra.mxu0 0
  %1096 = vmatpush.bf16.msra.mxu0 0
  %1097 = vmatpush.bf16.msra.mxu0 0
  %1098 = vmatpush.bf16.msra.mxu0 0
  %1099 = vmatpush.bf16.msra.mxu0 0
  %1100 = vmatpush.bf16.msra.mxu0 %v1092
  %1101 = vmatpush.bf16.msra.mxu0 %v1085
  %1102 = vmatmul.bf16.gmra.mxu0 %v1089
  %v1103 = vpop.f32.mrf.mxu0
  %v1104 = vadd.f32 0.0, %v1103
  %v1105 = vpop.f32.mrf.mxu0
  %1106 = vdwg.mxu0
  %v1107 = vadd.f32 %v1069, %v1104
  %s1108 = scalar_lea.vmem %s0, 52
  %v1109 = vld [vmem:[%s1108] sm:$0xf]
  %v1110 = vld [vmem:[%s163] sm:$0xf]
  %v1111 = vld [vmem:[%s163 + $0x4] sm:$0xf]
  %v1112 = vld [vmem:[%s163 + $0x8] sm:$0xf]
  %v1113 = vld [vmem:[%s163 + $0xc] sm:$0x3]
  %v1118 = vunpack.c.l.b16 %v1110
  %v1119 = vunpack.c.l.b16 %v1111
  %v1120 = vunpack.c.l.b16 %v1112
  %v1121 = vunpack.c.l.b16 %v1113
  %v1122 = vpack.c.b16 %v1119, %v1118
  %v1123 = vpack.c.b16 %v1121, %v1120
  %v1126 = vsel %vm72, %v1109, 0
  %v1129 = vsel %vm76, %v1123, 0
  %1131 = vmatpush.bf16.msra.mxu0 0
  %1132 = vmatpush.bf16.msra.mxu0 0
  %1133 = vmatpush.bf16.msra.mxu0 0
  %1134 = vmatpush.bf16.msra.mxu0 0
  %1135 = vmatpush.bf16.msra.mxu0 0
  %1136 = vmatpush.bf16.msra.mxu0 0
  %1137 = vmatpush.bf16.msra.mxu0 %v1129
  %1138 = vmatpush.bf16.msra.mxu0 %v1122
  %1139 = vmatmul.bf16.gmra.mxu0 %v1126
  %v1140 = vpop.f32.mrf.mxu0
  %v1141 = vadd.f32 0.0, %v1140
  %v1142 = vpop.f32.mrf.mxu0
  %1143 = vdwg.mxu0
  %v1144 = vadd.f32 %v1107, %v1141
  %s1145 = scalar_lea.vmem %s0, 56
  %v1146 = vld [vmem:[%s1145] sm:$0xf]
  %v1147 = vld [vmem:[%s201] sm:$0xf]
  %v1148 = vld [vmem:[%s201 + $0x4] sm:$0xf]
  %v1149 = vld [vmem:[%s201 + $0x8] sm:$0xf]
  %v1150 = vld [vmem:[%s201 + $0xc] sm:$0x3]
  %v1155 = vunpack.c.l.b16 %v1147
  %v1156 = vunpack.c.l.b16 %v1148
  %v1157 = vunpack.c.l.b16 %v1149
  %v1158 = vunpack.c.l.b16 %v1150
  %v1159 = vpack.c.b16 %v1156, %v1155
  %v1160 = vpack.c.b16 %v1158, %v1157
  %v1163 = vsel %vm72, %v1146, 0
  %v1166 = vsel %vm76, %v1160, 0
  %1168 = vmatpush.bf16.msra.mxu0 0
  %1169 = vmatpush.bf16.msra.mxu0 0
  %1170 = vmatpush.bf16.msra.mxu0 0
  %1171 = vmatpush.bf16.msra.mxu0 0
  %1172 = vmatpush.bf16.msra.mxu0 0
  %1173 = vmatpush.bf16.msra.mxu0 0
  %1174 = vmatpush.bf16.msra.mxu0 %v1166
  %1175 = vmatpush.bf16.msra.mxu0 %v1159
  %1176 = vmatmul.bf16.gmra.mxu0 %v1163
  %v1177 = vpop.f32.mrf.mxu0
  %v1178 = vadd.f32 0.0, %v1177
  %v1179 = vpop.f32.mrf.mxu0
  %1180 = vdwg.mxu0
  %v1181 = vadd.f32 %v1144, %v1178
  %v1182 = vld [vmem:[%s2] sm:$0x1]
  %v1184 = vperm.slane %v1182, 0
  %v1186 = vadd.f32 %v1181, %v1184
  %v1187 = vmax.f32 %v1186, 0.0
  %v1188 = vpack.c.bf16 %v1187, %v1187
  %s1189 = scalar_lea.vmem [#allocation2], 28
  %1190 = vst.msk [vmem:[%s1189] sm:$0xf] %vm34, %v1188
  %v1191 = vld [vmem:[%s956] sm:$0xf]
  %v1192 = vld [vmem:[%s1] sm:$0xf]
  %v1193 = vld [vmem:[%s1 + $0x4] sm:$0xf]
  %v1194 = vld [vmem:[%s1 + $0x8] sm:$0xf]
  %v1195 = vld [vmem:[%s1 + $0xc] sm:$0x3]
  %v1196 = vld [vmem:[%s1108] sm:$0xf]
  %v1197 = vld [vmem:[%s56] sm:$0xf]
  %v1198 = vld [vmem:[%s56 + $0x4] sm:$0xf]
  %v1199 = vld [vmem:[%s56 + $0x8] sm:$0xf]
  %v1200 = vld [vmem:[%s56 + $0xc] sm:$0x3]
  %v1205 = vunpack.c.l.b16 %v1197
  %v1206 = vunpack.c.l.b16 %v1198
  %v1207 = vunpack.c.l.b16 %v1199
  %v1208 = vunpack.c.l.b16 %v1200
  %v1209 = vpack.c.b16 %v1206, %v1205
  %v1210 = vpack.c.b16 %v1208, %v1207
  %v1213 = vsel %vm72, %v1196, 0
  %v1216 = vsel %vm76, %v1210, 0
  %1218 = vmatpush.bf16.msra.mxu0 0
  %1219 = vmatpush.bf16.msra.mxu0 0
  %1220 = vmatpush.bf16.msra.mxu0 0
  %1221 = vmatpush.bf16.msra.mxu0 0
  %1222 = vmatpush.bf16.msra.mxu0 0
  %1223 = vmatpush.bf16.msra.mxu0 0
  %1224 = vmatpush.bf16.msra.mxu0 %v1216
  %1225 = vmatpush.bf16.msra.mxu0 %v1209
  %1226 = vmatmul.bf16.gmra.mxu0 %v1213
  %v1227 = vpop.f32.mrf.mxu0
  %v1228 = vadd.f32 0.0, %v1227
  %v1229 = vpop.f32.mrf.mxu0
  %1230 = vdwg.mxu0
  %v1235 = vunpack.c.l.b16 %v1192
  %v1236 = vunpack.c.l.b16 %v1193
  %v1237 = vunpack.c.l.b16 %v1194
  %v1238 = vunpack.c.l.b16 %v1195
  %v1239 = vpack.c.b16 %v1236, %v1235
  %v1240 = vpack.c.b16 %v1238, %v1237
  %v1243 = vsel %vm72, %v1191, 0
  %v1246 = vsel %vm76, %v1240, 0
  %1248 = vmatpush.bf16.msra.mxu0 0
  %1249 = vmatpush.bf16.msra.mxu0 0
  %1250 = vmatpush.bf16.msra.mxu0 0
  %1251 = vmatpush.bf16.msra.mxu0 0
  %1252 = vmatpush.bf16.msra.mxu0 0
  %1253 = vmatpush.bf16.msra.mxu0 0
  %1254 = vmatpush.bf16.msra.mxu0 %v1246
  %1255 = vmatpush.bf16.msra.mxu0 %v1239
  %1256 = vmatmul.bf16.gmra.mxu0 %v1243
  %v1257 = vpop.f32.mrf.mxu0
  %v1258 = vadd.f32 %v1228, %v1257
  %v1259 = vpop.f32.mrf.mxu0
  %1260 = vdwg.mxu0
  %v1261 = vld [vmem:[%s1145] sm:$0xf]
  %v1262 = vld [vmem:[%s125] sm:$0xf]
  %v1263 = vld [vmem:[%s125 + $0x4] sm:$0xf]
  %v1264 = vld [vmem:[%s125 + $0x8] sm:$0xf]
  %v1265 = vld [vmem:[%s125 + $0xc] sm:$0x3]
  %v1270 = vunpack.c.l.b16 %v1262
  %v1271 = vunpack.c.l.b16 %v1263
  %v1272 = vunpack.c.l.b16 %v1264
  %v1273 = vunpack.c.l.b16 %v1265
  %v1274 = vpack.c.b16 %v1271, %v1270
  %v1275 = vpack.c.b16 %v1273, %v1272
  %v1278 = vsel %vm72, %v1261, 0
  %v1281 = vsel %vm76, %v1275, 0
  %1283 = vmatpush.bf16.msra.mxu0 0
  %1284 = vmatpush.bf16.msra.mxu0 0
  %1285 = vmatpush.bf16.msra.mxu0 0
  %1286 = vmatpush.bf16.msra.mxu0 0
  %1287 = vmatpush.bf16.msra.mxu0 0
  %1288 = vmatpush.bf16.msra.mxu0 0
  %1289 = vmatpush.bf16.msra.mxu0 %v1281
  %1290 = vmatpush.bf16.msra.mxu0 %v1274
  %1291 = vmatmul.bf16.gmra.mxu0 %v1278
  %v1292 = vpop.f32.mrf.mxu0
  %v1293 = vadd.f32 0.0, %v1292
  %v1294 = vpop.f32.mrf.mxu0
  %1295 = vdwg.mxu0
  %v1296 = vadd.f32 %v1258, %v1293
  %s1297 = scalar_lea.vmem %s0, 60
  %v1298 = vld [vmem:[%s1297] sm:$0xf]
  %v1299 = vld [vmem:[%s163] sm:$0xf]
  %v1300 = vld [vmem:[%s163 + $0x4] sm:$0xf]
  %v1301 = vld [vmem:[%s163 + $0x8] sm:$0xf]
  %v1302 = vld [vmem:[%s163 + $0xc] sm:$0x3]
  %v1307 = vunpack.c.l.b16 %v1299
  %v1308 = vunpack.c.l.b16 %v1300
  %v1309 = vunpack.c.l.b16 %v1301
  %v1310 = vunpack.c.l.b16 %v1302
  %v1311 = vpack.c.b16 %v1308, %v1307
  %v1312 = vpack.c.b16 %v1310, %v1309
  %v1315 = vsel %vm72, %v1298, 0
  %v1318 = vsel %vm76, %v1312, 0
  %1320 = vmatpush.bf16.msra.mxu0 0
  %1321 = vmatpush.bf16.msra.mxu0 0
  %1322 = vmatpush.bf16.msra.mxu0 0
  %1323 = vmatpush.bf16.msra.mxu0 0
  %1324 = vmatpush.bf16.msra.mxu0 0
  %1325 = vmatpush.bf16.msra.mxu0 0
  %1326 = vmatpush.bf16.msra.mxu0 %v1318
  %1327 = vmatpush.bf16.msra.mxu0 %v1311
  %1328 = vmatmul.bf16.gmra.mxu0 %v1315
  %v1329 = vpop.f32.mrf.mxu0
  %v1330 = vadd.f32 0.0, %v1329
  %v1331 = vpop.f32.mrf.mxu0
  %1332 = vdwg.mxu0
  %v1333 = vadd.f32 %v1296, %v1330
  %s1334 = scalar_lea.vmem %s0, 64
  %v1335 = vld [vmem:[%s1334] sm:$0xf]
  %v1336 = vld [vmem:[%s201] sm:$0xf]
  %v1337 = vld [vmem:[%s201 + $0x4] sm:$0xf]
  %v1338 = vld [vmem:[%s201 + $0x8] sm:$0xf]
  %v1339 = vld [vmem:[%s201 + $0xc] sm:$0x3]
  %v1344 = vunpack.c.l.b16 %v1336
  %v1345 = vunpack.c.l.b16 %v1337
  %v1346 = vunpack.c.l.b16 %v1338
  %v1347 = vunpack.c.l.b16 %v1339
  %v1348 = vpack.c.b16 %v1345, %v1344
  %v1349 = vpack.c.b16 %v1347, %v1346
  %v1352 = vsel %vm72, %v1335, 0
  %v1355 = vsel %vm76, %v1349, 0
  %1357 = vmatpush.bf16.msra.mxu0 0
  %1358 = vmatpush.bf16.msra.mxu0 0
  %1359 = vmatpush.bf16.msra.mxu0 0
  %1360 = vmatpush.bf16.msra.mxu0 0
  %1361 = vmatpush.bf16.msra.mxu0 0
  %1362 = vmatpush.bf16.msra.mxu0 0
  %1363 = vmatpush.bf16.msra.mxu0 %v1355
  %1364 = vmatpush.bf16.msra.mxu0 %v1348
  %1365 = vmatmul.bf16.gmra.mxu0 %v1352
  %v1366 = vpop.f32.mrf.mxu0
  %v1367 = vadd.f32 0.0, %v1366
  %v1368 = vpop.f32.mrf.mxu0
  %1369 = vdwg.mxu0
  %v1370 = vadd.f32 %v1333, %v1367
  %v1371 = vld [vmem:[%s2] sm:$0x1]
  %v1373 = vperm.slane %v1371, 0
  %v1375 = vadd.f32 %v1370, %v1373
  %v1376 = vmax.f32 %v1375, 0.0
  %v1377 = vpack.c.bf16 %v1376, %v1376
  %s1378 = scalar_lea.vmem [#allocation2], 32
  %1379 = vst.msk [vmem:[%s1378] sm:$0xf] %vm34, %v1377
  %v1380 = vld [vmem:[%s1145] sm:$0xf]
  %v1381 = vld [vmem:[%s1] sm:$0xf]
  %v1382 = vld [vmem:[%s1 + $0x4] sm:$0xf]
  %v1383 = vld [vmem:[%s1 + $0x8] sm:$0xf]
  %v1384 = vld [vmem:[%s1 + $0xc] sm:$0x3]
  %v1385 = vld [vmem:[%s1297] sm:$0xf]
  %v1386 = vld [vmem:[%s56] sm:$0xf]
  %v1387 = vld [vmem:[%s56 + $0x4] sm:$0xf]
  %v1388 = vld [vmem:[%s56 + $0x8] sm:$0xf]
  %v1389 = vld [vmem:[%s56 + $0xc] sm:$0x3]
  %v1394 = vunpack.c.l.b16 %v1386
  %v1395 = vunpack.c.l.b16 %v1387
  %v1396 = vunpack.c.l.b16 %v1388
  %v1397 = vunpack.c.l.b16 %v1389
  %v1398 = vpack.c.b16 %v1395, %v1394
  %v1399 = vpack.c.b16 %v1397, %v1396
  %v1402 = vsel %vm72, %v1385, 0
  %v1405 = vsel %vm76, %v1399, 0
  %1407 = vmatpush.bf16.msra.mxu0 0
  %1408 = vmatpush.bf16.msra.mxu0 0
  %1409 = vmatpush.bf16.msra.mxu0 0
  %1410 = vmatpush.bf16.msra.mxu0 0
  %1411 = vmatpush.bf16.msra.mxu0 0
  %1412 = vmatpush.bf16.msra.mxu0 0
  %1413 = vmatpush.bf16.msra.mxu0 %v1405
  %1414 = vmatpush.bf16.msra.mxu0 %v1398
  %1415 = vmatmul.bf16.gmra.mxu0 %v1402
  %v1416 = vpop.f32.mrf.mxu0
  %v1417 = vadd.f32 0.0, %v1416
  %v1418 = vpop.f32.mrf.mxu0
  %1419 = vdwg.mxu0
  %v1424 = vunpack.c.l.b16 %v1381
  %v1425 = vunpack.c.l.b16 %v1382
  %v1426 = vunpack.c.l.b16 %v1383
  %v1427 = vunpack.c.l.b16 %v1384
  %v1428 = vpack.c.b16 %v1425, %v1424
  %v1429 = vpack.c.b16 %v1427, %v1426
  %v1432 = vsel %vm72, %v1380, 0
  %v1435 = vsel %vm76, %v1429, 0
  %1437 = vmatpush.bf16.msra.mxu0 0
  %1438 = vmatpush.bf16.msra.mxu0 0
  %1439 = vmatpush.bf16.msra.mxu0 0
  %1440 = vmatpush.bf16.msra.mxu0 0
  %1441 = vmatpush.bf16.msra.mxu0 0
  %1442 = vmatpush.bf16.msra.mxu0 0
  %1443 = vmatpush.bf16.msra.mxu0 %v1435
  %1444 = vmatpush.bf16.msra.mxu0 %v1428
  %1445 = vmatmul.bf16.gmra.mxu0 %v1432
  %v1446 = vpop.f32.mrf.mxu0
  %v1447 = vadd.f32 %v1417, %v1446
  %v1448 = vpop.f32.mrf.mxu0
  %1449 = vdwg.mxu0
  %v1450 = vld [vmem:[%s1334] sm:$0xf]
  %v1451 = vld [vmem:[%s125] sm:$0xf]
  %v1452 = vld [vmem:[%s125 + $0x4] sm:$0xf]
  %v1453 = vld [vmem:[%s125 + $0x8] sm:$0xf]
  %v1454 = vld [vmem:[%s125 + $0xc] sm:$0x3]
  %v1459 = vunpack.c.l.b16 %v1451
  %v1460 = vunpack.c.l.b16 %v1452
  %v1461 = vunpack.c.l.b16 %v1453
  %v1462 = vunpack.c.l.b16 %v1454
  %v1463 = vpack.c.b16 %v1460, %v1459
  %v1464 = vpack.c.b16 %v1462, %v1461
  %v1467 = vsel %vm72, %v1450, 0
  %v1470 = vsel %vm76, %v1464, 0
  %1472 = vmatpush.bf16.msra.mxu0 0
  %1473 = vmatpush.bf16.msra.mxu0 0
  %1474 = vmatpush.bf16.msra.mxu0 0
  %1475 = vmatpush.bf16.msra.mxu0 0
  %1476 = vmatpush.bf16.msra.mxu0 0
  %1477 = vmatpush.bf16.msra.mxu0 0
  %1478 = vmatpush.bf16.msra.mxu0 %v1470
  %1479 = vmatpush.bf16.msra.mxu0 %v1463
  %1480 = vmatmul.bf16.gmra.mxu0 %v1467
  %v1481 = vpop.f32.mrf.mxu0
  %v1482 = vadd.f32 0.0, %v1481
  %v1483 = vpop.f32.mrf.mxu0
  %1484 = vdwg.mxu0
  %v1485 = vadd.f32 %v1447, %v1482
  %s1486 = scalar_lea.vmem %s0, 68
  %v1487 = vld [vmem:[%s1486] sm:$0xf]
  %v1488 = vld [vmem:[%s163] sm:$0xf]
  %v1489 = vld [vmem:[%s163 + $0x4] sm:$0xf]
  %v1490 = vld [vmem:[%s163 + $0x8] sm:$0xf]
  %v1491 = vld [vmem:[%s163 + $0xc] sm:$0x3]
  %v1496 = vunpack.c.l.b16 %v1488
  %v1497 = vunpack.c.l.b16 %v1489
  %v1498 = vunpack.c.l.b16 %v1490
  %v1499 = vunpack.c.l.b16 %v1491
  %v1500 = vpack.c.b16 %v1497, %v1496
  %v1501 = vpack.c.b16 %v1499, %v1498
  %v1504 = vsel %vm72, %v1487, 0
  %v1507 = vsel %vm76, %v1501, 0
  %1509 = vmatpush.bf16.msra.mxu0 0
  %1510 = vmatpush.bf16.msra.mxu0 0
  %1511 = vmatpush.bf16.msra.mxu0 0
  %1512 = vmatpush.bf16.msra.mxu0 0
  %1513 = vmatpush.bf16.msra.mxu0 0
  %1514 = vmatpush.bf16.msra.mxu0 0
  %1515 = vmatpush.bf16.msra.mxu0 %v1507
  %1516 = vmatpush.bf16.msra.mxu0 %v1500
  %1517 = vmatmul.bf16.gmra.mxu0 %v1504
  %v1518 = vpop.f32.mrf.mxu0
  %v1519 = vadd.f32 0.0, %v1518
  %v1520 = vpop.f32.mrf.mxu0
  %1521 = vdwg.mxu0
  %v1522 = vadd.f32 %v1485, %v1519
  %s1523 = scalar_lea.vmem %s0, 72
  %v1524 = vld [vmem:[%s1523] sm:$0xf]
  %v1525 = vld [vmem:[%s201] sm:$0xf]
  %v1526 = vld [vmem:[%s201 + $0x4] sm:$0xf]
  %v1527 = vld [vmem:[%s201 + $0x8] sm:$0xf]
  %v1528 = vld [vmem:[%s201 + $0xc] sm:$0x3]
  %v1533 = vunpack.c.l.b16 %v1525
  %v1534 = vunpack.c.l.b16 %v1526
  %v1535 = vunpack.c.l.b16 %v1527
  %v1536 = vunpack.c.l.b16 %v1528
  %v1537 = vpack.c.b16 %v1534, %v1533
  %v1538 = vpack.c.b16 %v1536, %v1535
  %v1541 = vsel %vm72, %v1524, 0
  %v1544 = vsel %vm76, %v1538, 0
  %1546 = vmatpush.bf16.msra.mxu0 0
  %1547 = vmatpush.bf16.msra.mxu0 0
  %1548 = vmatpush.bf16.msra.mxu0 0
  %1549 = vmatpush.bf16.msra.mxu0 0
  %1550 = vmatpush.bf16.msra.mxu0 0
  %1551 = vmatpush.bf16.msra.mxu0 0
  %1552 = vmatpush.bf16.msra.mxu0 %v1544
  %1553 = vmatpush.bf16.msra.mxu0 %v1537
  %1554 = vmatmul.bf16.gmra.mxu0 %v1541
  %v1555 = vpop.f32.mrf.mxu0
  %v1556 = vadd.f32 0.0, %v1555
  %v1557 = vpop.f32.mrf.mxu0
  %1558 = vdwg.mxu0
  %v1559 = vadd.f32 %v1522, %v1556
  %v1560 = vld [vmem:[%s2] sm:$0x1]
  %v1562 = vperm.slane %v1560, 0
  %v1564 = vadd.f32 %v1559, %v1562
  %v1565 = vmax.f32 %v1564, 0.0
  %v1566 = vpack.c.bf16 %v1565, %v1565
  %s1567 = scalar_lea.vmem [#allocation2], 36
  %1568 = vst.msk [vmem:[%s1567] sm:$0xf] %vm34, %v1566
  %v1569 = vld [vmem:[%s1334] sm:$0xf]
  %v1570 = vld [vmem:[%s1] sm:$0xf]
  %v1571 = vld [vmem:[%s1 + $0x4] sm:$0xf]
  %v1572 = vld [vmem:[%s1 + $0x8] sm:$0xf]
  %v1573 = vld [vmem:[%s1 + $0xc] sm:$0x3]
  %v1574 = vld [vmem:[%s1486] sm:$0xf]
  %v1575 = vld [vmem:[%s56] sm:$0xf]
  %v1576 = vld [vmem:[%s56 + $0x4] sm:$0xf]
  %v1577 = vld [vmem:[%s56 + $0x8] sm:$0xf]
  %v1578 = vld [vmem:[%s56 + $0xc] sm:$0x3]
  %v1583 = vunpack.c.l.b16 %v1575
  %v1584 = vunpack.c.l.b16 %v1576
  %v1585 = vunpack.c.l.b16 %v1577
  %v1586 = vunpack.c.l.b16 %v1578
  %v1587 = vpack.c.b16 %v1584, %v1583
  %v1588 = vpack.c.b16 %v1586, %v1585
  %v1591 = vsel %vm72, %v1574, 0
  %v1594 = vsel %vm76, %v1588, 0
  %1596 = vmatpush.bf16.msra.mxu0 0
  %1597 = vmatpush.bf16.msra.mxu0 0
  %1598 = vmatpush.bf16.msra.mxu0 0
  %1599 = vmatpush.bf16.msra.mxu0 0
  %1600 = vmatpush.bf16.msra.mxu0 0
  %1601 = vmatpush.bf16.msra.mxu0 0
  %1602 = vmatpush.bf16.msra.mxu0 %v1594
  %1603 = vmatpush.bf16.msra.mxu0 %v1587
  %1604 = vmatmul.bf16.gmra.mxu0 %v1591
  %v1605 = vpop.f32.mrf.mxu0
  %v1606 = vadd.f32 0.0, %v1605
  %v1607 = vpop.f32.mrf.mxu0
  %1608 = vdwg.mxu0
  %v1613 = vunpack.c.l.b16 %v1570
  %v1614 = vunpack.c.l.b16 %v1571
  %v1615 = vunpack.c.l.b16 %v1572
  %v1616 = vunpack.c.l.b16 %v1573
  %v1617 = vpack.c.b16 %v1614, %v1613
  %v1618 = vpack.c.b16 %v1616, %v1615
  %v1621 = vsel %vm72, %v1569, 0
  %v1624 = vsel %vm76, %v1618, 0
  %1626 = vmatpush.bf16.msra.mxu0 0
  %1627 = vmatpush.bf16.msra.mxu0 0
  %1628 = vmatpush.bf16.msra.mxu0 0
  %1629 = vmatpush.bf16.msra.mxu0 0
  %1630 = vmatpush.bf16.msra.mxu0 0
  %1631 = vmatpush.bf16.msra.mxu0 0
  %1632 = vmatpush.bf16.msra.mxu0 %v1624
  %1633 = vmatpush.bf16.msra.mxu0 %v1617
  %1634 = vmatmul.bf16.gmra.mxu0 %v1621
  %v1635 = vpop.f32.mrf.mxu0
  %v1636 = vadd.f32 %v1606, %v1635
  %v1637 = vpop.f32.mrf.mxu0
  %1638 = vdwg.mxu0
  %v1639 = vld [vmem:[%s1523] sm:$0xf]
  %v1640 = vld [vmem:[%s125] sm:$0xf]
  %v1641 = vld [vmem:[%s125 + $0x4] sm:$0xf]
  %v1642 = vld [vmem:[%s125 + $0x8] sm:$0xf]
  %v1643 = vld [vmem:[%s125 + $0xc] sm:$0x3]
  %v1648 = vunpack.c.l.b16 %v1640
  %v1649 = vunpack.c.l.b16 %v1641
  %v1650 = vunpack.c.l.b16 %v1642
  %v1651 = vunpack.c.l.b16 %v1643
  %v1652 = vpack.c.b16 %v1649, %v1648
  %v1653 = vpack.c.b16 %v1651, %v1650
  %v1656 = vsel %vm72, %v1639, 0
  %v1659 = vsel %vm76, %v1653, 0
  %1661 = vmatpush.bf16.msra.mxu0 0
  %1662 = vmatpush.bf16.msra.mxu0 0
  %1663 = vmatpush.bf16.msra.mxu0 0
  %1664 = vmatpush.bf16.msra.mxu0 0
  %1665 = vmatpush.bf16.msra.mxu0 0
  %1666 = vmatpush.bf16.msra.mxu0 0
  %1667 = vmatpush.bf16.msra.mxu0 %v1659
  %1668 = vmatpush.bf16.msra.mxu0 %v1652
  %1669 = vmatmul.bf16.gmra.mxu0 %v1656
  %v1670 = vpop.f32.mrf.mxu0
  %v1671 = vadd.f32 0.0, %v1670
  %v1672 = vpop.f32.mrf.mxu0
  %1673 = vdwg.mxu0
  %v1674 = vadd.f32 %v1636, %v1671
  %s1675 = scalar_lea.vmem %s0, 76
  %v1676 = vld [vmem:[%s1675] sm:$0xf]
  %v1677 = vld [vmem:[%s163] sm:$0xf]
  %v1678 = vld [vmem:[%s163 + $0x4] sm:$0xf]
  %v1679 = vld [vmem:[%s163 + $0x8] sm:$0xf]
  %v1680 = vld [vmem:[%s163 + $0xc] sm:$0x3]
  %v1685 = vunpack.c.l.b16 %v1677
  %v1686 = vunpack.c.l.b16 %v1678
  %v1687 = vunpack.c.l.b16 %v1679
  %v1688 = vunpack.c.l.b16 %v1680
  %v1689 = vpack.c.b16 %v1686, %v1685
  %v1690 = vpack.c.b16 %v1688, %v1687
  %v1693 = vsel %vm72, %v1676, 0
  %v1696 = vsel %vm76, %v1690, 0
  %1698 = vmatpush.bf16.msra.mxu0 0
  %1699 = vmatpush.bf16.msra.mxu0 0
  %1700 = vmatpush.bf16.msra.mxu0 0
  %1701 = vmatpush.bf16.msra.mxu0 0
  %1702 = vmatpush.bf16.msra.mxu0 0
  %1703 = vmatpush.bf16.msra.mxu0 0
  %1704 = vmatpush.bf16.msra.mxu0 %v1696
  %1705 = vmatpush.bf16.msra.mxu0 %v1689
  %1706 = vmatmul.bf16.gmra.mxu0 %v1693
  %v1707 = vpop.f32.mrf.mxu0
  %v1708 = vadd.f32 0.0, %v1707
  %v1709 = vpop.f32.mrf.mxu0
  %1710 = vdwg.mxu0
  %v1711 = vadd.f32 %v1674, %v1708
  %s1712 = scalar_lea.vmem %s0, 80
  %v1713 = vld [vmem:[%s1712] sm:$0xf]
  %v1714 = vld [vmem:[%s201] sm:$0xf]
  %v1715 = vld [vmem:[%s201 + $0x4] sm:$0xf]
  %v1716 = vld [vmem:[%s201 + $0x8] sm:$0xf]
  %v1717 = vld [vmem:[%s201 + $0xc] sm:$0x3]
  %v1722 = vunpack.c.l.b16 %v1714
  %v1723 = vunpack.c.l.b16 %v1715
  %v1724 = vunpack.c.l.b16 %v1716
  %v1725 = vunpack.c.l.b16 %v1717
  %v1726 = vpack.c.b16 %v1723, %v1722
  %v1727 = vpack.c.b16 %v1725, %v1724
  %v1730 = vsel %vm72, %v1713, 0
  %v1733 = vsel %vm76, %v1727, 0
  %1735 = vmatpush.bf16.msra.mxu0 0
  %1736 = vmatpush.bf16.msra.mxu0 0
  %1737 = vmatpush.bf16.msra.mxu0 0
  %1738 = vmatpush.bf16.msra.mxu0 0
  %1739 = vmatpush.bf16.msra.mxu0 0
  %1740 = vmatpush.bf16.msra.mxu0 0
  %1741 = vmatpush.bf16.msra.mxu0 %v1733
  %1742 = vmatpush.bf16.msra.mxu0 %v1726
  %1743 = vmatmul.bf16.gmra.mxu0 %v1730
  %v1744 = vpop.f32.mrf.mxu0
  %v1745 = vadd.f32 0.0, %v1744
  %v1746 = vpop.f32.mrf.mxu0
  %1747 = vdwg.mxu0
  %v1748 = vadd.f32 %v1711, %v1745
  %v1749 = vld [vmem:[%s2] sm:$0x1]
  %v1751 = vperm.slane %v1749, 0
  %v1753 = vadd.f32 %v1748, %v1751
  %v1754 = vmax.f32 %v1753, 0.0
  %v1755 = vpack.c.bf16 %v1754, %v1754
  %s1756 = scalar_lea.vmem [#allocation2], 40
  %1757 = vst.msk [vmem:[%s1756] sm:$0xf] %vm34, %v1755
  %v1758 = vld [vmem:[%s1523] sm:$0xf]
  %v1759 = vld [vmem:[%s1] sm:$0xf]
  %v1760 = vld [vmem:[%s1 + $0x4] sm:$0xf]
  %v1761 = vld [vmem:[%s1 + $0x8] sm:$0xf]
  %v1762 = vld [vmem:[%s1 + $0xc] sm:$0x3]
  %v1763 = vld [vmem:[%s1675] sm:$0xf]
  %v1764 = vld [vmem:[%s56] sm:$0xf]
  %v1765 = vld [vmem:[%s56 + $0x4] sm:$0xf]
  %v1766 = vld [vmem:[%s56 + $0x8] sm:$0xf]
  %v1767 = vld [vmem:[%s56 + $0xc] sm:$0x3]
  %v1772 = vunpack.c.l.b16 %v1764
  %v1773 = vunpack.c.l.b16 %v1765
  %v1774 = vunpack.c.l.b16 %v1766
  %v1775 = vunpack.c.l.b16 %v1767
  %v1776 = vpack.c.b16 %v1773, %v1772
  %v1777 = vpack.c.b16 %v1775, %v1774
  %v1780 = vsel %vm72, %v1763, 0
  %v1783 = vsel %vm76, %v1777, 0
  %1785 = vmatpush.bf16.msra.mxu0 0
  %1786 = vmatpush.bf16.msra.mxu0 0
  %1787 = vmatpush.bf16.msra.mxu0 0
  %1788 = vmatpush.bf16.msra.mxu0 0
  %1789 = vmatpush.bf16.msra.mxu0 0
  %1790 = vmatpush.bf16.msra.mxu0 0
  %1791 = vmatpush.bf16.msra.mxu0 %v1783
  %1792 = vmatpush.bf16.msra.mxu0 %v1776
  %1793 = vmatmul.bf16.gmra.mxu0 %v1780
  %v1794 = vpop.f32.mrf.mxu0
  %v1795 = vadd.f32 0.0, %v1794
  %v1796 = vpop.f32.mrf.mxu0
  %1797 = vdwg.mxu0
  %v1802 = vunpack.c.l.b16 %v1759
  %v1803 = vunpack.c.l.b16 %v1760
  %v1804 = vunpack.c.l.b16 %v1761
  %v1805 = vunpack.c.l.b16 %v1762
  %v1806 = vpack.c.b16 %v1803, %v1802
  %v1807 = vpack.c.b16 %v1805, %v1804
  %v1810 = vsel %vm72, %v1758, 0
  %v1813 = vsel %vm76, %v1807, 0
  %1815 = vmatpush.bf16.msra.mxu0 0
  %1816 = vmatpush.bf16.msra.mxu0 0
  %1817 = vmatpush.bf16.msra.mxu0 0
  %1818 = vmatpush.bf16.msra.mxu0 0
  %1819 = vmatpush.bf16.msra.mxu0 0
  %1820 = vmatpush.bf16.msra.mxu0 0
  %1821 = vmatpush.bf16.msra.mxu0 %v1813
  %1822 = vmatpush.bf16.msra.mxu0 %v1806
  %1823 = vmatmul.bf16.gmra.mxu0 %v1810
  %v1824 = vpop.f32.mrf.mxu0
  %v1825 = vadd.f32 %v1795, %v1824
  %v1826 = vpop.f32.mrf.mxu0
  %1827 = vdwg.mxu0
  %v1828 = vld [vmem:[%s1712] sm:$0xf]
  %v1829 = vld [vmem:[%s125] sm:$0xf]
  %v1830 = vld [vmem:[%s125 + $0x4] sm:$0xf]
  %v1831 = vld [vmem:[%s125 + $0x8] sm:$0xf]
  %v1832 = vld [vmem:[%s125 + $0xc] sm:$0x3]
  %v1837 = vunpack.c.l.b16 %v1829
  %v1838 = vunpack.c.l.b16 %v1830
  %v1839 = vunpack.c.l.b16 %v1831
  %v1840 = vunpack.c.l.b16 %v1832
  %v1841 = vpack.c.b16 %v1838, %v1837
  %v1842 = vpack.c.b16 %v1840, %v1839
  %v1845 = vsel %vm72, %v1828, 0
  %v1848 = vsel %vm76, %v1842, 0
  %1850 = vmatpush.bf16.msra.mxu0 0
  %1851 = vmatpush.bf16.msra.mxu0 0
  %1852 = vmatpush.bf16.msra.mxu0 0
  %1853 = vmatpush.bf16.msra.mxu0 0
  %1854 = vmatpush.bf16.msra.mxu0 0
  %1855 = vmatpush.bf16.msra.mxu0 0
  %1856 = vmatpush.bf16.msra.mxu0 %v1848
  %1857 = vmatpush.bf16.msra.mxu0 %v1841
  %1858 = vmatmul.bf16.gmra.mxu0 %v1845
  %v1859 = vpop.f32.mrf.mxu0
  %v1860 = vadd.f32 0.0, %v1859
  %v1861 = vpop.f32.mrf.mxu0
  %1862 = vdwg.mxu0
  %v1863 = vadd.f32 %v1825, %v1860
  %s1864 = scalar_lea.vmem %s0, 84
  %v1865 = vld [vmem:[%s1864] sm:$0xf]
  %v1866 = vld [vmem:[%s163] sm:$0xf]
  %v1867 = vld [vmem:[%s163 + $0x4] sm:$0xf]
  %v1868 = vld [vmem:[%s163 + $0x8] sm:$0xf]
  %v1869 = vld [vmem:[%s163 + $0xc] sm:$0x3]
  %v1874 = vunpack.c.l.b16 %v1866
  %v1875 = vunpack.c.l.b16 %v1867
  %v1876 = vunpack.c.l.b16 %v1868
  %v1877 = vunpack.c.l.b16 %v1869
  %v1878 = vpack.c.b16 %v1875, %v1874
  %v1879 = vpack.c.b16 %v1877, %v1876
  %v1882 = vsel %vm72, %v1865, 0
  %v1885 = vsel %vm76, %v1879, 0
  %1887 = vmatpush.bf16.msra.mxu0 0
  %1888 = vmatpush.bf16.msra.mxu0 0
  %1889 = vmatpush.bf16.msra.mxu0 0
  %1890 = vmatpush.bf16.msra.mxu0 0
  %1891 = vmatpush.bf16.msra.mxu0 0
  %1892 = vmatpush.bf16.msra.mxu0 0
  %1893 = vmatpush.bf16.msra.mxu0 %v1885
  %1894 = vmatpush.bf16.msra.mxu0 %v1878
  %1895 = vmatmul.bf16.gmra.mxu0 %v1882
  %v1896 = vpop.f32.mrf.mxu0
  %v1897 = vadd.f32 0.0, %v1896
  %v1898 = vpop.f32.mrf.mxu0
  %1899 = vdwg.mxu0
  %v1900 = vadd.f32 %v1863, %v1897
  %s1901 = scalar_lea.vmem %s0, 88
  %v1902 = vld [vmem:[%s1901] sm:$0xf]
  %v1903 = vld [vmem:[%s201] sm:$0xf]
  %v1904 = vld [vmem:[%s201 + $0x4] sm:$0xf]
  %v1905 = vld [vmem:[%s201 + $0x8] sm:$0xf]
  %v1906 = vld [vmem:[%s201 + $0xc] sm:$0x3]
  %v1911 = vunpack.c.l.b16 %v1903
  %v1912 = vunpack.c.l.b16 %v1904
  %v1913 = vunpack.c.l.b16 %v1905
  %v1914 = vunpack.c.l.b16 %v1906
  %v1915 = vpack.c.b16 %v1912, %v1911
  %v1916 = vpack.c.b16 %v1914, %v1913
  %v1919 = vsel %vm72, %v1902, 0
  %v1922 = vsel %vm76, %v1916, 0
  %1924 = vmatpush.bf16.msra.mxu0 0
  %1925 = vmatpush.bf16.msra.mxu0 0
  %1926 = vmatpush.bf16.msra.mxu0 0
  %1927 = vmatpush.bf16.msra.mxu0 0
  %1928 = vmatpush.bf16.msra.mxu0 0
  %1929 = vmatpush.bf16.msra.mxu0 0
  %1930 = vmatpush.bf16.msra.mxu0 %v1922
  %1931 = vmatpush.bf16.msra.mxu0 %v1915
  %1932 = vmatmul.bf16.gmra.mxu0 %v1919
  %v1933 = vpop.f32.mrf.mxu0
  %v1934 = vadd.f32 0.0, %v1933
  %v1935 = vpop.f32.mrf.mxu0
  %1936 = vdwg.mxu0
  %v1937 = vadd.f32 %v1900, %v1934
  %v1938 = vld [vmem:[%s2] sm:$0x1]
  %v1940 = vperm.slane %v1938, 0
  %v1942 = vadd.f32 %v1937, %v1940
  %v1943 = vmax.f32 %v1942, 0.0
  %v1944 = vpack.c.bf16 %v1943, %v1943
  %s1945 = scalar_lea.vmem [#allocation2], 44
  %1946 = vst.msk [vmem:[%s1945] sm:$0xf] %vm34, %v1944
  %v1947 = vld [vmem:[%s1712] sm:$0xf]
  %v1948 = vld [vmem:[%s1] sm:$0xf]
  %v1949 = vld [vmem:[%s1 + $0x4] sm:$0xf]
  %v1950 = vld [vmem:[%s1 + $0x8] sm:$0xf]
  %v1951 = vld [vmem:[%s1 + $0xc] sm:$0x3]
  %v1952 = vld [vmem:[%s1864] sm:$0xf]
  %v1953 = vld [vmem:[%s56] sm:$0xf]
  %v1954 = vld [vmem:[%s56 + $0x4] sm:$0xf]
  %v1955 = vld [vmem:[%s56 + $0x8] sm:$0xf]
  %v1956 = vld [vmem:[%s56 + $0xc] sm:$0x3]
  %v1961 = vunpack.c.l.b16 %v1953
  %v1962 = vunpack.c.l.b16 %v1954
  %v1963 = vunpack.c.l.b16 %v1955
  %v1964 = vunpack.c.l.b16 %v1956
  %v1965 = vpack.c.b16 %v1962, %v1961
  %v1966 = vpack.c.b16 %v1964, %v1963
  %v1969 = vsel %vm72, %v1952, 0
  %v1972 = vsel %vm76, %v1966, 0
  %1974 = vmatpush.bf16.msra.mxu0 0
  %1975 = vmatpush.bf16.msra.mxu0 0
  %1976 = vmatpush.bf16.msra.mxu0 0
  %1977 = vmatpush.bf16.msra.mxu0 0
  %1978 = vmatpush.bf16.msra.mxu0 0
  %1979 = vmatpush.bf16.msra.mxu0 0
  %1980 = vmatpush.bf16.msra.mxu0 %v1972
  %1981 = vmatpush.bf16.msra.mxu0 %v1965
  %1982 = vmatmul.bf16.gmra.mxu0 %v1969
  %v1983 = vpop.f32.mrf.mxu0
  %v1984 = vadd.f32 0.0, %v1983
  %v1985 = vpop.f32.mrf.mxu0
  %1986 = vdwg.mxu0
  %v1991 = vunpack.c.l.b16 %v1948
  %v1992 = vunpack.c.l.b16 %v1949
  %v1993 = vunpack.c.l.b16 %v1950
  %v1994 = vunpack.c.l.b16 %v1951
  %v1995 = vpack.c.b16 %v1992, %v1991
  %v1996 = vpack.c.b16 %v1994, %v1993
  %v1999 = vsel %vm72, %v1947, 0
  %v2002 = vsel %vm76, %v1996, 0
  %2004 = vmatpush.bf16.msra.mxu0 0
  %2005 = vmatpush.bf16.msra.mxu0 0
  %2006 = vmatpush.bf16.msra.mxu0 0
  %2007 = vmatpush.bf16.msra.mxu0 0
  %2008 = vmatpush.bf16.msra.mxu0 0
  %2009 = vmatpush.bf16.msra.mxu0 0
  %2010 = vmatpush.bf16.msra.mxu0 %v2002
  %2011 = vmatpush.bf16.msra.mxu0 %v1995
  %2012 = vmatmul.bf16.gmra.mxu0 %v1999
  %v2013 = vpop.f32.mrf.mxu0
  %v2014 = vadd.f32 %v1984, %v2013
  %v2015 = vpop.f32.mrf.mxu0
  %2016 = vdwg.mxu0
  %v2017 = vld [vmem:[%s1901] sm:$0xf]
  %v2018 = vld [vmem:[%s125] sm:$0xf]
  %v2019 = vld [vmem:[%s125 + $0x4] sm:$0xf]
  %v2020 = vld [vmem:[%s125 + $0x8] sm:$0xf]
  %v2021 = vld [vmem:[%s125 + $0xc] sm:$0x3]
  %v2026 = vunpack.c.l.b16 %v2018
  %v2027 = vunpack.c.l.b16 %v2019
  %v2028 = vunpack.c.l.b16 %v2020
  %v2029 = vunpack.c.l.b16 %v2021
  %v2030 = vpack.c.b16 %v2027, %v2026
  %v2031 = vpack.c.b16 %v2029, %v2028
  %v2034 = vsel %vm72, %v2017, 0
  %v2037 = vsel %vm76, %v2031, 0
  %2039 = vmatpush.bf16.msra.mxu0 0
  %2040 = vmatpush.bf16.msra.mxu0 0
  %2041 = vmatpush.bf16.msra.mxu0 0
  %2042 = vmatpush.bf16.msra.mxu0 0
  %2043 = vmatpush.bf16.msra.mxu0 0
  %2044 = vmatpush.bf16.msra.mxu0 0
  %2045 = vmatpush.bf16.msra.mxu0 %v2037
  %2046 = vmatpush.bf16.msra.mxu0 %v2030
  %2047 = vmatmul.bf16.gmra.mxu0 %v2034
  %v2048 = vpop.f32.mrf.mxu0
  %v2049 = vadd.f32 0.0, %v2048
  %v2050 = vpop.f32.mrf.mxu0
  %2051 = vdwg.mxu0
  %v2052 = vadd.f32 %v2014, %v2049
  %s2053 = scalar_lea.vmem %s0, 92
  %v2054 = vld [vmem:[%s2053] sm:$0xf]
  %v2055 = vld [vmem:[%s163] sm:$0xf]
  %v2056 = vld [vmem:[%s163 + $0x4] sm:$0xf]
  %v2057 = vld [vmem:[%s163 + $0x8] sm:$0xf]
  %v2058 = vld [vmem:[%s163 + $0xc] sm:$0x3]
  %v2063 = vunpack.c.l.b16 %v2055
  %v2064 = vunpack.c.l.b16 %v2056
  %v2065 = vunpack.c.l.b16 %v2057
  %v2066 = vunpack.c.l.b16 %v2058
  %v2067 = vpack.c.b16 %v2064, %v2063
  %v2068 = vpack.c.b16 %v2066, %v2065
  %v2071 = vsel %vm72, %v2054, 0
  %v2074 = vsel %vm76, %v2068, 0
  %2076 = vmatpush.bf16.msra.mxu0 0
  %2077 = vmatpush.bf16.msra.mxu0 0
  %2078 = vmatpush.bf16.msra.mxu0 0
  %2079 = vmatpush.bf16.msra.mxu0 0
  %2080 = vmatpush.bf16.msra.mxu0 0
  %2081 = vmatpush.bf16.msra.mxu0 0
  %2082 = vmatpush.bf16.msra.mxu0 %v2074
  %2083 = vmatpush.bf16.msra.mxu0 %v2067
  %2084 = vmatmul.bf16.gmra.mxu0 %v2071
  %v2085 = vpop.f32.mrf.mxu0
  %v2086 = vadd.f32 0.0, %v2085
  %v2087 = vpop.f32.mrf.mxu0
  %2088 = vdwg.mxu0
  %v2089 = vadd.f32 %v2052, %v2086
  %s2090 = scalar_lea.vmem %s0, 96
  %v2091 = vld [vmem:[%s2090] sm:$0xf]
  %v2092 = vld [vmem:[%s201] sm:$0xf]
  %v2093 = vld [vmem:[%s201 + $0x4] sm:$0xf]
  %v2094 = vld [vmem:[%s201 + $0x8] sm:$0xf]
  %v2095 = vld [vmem:[%s201 + $0xc] sm:$0x3]
  %v2100 = vunpack.c.l.b16 %v2092
  %v2101 = vunpack.c.l.b16 %v2093
  %v2102 = vunpack.c.l.b16 %v2094
  %v2103 = vunpack.c.l.b16 %v2095
  %v2104 = vpack.c.b16 %v2101, %v2100
  %v2105 = vpack.c.b16 %v2103, %v2102
  %v2108 = vsel %vm72, %v2091, 0
  %v2111 = vsel %vm76, %v2105, 0
  %2113 = vmatpush.bf16.msra.mxu0 0
  %2114 = vmatpush.bf16.msra.mxu0 0
  %2115 = vmatpush.bf16.msra.mxu0 0
  %2116 = vmatpush.bf16.msra.mxu0 0
  %2117 = vmatpush.bf16.msra.mxu0 0
  %2118 = vmatpush.bf16.msra.mxu0 0
  %2119 = vmatpush.bf16.msra.mxu0 %v2111
  %2120 = vmatpush.bf16.msra.mxu0 %v2104
  %2121 = vmatmul.bf16.gmra.mxu0 %v2108
  %v2122 = vpop.f32.mrf.mxu0
  %v2123 = vadd.f32 0.0, %v2122
  %v2124 = vpop.f32.mrf.mxu0
  %2125 = vdwg.mxu0
  %v2126 = vadd.f32 %v2089, %v2123
  %v2127 = vld [vmem:[%s2] sm:$0x1]
  %v2129 = vperm.slane %v2127, 0
  %v2131 = vadd.f32 %v2126, %v2129
  %v2132 = vmax.f32 %v2131, 0.0
  %v2133 = vpack.c.bf16 %v2132, %v2132
  %s2134 = scalar_lea.vmem [#allocation2], 48
  %2135 = vst.msk [vmem:[%s2134] sm:$0xf] %vm34, %v2133
  %v2136 = vld [vmem:[%s1901] sm:$0xf]
  %v2137 = vld [vmem:[%s1] sm:$0xf]
  %v2138 = vld [vmem:[%s1 + $0x4] sm:$0xf]
  %v2139 = vld [vmem:[%s1 + $0x8] sm:$0xf]
  %v2140 = vld [vmem:[%s1 + $0xc] sm:$0x3]
  %v2141 = vld [vmem:[%s2053] sm:$0xf]
  %v2142 = vld [vmem:[%s56] sm:$0xf]
  %v2143 = vld [vmem:[%s56 + $0x4] sm:$0xf]
  %v2144 = vld [vmem:[%s56 + $0x8] sm:$0xf]
  %v2145 = vld [vmem:[%s56 + $0xc] sm:$0x3]
  %v2150 = vunpack.c.l.b16 %v2142
  %v2151 = vunpack.c.l.b16 %v2143
  %v2152 = vunpack.c.l.b16 %v2144
  %v2153 = vunpack.c.l.b16 %v2145
  %v2154 = vpack.c.b16 %v2151, %v2150
  %v2155 = vpack.c.b16 %v2153, %v2152
  %v2158 = vsel %vm72, %v2141, 0
  %v2161 = vsel %vm76, %v2155, 0
  %2163 = vmatpush.bf16.msra.mxu0 0
  %2164 = vmatpush.bf16.msra.mxu0 0
  %2165 = vmatpush.bf16.msra.mxu0 0
  %2166 = vmatpush.bf16.msra.mxu0 0
  %2167 = vmatpush.bf16.msra.mxu0 0
  %2168 = vmatpush.bf16.msra.mxu0 0
  %2169 = vmatpush.bf16.msra.mxu0 %v2161
  %2170 = vmatpush.bf16.msra.mxu0 %v2154
  %2171 = vmatmul.bf16.gmra.mxu0 %v2158
  %v2172 = vpop.f32.mrf.mxu0
  %v2173 = vadd.f32 0.0, %v2172
  %v2174 = vpop.f32.mrf.mxu0
  %2175 = vdwg.mxu0
  %v2180 = vunpack.c.l.b16 %v2137
  %v2181 = vunpack.c.l.b16 %v2138
  %v2182 = vunpack.c.l.b16 %v2139
  %v2183 = vunpack.c.l.b16 %v2140
  %v2184 = vpack.c.b16 %v2181, %v2180
  %v2185 = vpack.c.b16 %v2183, %v2182
  %v2188 = vsel %vm72, %v2136, 0
  %v2191 = vsel %vm76, %v2185, 0
  %2193 = vmatpush.bf16.msra.mxu0 0
  %2194 = vmatpush.bf16.msra.mxu0 0
  %2195 = vmatpush.bf16.msra.mxu0 0
  %2196 = vmatpush.bf16.msra.mxu0 0
  %2197 = vmatpush.bf16.msra.mxu0 0
  %2198 = vmatpush.bf16.msra.mxu0 0
  %2199 = vmatpush.bf16.msra.mxu0 %v2191
  %2200 = vmatpush.bf16.msra.mxu0 %v2184
  %2201 = vmatmul.bf16.gmra.mxu0 %v2188
  %v2202 = vpop.f32.mrf.mxu0
  %v2203 = vadd.f32 %v2173, %v2202
  %v2204 = vpop.f32.mrf.mxu0
  %2205 = vdwg.mxu0
  %v2206 = vld [vmem:[%s2090] sm:$0xf]
  %v2207 = vld [vmem:[%s125] sm:$0xf]
  %v2208 = vld [vmem:[%s125 + $0x4] sm:$0xf]
  %v2209 = vld [vmem:[%s125 + $0x8] sm:$0xf]
  %v2210 = vld [vmem:[%s125 + $0xc] sm:$0x3]
  %v2215 = vunpack.c.l.b16 %v2207
  %v2216 = vunpack.c.l.b16 %v2208
  %v2217 = vunpack.c.l.b16 %v2209
  %v2218 = vunpack.c.l.b16 %v2210
  %v2219 = vpack.c.b16 %v2216, %v2215
  %v2220 = vpack.c.b16 %v2218, %v2217
  %v2223 = vsel %vm72, %v2206, 0
  %v2226 = vsel %vm76, %v2220, 0
  %2228 = vmatpush.bf16.msra.mxu0 0
  %2229 = vmatpush.bf16.msra.mxu0 0
  %2230 = vmatpush.bf16.msra.mxu0 0
  %2231 = vmatpush.bf16.msra.mxu0 0
  %2232 = vmatpush.bf16.msra.mxu0 0
  %2233 = vmatpush.bf16.msra.mxu0 0
  %2234 = vmatpush.bf16.msra.mxu0 %v2226
  %2235 = vmatpush.bf16.msra.mxu0 %v2219
  %2236 = vmatmul.bf16.gmra.mxu0 %v2223
  %v2237 = vpop.f32.mrf.mxu0
  %v2238 = vadd.f32 0.0, %v2237
  %v2239 = vpop.f32.mrf.mxu0
  %2240 = vdwg.mxu0
  %v2241 = vadd.f32 %v2203, %v2238
  %s2242 = scalar_lea.vmem %s0, 100
  %v2243 = vld [vmem:[%s2242] sm:$0xf]
  %v2244 = vld [vmem:[%s163] sm:$0xf]
  %v2245 = vld [vmem:[%s163 + $0x4] sm:$0xf]
  %v2246 = vld [vmem:[%s163 + $0x8] sm:$0xf]
  %v2247 = vld [vmem:[%s163 + $0xc] sm:$0x3]
  %v2252 = vunpack.c.l.b16 %v2244
  %v2253 = vunpack.c.l.b16 %v2245
  %v2254 = vunpack.c.l.b16 %v2246
  %v2255 = vunpack.c.l.b16 %v2247
  %v2256 = vpack.c.b16 %v2253, %v2252
  %v2257 = vpack.c.b16 %v2255, %v2254
  %v2260 = vsel %vm72, %v2243, 0
  %v2263 = vsel %vm76, %v2257, 0
  %2265 = vmatpush.bf16.msra.mxu0 0
  %2266 = vmatpush.bf16.msra.mxu0 0
  %2267 = vmatpush.bf16.msra.mxu0 0
  %2268 = vmatpush.bf16.msra.mxu0 0
  %2269 = vmatpush.bf16.msra.mxu0 0
  %2270 = vmatpush.bf16.msra.mxu0 0
  %2271 = vmatpush.bf16.msra.mxu0 %v2263
  %2272 = vmatpush.bf16.msra.mxu0 %v2256
  %2273 = vmatmul.bf16.gmra.mxu0 %v2260
  %v2274 = vpop.f32.mrf.mxu0
  %v2275 = vadd.f32 0.0, %v2274
  %v2276 = vpop.f32.mrf.mxu0
  %2277 = vdwg.mxu0
  %v2278 = vadd.f32 %v2241, %v2275
  %s2279 = scalar_lea.vmem %s0, 104
  %v2280 = vld [vmem:[%s2279] sm:$0xf]
  %v2281 = vld [vmem:[%s201] sm:$0xf]
  %v2282 = vld [vmem:[%s201 + $0x4] sm:$0xf]
  %v2283 = vld [vmem:[%s201 + $0x8] sm:$0xf]
  %v2284 = vld [vmem:[%s201 + $0xc] sm:$0x3]
  %v2289 = vunpack.c.l.b16 %v2281
  %v2290 = vunpack.c.l.b16 %v2282
  %v2291 = vunpack.c.l.b16 %v2283
  %v2292 = vunpack.c.l.b16 %v2284
  %v2293 = vpack.c.b16 %v2290, %v2289
  %v2294 = vpack.c.b16 %v2292, %v2291
  %v2297 = vsel %vm72, %v2280, 0
  %v2300 = vsel %vm76, %v2294, 0
  %2302 = vmatpush.bf16.msra.mxu0 0
  %2303 = vmatpush.bf16.msra.mxu0 0
  %2304 = vmatpush.bf16.msra.mxu0 0
  %2305 = vmatpush.bf16.msra.mxu0 0
  %2306 = vmatpush.bf16.msra.mxu0 0
  %2307 = vmatpush.bf16.msra.mxu0 0
  %2308 = vmatpush.bf16.msra.mxu0 %v2300
  %2309 = vmatpush.bf16.msra.mxu0 %v2293
  %2310 = vmatmul.bf16.gmra.mxu0 %v2297
  %v2311 = vpop.f32.mrf.mxu0
  %v2312 = vadd.f32 0.0, %v2311
  %v2313 = vpop.f32.mrf.mxu0
  %2314 = vdwg.mxu0
  %v2315 = vadd.f32 %v2278, %v2312
  %v2316 = vld [vmem:[%s2] sm:$0x1]
  %v2318 = vperm.slane %v2316, 0
  %v2320 = vadd.f32 %v2315, %v2318
  %v2321 = vmax.f32 %v2320, 0.0
  %v2322 = vpack.c.bf16 %v2321, %v2321
  %s2323 = scalar_lea.vmem [#allocation2], 52
  %2324 = vst.msk [vmem:[%s2323] sm:$0xf] %vm34, %v2322
  %v2325 = vld [vmem:[%s2090] sm:$0xf]
  %v2326 = vld [vmem:[%s1] sm:$0xf]
  %v2327 = vld [vmem:[%s1 + $0x4] sm:$0xf]
  %v2328 = vld [vmem:[%s1 + $0x8] sm:$0xf]
  %v2329 = vld [vmem:[%s1 + $0xc] sm:$0x3]
  %v2330 = vld [vmem:[%s2242] sm:$0xf]
  %v2331 = vld [vmem:[%s56] sm:$0xf]
  %v2332 = vld [vmem:[%s56 + $0x4] sm:$0xf]
  %v2333 = vld [vmem:[%s56 + $0x8] sm:$0xf]
  %v2334 = vld [vmem:[%s56 + $0xc] sm:$0x3]
  %v2339 = vunpack.c.l.b16 %v2331
  %v2340 = vunpack.c.l.b16 %v2332
  %v2341 = vunpack.c.l.b16 %v2333
  %v2342 = vunpack.c.l.b16 %v2334
  %v2343 = vpack.c.b16 %v2340, %v2339
  %v2344 = vpack.c.b16 %v2342, %v2341
  %v2347 = vsel %vm72, %v2330, 0
  %v2350 = vsel %vm76, %v2344, 0
  %2352 = vmatpush.bf16.msra.mxu0 0
  %2353 = vmatpush.bf16.msra.mxu0 0
  %2354 = vmatpush.bf16.msra.mxu0 0
  %2355 = vmatpush.bf16.msra.mxu0 0
  %2356 = vmatpush.bf16.msra.mxu0 0
  %2357 = vmatpush.bf16.msra.mxu0 0
  %2358 = vmatpush.bf16.msra.mxu0 %v2350
  %2359 = vmatpush.bf16.msra.mxu0 %v2343
  %2360 = vmatmul.bf16.gmra.mxu0 %v2347
  %v2361 = vpop.f32.mrf.mxu0
  %v2362 = vadd.f32 0.0, %v2361
  %v2363 = vpop.f32.mrf.mxu0
  %2364 = vdwg.mxu0
  %v2369 = vunpack.c.l.b16 %v2326
  %v2370 = vunpack.c.l.b16 %v2327
  %v2371 = vunpack.c.l.b16 %v2328
  %v2372 = vunpack.c.l.b16 %v2329
  %v2373 = vpack.c.b16 %v2370, %v2369
  %v2374 = vpack.c.b16 %v2372, %v2371
  %v2377 = vsel %vm72, %v2325, 0
  %v2380 = vsel %vm76, %v2374, 0
  %2382 = vmatpush.bf16.msra.mxu0 0
  %2383 = vmatpush.bf16.msra.mxu0 0
  %2384 = vmatpush.bf16.msra.mxu0 0
  %2385 = vmatpush.bf16.msra.mxu0 0
  %2386 = vmatpush.bf16.msra.mxu0 0
  %2387 = vmatpush.bf16.msra.mxu0 0
  %2388 = vmatpush.bf16.msra.mxu0 %v2380
  %2389 = vmatpush.bf16.msra.mxu0 %v2373
  %2390 = vmatmul.bf16.gmra.mxu0 %v2377
  %v2391 = vpop.f32.mrf.mxu0
  %v2392 = vadd.f32 %v2362, %v2391
  %v2393 = vpop.f32.mrf.mxu0
  %2394 = vdwg.mxu0
  %v2395 = vld [vmem:[%s2279] sm:$0xf]
  %v2396 = vld [vmem:[%s125] sm:$0xf]
  %v2397 = vld [vmem:[%s125 + $0x4] sm:$0xf]
  %v2398 = vld [vmem:[%s125 + $0x8] sm:$0xf]
  %v2399 = vld [vmem:[%s125 + $0xc] sm:$0x3]
  %v2404 = vunpack.c.l.b16 %v2396
  %v2405 = vunpack.c.l.b16 %v2397
  %v2406 = vunpack.c.l.b16 %v2398
  %v2407 = vunpack.c.l.b16 %v2399
  %v2408 = vpack.c.b16 %v2405, %v2404
  %v2409 = vpack.c.b16 %v2407, %v2406
  %v2412 = vsel %vm72, %v2395, 0
  %v2415 = vsel %vm76, %v2409, 0
  %2417 = vmatpush.bf16.msra.mxu0 0
  %2418 = vmatpush.bf16.msra.mxu0 0
  %2419 = vmatpush.bf16.msra.mxu0 0
  %2420 = vmatpush.bf16.msra.mxu0 0
  %2421 = vmatpush.bf16.msra.mxu0 0
  %2422 = vmatpush.bf16.msra.mxu0 0
  %2423 = vmatpush.bf16.msra.mxu0 %v2415
  %2424 = vmatpush.bf16.msra.mxu0 %v2408
  %2425 = vmatmul.bf16.gmra.mxu0 %v2412
  %v2426 = vpop.f32.mrf.mxu0
  %v2427 = vadd.f32 0.0, %v2426
  %v2428 = vpop.f32.mrf.mxu0
  %2429 = vdwg.mxu0
  %v2430 = vadd.f32 %v2392, %v2427
  %s2431 = scalar_lea.vmem %s0, 108
  %v2432 = vld [vmem:[%s2431] sm:$0xf]
  %v2433 = vld [vmem:[%s163] sm:$0xf]
  %v2434 = vld [vmem:[%s163 + $0x4] sm:$0xf]
  %v2435 = vld [vmem:[%s163 + $0x8] sm:$0xf]
  %v2436 = vld [vmem:[%s163 + $0xc] sm:$0x3]
  %v2441 = vunpack.c.l.b16 %v2433
  %v2442 = vunpack.c.l.b16 %v2434
  %v2443 = vunpack.c.l.b16 %v2435
  %v2444 = vunpack.c.l.b16 %v2436
  %v2445 = vpack.c.b16 %v2442, %v2441
  %v2446 = vpack.c.b16 %v2444, %v2443
  %v2449 = vsel %vm72, %v2432, 0
  %v2452 = vsel %vm76, %v2446, 0
  %2454 = vmatpush.bf16.msra.mxu0 0
  %2455 = vmatpush.bf16.msra.mxu0 0
  %2456 = vmatpush.bf16.msra.mxu0 0
  %2457 = vmatpush.bf16.msra.mxu0 0
  %2458 = vmatpush.bf16.msra.mxu0 0
  %2459 = vmatpush.bf16.msra.mxu0 0
  %2460 = vmatpush.bf16.msra.mxu0 %v2452
  %2461 = vmatpush.bf16.msra.mxu0 %v2445
  %2462 = vmatmul.bf16.gmra.mxu0 %v2449
  %v2463 = vpop.f32.mrf.mxu0
  %v2464 = vadd.f32 0.0, %v2463
  %v2465 = vpop.f32.mrf.mxu0
  %2466 = vdwg.mxu0
  %v2467 = vadd.f32 %v2430, %v2464
  %s2468 = scalar_lea.vmem %s0, 112
  %v2469 = vld [vmem:[%s2468] sm:$0xf]
  %v2470 = vld [vmem:[%s201] sm:$0xf]
  %v2471 = vld [vmem:[%s201 + $0x4] sm:$0xf]
  %v2472 = vld [vmem:[%s201 + $0x8] sm:$0xf]
  %v2473 = vld [vmem:[%s201 + $0xc] sm:$0x3]
  %v2478 = vunpack.c.l.b16 %v2470
  %v2479 = vunpack.c.l.b16 %v2471
  %v2480 = vunpack.c.l.b16 %v2472
  %v2481 = vunpack.c.l.b16 %v2473
  %v2482 = vpack.c.b16 %v2479, %v2478
  %v2483 = vpack.c.b16 %v2481, %v2480
  %v2486 = vsel %vm72, %v2469, 0
  %v2489 = vsel %vm76, %v2483, 0
  %2491 = vmatpush.bf16.msra.mxu0 0
  %2492 = vmatpush.bf16.msra.mxu0 0
  %2493 = vmatpush.bf16.msra.mxu0 0
  %2494 = vmatpush.bf16.msra.mxu0 0
  %2495 = vmatpush.bf16.msra.mxu0 0
  %2496 = vmatpush.bf16.msra.mxu0 0
  %2497 = vmatpush.bf16.msra.mxu0 %v2489
  %2498 = vmatpush.bf16.msra.mxu0 %v2482
  %2499 = vmatmul.bf16.gmra.mxu0 %v2486
  %v2500 = vpop.f32.mrf.mxu0
  %v2501 = vadd.f32 0.0, %v2500
  %v2502 = vpop.f32.mrf.mxu0
  %2503 = vdwg.mxu0
  %v2504 = vadd.f32 %v2467, %v2501
  %v2505 = vld [vmem:[%s2] sm:$0x1]
  %v2507 = vperm.slane %v2505, 0
  %v2509 = vadd.f32 %v2504, %v2507
  %v2510 = vmax.f32 %v2509, 0.0
  %v2511 = vpack.c.bf16 %v2510, %v2510
  %s2512 = scalar_lea.vmem [#allocation2], 56
  %2513 = vst.msk [vmem:[%s2512] sm:$0xf] %vm34, %v2511
  %v2514 = vld [vmem:[%s2279] sm:$0xf]
  %v2515 = vld [vmem:[%s1] sm:$0xf]
  %v2516 = vld [vmem:[%s1 + $0x4] sm:$0xf]
  %v2517 = vld [vmem:[%s1 + $0x8] sm:$0xf]
  %v2518 = vld [vmem:[%s1 + $0xc] sm:$0x3]
  %v2519 = vld [vmem:[%s2431] sm:$0xf]
  %v2520 = vld [vmem:[%s56] sm:$0xf]
  %v2521 = vld [vmem:[%s56 + $0x4] sm:$0xf]
  %v2522 = vld [vmem:[%s56 + $0x8] sm:$0xf]
  %v2523 = vld [vmem:[%s56 + $0xc] sm:$0x3]
  %v2528 = vunpack.c.l.b16 %v2520
  %v2529 = vunpack.c.l.b16 %v2521
  %v2530 = vunpack.c.l.b16 %v2522
  %v2531 = vunpack.c.l.b16 %v2523
  %v2532 = vpack.c.b16 %v2529, %v2528
  %v2533 = vpack.c.b16 %v2531, %v2530
  %v2536 = vsel %vm72, %v2519, 0
  %v2539 = vsel %vm76, %v2533, 0
  %2541 = vmatpush.bf16.msra.mxu0 0
  %2542 = vmatpush.bf16.msra.mxu0 0
  %2543 = vmatpush.bf16.msra.mxu0 0
  %2544 = vmatpush.bf16.msra.mxu0 0
  %2545 = vmatpush.bf16.msra.mxu0 0
  %2546 = vmatpush.bf16.msra.mxu0 0
  %2547 = vmatpush.bf16.msra.mxu0 %v2539
  %2548 = vmatpush.bf16.msra.mxu0 %v2532
  %2549 = vmatmul.bf16.gmra.mxu0 %v2536
  %v2550 = vpop.f32.mrf.mxu0
  %v2551 = vadd.f32 0.0, %v2550
  %v2552 = vpop.f32.mrf.mxu0
  %2553 = vdwg.mxu0
  %v2558 = vunpack.c.l.b16 %v2515
  %v2559 = vunpack.c.l.b16 %v2516
  %v2560 = vunpack.c.l.b16 %v2517
  %v2561 = vunpack.c.l.b16 %v2518
  %v2562 = vpack.c.b16 %v2559, %v2558
  %v2563 = vpack.c.b16 %v2561, %v2560
  %v2566 = vsel %vm72, %v2514, 0
  %v2569 = vsel %vm76, %v2563, 0
  %2571 = vmatpush.bf16.msra.mxu0 0
  %2572 = vmatpush.bf16.msra.mxu0 0
  %2573 = vmatpush.bf16.msra.mxu0 0
  %2574 = vmatpush.bf16.msra.mxu0 0
  %2575 = vmatpush.bf16.msra.mxu0 0
  %2576 = vmatpush.bf16.msra.mxu0 0
  %2577 = vmatpush.bf16.msra.mxu0 %v2569
  %2578 = vmatpush.bf16.msra.mxu0 %v2562
  %2579 = vmatmul.bf16.gmra.mxu0 %v2566
  %v2580 = vpop.f32.mrf.mxu0
  %v2581 = vadd.f32 %v2551, %v2580
  %v2582 = vpop.f32.mrf.mxu0
  %2583 = vdwg.mxu0
  %v2584 = vld [vmem:[%s2468] sm:$0xf]
  %v2585 = vld [vmem:[%s125] sm:$0xf]
  %v2586 = vld [vmem:[%s125 + $0x4] sm:$0xf]
  %v2587 = vld [vmem:[%s125 + $0x8] sm:$0xf]
  %v2588 = vld [vmem:[%s125 + $0xc] sm:$0x3]
  %v2593 = vunpack.c.l.b16 %v2585
  %v2594 = vunpack.c.l.b16 %v2586
  %v2595 = vunpack.c.l.b16 %v2587
  %v2596 = vunpack.c.l.b16 %v2588
  %v2597 = vpack.c.b16 %v2594, %v2593
  %v2598 = vpack.c.b16 %v2596, %v2595
  %v2601 = vsel %vm72, %v2584, 0
  %v2604 = vsel %vm76, %v2598, 0
  %2606 = vmatpush.bf16.msra.mxu0 0
  %2607 = vmatpush.bf16.msra.mxu0 0
  %2608 = vmatpush.bf16.msra.mxu0 0
  %2609 = vmatpush.bf16.msra.mxu0 0
  %2610 = vmatpush.bf16.msra.mxu0 0
  %2611 = vmatpush.bf16.msra.mxu0 0
  %2612 = vmatpush.bf16.msra.mxu0 %v2604
  %2613 = vmatpush.bf16.msra.mxu0 %v2597
  %2614 = vmatmul.bf16.gmra.mxu0 %v2601
  %v2615 = vpop.f32.mrf.mxu0
  %v2616 = vadd.f32 0.0, %v2615
  %v2617 = vpop.f32.mrf.mxu0
  %2618 = vdwg.mxu0
  %v2619 = vadd.f32 %v2581, %v2616
  %s2620 = scalar_lea.vmem %s0, 116
  %v2621 = vld [vmem:[%s2620] sm:$0xf]
  %v2622 = vld [vmem:[%s163] sm:$0xf]
  %v2623 = vld [vmem:[%s163 + $0x4] sm:$0xf]
  %v2624 = vld [vmem:[%s163 + $0x8] sm:$0xf]
  %v2625 = vld [vmem:[%s163 + $0xc] sm:$0x3]
  %v2630 = vunpack.c.l.b16 %v2622
  %v2631 = vunpack.c.l.b16 %v2623
  %v2632 = vunpack.c.l.b16 %v2624
  %v2633 = vunpack.c.l.b16 %v2625
  %v2634 = vpack.c.b16 %v2631, %v2630
  %v2635 = vpack.c.b16 %v2633, %v2632
  %v2638 = vsel %vm72, %v2621, 0
  %v2641 = vsel %vm76, %v2635, 0
  %2643 = vmatpush.bf16.msra.mxu0 0
  %2644 = vmatpush.bf16.msra.mxu0 0
  %2645 = vmatpush.bf16.msra.mxu0 0
  %2646 = vmatpush.bf16.msra.mxu0 0
  %2647 = vmatpush.bf16.msra.mxu0 0
  %2648 = vmatpush.bf16.msra.mxu0 0
  %2649 = vmatpush.bf16.msra.mxu0 %v2641
  %2650 = vmatpush.bf16.msra.mxu0 %v2634
  %2651 = vmatmul.bf16.gmra.mxu0 %v2638
  %v2652 = vpop.f32.mrf.mxu0
  %v2653 = vadd.f32 0.0, %v2652
  %v2654 = vpop.f32.mrf.mxu0
  %2655 = vdwg.mxu0
  %v2656 = vadd.f32 %v2619, %v2653
  %s2657 = scalar_lea.vmem %s0, 120
  %v2658 = vld [vmem:[%s2657] sm:$0xf]
  %v2659 = vld [vmem:[%s201] sm:$0xf]
  %v2660 = vld [vmem:[%s201 + $0x4] sm:$0xf]
  %v2661 = vld [vmem:[%s201 + $0x8] sm:$0xf]
  %v2662 = vld [vmem:[%s201 + $0xc] sm:$0x3]
  %v2667 = vunpack.c.l.b16 %v2659
  %v2668 = vunpack.c.l.b16 %v2660
  %v2669 = vunpack.c.l.b16 %v2661
  %v2670 = vunpack.c.l.b16 %v2662
  %v2671 = vpack.c.b16 %v2668, %v2667
  %v2672 = vpack.c.b16 %v2670, %v2669
  %v2675 = vsel %vm72, %v2658, 0
  %v2678 = vsel %vm76, %v2672, 0
  %2680 = vmatpush.bf16.msra.mxu0 0
  %2681 = vmatpush.bf16.msra.mxu0 0
  %2682 = vmatpush.bf16.msra.mxu0 0
  %2683 = vmatpush.bf16.msra.mxu0 0
  %2684 = vmatpush.bf16.msra.mxu0 0
  %2685 = vmatpush.bf16.msra.mxu0 0
  %2686 = vmatpush.bf16.msra.mxu0 %v2678
  %2687 = vmatpush.bf16.msra.mxu0 %v2671
  %2688 = vmatmul.bf16.gmra.mxu0 %v2675
  %v2689 = vpop.f32.mrf.mxu0
  %v2690 = vadd.f32 0.0, %v2689
  %v2691 = vpop.f32.mrf.mxu0
  %2692 = vdwg.mxu0
  %v2693 = vadd.f32 %v2656, %v2690
  %v2694 = vld [vmem:[%s2] sm:$0x1]
  %v2696 = vperm.slane %v2694, 0
  %v2698 = vadd.f32 %v2693, %v2696
  %v2699 = vmax.f32 %v2698, 0.0
  %v2700 = vpack.c.bf16 %v2699, %v2699
  %s2701 = scalar_lea.vmem [#allocation2], 60
  %2702 = vst.msk [vmem:[%s2701] sm:$0xf] %vm34, %v2700
  %v2703 = vld [vmem:[#allocation2] sm:$0xf]
  %v2704 = vld [vmem:[%s3] sm:$0xf]
  %v2705 = vld [vmem:[%s3 + $0x4] sm:$0xf]
  %v2706 = vld [vmem:[%s3 + $0x8] sm:$0xf]
  %v2707 = vld [vmem:[%s3 + $0xc] sm:$0xf]
  %v2708 = vld [vmem:[%s3 + $0x10] sm:$0xf]
  %v2709 = vld [vmem:[%s3 + $0x14] sm:$0xf]
  %v2710 = vld [vmem:[%s3 + $0x18] sm:$0xf]
  %v2711 = vld [vmem:[%s3 + $0x1c] sm:$0xf]
  %v2712 = vld [vmem:[%s3 + $0x20] sm:$0xf]
  %v2713 = vld [vmem:[%s3 + $0x24] sm:$0xf]
  %v2714 = vld [vmem:[%s3 + $0x28] sm:$0xf]
  %v2715 = vld [vmem:[%s3 + $0x2c] sm:$0xf]
  %v2716 = vld [vmem:[%s3 + $0x30] sm:$0xf]
  %v2717 = vld [vmem:[%s3 + $0x34] sm:$0xf]
  %v2718 = vld [vmem:[%s36] sm:$0xf]
  %s2719 = scalar_lea.vmem %s3, 56
  %v2720 = vld [vmem:[%s2719] sm:$0xf]
  %v2721 = vld [vmem:[%s2719 + $0x4] sm:$0xf]
  %v2722 = vld [vmem:[%s2719 + $0x8] sm:$0xf]
  %v2723 = vld [vmem:[%s2719 + $0xc] sm:$0xf]
  %v2724 = vld [vmem:[%s2719 + $0x10] sm:$0xf]
  %v2725 = vld [vmem:[%s2719 + $0x14] sm:$0xf]
  %v2726 = vld [vmem:[%s2719 + $0x18] sm:$0xf]
  %v2727 = vld [vmem:[%s2719 + $0x1c] sm:$0xf]
  %v2728 = vld [vmem:[%s2719 + $0x20] sm:$0xf]
  %v2729 = vld [vmem:[%s2719 + $0x24] sm:$0xf]
  %v2730 = vld [vmem:[%s2719 + $0x28] sm:$0xf]
  %v2731 = vld [vmem:[%s2719 + $0x2c] sm:$0xf]
  %v2732 = vld [vmem:[%s2719 + $0x30] sm:$0xf]
  %v2733 = vld [vmem:[%s2719 + $0x34] sm:$0xf]
  %v2748 = vunpack.c.l.b16 %v2720
  %v2749 = vunpack.c.l.b16 %v2721
  %v2750 = vunpack.c.l.b16 %v2722
  %v2751 = vunpack.c.l.b16 %v2723
  %v2752 = vunpack.c.l.b16 %v2724
  %v2753 = vunpack.c.l.b16 %v2725
  %v2754 = vunpack.c.l.b16 %v2726
  %v2755 = vunpack.c.l.b16 %v2727
  %v2756 = vunpack.c.l.b16 %v2728
  %v2757 = vunpack.c.l.b16 %v2729
  %v2758 = vunpack.c.l.b16 %v2730
  %v2759 = vunpack.c.l.b16 %v2731
  %v2760 = vunpack.c.l.b16 %v2732
  %v2761 = vunpack.c.l.b16 %v2733
  %v2762 = vpack.c.b16 %v2749, %v2748
  %v2763 = vpack.c.b16 %v2751, %v2750
  %v2764 = vpack.c.b16 %v2753, %v2752
  %v2765 = vpack.c.b16 %v2755, %v2754
  %v2766 = vpack.c.b16 %v2757, %v2756
  %v2767 = vpack.c.b16 %v2759, %v2758
  %v2768 = vpack.c.b16 %v2761, %v2760
  %vm2776 = vcmask 916480
  %v2778 = vsel %vm2776, %v2718, 0
  %2780 = vmatpush.bf16.msra.mxu0 0
  %2781 = vmatpush.bf16.msra.mxu0 %v2768
  %2782 = vmatpush.bf16.msra.mxu0 %v2767
  %2783 = vmatpush.bf16.msra.mxu0 %v2766
  %2784 = vmatpush.bf16.msra.mxu0 %v2765
  %2785 = vmatpush.bf16.msra.mxu0 %v2764
  %2786 = vmatpush.bf16.msra.mxu0 %v2763
  %2787 = vmatpush.bf16.msra.mxu0 %v2762
  %2788 = vmatmul.bf16.gmra.mxu0 %v2778
  %v2789 = vpop.f32.mrf.mxu0
  %v2790 = vadd.f32 0.0, %v2789
  %v2791 = vpop.f32.mrf.mxu0
  %2792 = vdwg.mxu0
  %v2807 = vunpack.c.l.b16 %v2704
  %v2808 = vunpack.c.l.b16 %v2705
  %v2809 = vunpack.c.l.b16 %v2706
  %v2810 = vunpack.c.l.b16 %v2707
  %v2811 = vunpack.c.l.b16 %v2708
  %v2812 = vunpack.c.l.b16 %v2709
  %v2813 = vunpack.c.l.b16 %v2710
  %v2814 = vunpack.c.l.b16 %v2711
  %v2815 = vunpack.c.l.b16 %v2712
  %v2816 = vunpack.c.l.b16 %v2713
  %v2817 = vunpack.c.l.b16 %v2714
  %v2818 = vunpack.c.l.b16 %v2715
  %v2819 = vunpack.c.l.b16 %v2716
  %v2820 = vunpack.c.l.b16 %v2717
  %v2821 = vpack.c.b16 %v2808, %v2807
  %v2822 = vpack.c.b16 %v2810, %v2809
  %v2823 = vpack.c.b16 %v2812, %v2811
  %v2824 = vpack.c.b16 %v2814, %v2813
  %v2825 = vpack.c.b16 %v2816, %v2815
  %v2826 = vpack.c.b16 %v2818, %v2817
  %v2827 = vpack.c.b16 %v2820, %v2819
  %v2836 = vsel %vm2776, %v2703, 0
  %2838 = vmatpush.bf16.msra.mxu0 0
  %2839 = vmatpush.bf16.msra.mxu0 %v2827
  %2840 = vmatpush.bf16.msra.mxu0 %v2826
  %2841 = vmatpush.bf16.msra.mxu0 %v2825
  %2842 = vmatpush.bf16.msra.mxu0 %v2824
  %2843 = vmatpush.bf16.msra.mxu0 %v2823
  %2844 = vmatpush.bf16.msra.mxu0 %v2822
  %2845 = vmatpush.bf16.msra.mxu0 %v2821
  %2846 = vmatmul.bf16.gmra.mxu0 %v2836
  %v2847 = vpop.f32.mrf.mxu0
  %v2848 = vadd.f32 %v2790, %v2847
  %v2849 = vpop.f32.mrf.mxu0
  %2850 = vdwg.mxu0
  %v2851 = vld [vmem:[%s244] sm:$0xf]
  %s2852 = scalar_lea.vmem %s3, 112
  %v2853 = vld [vmem:[%s2852] sm:$0xf]
  %v2854 = vld [vmem:[%s2852 + $0x4] sm:$0xf]
  %v2855 = vld [vmem:[%s2852 + $0x8] sm:$0xf]
  %v2856 = vld [vmem:[%s2852 + $0xc] sm:$0xf]
  %v2857 = vld [vmem:[%s2852 + $0x10] sm:$0xf]
  %v2858 = vld [vmem:[%s2852 + $0x14] sm:$0xf]
  %v2859 = vld [vmem:[%s2852 + $0x18] sm:$0xf]
  %v2860 = vld [vmem:[%s2852 + $0x1c] sm:$0xf]
  %v2861 = vld [vmem:[%s2852 + $0x20] sm:$0xf]
  %v2862 = vld [vmem:[%s2852 + $0x24] sm:$0xf]
  %v2863 = vld [vmem:[%s2852 + $0x28] sm:$0xf]
  %v2864 = vld [vmem:[%s2852 + $0x2c] sm:$0xf]
  %v2865 = vld [vmem:[%s2852 + $0x30] sm:$0xf]
  %v2866 = vld [vmem:[%s2852 + $0x34] sm:$0xf]
  %v2881 = vunpack.c.l.b16 %v2853
  %v2882 = vunpack.c.l.b16 %v2854
  %v2883 = vunpack.c.l.b16 %v2855
  %v2884 = vunpack.c.l.b16 %v2856
  %v2885 = vunpack.c.l.b16 %v2857
  %v2886 = vunpack.c.l.b16 %v2858
  %v2887 = vunpack.c.l.b16 %v2859
  %v2888 = vunpack.c.l.b16 %v2860
  %v2889 = vunpack.c.l.b16 %v2861
  %v2890 = vunpack.c.l.b16 %v2862
  %v2891 = vunpack.c.l.b16 %v2863
  %v2892 = vunpack.c.l.b16 %v2864
  %v2893 = vunpack.c.l.b16 %v2865
  %v2894 = vunpack.c.l.b16 %v2866
  %v2895 = vpack.c.b16 %v2882, %v2881
  %v2896 = vpack.c.b16 %v2884, %v2883
  %v2897 = vpack.c.b16 %v2886, %v2885
  %v2898 = vpack.c.b16 %v2888, %v2887
  %v2899 = vpack.c.b16 %v2890, %v2889
  %v2900 = vpack.c.b16 %v2892, %v2891
  %v2901 = vpack.c.b16 %v2894, %v2893
  %v2910 = vsel %vm2776, %v2851, 0
  %2912 = vmatpush.bf16.msra.mxu0 0
  %2913 = vmatpush.bf16.msra.mxu0 %v2901
  %2914 = vmatpush.bf16.msra.mxu0 %v2900
  %2915 = vmatpush.bf16.msra.mxu0 %v2899
  %2916 = vmatpush.bf16.msra.mxu0 %v2898
  %2917 = vmatpush.bf16.msra.mxu0 %v2897
  %2918 = vmatpush.bf16.msra.mxu0 %v2896
  %2919 = vmatpush.bf16.msra.mxu0 %v2895
  %2920 = vmatmul.bf16.gmra.mxu0 %v2910
  %v2921 = vpop.f32.mrf.mxu0
  %v2922 = vadd.f32 0.0, %v2921
  %v2923 = vpop.f32.mrf.mxu0
  %2924 = vdwg.mxu0
  %v2925 = vadd.f32 %v2848, %v2922
  %v2926 = vld [vmem:[%s433] sm:$0xf]
  %s2927 = scalar_lea.vmem %s3, 168
  %v2928 = vld [vmem:[%s2927] sm:$0xf]
  %v2929 = vld [vmem:[%s2927 + $0x4] sm:$0xf]
  %v2930 = vld [vmem:[%s2927 + $0x8] sm:$0xf]
  %v2931 = vld [vmem:[%s2927 + $0xc] sm:$0xf]
  %v2932 = vld [vmem:[%s2927 + $0x10] sm:$0xf]
  %v2933 = vld [vmem:[%s2927 + $0x14] sm:$0xf]
  %v2934 = vld [vmem:[%s2927 + $0x18] sm:$0xf]
  %v2935 = vld [vmem:[%s2927 + $0x1c] sm:$0xf]
  %v2936 = vld [vmem:[%s2927 + $0x20] sm:$0xf]
  %v2937 = vld [vmem:[%s2927 + $0x24] sm:$0xf]
  %v2938 = vld [vmem:[%s2927 + $0x28] sm:$0xf]
  %v2939 = vld [vmem:[%s2927 + $0x2c] sm:$0xf]
  %v2940 = vld [vmem:[%s2927 + $0x30] sm:$0xf]
  %v2941 = vld [vmem:[%s2927 + $0x34] sm:$0xf]
  %v2956 = vunpack.c.l.b16 %v2928
  %v2957 = vunpack.c.l.b16 %v2929
  %v2958 = vunpack.c.l.b16 %v2930
  %v2959 = vunpack.c.l.b16 %v2931
  %v2960 = vunpack.c.l.b16 %v2932
  %v2961 = vunpack.c.l.b16 %v2933
  %v2962 = vunpack.c.l.b16 %v2934
  %v2963 = vunpack.c.l.b16 %v2935
  %v2964 = vunpack.c.l.b16 %v2936
  %v2965 = vunpack.c.l.b16 %v2937
  %v2966 = vunpack.c.l.b16 %v2938
  %v2967 = vunpack.c.l.b16 %v2939
  %v2968 = vunpack.c.l.b16 %v2940
  %v2969 = vunpack.c.l.b16 %v2941
  %v2970 = vpack.c.b16 %v2957, %v2956
  %v2971 = vpack.c.b16 %v2959, %v2958
  %v2972 = vpack.c.b16 %v2961, %v2960
  %v2973 = vpack.c.b16 %v2963, %v2962
  %v2974 = vpack.c.b16 %v2965, %v2964
  %v2975 = vpack.c.b16 %v2967, %v2966
  %v2976 = vpack.c.b16 %v2969, %v2968
  %v2985 = vsel %vm2776, %v2926, 0
  %2987 = vmatpush.bf16.msra.mxu0 0
  %2988 = vmatpush.bf16.msra.mxu0 %v2976
  %2989 = vmatpush.bf16.msra.mxu0 %v2975
  %2990 = vmatpush.bf16.msra.mxu0 %v2974
  %2991 = vmatpush.bf16.msra.mxu0 %v2973
  %2992 = vmatpush.bf16.msra.mxu0 %v2972
  %2993 = vmatpush.bf16.msra.mxu0 %v2971
  %2994 = vmatpush.bf16.msra.mxu0 %v2970
  %2995 = vmatmul.bf16.gmra.mxu0 %v2985
  %v2996 = vpop.f32.mrf.mxu0
  %v2997 = vadd.f32 0.0, %v2996
  %v2998 = vpop.f32.mrf.mxu0
  %2999 = vdwg.mxu0
  %v3000 = vadd.f32 %v2925, %v2997
  %v3001 = vld [vmem:[%s622] sm:$0xf]
  %s3002 = scalar_lea.vmem %s3, 224
  %v3003 = vld [vmem:[%s3002] sm:$0xf]
  %v3004 = vld [vmem:[%s3002 + $0x4] sm:$0xf]
  %v3005 = vld [vmem:[%s3002 + $0x8] sm:$0xf]
  %v3006 = vld [vmem:[%s3002 + $0xc] sm:$0xf]
  %v3007 = vld [vmem:[%s3002 + $0x10] sm:$0xf]
  %v3008 = vld [vmem:[%s3002 + $0x14] sm:$0xf]
  %v3009 = vld [vmem:[%s3002 + $0x18] sm:$0xf]
  %v3010 = vld [vmem:[%s3002 + $0x1c] sm:$0xf]
  %v3011 = vld [vmem:[%s3002 + $0x20] sm:$0xf]
  %v3012 = vld [vmem:[%s3002 + $0x24] sm:$0xf]
  %v3013 = vld [vmem:[%s3002 + $0x28] sm:$0xf]
  %v3014 = vld [vmem:[%s3002 + $0x2c] sm:$0xf]
  %v3015 = vld [vmem:[%s3002 + $0x30] sm:$0xf]
  %v3016 = vld [vmem:[%s3002 + $0x34] sm:$0xf]
  %v3031 = vunpack.c.l.b16 %v3003
  %v3032 = vunpack.c.l.b16 %v3004
  %v3033 = vunpack.c.l.b16 %v3005
  %v3034 = vunpack.c.l.b16 %v3006
  %v3035 = vunpack.c.l.b16 %v3007
  %v3036 = vunpack.c.l.b16 %v3008
  %v3037 = vunpack.c.l.b16 %v3009
  %v3038 = vunpack.c.l.b16 %v3010
  %v3039 = vunpack.c.l.b16 %v3011
  %v3040 = vunpack.c.l.b16 %v3012
  %v3041 = vunpack.c.l.b16 %v3013
  %v3042 = vunpack.c.l.b16 %v3014
  %v3043 = vunpack.c.l.b16 %v3015
  %v3044 = vunpack.c.l.b16 %v3016
  %v3045 = vpack.c.b16 %v3032, %v3031
  %v3046 = vpack.c.b16 %v3034, %v3033
  %v3047 = vpack.c.b16 %v3036, %v3035
  %v3048 = vpack.c.b16 %v3038, %v3037
  %v3049 = vpack.c.b16 %v3040, %v3039
  %v3050 = vpack.c.b16 %v3042, %v3041
  %v3051 = vpack.c.b16 %v3044, %v3043
  %v3060 = vsel %vm2776, %v3001, 0
  %3062 = vmatpush.bf16.msra.mxu0 0
  %3063 = vmatpush.bf16.msra.mxu0 %v3051
  %3064 = vmatpush.bf16.msra.mxu0 %v3050
  %3065 = vmatpush.bf16.msra.mxu0 %v3049
  %3066 = vmatpush.bf16.msra.mxu0 %v3048
  %3067 = vmatpush.bf16.msra.mxu0 %v3047
  %3068 = vmatpush.bf16.msra.mxu0 %v3046
  %3069 = vmatpush.bf16.msra.mxu0 %v3045
  %3070 = vmatmul.bf16.gmra.mxu0 %v3060
  %v3071 = vpop.f32.mrf.mxu0
  %v3072 = vadd.f32 0.0, %v3071
  %v3073 = vpop.f32.mrf.mxu0
  %3074 = vdwg.mxu0
  %v3075 = vadd.f32 %v3000, %v3072
  %v3076 = vld [vmem:[%s4] sm:$0x1]
  %v3078 = vperm.slane %v3076, 0
  %v3080 = vadd.f32 %v3075, %v3078
  %v3081 = vmax.f32 %v3080, 0.0
  %v3082 = vpack.c.bf16 %v3081, %v3081
  %s3083 = scalar_lea.vmem [#allocation3], 8
  %3084 = vst.msk [vmem:[%s3083] sm:$0xf] %vm34, %v3082
  %v3085 = vld [vmem:[%s244] sm:$0xf]
  %v3086 = vld [vmem:[%s3] sm:$0xf]
  %v3087 = vld [vmem:[%s3 + $0x4] sm:$0xf]
  %v3088 = vld [vmem:[%s3 + $0x8] sm:$0xf]
  %v3089 = vld [vmem:[%s3 + $0xc] sm:$0xf]
  %v3090 = vld [vmem:[%s3 + $0x10] sm:$0xf]
  %v3091 = vld [vmem:[%s3 + $0x14] sm:$0xf]
  %v3092 = vld [vmem:[%s3 + $0x18] sm:$0xf]
  %v3093 = vld [vmem:[%s3 + $0x1c] sm:$0xf]
  %v3094 = vld [vmem:[%s3 + $0x20] sm:$0xf]
  %v3095 = vld [vmem:[%s3 + $0x24] sm:$0xf]
  %v3096 = vld [vmem:[%s3 + $0x28] sm:$0xf]
  %v3097 = vld [vmem:[%s3 + $0x2c] sm:$0xf]
  %v3098 = vld [vmem:[%s3 + $0x30] sm:$0xf]
  %v3099 = vld [vmem:[%s3 + $0x34] sm:$0xf]
  %v3100 = vld [vmem:[%s433] sm:$0xf]
  %v3101 = vld [vmem:[%s2719] sm:$0xf]
  %v3102 = vld [vmem:[%s2719 + $0x4] sm:$0xf]
  %v3103 = vld [vmem:[%s2719 + $0x8] sm:$0xf]
  %v3104 = vld [vmem:[%s2719 + $0xc] sm:$0xf]
  %v3105 = vld [vmem:[%s2719 + $0x10] sm:$0xf]
  %v3106 = vld [vmem:[%s2719 + $0x14] sm:$0xf]
  %v3107 = vld [vmem:[%s2719 + $0x18] sm:$0xf]
  %v3108 = vld [vmem:[%s2719 + $0x1c] sm:$0xf]
  %v3109 = vld [vmem:[%s2719 + $0x20] sm:$0xf]
  %v3110 = vld [vmem:[%s2719 + $0x24] sm:$0xf]
  %v3111 = vld [vmem:[%s2719 + $0x28] sm:$0xf]
  %v3112 = vld [vmem:[%s2719 + $0x2c] sm:$0xf]
  %v3113 = vld [vmem:[%s2719 + $0x30] sm:$0xf]
  %v3114 = vld [vmem:[%s2719 + $0x34] sm:$0xf]
  %v3129 = vunpack.c.l.b16 %v3101
  %v3130 = vunpack.c.l.b16 %v3102
  %v3131 = vunpack.c.l.b16 %v3103
  %v3132 = vunpack.c.l.b16 %v3104
  %v3133 = vunpack.c.l.b16 %v3105
  %v3134 = vunpack.c.l.b16 %v3106
  %v3135 = vunpack.c.l.b16 %v3107
  %v3136 = vunpack.c.l.b16 %v3108
  %v3137 = vunpack.c.l.b16 %v3109
  %v3138 = vunpack.c.l.b16 %v3110
  %v3139 = vunpack.c.l.b16 %v3111
  %v3140 = vunpack.c.l.b16 %v3112
  %v3141 = vunpack.c.l.b16 %v3113
  %v3142 = vunpack.c.l.b16 %v3114
  %v3143 = vpack.c.b16 %v3130, %v3129
  %v3144 = vpack.c.b16 %v3132, %v3131
  %v3145 = vpack.c.b16 %v3134, %v3133
  %v3146 = vpack.c.b16 %v3136, %v3135
  %v3147 = vpack.c.b16 %v3138, %v3137
  %v3148 = vpack.c.b16 %v3140, %v3139
  %v3149 = vpack.c.b16 %v3142, %v3141
  %v3158 = vsel %vm2776, %v3100, 0
  %3160 = vmatpush.bf16.msra.mxu0 0
  %3161 = vmatpush.bf16.msra.mxu0 %v3149
  %3162 = vmatpush.bf16.msra.mxu0 %v3148
  %3163 = vmatpush.bf16.msra.mxu0 %v3147
  %3164 = vmatpush.bf16.msra.mxu0 %v3146
  %3165 = vmatpush.bf16.msra.mxu0 %v3145
  %3166 = vmatpush.bf16.msra.mxu0 %v3144
  %3167 = vmatpush.bf16.msra.mxu0 %v3143
  %3168 = vmatmul.bf16.gmra.mxu0 %v3158
  %v3169 = vpop.f32.mrf.mxu0
  %v3170 = vadd.f32 0.0, %v3169
  %v3171 = vpop.f32.mrf.mxu0
  %3172 = vdwg.mxu0
  %v3187 = vunpack.c.l.b16 %v3086
  %v3188 = vunpack.c.l.b16 %v3087
  %v3189 = vunpack.c.l.b16 %v3088
  %v3190 = vunpack.c.l.b16 %v3089
  %v3191 = vunpack.c.l.b16 %v3090
  %v3192 = vunpack.c.l.b16 %v3091
  %v3193 = vunpack.c.l.b16 %v3092
  %v3194 = vunpack.c.l.b16 %v3093
  %v3195 = vunpack.c.l.b16 %v3094
  %v3196 = vunpack.c.l.b16 %v3095
  %v3197 = vunpack.c.l.b16 %v3096
  %v3198 = vunpack.c.l.b16 %v3097
  %v3199 = vunpack.c.l.b16 %v3098
  %v3200 = vunpack.c.l.b16 %v3099
  %v3201 = vpack.c.b16 %v3188, %v3187
  %v3202 = vpack.c.b16 %v3190, %v3189
  %v3203 = vpack.c.b16 %v3192, %v3191
  %v3204 = vpack.c.b16 %v3194, %v3193
  %v3205 = vpack.c.b16 %v3196, %v3195
  %v3206 = vpack.c.b16 %v3198, %v3197
  %v3207 = vpack.c.b16 %v3200, %v3199
  %v3216 = vsel %vm2776, %v3085, 0
  %3218 = vmatpush.bf16.msra.mxu0 0
  %3219 = vmatpush.bf16.msra.mxu0 %v3207
  %3220 = vmatpush.bf16.msra.mxu0 %v3206
  %3221 = vmatpush.bf16.msra.mxu0 %v3205
  %3222 = vmatpush.bf16.msra.mxu0 %v3204
  %3223 = vmatpush.bf16.msra.mxu0 %v3203
  %3224 = vmatpush.bf16.msra.mxu0 %v3202
  %3225 = vmatpush.bf16.msra.mxu0 %v3201
  %3226 = vmatmul.bf16.gmra.mxu0 %v3216
  %v3227 = vpop.f32.mrf.mxu0
  %v3228 = vadd.f32 %v3170, %v3227
  %v3229 = vpop.f32.mrf.mxu0
  %3230 = vdwg.mxu0
  %v3231 = vld [vmem:[%s622] sm:$0xf]
  %v3232 = vld [vmem:[%s2852] sm:$0xf]
  %v3233 = vld [vmem:[%s2852 + $0x4] sm:$0xf]
  %v3234 = vld [vmem:[%s2852 + $0x8] sm:$0xf]
  %v3235 = vld [vmem:[%s2852 + $0xc] sm:$0xf]
  %v3236 = vld [vmem:[%s2852 + $0x10] sm:$0xf]
  %v3237 = vld [vmem:[%s2852 + $0x14] sm:$0xf]
  %v3238 = vld [vmem:[%s2852 + $0x18] sm:$0xf]
  %v3239 = vld [vmem:[%s2852 + $0x1c] sm:$0xf]
  %v3240 = vld [vmem:[%s2852 + $0x20] sm:$0xf]
  %v3241 = vld [vmem:[%s2852 + $0x24] sm:$0xf]
  %v3242 = vld [vmem:[%s2852 + $0x28] sm:$0xf]
  %v3243 = vld [vmem:[%s2852 + $0x2c] sm:$0xf]
  %v3244 = vld [vmem:[%s2852 + $0x30] sm:$0xf]
  %v3245 = vld [vmem:[%s2852 + $0x34] sm:$0xf]
  %v3260 = vunpack.c.l.b16 %v3232
  %v3261 = vunpack.c.l.b16 %v3233
  %v3262 = vunpack.c.l.b16 %v3234
  %v3263 = vunpack.c.l.b16 %v3235
  %v3264 = vunpack.c.l.b16 %v3236
  %v3265 = vunpack.c.l.b16 %v3237
  %v3266 = vunpack.c.l.b16 %v3238
  %v3267 = vunpack.c.l.b16 %v3239
  %v3268 = vunpack.c.l.b16 %v3240
  %v3269 = vunpack.c.l.b16 %v3241
  %v3270 = vunpack.c.l.b16 %v3242
  %v3271 = vunpack.c.l.b16 %v3243
  %v3272 = vunpack.c.l.b16 %v3244
  %v3273 = vunpack.c.l.b16 %v3245
  %v3274 = vpack.c.b16 %v3261, %v3260
  %v3275 = vpack.c.b16 %v3263, %v3262
  %v3276 = vpack.c.b16 %v3265, %v3264
  %v3277 = vpack.c.b16 %v3267, %v3266
  %v3278 = vpack.c.b16 %v3269, %v3268
  %v3279 = vpack.c.b16 %v3271, %v3270
  %v3280 = vpack.c.b16 %v3273, %v3272
  %v3289 = vsel %vm2776, %v3231, 0
  %3291 = vmatpush.bf16.msra.mxu0 0
  %3292 = vmatpush.bf16.msra.mxu0 %v3280
  %3293 = vmatpush.bf16.msra.mxu0 %v3279
  %3294 = vmatpush.bf16.msra.mxu0 %v3278
  %3295 = vmatpush.bf16.msra.mxu0 %v3277
  %3296 = vmatpush.bf16.msra.mxu0 %v3276
  %3297 = vmatpush.bf16.msra.mxu0 %v3275
  %3298 = vmatpush.bf16.msra.mxu0 %v3274
  %3299 = vmatmul.bf16.gmra.mxu0 %v3289
  %v3300 = vpop.f32.mrf.mxu0
  %v3301 = vadd.f32 0.0, %v3300
  %v3302 = vpop.f32.mrf.mxu0
  %3303 = vdwg.mxu0
  %v3304 = vadd.f32 %v3228, %v3301
  %v3305 = vld [vmem:[%s811] sm:$0xf]
  %v3306 = vld [vmem:[%s2927] sm:$0xf]
  %v3307 = vld [vmem:[%s2927 + $0x4] sm:$0xf]
  %v3308 = vld [vmem:[%s2927 + $0x8] sm:$0xf]
  %v3309 = vld [vmem:[%s2927 + $0xc] sm:$0xf]
  %v3310 = vld [vmem:[%s2927 + $0x10] sm:$0xf]
  %v3311 = vld [vmem:[%s2927 + $0x14] sm:$0xf]
  %v3312 = vld [vmem:[%s2927 + $0x18] sm:$0xf]
  %v3313 = vld [vmem:[%s2927 + $0x1c] sm:$0xf]
  %v3314 = vld [vmem:[%s2927 + $0x20] sm:$0xf]
  %v3315 = vld [vmem:[%s2927 + $0x24] sm:$0xf]
  %v3316 = vld [vmem:[%s2927 + $0x28] sm:$0xf]
  %v3317 = vld [vmem:[%s2927 + $0x2c] sm:$0xf]
  %v3318 = vld [vmem:[%s2927 + $0x30] sm:$0xf]
  %v3319 = vld [vmem:[%s2927 + $0x34] sm:$0xf]
  %v3334 = vunpack.c.l.b16 %v3306
  %v3335 = vunpack.c.l.b16 %v3307
  %v3336 = vunpack.c.l.b16 %v3308
  %v3337 = vunpack.c.l.b16 %v3309
  %v3338 = vunpack.c.l.b16 %v3310
  %v3339 = vunpack.c.l.b16 %v3311
  %v3340 = vunpack.c.l.b16 %v3312
  %v3341 = vunpack.c.l.b16 %v3313
  %v3342 = vunpack.c.l.b16 %v3314
  %v3343 = vunpack.c.l.b16 %v3315
  %v3344 = vunpack.c.l.b16 %v3316
  %v3345 = vunpack.c.l.b16 %v3317
  %v3346 = vunpack.c.l.b16 %v3318
  %v3347 = vunpack.c.l.b16 %v3319
  %v3348 = vpack.c.b16 %v3335, %v3334
  %v3349 = vpack.c.b16 %v3337, %v3336
  %v3350 = vpack.c.b16 %v3339, %v3338
  %v3351 = vpack.c.b16 %v3341, %v3340
  %v3352 = vpack.c.b16 %v3343, %v3342
  %v3353 = vpack.c.b16 %v3345, %v3344
  %v3354 = vpack.c.b16 %v3347, %v3346
  %v3363 = vsel %vm2776, %v3305, 0
  %3365 = vmatpush.bf16.msra.mxu0 0
  %3366 = vmatpush.bf16.msra.mxu0 %v3354
  %3367 = vmatpush.bf16.msra.mxu0 %v3353
  %3368 = vmatpush.bf16.msra.mxu0 %v3352
  %3369 = vmatpush.bf16.msra.mxu0 %v3351
  %3370 = vmatpush.bf16.msra.mxu0 %v3350
  %3371 = vmatpush.bf16.msra.mxu0 %v3349
  %3372 = vmatpush.bf16.msra.mxu0 %v3348
  %3373 = vmatmul.bf16.gmra.mxu0 %v3363
  %v3374 = vpop.f32.mrf.mxu0
  %v3375 = vadd.f32 0.0, %v3374
  %v3376 = vpop.f32.mrf.mxu0
  %3377 = vdwg.mxu0
  %v3378 = vadd.f32 %v3304, %v3375
  %v3379 = vld [vmem:[%s1000] sm:$0xf]
  %v3380 = vld [vmem:[%s3002] sm:$0xf]
  %v3381 = vld [vmem:[%s3002 + $0x4] sm:$0xf]
  %v3382 = vld [vmem:[%s3002 + $0x8] sm:$0xf]
  %v3383 = vld [vmem:[%s3002 + $0xc] sm:$0xf]
  %v3384 = vld [vmem:[%s3002 + $0x10] sm:$0xf]
  %v3385 = vld [vmem:[%s3002 + $0x14] sm:$0xf]
  %v3386 = vld [vmem:[%s3002 + $0x18] sm:$0xf]
  %v3387 = vld [vmem:[%s3002 + $0x1c] sm:$0xf]
  %v3388 = vld [vmem:[%s3002 + $0x20] sm:$0xf]
  %v3389 = vld [vmem:[%s3002 + $0x24] sm:$0xf]
  %v3390 = vld [vmem:[%s3002 + $0x28] sm:$0xf]
  %v3391 = vld [vmem:[%s3002 + $0x2c] sm:$0xf]
  %v3392 = vld [vmem:[%s3002 + $0x30] sm:$0xf]
  %v3393 = vld [vmem:[%s3002 + $0x34] sm:$0xf]
  %v3408 = vunpack.c.l.b16 %v3380
  %v3409 = vunpack.c.l.b16 %v3381
  %v3410 = vunpack.c.l.b16 %v3382
  %v3411 = vunpack.c.l.b16 %v3383
  %v3412 = vunpack.c.l.b16 %v3384
  %v3413 = vunpack.c.l.b16 %v3385
  %v3414 = vunpack.c.l.b16 %v3386
  %v3415 = vunpack.c.l.b16 %v3387
  %v3416 = vunpack.c.l.b16 %v3388
  %v3417 = vunpack.c.l.b16 %v3389
  %v3418 = vunpack.c.l.b16 %v3390
  %v3419 = vunpack.c.l.b16 %v3391
  %v3420 = vunpack.c.l.b16 %v3392
  %v3421 = vunpack.c.l.b16 %v3393
  %v3422 = vpack.c.b16 %v3409, %v3408
  %v3423 = vpack.c.b16 %v3411, %v3410
  %v3424 = vpack.c.b16 %v3413, %v3412
  %v3425 = vpack.c.b16 %v3415, %v3414
  %v3426 = vpack.c.b16 %v3417, %v3416
  %v3427 = vpack.c.b16 %v3419, %v3418
  %v3428 = vpack.c.b16 %v3421, %v3420
  %v3437 = vsel %vm2776, %v3379, 0
  %3439 = vmatpush.bf16.msra.mxu0 0
  %3440 = vmatpush.bf16.msra.mxu0 %v3428
  %3441 = vmatpush.bf16.msra.mxu0 %v3427
  %3442 = vmatpush.bf16.msra.mxu0 %v3426
  %3443 = vmatpush.bf16.msra.mxu0 %v3425
  %3444 = vmatpush.bf16.msra.mxu0 %v3424
  %3445 = vmatpush.bf16.msra.mxu0 %v3423
  %3446 = vmatpush.bf16.msra.mxu0 %v3422
  %3447 = vmatmul.bf16.gmra.mxu0 %v3437
  %v3448 = vpop.f32.mrf.mxu0
  %v3449 = vadd.f32 0.0, %v3448
  %v3450 = vpop.f32.mrf.mxu0
  %3451 = vdwg.mxu0
  %v3452 = vadd.f32 %v3378, %v3449
  %v3453 = vld [vmem:[%s4] sm:$0x1]
  %v3455 = vperm.slane %v3453, 0
  %v3457 = vadd.f32 %v3452, %v3455
  %v3458 = vmax.f32 %v3457, 0.0
  %v3459 = vpack.c.bf16 %v3458, %v3458
  %s3460 = scalar_lea.vmem [#allocation3], 12
  %3461 = vst.msk [vmem:[%s3460] sm:$0xf] %vm34, %v3459
  %v3462 = vld [vmem:[%s622] sm:$0xf]
  %v3463 = vld [vmem:[%s3] sm:$0xf]
  %v3464 = vld [vmem:[%s3 + $0x4] sm:$0xf]
  %v3465 = vld [vmem:[%s3 + $0x8] sm:$0xf]
  %v3466 = vld [vmem:[%s3 + $0xc] sm:$0xf]
  %v3467 = vld [vmem:[%s3 + $0x10] sm:$0xf]
  %v3468 = vld [vmem:[%s3 + $0x14] sm:$0xf]
  %v3469 = vld [vmem:[%s3 + $0x18] sm:$0xf]
  %v3470 = vld [vmem:[%s3 + $0x1c] sm:$0xf]
  %v3471 = vld [vmem:[%s3 + $0x20] sm:$0xf]
  %v3472 = vld [vmem:[%s3 + $0x24] sm:$0xf]
  %v3473 = vld [vmem:[%s3 + $0x28] sm:$0xf]
  %v3474 = vld [vmem:[%s3 + $0x2c] sm:$0xf]
  %v3475 = vld [vmem:[%s3 + $0x30] sm:$0xf]
  %v3476 = vld [vmem:[%s3 + $0x34] sm:$0xf]
  %v3477 = vld [vmem:[%s811] sm:$0xf]
  %v3478 = vld [vmem:[%s2719] sm:$0xf]
  %v3479 = vld [vmem:[%s2719 + $0x4] sm:$0xf]
  %v3480 = vld [vmem:[%s2719 + $0x8] sm:$0xf]
  %v3481 = vld [vmem:[%s2719 + $0xc] sm:$0xf]
  %v3482 = vld [vmem:[%s2719 + $0x10] sm:$0xf]
  %v3483 = vld [vmem:[%s2719 + $0x14] sm:$0xf]
  %v3484 = vld [vmem:[%s2719 + $0x18] sm:$0xf]
  %v3485 = vld [vmem:[%s2719 + $0x1c] sm:$0xf]
  %v3486 = vld [vmem:[%s2719 + $0x20] sm:$0xf]
  %v3487 = vld [vmem:[%s2719 + $0x24] sm:$0xf]
  %v3488 = vld [vmem:[%s2719 + $0x28] sm:$0xf]
  %v3489 = vld [vmem:[%s2719 + $0x2c] sm:$0xf]
  %v3490 = vld [vmem:[%s2719 + $0x30] sm:$0xf]
  %v3491 = vld [vmem:[%s2719 + $0x34] sm:$0xf]
  %v3506 = vunpack.c.l.b16 %v3478
  %v3507 = vunpack.c.l.b16 %v3479
  %v3508 = vunpack.c.l.b16 %v3480
  %v3509 = vunpack.c.l.b16 %v3481
  %v3510 = vunpack.c.l.b16 %v3482
  %v3511 = vunpack.c.l.b16 %v3483
  %v3512 = vunpack.c.l.b16 %v3484
  %v3513 = vunpack.c.l.b16 %v3485
  %v3514 = vunpack.c.l.b16 %v3486
  %v3515 = vunpack.c.l.b16 %v3487
  %v3516 = vunpack.c.l.b16 %v3488
  %v3517 = vunpack.c.l.b16 %v3489
  %v3518 = vunpack.c.l.b16 %v3490
  %v3519 = vunpack.c.l.b16 %v3491
  %v3520 = vpack.c.b16 %v3507, %v3506
  %v3521 = vpack.c.b16 %v3509, %v3508
  %v3522 = vpack.c.b16 %v3511, %v3510
  %v3523 = vpack.c.b16 %v3513, %v3512
  %v3524 = vpack.c.b16 %v3515, %v3514
  %v3525 = vpack.c.b16 %v3517, %v3516
  %v3526 = vpack.c.b16 %v3519, %v3518
  %v3535 = vsel %vm2776, %v3477, 0
  %3537 = vmatpush.bf16.msra.mxu0 0
  %3538 = vmatpush.bf16.msra.mxu0 %v3526
  %3539 = vmatpush.bf16.msra.mxu0 %v3525
  %3540 = vmatpush.bf16.msra.mxu0 %v3524
  %3541 = vmatpush.bf16.msra.mxu0 %v3523
  %3542 = vmatpush.bf16.msra.mxu0 %v3522
  %3543 = vmatpush.bf16.msra.mxu0 %v3521
  %3544 = vmatpush.bf16.msra.mxu0 %v3520
  %3545 = vmatmul.bf16.gmra.mxu0 %v3535
  %v3546 = vpop.f32.mrf.mxu0
  %v3547 = vadd.f32 0.0, %v3546
  %v3548 = vpop.f32.mrf.mxu0
  %3549 = vdwg.mxu0
  %v3564 = vunpack.c.l.b16 %v3463
  %v3565 = vunpack.c.l.b16 %v3464
  %v3566 = vunpack.c.l.b16 %v3465
  %v3567 = vunpack.c.l.b16 %v3466
  %v3568 = vunpack.c.l.b16 %v3467
  %v3569 = vunpack.c.l.b16 %v3468
  %v3570 = vunpack.c.l.b16 %v3469
  %v3571 = vunpack.c.l.b16 %v3470
  %v3572 = vunpack.c.l.b16 %v3471
  %v3573 = vunpack.c.l.b16 %v3472
  %v3574 = vunpack.c.l.b16 %v3473
  %v3575 = vunpack.c.l.b16 %v3474
  %v3576 = vunpack.c.l.b16 %v3475
  %v3577 = vunpack.c.l.b16 %v3476
  %v3578 = vpack.c.b16 %v3565, %v3564
  %v3579 = vpack.c.b16 %v3567, %v3566
  %v3580 = vpack.c.b16 %v3569, %v3568
  %v3581 = vpack.c.b16 %v3571, %v3570
  %v3582 = vpack.c.b16 %v3573, %v3572
  %v3583 = vpack.c.b16 %v3575, %v3574
  %v3584 = vpack.c.b16 %v3577, %v3576
  %v3593 = vsel %vm2776, %v3462, 0
  %3595 = vmatpush.bf16.msra.mxu0 0
  %3596 = vmatpush.bf16.msra.mxu0 %v3584
  %3597 = vmatpush.bf16.msra.mxu0 %v3583
  %3598 = vmatpush.bf16.msra.mxu0 %v3582
  %3599 = vmatpush.bf16.msra.mxu0 %v3581
  %3600 = vmatpush.bf16.msra.mxu0 %v3580
  %3601 = vmatpush.bf16.msra.mxu0 %v3579
  %3602 = vmatpush.bf16.msra.mxu0 %v3578
  %3603 = vmatmul.bf16.gmra.mxu0 %v3593
  %v3604 = vpop.f32.mrf.mxu0
  %v3605 = vadd.f32 %v3547, %v3604
  %v3606 = vpop.f32.mrf.mxu0
  %3607 = vdwg.mxu0
  %v3608 = vld [vmem:[%s1000] sm:$0xf]
  %v3609 = vld [vmem:[%s2852] sm:$0xf]
  %v3610 = vld [vmem:[%s2852 + $0x4] sm:$0xf]
  %v3611 = vld [vmem:[%s2852 + $0x8] sm:$0xf]
  %v3612 = vld [vmem:[%s2852 + $0xc] sm:$0xf]
  %v3613 = vld [vmem:[%s2852 + $0x10] sm:$0xf]
  %v3614 = vld [vmem:[%s2852 + $0x14] sm:$0xf]
  %v3615 = vld [vmem:[%s2852 + $0x18] sm:$0xf]
  %v3616 = vld [vmem:[%s2852 + $0x1c] sm:$0xf]
  %v3617 = vld [vmem:[%s2852 + $0x20] sm:$0xf]
  %v3618 = vld [vmem:[%s2852 + $0x24] sm:$0xf]
  %v3619 = vld [vmem:[%s2852 + $0x28] sm:$0xf]
  %v3620 = vld [vmem:[%s2852 + $0x2c] sm:$0xf]
  %v3621 = vld [vmem:[%s2852 + $0x30] sm:$0xf]
  %v3622 = vld [vmem:[%s2852 + $0x34] sm:$0xf]
  %v3637 = vunpack.c.l.b16 %v3609
  %v3638 = vunpack.c.l.b16 %v3610
  %v3639 = vunpack.c.l.b16 %v3611
  %v3640 = vunpack.c.l.b16 %v3612
  %v3641 = vunpack.c.l.b16 %v3613
  %v3642 = vunpack.c.l.b16 %v3614
  %v3643 = vunpack.c.l.b16 %v3615
  %v3644 = vunpack.c.l.b16 %v3616
  %v3645 = vunpack.c.l.b16 %v3617
  %v3646 = vunpack.c.l.b16 %v3618
  %v3647 = vunpack.c.l.b16 %v3619
  %v3648 = vunpack.c.l.b16 %v3620
  %v3649 = vunpack.c.l.b16 %v3621
  %v3650 = vunpack.c.l.b16 %v3622
  %v3651 = vpack.c.b16 %v3638, %v3637
  %v3652 = vpack.c.b16 %v3640, %v3639
  %v3653 = vpack.c.b16 %v3642, %v3641
  %v3654 = vpack.c.b16 %v3644, %v3643
  %v3655 = vpack.c.b16 %v3646, %v3645
  %v3656 = vpack.c.b16 %v3648, %v3647
  %v3657 = vpack.c.b16 %v3650, %v3649
  %v3666 = vsel %vm2776, %v3608, 0
  %3668 = vmatpush.bf16.msra.mxu0 0
  %3669 = vmatpush.bf16.msra.mxu0 %v3657
  %3670 = vmatpush.bf16.msra.mxu0 %v3656
  %3671 = vmatpush.bf16.msra.mxu0 %v3655
  %3672 = vmatpush.bf16.msra.mxu0 %v3654
  %3673 = vmatpush.bf16.msra.mxu0 %v3653
  %3674 = vmatpush.bf16.msra.mxu0 %v3652
  %3675 = vmatpush.bf16.msra.mxu0 %v3651
  %3676 = vmatmul.bf16.gmra.mxu0 %v3666
  %v3677 = vpop.f32.mrf.mxu0
  %v3678 = vadd.f32 0.0, %v3677
  %v3679 = vpop.f32.mrf.mxu0
  %3680 = vdwg.mxu0
  %v3681 = vadd.f32 %v3605, %v3678
  %v3682 = vld [vmem:[%s1189] sm:$0xf]
  %v3683 = vld [vmem:[%s2927] sm:$0xf]
  %v3684 = vld [vmem:[%s2927 + $0x4] sm:$0xf]
  %v3685 = vld [vmem:[%s2927 + $0x8] sm:$0xf]
  %v3686 = vld [vmem:[%s2927 + $0xc] sm:$0xf]
  %v3687 = vld [vmem:[%s2927 + $0x10] sm:$0xf]
  %v3688 = vld [vmem:[%s2927 + $0x14] sm:$0xf]
  %v3689 = vld [vmem:[%s2927 + $0x18] sm:$0xf]
  %v3690 = vld [vmem:[%s2927 + $0x1c] sm:$0xf]
  %v3691 = vld [vmem:[%s2927 + $0x20] sm:$0xf]
  %v3692 = vld [vmem:[%s2927 + $0x24] sm:$0xf]
  %v3693 = vld [vmem:[%s2927 + $0x28] sm:$0xf]
  %v3694 = vld [vmem:[%s2927 + $0x2c] sm:$0xf]
  %v3695 = vld [vmem:[%s2927 + $0x30] sm:$0xf]
  %v3696 = vld [vmem:[%s2927 + $0x34] sm:$0xf]
  %v3711 = vunpack.c.l.b16 %v3683
  %v3712 = vunpack.c.l.b16 %v3684
  %v3713 = vunpack.c.l.b16 %v3685
  %v3714 = vunpack.c.l.b16 %v3686
  %v3715 = vunpack.c.l.b16 %v3687
  %v3716 = vunpack.c.l.b16 %v3688
  %v3717 = vunpack.c.l.b16 %v3689
  %v3718 = vunpack.c.l.b16 %v3690
  %v3719 = vunpack.c.l.b16 %v3691
  %v3720 = vunpack.c.l.b16 %v3692
  %v3721 = vunpack.c.l.b16 %v3693
  %v3722 = vunpack.c.l.b16 %v3694
  %v3723 = vunpack.c.l.b16 %v3695
  %v3724 = vunpack.c.l.b16 %v3696
  %v3725 = vpack.c.b16 %v3712, %v3711
  %v3726 = vpack.c.b16 %v3714, %v3713
  %v3727 = vpack.c.b16 %v3716, %v3715
  %v3728 = vpack.c.b16 %v3718, %v3717
  %v3729 = vpack.c.b16 %v3720, %v3719
  %v3730 = vpack.c.b16 %v3722, %v3721
  %v3731 = vpack.c.b16 %v3724, %v3723
  %v3740 = vsel %vm2776, %v3682, 0
  %3742 = vmatpush.bf16.msra.mxu0 0
  %3743 = vmatpush.bf16.msra.mxu0 %v3731
  %3744 = vmatpush.bf16.msra.mxu0 %v3730
  %3745 = vmatpush.bf16.msra.mxu0 %v3729
  %3746 = vmatpush.bf16.msra.mxu0 %v3728
  %3747 = vmatpush.bf16.msra.mxu0 %v3727
  %3748 = vmatpush.bf16.msra.mxu0 %v3726
  %3749 = vmatpush.bf16.msra.mxu0 %v3725
  %3750 = vmatmul.bf16.gmra.mxu0 %v3740
  %v3751 = vpop.f32.mrf.mxu0
  %v3752 = vadd.f32 0.0, %v3751
  %v3753 = vpop.f32.mrf.mxu0
  %3754 = vdwg.mxu0
  %v3755 = vadd.f32 %v3681, %v3752
  %v3756 = vld [vmem:[%s1378] sm:$0xf]
  %v3757 = vld [vmem:[%s3002] sm:$0xf]
  %v3758 = vld [vmem:[%s3002 + $0x4] sm:$0xf]
  %v3759 = vld [vmem:[%s3002 + $0x8] sm:$0xf]
  %v3760 = vld [vmem:[%s3002 + $0xc] sm:$0xf]
  %v3761 = vld [vmem:[%s3002 + $0x10] sm:$0xf]
  %v3762 = vld [vmem:[%s3002 + $0x14] sm:$0xf]
  %v3763 = vld [vmem:[%s3002 + $0x18] sm:$0xf]
  %v3764 = vld [vmem:[%s3002 + $0x1c] sm:$0xf]
  %v3765 = vld [vmem:[%s3002 + $0x20] sm:$0xf]
  %v3766 = vld [vmem:[%s3002 + $0x24] sm:$0xf]
  %v3767 = vld [vmem:[%s3002 + $0x28] sm:$0xf]
  %v3768 = vld [vmem:[%s3002 + $0x2c] sm:$0xf]
  %v3769 = vld [vmem:[%s3002 + $0x30] sm:$0xf]
  %v3770 = vld [vmem:[%s3002 + $0x34] sm:$0xf]
  %v3785 = vunpack.c.l.b16 %v3757
  %v3786 = vunpack.c.l.b16 %v3758
  %v3787 = vunpack.c.l.b16 %v3759
  %v3788 = vunpack.c.l.b16 %v3760
  %v3789 = vunpack.c.l.b16 %v3761
  %v3790 = vunpack.c.l.b16 %v3762
  %v3791 = vunpack.c.l.b16 %v3763
  %v3792 = vunpack.c.l.b16 %v3764
  %v3793 = vunpack.c.l.b16 %v3765
  %v3794 = vunpack.c.l.b16 %v3766
  %v3795 = vunpack.c.l.b16 %v3767
  %v3796 = vunpack.c.l.b16 %v3768
  %v3797 = vunpack.c.l.b16 %v3769
  %v3798 = vunpack.c.l.b16 %v3770
  %v3799 = vpack.c.b16 %v3786, %v3785
  %v3800 = vpack.c.b16 %v3788, %v3787
  %v3801 = vpack.c.b16 %v3790, %v3789
  %v3802 = vpack.c.b16 %v3792, %v3791
  %v3803 = vpack.c.b16 %v3794, %v3793
  %v3804 = vpack.c.b16 %v3796, %v3795
  %v3805 = vpack.c.b16 %v3798, %v3797
  %v3814 = vsel %vm2776, %v3756, 0
  %3816 = vmatpush.bf16.msra.mxu0 0
  %3817 = vmatpush.bf16.msra.mxu0 %v3805
  %3818 = vmatpush.bf16.msra.mxu0 %v3804
  %3819 = vmatpush.bf16.msra.mxu0 %v3803
  %3820 = vmatpush.bf16.msra.mxu0 %v3802
  %3821 = vmatpush.bf16.msra.mxu0 %v3801
  %3822 = vmatpush.bf16.msra.mxu0 %v3800
  %3823 = vmatpush.bf16.msra.mxu0 %v3799
  %3824 = vmatmul.bf16.gmra.mxu0 %v3814
  %v3825 = vpop.f32.mrf.mxu0
  %v3826 = vadd.f32 0.0, %v3825
  %v3827 = vpop.f32.mrf.mxu0
  %3828 = vdwg.mxu0
  %v3829 = vadd.f32 %v3755, %v3826
  %v3830 = vld [vmem:[%s4] sm:$0x1]
  %v3832 = vperm.slane %v3830, 0
  %v3834 = vadd.f32 %v3829, %v3832
  %v3835 = vmax.f32 %v3834, 0.0
  %v3836 = vpack.c.bf16 %v3835, %v3835
  %s3837 = scalar_lea.vmem [#allocation3], 16
  %3838 = vst.msk [vmem:[%s3837] sm:$0xf] %vm34, %v3836
  %v3839 = vld [vmem:[%s1000] sm:$0xf]
  %v3840 = vld [vmem:[%s3] sm:$0xf]
  %v3841 = vld [vmem:[%s3 + $0x4] sm:$0xf]
  %v3842 = vld [vmem:[%s3 + $0x8] sm:$0xf]
  %v3843 = vld [vmem:[%s3 + $0xc] sm:$0xf]
  %v3844 = vld [vmem:[%s3 + $0x10] sm:$0xf]
  %v3845 = vld [vmem:[%s3 + $0x14] sm:$0xf]
  %v3846 = vld [vmem:[%s3 + $0x18] sm:$0xf]
  %v3847 = vld [vmem:[%s3 + $0x1c] sm:$0xf]
  %v3848 = vld [vmem:[%s3 + $0x20] sm:$0xf]
  %v3849 = vld [vmem:[%s3 + $0x24] sm:$0xf]
  %v3850 = vld [vmem:[%s3 + $0x28] sm:$0xf]
  %v3851 = vld [vmem:[%s3 + $0x2c] sm:$0xf]
  %v3852 = vld [vmem:[%s3 + $0x30] sm:$0xf]
  %v3853 = vld [vmem:[%s3 + $0x34] sm:$0xf]
  %v3854 = vld [vmem:[%s1189] sm:$0xf]
  %v3855 = vld [vmem:[%s2719] sm:$0xf]
  %v3856 = vld [vmem:[%s2719 + $0x4] sm:$0xf]
  %v3857 = vld [vmem:[%s2719 + $0x8] sm:$0xf]
  %v3858 = vld [vmem:[%s2719 + $0xc] sm:$0xf]
  %v3859 = vld [vmem:[%s2719 + $0x10] sm:$0xf]
  %v3860 = vld [vmem:[%s2719 + $0x14] sm:$0xf]
  %v3861 = vld [vmem:[%s2719 + $0x18] sm:$0xf]
  %v3862 = vld [vmem:[%s2719 + $0x1c] sm:$0xf]
  %v3863 = vld [vmem:[%s2719 + $0x20] sm:$0xf]
  %v3864 = vld [vmem:[%s2719 + $0x24] sm:$0xf]
  %v3865 = vld [vmem:[%s2719 + $0x28] sm:$0xf]
  %v3866 = vld [vmem:[%s2719 + $0x2c] sm:$0xf]
  %v3867 = vld [vmem:[%s2719 + $0x30] sm:$0xf]
  %v3868 = vld [vmem:[%s2719 + $0x34] sm:$0xf]
  %v3883 = vunpack.c.l.b16 %v3855
  %v3884 = vunpack.c.l.b16 %v3856
  %v3885 = vunpack.c.l.b16 %v3857
  %v3886 = vunpack.c.l.b16 %v3858
  %v3887 = vunpack.c.l.b16 %v3859
  %v3888 = vunpack.c.l.b16 %v3860
  %v3889 = vunpack.c.l.b16 %v3861
  %v3890 = vunpack.c.l.b16 %v3862
  %v3891 = vunpack.c.l.b16 %v3863
  %v3892 = vunpack.c.l.b16 %v3864
  %v3893 = vunpack.c.l.b16 %v3865
  %v3894 = vunpack.c.l.b16 %v3866
  %v3895 = vunpack.c.l.b16 %v3867
  %v3896 = vunpack.c.l.b16 %v3868
  %v3897 = vpack.c.b16 %v3884, %v3883
  %v3898 = vpack.c.b16 %v3886, %v3885
  %v3899 = vpack.c.b16 %v3888, %v3887
  %v3900 = vpack.c.b16 %v3890, %v3889
  %v3901 = vpack.c.b16 %v3892, %v3891
  %v3902 = vpack.c.b16 %v3894, %v3893
  %v3903 = vpack.c.b16 %v3896, %v3895
  %v3912 = vsel %vm2776, %v3854, 0
  %3914 = vmatpush.bf16.msra.mxu0 0
  %3915 = vmatpush.bf16.msra.mxu0 %v3903
  %3916 = vmatpush.bf16.msra.mxu0 %v3902
  %3917 = vmatpush.bf16.msra.mxu0 %v3901
  %3918 = vmatpush.bf16.msra.mxu0 %v3900
  %3919 = vmatpush.bf16.msra.mxu0 %v3899
  %3920 = vmatpush.bf16.msra.mxu0 %v3898
  %3921 = vmatpush.bf16.msra.mxu0 %v3897
  %3922 = vmatmul.bf16.gmra.mxu0 %v3912
  %v3923 = vpop.f32.mrf.mxu0
  %v3924 = vadd.f32 0.0, %v3923
  %v3925 = vpop.f32.mrf.mxu0
  %3926 = vdwg.mxu0
  %v3941 = vunpack.c.l.b16 %v3840
  %v3942 = vunpack.c.l.b16 %v3841
  %v3943 = vunpack.c.l.b16 %v3842
  %v3944 = vunpack.c.l.b16 %v3843
  %v3945 = vunpack.c.l.b16 %v3844
  %v3946 = vunpack.c.l.b16 %v3845
  %v3947 = vunpack.c.l.b16 %v3846
  %v3948 = vunpack.c.l.b16 %v3847
  %v3949 = vunpack.c.l.b16 %v3848
  %v3950 = vunpack.c.l.b16 %v3849
  %v3951 = vunpack.c.l.b16 %v3850
  %v3952 = vunpack.c.l.b16 %v3851
  %v3953 = vunpack.c.l.b16 %v3852
  %v3954 = vunpack.c.l.b16 %v3853
  %v3955 = vpack.c.b16 %v3942, %v3941
  %v3956 = vpack.c.b16 %v3944, %v3943
  %v3957 = vpack.c.b16 %v3946, %v3945
  %v3958 = vpack.c.b16 %v3948, %v3947
  %v3959 = vpack.c.b16 %v3950, %v3949
  %v3960 = vpack.c.b16 %v3952, %v3951
  %v3961 = vpack.c.b16 %v3954, %v3953
  %v3970 = vsel %vm2776, %v3839, 0
  %3972 = vmatpush.bf16.msra.mxu0 0
  %3973 = vmatpush.bf16.msra.mxu0 %v3961
  %3974 = vmatpush.bf16.msra.mxu0 %v3960
  %3975 = vmatpush.bf16.msra.mxu0 %v3959
  %3976 = vmatpush.bf16.msra.mxu0 %v3958
  %3977 = vmatpush.bf16.msra.mxu0 %v3957
  %3978 = vmatpush.bf16.msra.mxu0 %v3956
  %3979 = vmatpush.bf16.msra.mxu0 %v3955
  %3980 = vmatmul.bf16.gmra.mxu0 %v3970
  %v3981 = vpop.f32.mrf.mxu0
  %v3982 = vadd.f32 %v3924, %v3981
  %v3983 = vpop.f32.mrf.mxu0
  %3984 = vdwg.mxu0
  %v3985 = vld [vmem:[%s1378] sm:$0xf]
  %v3986 = vld [vmem:[%s2852] sm:$0xf]
  %v3987 = vld [vmem:[%s2852 + $0x4] sm:$0xf]
  %v3988 = vld [vmem:[%s2852 + $0x8] sm:$0xf]
  %v3989 = vld [vmem:[%s2852 + $0xc] sm:$0xf]
  %v3990 = vld [vmem:[%s2852 + $0x10] sm:$0xf]
  %v3991 = vld [vmem:[%s2852 + $0x14] sm:$0xf]
  %v3992 = vld [vmem:[%s2852 + $0x18] sm:$0xf]
  %v3993 = vld [vmem:[%s2852 + $0x1c] sm:$0xf]
  %v3994 = vld [vmem:[%s2852 + $0x20] sm:$0xf]
  %v3995 = vld [vmem:[%s2852 + $0x24] sm:$0xf]
  %v3996 = vld [vmem:[%s2852 + $0x28] sm:$0xf]
  %v3997 = vld [vmem:[%s2852 + $0x2c] sm:$0xf]
  %v3998 = vld [vmem:[%s2852 + $0x30] sm:$0xf]
  %v3999 = vld [vmem:[%s2852 + $0x34] sm:$0xf]
  %v4014 = vunpack.c.l.b16 %v3986
  %v4015 = vunpack.c.l.b16 %v3987
  %v4016 = vunpack.c.l.b16 %v3988
  %v4017 = vunpack.c.l.b16 %v3989
  %v4018 = vunpack.c.l.b16 %v3990
  %v4019 = vunpack.c.l.b16 %v3991
  %v4020 = vunpack.c.l.b16 %v3992
  %v4021 = vunpack.c.l.b16 %v3993
  %v4022 = vunpack.c.l.b16 %v3994
  %v4023 = vunpack.c.l.b16 %v3995
  %v4024 = vunpack.c.l.b16 %v3996
  %v4025 = vunpack.c.l.b16 %v3997
  %v4026 = vunpack.c.l.b16 %v3998
  %v4027 = vunpack.c.l.b16 %v3999
  %v4028 = vpack.c.b16 %v4015, %v4014
  %v4029 = vpack.c.b16 %v4017, %v4016
  %v4030 = vpack.c.b16 %v4019, %v4018
  %v4031 = vpack.c.b16 %v4021, %v4020
  %v4032 = vpack.c.b16 %v4023, %v4022
  %v4033 = vpack.c.b16 %v4025, %v4024
  %v4034 = vpack.c.b16 %v4027, %v4026
  %v4043 = vsel %vm2776, %v3985, 0
  %4045 = vmatpush.bf16.msra.mxu0 0
  %4046 = vmatpush.bf16.msra.mxu0 %v4034
  %4047 = vmatpush.bf16.msra.mxu0 %v4033
  %4048 = vmatpush.bf16.msra.mxu0 %v4032
  %4049 = vmatpush.bf16.msra.mxu0 %v4031
  %4050 = vmatpush.bf16.msra.mxu0 %v4030
  %4051 = vmatpush.bf16.msra.mxu0 %v4029
  %4052 = vmatpush.bf16.msra.mxu0 %v4028
  %4053 = vmatmul.bf16.gmra.mxu0 %v4043
  %v4054 = vpop.f32.mrf.mxu0
  %v4055 = vadd.f32 0.0, %v4054
  %v4056 = vpop.f32.mrf.mxu0
  %4057 = vdwg.mxu0
  %v4058 = vadd.f32 %v3982, %v4055
  %v4059 = vld [vmem:[%s1567] sm:$0xf]
  %v4060 = vld [vmem:[%s2927] sm:$0xf]
  %v4061 = vld [vmem:[%s2927 + $0x4] sm:$0xf]
  %v4062 = vld [vmem:[%s2927 + $0x8] sm:$0xf]
  %v4063 = vld [vmem:[%s2927 + $0xc] sm:$0xf]
  %v4064 = vld [vmem:[%s2927 + $0x10] sm:$0xf]
  %v4065 = vld [vmem:[%s2927 + $0x14] sm:$0xf]
  %v4066 = vld [vmem:[%s2927 + $0x18] sm:$0xf]
  %v4067 = vld [vmem:[%s2927 + $0x1c] sm:$0xf]
  %v4068 = vld [vmem:[%s2927 + $0x20] sm:$0xf]
  %v4069 = vld [vmem:[%s2927 + $0x24] sm:$0xf]
  %v4070 = vld [vmem:[%s2927 + $0x28] sm:$0xf]
  %v4071 = vld [vmem:[%s2927 + $0x2c] sm:$0xf]
  %v4072 = vld [vmem:[%s2927 + $0x30] sm:$0xf]
  %v4073 = vld [vmem:[%s2927 + $0x34] sm:$0xf]
  %v4088 = vunpack.c.l.b16 %v4060
  %v4089 = vunpack.c.l.b16 %v4061
  %v4090 = vunpack.c.l.b16 %v4062
  %v4091 = vunpack.c.l.b16 %v4063
  %v4092 = vunpack.c.l.b16 %v4064
  %v4093 = vunpack.c.l.b16 %v4065
  %v4094 = vunpack.c.l.b16 %v4066
  %v4095 = vunpack.c.l.b16 %v4067
  %v4096 = vunpack.c.l.b16 %v4068
  %v4097 = vunpack.c.l.b16 %v4069
  %v4098 = vunpack.c.l.b16 %v4070
  %v4099 = vunpack.c.l.b16 %v4071
  %v4100 = vunpack.c.l.b16 %v4072
  %v4101 = vunpack.c.l.b16 %v4073
  %v4102 = vpack.c.b16 %v4089, %v4088
  %v4103 = vpack.c.b16 %v4091, %v4090
  %v4104 = vpack.c.b16 %v4093, %v4092
  %v4105 = vpack.c.b16 %v4095, %v4094
  %v4106 = vpack.c.b16 %v4097, %v4096
  %v4107 = vpack.c.b16 %v4099, %v4098
  %v4108 = vpack.c.b16 %v4101, %v4100
  %v4117 = vsel %vm2776, %v4059, 0
  %4119 = vmatpush.bf16.msra.mxu0 0
  %4120 = vmatpush.bf16.msra.mxu0 %v4108
  %4121 = vmatpush.bf16.msra.mxu0 %v4107
  %4122 = vmatpush.bf16.msra.mxu0 %v4106
  %4123 = vmatpush.bf16.msra.mxu0 %v4105
  %4124 = vmatpush.bf16.msra.mxu0 %v4104
  %4125 = vmatpush.bf16.msra.mxu0 %v4103
  %4126 = vmatpush.bf16.msra.mxu0 %v4102
  %4127 = vmatmul.bf16.gmra.mxu0 %v4117
  %v4128 = vpop.f32.mrf.mxu0
  %v4129 = vadd.f32 0.0, %v4128
  %v4130 = vpop.f32.mrf.mxu0
  %4131 = vdwg.mxu0
  %v4132 = vadd.f32 %v4058, %v4129
  %v4133 = vld [vmem:[%s1756] sm:$0xf]
  %v4134 = vld [vmem:[%s3002] sm:$0xf]
  %v4135 = vld [vmem:[%s3002 + $0x4] sm:$0xf]
  %v4136 = vld [vmem:[%s3002 + $0x8] sm:$0xf]
  %v4137 = vld [vmem:[%s3002 + $0xc] sm:$0xf]
  %v4138 = vld [vmem:[%s3002 + $0x10] sm:$0xf]
  %v4139 = vld [vmem:[%s3002 + $0x14] sm:$0xf]
  %v4140 = vld [vmem:[%s3002 + $0x18] sm:$0xf]
  %v4141 = vld [vmem:[%s3002 + $0x1c] sm:$0xf]
  %v4142 = vld [vmem:[%s3002 + $0x20] sm:$0xf]
  %v4143 = vld [vmem:[%s3002 + $0x24] sm:$0xf]
  %v4144 = vld [vmem:[%s3002 + $0x28] sm:$0xf]
  %v4145 = vld [vmem:[%s3002 + $0x2c] sm:$0xf]
  %v4146 = vld [vmem:[%s3002 + $0x30] sm:$0xf]
  %v4147 = vld [vmem:[%s3002 + $0x34] sm:$0xf]
  %v4162 = vunpack.c.l.b16 %v4134
  %v4163 = vunpack.c.l.b16 %v4135
  %v4164 = vunpack.c.l.b16 %v4136
  %v4165 = vunpack.c.l.b16 %v4137
  %v4166 = vunpack.c.l.b16 %v4138
  %v4167 = vunpack.c.l.b16 %v4139
  %v4168 = vunpack.c.l.b16 %v4140
  %v4169 = vunpack.c.l.b16 %v4141
  %v4170 = vunpack.c.l.b16 %v4142
  %v4171 = vunpack.c.l.b16 %v4143
  %v4172 = vunpack.c.l.b16 %v4144
  %v4173 = vunpack.c.l.b16 %v4145
  %v4174 = vunpack.c.l.b16 %v4146
  %v4175 = vunpack.c.l.b16 %v4147
  %v4176 = vpack.c.b16 %v4163, %v4162
  %v4177 = vpack.c.b16 %v4165, %v4164
  %v4178 = vpack.c.b16 %v4167, %v4166
  %v4179 = vpack.c.b16 %v4169, %v4168
  %v4180 = vpack.c.b16 %v4171, %v4170
  %v4181 = vpack.c.b16 %v4173, %v4172
  %v4182 = vpack.c.b16 %v4175, %v4174
  %v4191 = vsel %vm2776, %v4133, 0
  %4193 = vmatpush.bf16.msra.mxu0 0
  %4194 = vmatpush.bf16.msra.mxu0 %v4182
  %4195 = vmatpush.bf16.msra.mxu0 %v4181
  %4196 = vmatpush.bf16.msra.mxu0 %v4180
  %4197 = vmatpush.bf16.msra.mxu0 %v4179
  %4198 = vmatpush.bf16.msra.mxu0 %v4178
  %4199 = vmatpush.bf16.msra.mxu0 %v4177
  %4200 = vmatpush.bf16.msra.mxu0 %v4176
  %4201 = vmatmul.bf16.gmra.mxu0 %v4191
  %v4202 = vpop.f32.mrf.mxu0
  %v4203 = vadd.f32 0.0, %v4202
  %v4204 = vpop.f32.mrf.mxu0
  %4205 = vdwg.mxu0
  %v4206 = vadd.f32 %v4132, %v4203
  %v4207 = vld [vmem:[%s4] sm:$0x1]
  %v4209 = vperm.slane %v4207, 0
  %v4211 = vadd.f32 %v4206, %v4209
  %v4212 = vmax.f32 %v4211, 0.0
  %v4213 = vpack.c.bf16 %v4212, %v4212
  %s4214 = scalar_lea.vmem [#allocation3], 20
  %4215 = vst.msk [vmem:[%s4214] sm:$0xf] %vm34, %v4213
  %v4216 = vld [vmem:[%s1378] sm:$0xf]
  %v4217 = vld [vmem:[%s3] sm:$0xf]
  %v4218 = vld [vmem:[%s3 + $0x4] sm:$0xf]
  %v4219 = vld [vmem:[%s3 + $0x8] sm:$0xf]
  %v4220 = vld [vmem:[%s3 + $0xc] sm:$0xf]
  %v4221 = vld [vmem:[%s3 + $0x10] sm:$0xf]
  %v4222 = vld [vmem:[%s3 + $0x14] sm:$0xf]
  %v4223 = vld [vmem:[%s3 + $0x18] sm:$0xf]
  %v4224 = vld [vmem:[%s3 + $0x1c] sm:$0xf]
  %v4225 = vld [vmem:[%s3 + $0x20] sm:$0xf]
  %v4226 = vld [vmem:[%s3 + $0x24] sm:$0xf]
  %v4227 = vld [vmem:[%s3 + $0x28] sm:$0xf]
  %v4228 = vld [vmem:[%s3 + $0x2c] sm:$0xf]
  %v4229 = vld [vmem:[%s3 + $0x30] sm:$0xf]
  %v4230 = vld [vmem:[%s3 + $0x34] sm:$0xf]
  %v4231 = vld [vmem:[%s1567] sm:$0xf]
  %v4232 = vld [vmem:[%s2719] sm:$0xf]
  %v4233 = vld [vmem:[%s2719 + $0x4] sm:$0xf]
  %v4234 = vld [vmem:[%s2719 + $0x8] sm:$0xf]
  %v4235 = vld [vmem:[%s2719 + $0xc] sm:$0xf]
  %v4236 = vld [vmem:[%s2719 + $0x10] sm:$0xf]
  %v4237 = vld [vmem:[%s2719 + $0x14] sm:$0xf]
  %v4238 = vld [vmem:[%s2719 + $0x18] sm:$0xf]
  %v4239 = vld [vmem:[%s2719 + $0x1c] sm:$0xf]
  %v4240 = vld [vmem:[%s2719 + $0x20] sm:$0xf]
  %v4241 = vld [vmem:[%s2719 + $0x24] sm:$0xf]
  %v4242 = vld [vmem:[%s2719 + $0x28] sm:$0xf]
  %v4243 = vld [vmem:[%s2719 + $0x2c] sm:$0xf]
  %v4244 = vld [vmem:[%s2719 + $0x30] sm:$0xf]
  %v4245 = vld [vmem:[%s2719 + $0x34] sm:$0xf]
  %v4260 = vunpack.c.l.b16 %v4232
  %v4261 = vunpack.c.l.b16 %v4233
  %v4262 = vunpack.c.l.b16 %v4234
  %v4263 = vunpack.c.l.b16 %v4235
  %v4264 = vunpack.c.l.b16 %v4236
  %v4265 = vunpack.c.l.b16 %v4237
  %v4266 = vunpack.c.l.b16 %v4238
  %v4267 = vunpack.c.l.b16 %v4239
  %v4268 = vunpack.c.l.b16 %v4240
  %v4269 = vunpack.c.l.b16 %v4241
  %v4270 = vunpack.c.l.b16 %v4242
  %v4271 = vunpack.c.l.b16 %v4243
  %v4272 = vunpack.c.l.b16 %v4244
  %v4273 = vunpack.c.l.b16 %v4245
  %v4274 = vpack.c.b16 %v4261, %v4260
  %v4275 = vpack.c.b16 %v4263, %v4262
  %v4276 = vpack.c.b16 %v4265, %v4264
  %v4277 = vpack.c.b16 %v4267, %v4266
  %v4278 = vpack.c.b16 %v4269, %v4268
  %v4279 = vpack.c.b16 %v4271, %v4270
  %v4280 = vpack.c.b16 %v4273, %v4272
  %v4289 = vsel %vm2776, %v4231, 0
  %4291 = vmatpush.bf16.msra.mxu0 0
  %4292 = vmatpush.bf16.msra.mxu0 %v4280
  %4293 = vmatpush.bf16.msra.mxu0 %v4279
  %4294 = vmatpush.bf16.msra.mxu0 %v4278
  %4295 = vmatpush.bf16.msra.mxu0 %v4277
  %4296 = vmatpush.bf16.msra.mxu0 %v4276
  %4297 = vmatpush.bf16.msra.mxu0 %v4275
  %4298 = vmatpush.bf16.msra.mxu0 %v4274
  %4299 = vmatmul.bf16.gmra.mxu0 %v4289
  %v4300 = vpop.f32.mrf.mxu0
  %v4301 = vadd.f32 0.0, %v4300
  %v4302 = vpop.f32.mrf.mxu0
  %4303 = vdwg.mxu0
  %v4318 = vunpack.c.l.b16 %v4217
  %v4319 = vunpack.c.l.b16 %v4218
  %v4320 = vunpack.c.l.b16 %v4219
  %v4321 = vunpack.c.l.b16 %v4220
  %v4322 = vunpack.c.l.b16 %v4221
  %v4323 = vunpack.c.l.b16 %v4222
  %v4324 = vunpack.c.l.b16 %v4223
  %v4325 = vunpack.c.l.b16 %v4224
  %v4326 = vunpack.c.l.b16 %v4225
  %v4327 = vunpack.c.l.b16 %v4226
  %v4328 = vunpack.c.l.b16 %v4227
  %v4329 = vunpack.c.l.b16 %v4228
  %v4330 = vunpack.c.l.b16 %v4229
  %v4331 = vunpack.c.l.b16 %v4230
  %v4332 = vpack.c.b16 %v4319, %v4318
  %v4333 = vpack.c.b16 %v4321, %v4320
  %v4334 = vpack.c.b16 %v4323, %v4322
  %v4335 = vpack.c.b16 %v4325, %v4324
  %v4336 = vpack.c.b16 %v4327, %v4326
  %v4337 = vpack.c.b16 %v4329, %v4328
  %v4338 = vpack.c.b16 %v4331, %v4330
  %v4347 = vsel %vm2776, %v4216, 0
  %4349 = vmatpush.bf16.msra.mxu0 0
  %4350 = vmatpush.bf16.msra.mxu0 %v4338
  %4351 = vmatpush.bf16.msra.mxu0 %v4337
  %4352 = vmatpush.bf16.msra.mxu0 %v4336
  %4353 = vmatpush.bf16.msra.mxu0 %v4335
  %4354 = vmatpush.bf16.msra.mxu0 %v4334
  %4355 = vmatpush.bf16.msra.mxu0 %v4333
  %4356 = vmatpush.bf16.msra.mxu0 %v4332
  %4357 = vmatmul.bf16.gmra.mxu0 %v4347
  %v4358 = vpop.f32.mrf.mxu0
  %v4359 = vadd.f32 %v4301, %v4358
  %v4360 = vpop.f32.mrf.mxu0
  %4361 = vdwg.mxu0
  %v4362 = vld [vmem:[%s1756] sm:$0xf]
  %v4363 = vld [vmem:[%s2852] sm:$0xf]
  %v4364 = vld [vmem:[%s2852 + $0x4] sm:$0xf]
  %v4365 = vld [vmem:[%s2852 + $0x8] sm:$0xf]
  %v4366 = vld [vmem:[%s2852 + $0xc] sm:$0xf]
  %v4367 = vld [vmem:[%s2852 + $0x10] sm:$0xf]
  %v4368 = vld [vmem:[%s2852 + $0x14] sm:$0xf]
  %v4369 = vld [vmem:[%s2852 + $0x18] sm:$0xf]
  %v4370 = vld [vmem:[%s2852 + $0x1c] sm:$0xf]
  %v4371 = vld [vmem:[%s2852 + $0x20] sm:$0xf]
  %v4372 = vld [vmem:[%s2852 + $0x24] sm:$0xf]
  %v4373 = vld [vmem:[%s2852 + $0x28] sm:$0xf]
  %v4374 = vld [vmem:[%s2852 + $0x2c] sm:$0xf]
  %v4375 = vld [vmem:[%s2852 + $0x30] sm:$0xf]
  %v4376 = vld [vmem:[%s2852 + $0x34] sm:$0xf]
  %v4391 = vunpack.c.l.b16 %v4363
  %v4392 = vunpack.c.l.b16 %v4364
  %v4393 = vunpack.c.l.b16 %v4365
  %v4394 = vunpack.c.l.b16 %v4366
  %v4395 = vunpack.c.l.b16 %v4367
  %v4396 = vunpack.c.l.b16 %v4368
  %v4397 = vunpack.c.l.b16 %v4369
  %v4398 = vunpack.c.l.b16 %v4370
  %v4399 = vunpack.c.l.b16 %v4371
  %v4400 = vunpack.c.l.b16 %v4372
  %v4401 = vunpack.c.l.b16 %v4373
  %v4402 = vunpack.c.l.b16 %v4374
  %v4403 = vunpack.c.l.b16 %v4375
  %v4404 = vunpack.c.l.b16 %v4376
  %v4405 = vpack.c.b16 %v4392, %v4391
  %v4406 = vpack.c.b16 %v4394, %v4393
  %v4407 = vpack.c.b16 %v4396, %v4395
  %v4408 = vpack.c.b16 %v4398, %v4397
  %v4409 = vpack.c.b16 %v4400, %v4399
  %v4410 = vpack.c.b16 %v4402, %v4401
  %v4411 = vpack.c.b16 %v4404, %v4403
  %v4420 = vsel %vm2776, %v4362, 0
  %4422 = vmatpush.bf16.msra.mxu0 0
  %4423 = vmatpush.bf16.msra.mxu0 %v4411
  %4424 = vmatpush.bf16.msra.mxu0 %v4410
  %4425 = vmatpush.bf16.msra.mxu0 %v4409
  %4426 = vmatpush.bf16.msra.mxu0 %v4408
  %4427 = vmatpush.bf16.msra.mxu0 %v4407
  %4428 = vmatpush.bf16.msra.mxu0 %v4406
  %4429 = vmatpush.bf16.msra.mxu0 %v4405
  %4430 = vmatmul.bf16.gmra.mxu0 %v4420
  %v4431 = vpop.f32.mrf.mxu0
  %v4432 = vadd.f32 0.0, %v4431
  %v4433 = vpop.f32.mrf.mxu0
  %4434 = vdwg.mxu0
  %v4435 = vadd.f32 %v4359, %v4432
  %v4436 = vld [vmem:[%s1945] sm:$0xf]
  %v4437 = vld [vmem:[%s2927] sm:$0xf]
  %v4438 = vld [vmem:[%s2927 + $0x4] sm:$0xf]
  %v4439 = vld [vmem:[%s2927 + $0x8] sm:$0xf]
  %v4440 = vld [vmem:[%s2927 + $0xc] sm:$0xf]
  %v4441 = vld [vmem:[%s2927 + $0x10] sm:$0xf]
  %v4442 = vld [vmem:[%s2927 + $0x14] sm:$0xf]
  %v4443 = vld [vmem:[%s2927 + $0x18] sm:$0xf]
  %v4444 = vld [vmem:[%s2927 + $0x1c] sm:$0xf]
  %v4445 = vld [vmem:[%s2927 + $0x20] sm:$0xf]
  %v4446 = vld [vmem:[%s2927 + $0x24] sm:$0xf]
  %v4447 = vld [vmem:[%s2927 + $0x28] sm:$0xf]
  %v4448 = vld [vmem:[%s2927 + $0x2c] sm:$0xf]
  %v4449 = vld [vmem:[%s2927 + $0x30] sm:$0xf]
  %v4450 = vld [vmem:[%s2927 + $0x34] sm:$0xf]
  %v4465 = vunpack.c.l.b16 %v4437
  %v4466 = vunpack.c.l.b16 %v4438
  %v4467 = vunpack.c.l.b16 %v4439
  %v4468 = vunpack.c.l.b16 %v4440
  %v4469 = vunpack.c.l.b16 %v4441
  %v4470 = vunpack.c.l.b16 %v4442
  %v4471 = vunpack.c.l.b16 %v4443
  %v4472 = vunpack.c.l.b16 %v4444
  %v4473 = vunpack.c.l.b16 %v4445
  %v4474 = vunpack.c.l.b16 %v4446
  %v4475 = vunpack.c.l.b16 %v4447
  %v4476 = vunpack.c.l.b16 %v4448
  %v4477 = vunpack.c.l.b16 %v4449
  %v4478 = vunpack.c.l.b16 %v4450
  %v4479 = vpack.c.b16 %v4466, %v4465
  %v4480 = vpack.c.b16 %v4468, %v4467
  %v4481 = vpack.c.b16 %v4470, %v4469
  %v4482 = vpack.c.b16 %v4472, %v4471
  %v4483 = vpack.c.b16 %v4474, %v4473
  %v4484 = vpack.c.b16 %v4476, %v4475
  %v4485 = vpack.c.b16 %v4478, %v4477
  %v4494 = vsel %vm2776, %v4436, 0
  %4496 = vmatpush.bf16.msra.mxu0 0
  %4497 = vmatpush.bf16.msra.mxu0 %v4485
  %4498 = vmatpush.bf16.msra.mxu0 %v4484
  %4499 = vmatpush.bf16.msra.mxu0 %v4483
  %4500 = vmatpush.bf16.msra.mxu0 %v4482
  %4501 = vmatpush.bf16.msra.mxu0 %v4481
  %4502 = vmatpush.bf16.msra.mxu0 %v4480
  %4503 = vmatpush.bf16.msra.mxu0 %v4479
  %4504 = vmatmul.bf16.gmra.mxu0 %v4494
  %v4505 = vpop.f32.mrf.mxu0
  %v4506 = vadd.f32 0.0, %v4505
  %v4507 = vpop.f32.mrf.mxu0
  %4508 = vdwg.mxu0
  %v4509 = vadd.f32 %v4435, %v4506
  %v4510 = vld [vmem:[%s2134] sm:$0xf]
  %v4511 = vld [vmem:[%s3002] sm:$0xf]
  %v4512 = vld [vmem:[%s3002 + $0x4] sm:$0xf]
  %v4513 = vld [vmem:[%s3002 + $0x8] sm:$0xf]
  %v4514 = vld [vmem:[%s3002 + $0xc] sm:$0xf]
  %v4515 = vld [vmem:[%s3002 + $0x10] sm:$0xf]
  %v4516 = vld [vmem:[%s3002 + $0x14] sm:$0xf]
  %v4517 = vld [vmem:[%s3002 + $0x18] sm:$0xf]
  %v4518 = vld [vmem:[%s3002 + $0x1c] sm:$0xf]
  %v4519 = vld [vmem:[%s3002 + $0x20] sm:$0xf]
  %v4520 = vld [vmem:[%s3002 + $0x24] sm:$0xf]
  %v4521 = vld [vmem:[%s3002 + $0x28] sm:$0xf]
  %v4522 = vld [vmem:[%s3002 + $0x2c] sm:$0xf]
  %v4523 = vld [vmem:[%s3002 + $0x30] sm:$0xf]
  %v4524 = vld [vmem:[%s3002 + $0x34] sm:$0xf]
  %v4539 = vunpack.c.l.b16 %v4511
  %v4540 = vunpack.c.l.b16 %v4512
  %v4541 = vunpack.c.l.b16 %v4513
  %v4542 = vunpack.c.l.b16 %v4514
  %v4543 = vunpack.c.l.b16 %v4515
  %v4544 = vunpack.c.l.b16 %v4516
  %v4545 = vunpack.c.l.b16 %v4517
  %v4546 = vunpack.c.l.b16 %v4518
  %v4547 = vunpack.c.l.b16 %v4519
  %v4548 = vunpack.c.l.b16 %v4520
  %v4549 = vunpack.c.l.b16 %v4521
  %v4550 = vunpack.c.l.b16 %v4522
  %v4551 = vunpack.c.l.b16 %v4523
  %v4552 = vunpack.c.l.b16 %v4524
  %v4553 = vpack.c.b16 %v4540, %v4539
  %v4554 = vpack.c.b16 %v4542, %v4541
  %v4555 = vpack.c.b16 %v4544, %v4543
  %v4556 = vpack.c.b16 %v4546, %v4545
  %v4557 = vpack.c.b16 %v4548, %v4547
  %v4558 = vpack.c.b16 %v4550, %v4549
  %v4559 = vpack.c.b16 %v4552, %v4551
  %v4568 = vsel %vm2776, %v4510, 0
  %4570 = vmatpush.bf16.msra.mxu0 0
  %4571 = vmatpush.bf16.msra.mxu0 %v4559
  %4572 = vmatpush.bf16.msra.mxu0 %v4558
  %4573 = vmatpush.bf16.msra.mxu0 %v4557
  %4574 = vmatpush.bf16.msra.mxu0 %v4556
  %4575 = vmatpush.bf16.msra.mxu0 %v4555
  %4576 = vmatpush.bf16.msra.mxu0 %v4554
  %4577 = vmatpush.bf16.msra.mxu0 %v4553
  %4578 = vmatmul.bf16.gmra.mxu0 %v4568
  %v4579 = vpop.f32.mrf.mxu0
  %v4580 = vadd.f32 0.0, %v4579
  %v4581 = vpop.f32.mrf.mxu0
  %4582 = vdwg.mxu0
  %v4583 = vadd.f32 %v4509, %v4580
  %v4584 = vld [vmem:[%s4] sm:$0x1]
  %v4586 = vperm.slane %v4584, 0
  %v4588 = vadd.f32 %v4583, %v4586
  %v4589 = vmax.f32 %v4588, 0.0
  %v4590 = vpack.c.bf16 %v4589, %v4589
  %s4591 = scalar_lea.vmem [#allocation3], 24
  %4592 = vst.msk [vmem:[%s4591] sm:$0xf] %vm34, %v4590
  %v4593 = vld [vmem:[%s1756] sm:$0xf]
  %v4594 = vld [vmem:[%s3] sm:$0xf]
  %v4595 = vld [vmem:[%s3 + $0x4] sm:$0xf]
  %v4596 = vld [vmem:[%s3 + $0x8] sm:$0xf]
  %v4597 = vld [vmem:[%s3 + $0xc] sm:$0xf]
  %v4598 = vld [vmem:[%s3 + $0x10] sm:$0xf]
  %v4599 = vld [vmem:[%s3 + $0x14] sm:$0xf]
  %v4600 = vld [vmem:[%s3 + $0x18] sm:$0xf]
  %v4601 = vld [vmem:[%s3 + $0x1c] sm:$0xf]
  %v4602 = vld [vmem:[%s3 + $0x20] sm:$0xf]
  %v4603 = vld [vmem:[%s3 + $0x24] sm:$0xf]
  %v4604 = vld [vmem:[%s3 + $0x28] sm:$0xf]
  %v4605 = vld [vmem:[%s3 + $0x2c] sm:$0xf]
  %v4606 = vld [vmem:[%s3 + $0x30] sm:$0xf]
  %v4607 = vld [vmem:[%s3 + $0x34] sm:$0xf]
  %v4608 = vld [vmem:[%s1945] sm:$0xf]
  %v4609 = vld [vmem:[%s2719] sm:$0xf]
  %v4610 = vld [vmem:[%s2719 + $0x4] sm:$0xf]
  %v4611 = vld [vmem:[%s2719 + $0x8] sm:$0xf]
  %v4612 = vld [vmem:[%s2719 + $0xc] sm:$0xf]
  %v4613 = vld [vmem:[%s2719 + $0x10] sm:$0xf]
  %v4614 = vld [vmem:[%s2719 + $0x14] sm:$0xf]
  %v4615 = vld [vmem:[%s2719 + $0x18] sm:$0xf]
  %v4616 = vld [vmem:[%s2719 + $0x1c] sm:$0xf]
  %v4617 = vld [vmem:[%s2719 + $0x20] sm:$0xf]
  %v4618 = vld [vmem:[%s2719 + $0x24] sm:$0xf]
  %v4619 = vld [vmem:[%s2719 + $0x28] sm:$0xf]
  %v4620 = vld [vmem:[%s2719 + $0x2c] sm:$0xf]
  %v4621 = vld [vmem:[%s2719 + $0x30] sm:$0xf]
  %v4622 = vld [vmem:[%s2719 + $0x34] sm:$0xf]
  %v4637 = vunpack.c.l.b16 %v4609
  %v4638 = vunpack.c.l.b16 %v4610
  %v4639 = vunpack.c.l.b16 %v4611
  %v4640 = vunpack.c.l.b16 %v4612
  %v4641 = vunpack.c.l.b16 %v4613
  %v4642 = vunpack.c.l.b16 %v4614
  %v4643 = vunpack.c.l.b16 %v4615
  %v4644 = vunpack.c.l.b16 %v4616
  %v4645 = vunpack.c.l.b16 %v4617
  %v4646 = vunpack.c.l.b16 %v4618
  %v4647 = vunpack.c.l.b16 %v4619
  %v4648 = vunpack.c.l.b16 %v4620
  %v4649 = vunpack.c.l.b16 %v4621
  %v4650 = vunpack.c.l.b16 %v4622
  %v4651 = vpack.c.b16 %v4638, %v4637
  %v4652 = vpack.c.b16 %v4640, %v4639
  %v4653 = vpack.c.b16 %v4642, %v4641
  %v4654 = vpack.c.b16 %v4644, %v4643
  %v4655 = vpack.c.b16 %v4646, %v4645
  %v4656 = vpack.c.b16 %v4648, %v4647
  %v4657 = vpack.c.b16 %v4650, %v4649
  %v4666 = vsel %vm2776, %v4608, 0
  %4668 = vmatpush.bf16.msra.mxu0 0
  %4669 = vmatpush.bf16.msra.mxu0 %v4657
  %4670 = vmatpush.bf16.msra.mxu0 %v4656
  %4671 = vmatpush.bf16.msra.mxu0 %v4655
  %4672 = vmatpush.bf16.msra.mxu0 %v4654
  %4673 = vmatpush.bf16.msra.mxu0 %v4653
  %4674 = vmatpush.bf16.msra.mxu0 %v4652
  %4675 = vmatpush.bf16.msra.mxu0 %v4651
  %4676 = vmatmul.bf16.gmra.mxu0 %v4666
  %v4677 = vpop.f32.mrf.mxu0
  %v4678 = vadd.f32 0.0, %v4677
  %v4679 = vpop.f32.mrf.mxu0
  %4680 = vdwg.mxu0
  %v4695 = vunpack.c.l.b16 %v4594
  %v4696 = vunpack.c.l.b16 %v4595
  %v4697 = vunpack.c.l.b16 %v4596
  %v4698 = vunpack.c.l.b16 %v4597
  %v4699 = vunpack.c.l.b16 %v4598
  %v4700 = vunpack.c.l.b16 %v4599
  %v4701 = vunpack.c.l.b16 %v4600
  %v4702 = vunpack.c.l.b16 %v4601
  %v4703 = vunpack.c.l.b16 %v4602
  %v4704 = vunpack.c.l.b16 %v4603
  %v4705 = vunpack.c.l.b16 %v4604
  %v4706 = vunpack.c.l.b16 %v4605
  %v4707 = vunpack.c.l.b16 %v4606
  %v4708 = vunpack.c.l.b16 %v4607
  %v4709 = vpack.c.b16 %v4696, %v4695
  %v4710 = vpack.c.b16 %v4698, %v4697
  %v4711 = vpack.c.b16 %v4700, %v4699
  %v4712 = vpack.c.b16 %v4702, %v4701
  %v4713 = vpack.c.b16 %v4704, %v4703
  %v4714 = vpack.c.b16 %v4706, %v4705
  %v4715 = vpack.c.b16 %v4708, %v4707
  %v4724 = vsel %vm2776, %v4593, 0
  %4726 = vmatpush.bf16.msra.mxu0 0
  %4727 = vmatpush.bf16.msra.mxu0 %v4715
  %4728 = vmatpush.bf16.msra.mxu0 %v4714
  %4729 = vmatpush.bf16.msra.mxu0 %v4713
  %4730 = vmatpush.bf16.msra.mxu0 %v4712
  %4731 = vmatpush.bf16.msra.mxu0 %v4711
  %4732 = vmatpush.bf16.msra.mxu0 %v4710
  %4733 = vmatpush.bf16.msra.mxu0 %v4709
  %4734 = vmatmul.bf16.gmra.mxu0 %v4724
  %v4735 = vpop.f32.mrf.mxu0
  %v4736 = vadd.f32 %v4678, %v4735
  %v4737 = vpop.f32.mrf.mxu0
  %4738 = vdwg.mxu0
  %v4739 = vld [vmem:[%s2134] sm:$0xf]
  %v4740 = vld [vmem:[%s2852] sm:$0xf]
  %v4741 = vld [vmem:[%s2852 + $0x4] sm:$0xf]
  %v4742 = vld [vmem:[%s2852 + $0x8] sm:$0xf]
  %v4743 = vld [vmem:[%s2852 + $0xc] sm:$0xf]
  %v4744 = vld [vmem:[%s2852 + $0x10] sm:$0xf]
  %v4745 = vld [vmem:[%s2852 + $0x14] sm:$0xf]
  %v4746 = vld [vmem:[%s2852 + $0x18] sm:$0xf]
  %v4747 = vld [vmem:[%s2852 + $0x1c] sm:$0xf]
  %v4748 = vld [vmem:[%s2852 + $0x20] sm:$0xf]
  %v4749 = vld [vmem:[%s2852 + $0x24] sm:$0xf]
  %v4750 = vld [vmem:[%s2852 + $0x28] sm:$0xf]
  %v4751 = vld [vmem:[%s2852 + $0x2c] sm:$0xf]
  %v4752 = vld [vmem:[%s2852 + $0x30] sm:$0xf]
  %v4753 = vld [vmem:[%s2852 + $0x34] sm:$0xf]
  %v4768 = vunpack.c.l.b16 %v4740
  %v4769 = vunpack.c.l.b16 %v4741
  %v4770 = vunpack.c.l.b16 %v4742
  %v4771 = vunpack.c.l.b16 %v4743
  %v4772 = vunpack.c.l.b16 %v4744
  %v4773 = vunpack.c.l.b16 %v4745
  %v4774 = vunpack.c.l.b16 %v4746
  %v4775 = vunpack.c.l.b16 %v4747
  %v4776 = vunpack.c.l.b16 %v4748
  %v4777 = vunpack.c.l.b16 %v4749
  %v4778 = vunpack.c.l.b16 %v4750
  %v4779 = vunpack.c.l.b16 %v4751
  %v4780 = vunpack.c.l.b16 %v4752
  %v4781 = vunpack.c.l.b16 %v4753
  %v4782 = vpack.c.b16 %v4769, %v4768
  %v4783 = vpack.c.b16 %v4771, %v4770
  %v4784 = vpack.c.b16 %v4773, %v4772
  %v4785 = vpack.c.b16 %v4775, %v4774
  %v4786 = vpack.c.b16 %v4777, %v4776
  %v4787 = vpack.c.b16 %v4779, %v4778
  %v4788 = vpack.c.b16 %v4781, %v4780
  %v4797 = vsel %vm2776, %v4739, 0
  %4799 = vmatpush.bf16.msra.mxu0 0
  %4800 = vmatpush.bf16.msra.mxu0 %v4788
  %4801 = vmatpush.bf16.msra.mxu0 %v4787
  %4802 = vmatpush.bf16.msra.mxu0 %v4786
  %4803 = vmatpush.bf16.msra.mxu0 %v4785
  %4804 = vmatpush.bf16.msra.mxu0 %v4784
  %4805 = vmatpush.bf16.msra.mxu0 %v4783
  %4806 = vmatpush.bf16.msra.mxu0 %v4782
  %4807 = vmatmul.bf16.gmra.mxu0 %v4797
  %v4808 = vpop.f32.mrf.mxu0
  %v4809 = vadd.f32 0.0, %v4808
  %v4810 = vpop.f32.mrf.mxu0
  %4811 = vdwg.mxu0
  %v4812 = vadd.f32 %v4736, %v4809
  %v4813 = vld [vmem:[%s2323] sm:$0xf]
  %v4814 = vld [vmem:[%s2927] sm:$0xf]
  %v4815 = vld [vmem:[%s2927 + $0x4] sm:$0xf]
  %v4816 = vld [vmem:[%s2927 + $0x8] sm:$0xf]
  %v4817 = vld [vmem:[%s2927 + $0xc] sm:$0xf]
  %v4818 = vld [vmem:[%s2927 + $0x10] sm:$0xf]
  %v4819 = vld [vmem:[%s2927 + $0x14] sm:$0xf]
  %v4820 = vld [vmem:[%s2927 + $0x18] sm:$0xf]
  %v4821 = vld [vmem:[%s2927 + $0x1c] sm:$0xf]
  %v4822 = vld [vmem:[%s2927 + $0x20] sm:$0xf]
  %v4823 = vld [vmem:[%s2927 + $0x24] sm:$0xf]
  %v4824 = vld [vmem:[%s2927 + $0x28] sm:$0xf]
  %v4825 = vld [vmem:[%s2927 + $0x2c] sm:$0xf]
  %v4826 = vld [vmem:[%s2927 + $0x30] sm:$0xf]
  %v4827 = vld [vmem:[%s2927 + $0x34] sm:$0xf]
  %v4842 = vunpack.c.l.b16 %v4814
  %v4843 = vunpack.c.l.b16 %v4815
  %v4844 = vunpack.c.l.b16 %v4816
  %v4845 = vunpack.c.l.b16 %v4817
  %v4846 = vunpack.c.l.b16 %v4818
  %v4847 = vunpack.c.l.b16 %v4819
  %v4848 = vunpack.c.l.b16 %v4820
  %v4849 = vunpack.c.l.b16 %v4821
  %v4850 = vunpack.c.l.b16 %v4822
  %v4851 = vunpack.c.l.b16 %v4823
  %v4852 = vunpack.c.l.b16 %v4824
  %v4853 = vunpack.c.l.b16 %v4825
  %v4854 = vunpack.c.l.b16 %v4826
  %v4855 = vunpack.c.l.b16 %v4827
  %v4856 = vpack.c.b16 %v4843, %v4842
  %v4857 = vpack.c.b16 %v4845, %v4844
  %v4858 = vpack.c.b16 %v4847, %v4846
  %v4859 = vpack.c.b16 %v4849, %v4848
  %v4860 = vpack.c.b16 %v4851, %v4850
  %v4861 = vpack.c.b16 %v4853, %v4852
  %v4862 = vpack.c.b16 %v4855, %v4854
  %v4871 = vsel %vm2776, %v4813, 0
  %4873 = vmatpush.bf16.msra.mxu0 0
  %4874 = vmatpush.bf16.msra.mxu0 %v4862
  %4875 = vmatpush.bf16.msra.mxu0 %v4861
  %4876 = vmatpush.bf16.msra.mxu0 %v4860
  %4877 = vmatpush.bf16.msra.mxu0 %v4859
  %4878 = vmatpush.bf16.msra.mxu0 %v4858
  %4879 = vmatpush.bf16.msra.mxu0 %v4857
  %4880 = vmatpush.bf16.msra.mxu0 %v4856
  %4881 = vmatmul.bf16.gmra.mxu0 %v4871
  %v4882 = vpop.f32.mrf.mxu0
  %v4883 = vadd.f32 0.0, %v4882
  %v4884 = vpop.f32.mrf.mxu0
  %4885 = vdwg.mxu0
  %v4886 = vadd.f32 %v4812, %v4883
  %v4887 = vld [vmem:[%s2512] sm:$0xf]
  %v4888 = vld [vmem:[%s3002] sm:$0xf]
  %v4889 = vld [vmem:[%s3002 + $0x4] sm:$0xf]
  %v4890 = vld [vmem:[%s3002 + $0x8] sm:$0xf]
  %v4891 = vld [vmem:[%s3002 + $0xc] sm:$0xf]
  %v4892 = vld [vmem:[%s3002 + $0x10] sm:$0xf]
  %v4893 = vld [vmem:[%s3002 + $0x14] sm:$0xf]
  %v4894 = vld [vmem:[%s3002 + $0x18] sm:$0xf]
  %v4895 = vld [vmem:[%s3002 + $0x1c] sm:$0xf]
  %v4896 = vld [vmem:[%s3002 + $0x20] sm:$0xf]
  %v4897 = vld [vmem:[%s3002 + $0x24] sm:$0xf]
  %v4898 = vld [vmem:[%s3002 + $0x28] sm:$0xf]
  %v4899 = vld [vmem:[%s3002 + $0x2c] sm:$0xf]
  %v4900 = vld [vmem:[%s3002 + $0x30] sm:$0xf]
  %v4901 = vld [vmem:[%s3002 + $0x34] sm:$0xf]
  %v4916 = vunpack.c.l.b16 %v4888
  %v4917 = vunpack.c.l.b16 %v4889
  %v4918 = vunpack.c.l.b16 %v4890
  %v4919 = vunpack.c.l.b16 %v4891
  %v4920 = vunpack.c.l.b16 %v4892
  %v4921 = vunpack.c.l.b16 %v4893
  %v4922 = vunpack.c.l.b16 %v4894
  %v4923 = vunpack.c.l.b16 %v4895
  %v4924 = vunpack.c.l.b16 %v4896
  %v4925 = vunpack.c.l.b16 %v4897
  %v4926 = vunpack.c.l.b16 %v4898
  %v4927 = vunpack.c.l.b16 %v4899
  %v4928 = vunpack.c.l.b16 %v4900
  %v4929 = vunpack.c.l.b16 %v4901
  %v4930 = vpack.c.b16 %v4917, %v4916
  %v4931 = vpack.c.b16 %v4919, %v4918
  %v4932 = vpack.c.b16 %v4921, %v4920
  %v4933 = vpack.c.b16 %v4923, %v4922
  %v4934 = vpack.c.b16 %v4925, %v4924
  %v4935 = vpack.c.b16 %v4927, %v4926
  %v4936 = vpack.c.b16 %v4929, %v4928
  %v4945 = vsel %vm2776, %v4887, 0
  %4947 = vmatpush.bf16.msra.mxu0 0
  %4948 = vmatpush.bf16.msra.mxu0 %v4936
  %4949 = vmatpush.bf16.msra.mxu0 %v4935
  %4950 = vmatpush.bf16.msra.mxu0 %v4934
  %4951 = vmatpush.bf16.msra.mxu0 %v4933
  %4952 = vmatpush.bf16.msra.mxu0 %v4932
  %4953 = vmatpush.bf16.msra.mxu0 %v4931
  %4954 = vmatpush.bf16.msra.mxu0 %v4930
  %4955 = vmatmul.bf16.gmra.mxu0 %v4945
  %v4956 = vpop.f32.mrf.mxu0
  %v4957 = vadd.f32 0.0, %v4956
  %v4958 = vpop.f32.mrf.mxu0
  %4959 = vdwg.mxu0
  %v4960 = vadd.f32 %v4886, %v4957
  %v4961 = vld [vmem:[%s4] sm:$0x1]
  %v4963 = vperm.slane %v4961, 0
  %v4965 = vadd.f32 %v4960, %v4963
  %v4966 = vmax.f32 %v4965, 0.0
  %v4967 = vpack.c.bf16 %v4966, %v4966
  %s4968 = scalar_lea.vmem [#allocation3], 28
  %4969 = vst.msk [vmem:[%s4968] sm:$0xf] %vm34, %v4967
  %v4970 = vld [vmem:[%s2134] sm:$0xf]
  %v4971 = vld [vmem:[%s3] sm:$0xf]
  %v4972 = vld [vmem:[%s3 + $0x4] sm:$0xf]
  %v4973 = vld [vmem:[%s3 + $0x8] sm:$0xf]
  %v4974 = vld [vmem:[%s3 + $0xc] sm:$0xf]
  %v4975 = vld [vmem:[%s3 + $0x10] sm:$0xf]
  %v4976 = vld [vmem:[%s3 + $0x14] sm:$0xf]
  %v4977 = vld [vmem:[%s3 + $0x18] sm:$0xf]
  %v4978 = vld [vmem:[%s3 + $0x1c] sm:$0xf]
  %v4979 = vld [vmem:[%s3 + $0x20] sm:$0xf]
  %v4980 = vld [vmem:[%s3 + $0x24] sm:$0xf]
  %v4981 = vld [vmem:[%s3 + $0x28] sm:$0xf]
  %v4982 = vld [vmem:[%s3 + $0x2c] sm:$0xf]
  %v4983 = vld [vmem:[%s3 + $0x30] sm:$0xf]
  %v4984 = vld [vmem:[%s3 + $0x34] sm:$0xf]
  %v4985 = vld [vmem:[%s2323] sm:$0xf]
  %v4986 = vld [vmem:[%s2719] sm:$0xf]
  %v4987 = vld [vmem:[%s2719 + $0x4] sm:$0xf]
  %v4988 = vld [vmem:[%s2719 + $0x8] sm:$0xf]
  %v4989 = vld [vmem:[%s2719 + $0xc] sm:$0xf]
  %v4990 = vld [vmem:[%s2719 + $0x10] sm:$0xf]
  %v4991 = vld [vmem:[%s2719 + $0x14] sm:$0xf]
  %v4992 = vld [vmem:[%s2719 + $0x18] sm:$0xf]
  %v4993 = vld [vmem:[%s2719 + $0x1c] sm:$0xf]
  %v4994 = vld [vmem:[%s2719 + $0x20] sm:$0xf]
  %v4995 = vld [vmem:[%s2719 + $0x24] sm:$0xf]
  %v4996 = vld [vmem:[%s2719 + $0x28] sm:$0xf]
  %v4997 = vld [vmem:[%s2719 + $0x2c] sm:$0xf]
  %v4998 = vld [vmem:[%s2719 + $0x30] sm:$0xf]
  %v4999 = vld [vmem:[%s2719 + $0x34] sm:$0xf]
  %v5014 = vunpack.c.l.b16 %v4986
  %v5015 = vunpack.c.l.b16 %v4987
  %v5016 = vunpack.c.l.b16 %v4988
  %v5017 = vunpack.c.l.b16 %v4989
  %v5018 = vunpack.c.l.b16 %v4990
  %v5019 = vunpack.c.l.b16 %v4991
  %v5020 = vunpack.c.l.b16 %v4992
  %v5021 = vunpack.c.l.b16 %v4993
  %v5022 = vunpack.c.l.b16 %v4994
  %v5023 = vunpack.c.l.b16 %v4995
  %v5024 = vunpack.c.l.b16 %v4996
  %v5025 = vunpack.c.l.b16 %v4997
  %v5026 = vunpack.c.l.b16 %v4998
  %v5027 = vunpack.c.l.b16 %v4999
  %v5028 = vpack.c.b16 %v5015, %v5014
  %v5029 = vpack.c.b16 %v5017, %v5016
  %v5030 = vpack.c.b16 %v5019, %v5018
  %v5031 = vpack.c.b16 %v5021, %v5020
  %v5032 = vpack.c.b16 %v5023, %v5022
  %v5033 = vpack.c.b16 %v5025, %v5024
  %v5034 = vpack.c.b16 %v5027, %v5026
  %v5043 = vsel %vm2776, %v4985, 0
  %5045 = vmatpush.bf16.msra.mxu0 0
  %5046 = vmatpush.bf16.msra.mxu0 %v5034
  %5047 = vmatpush.bf16.msra.mxu0 %v5033
  %5048 = vmatpush.bf16.msra.mxu0 %v5032
  %5049 = vmatpush.bf16.msra.mxu0 %v5031
  %5050 = vmatpush.bf16.msra.mxu0 %v5030
  %5051 = vmatpush.bf16.msra.mxu0 %v5029
  %5052 = vmatpush.bf16.msra.mxu0 %v5028
  %5053 = vmatmul.bf16.gmra.mxu0 %v5043
  %v5054 = vpop.f32.mrf.mxu0
  %v5055 = vadd.f32 0.0, %v5054
  %v5056 = vpop.f32.mrf.mxu0
  %5057 = vdwg.mxu0
  %v5072 = vunpack.c.l.b16 %v4971
  %v5073 = vunpack.c.l.b16 %v4972
  %v5074 = vunpack.c.l.b16 %v4973
  %v5075 = vunpack.c.l.b16 %v4974
  %v5076 = vunpack.c.l.b16 %v4975
  %v5077 = vunpack.c.l.b16 %v4976
  %v5078 = vunpack.c.l.b16 %v4977
  %v5079 = vunpack.c.l.b16 %v4978
  %v5080 = vunpack.c.l.b16 %v4979
  %v5081 = vunpack.c.l.b16 %v4980
  %v5082 = vunpack.c.l.b16 %v4981
  %v5083 = vunpack.c.l.b16 %v4982
  %v5084 = vunpack.c.l.b16 %v4983
  %v5085 = vunpack.c.l.b16 %v4984
  %v5086 = vpack.c.b16 %v5073, %v5072
  %v5087 = vpack.c.b16 %v5075, %v5074
  %v5088 = vpack.c.b16 %v5077, %v5076
  %v5089 = vpack.c.b16 %v5079, %v5078
  %v5090 = vpack.c.b16 %v5081, %v5080
  %v5091 = vpack.c.b16 %v5083, %v5082
  %v5092 = vpack.c.b16 %v5085, %v5084
  %v5101 = vsel %vm2776, %v4970, 0
  %5103 = vmatpush.bf16.msra.mxu0 0
  %5104 = vmatpush.bf16.msra.mxu0 %v5092
  %5105 = vmatpush.bf16.msra.mxu0 %v5091
  %5106 = vmatpush.bf16.msra.mxu0 %v5090
  %5107 = vmatpush.bf16.msra.mxu0 %v5089
  %5108 = vmatpush.bf16.msra.mxu0 %v5088
  %5109 = vmatpush.bf16.msra.mxu0 %v5087
  %5110 = vmatpush.bf16.msra.mxu0 %v5086
  %5111 = vmatmul.bf16.gmra.mxu0 %v5101
  %v5112 = vpop.f32.mrf.mxu0
  %v5113 = vadd.f32 %v5055, %v5112
  %v5114 = vpop.f32.mrf.mxu0
  %5115 = vdwg.mxu0
  %v5116 = vld [vmem:[%s2512] sm:$0xf]
  %v5117 = vld [vmem:[%s2852] sm:$0xf]
  %v5118 = vld [vmem:[%s2852 + $0x4] sm:$0xf]
  %v5119 = vld [vmem:[%s2852 + $0x8] sm:$0xf]
  %v5120 = vld [vmem:[%s2852 + $0xc] sm:$0xf]
  %v5121 = vld [vmem:[%s2852 + $0x10] sm:$0xf]
  %v5122 = vld [vmem:[%s2852 + $0x14] sm:$0xf]
  %v5123 = vld [vmem:[%s2852 + $0x18] sm:$0xf]
  %v5124 = vld [vmem:[%s2852 + $0x1c] sm:$0xf]
  %v5125 = vld [vmem:[%s2852 + $0x20] sm:$0xf]
  %v5126 = vld [vmem:[%s2852 + $0x24] sm:$0xf]
  %v5127 = vld [vmem:[%s2852 + $0x28] sm:$0xf]
  %v5128 = vld [vmem:[%s2852 + $0x2c] sm:$0xf]
  %v5129 = vld [vmem:[%s2852 + $0x30] sm:$0xf]
  %v5130 = vld [vmem:[%s2852 + $0x34] sm:$0xf]
  %v5145 = vunpack.c.l.b16 %v5117
  %v5146 = vunpack.c.l.b16 %v5118
  %v5147 = vunpack.c.l.b16 %v5119
  %v5148 = vunpack.c.l.b16 %v5120
  %v5149 = vunpack.c.l.b16 %v5121
  %v5150 = vunpack.c.l.b16 %v5122
  %v5151 = vunpack.c.l.b16 %v5123
  %v5152 = vunpack.c.l.b16 %v5124
  %v5153 = vunpack.c.l.b16 %v5125
  %v5154 = vunpack.c.l.b16 %v5126
  %v5155 = vunpack.c.l.b16 %v5127
  %v5156 = vunpack.c.l.b16 %v5128
  %v5157 = vunpack.c.l.b16 %v5129
  %v5158 = vunpack.c.l.b16 %v5130
  %v5159 = vpack.c.b16 %v5146, %v5145
  %v5160 = vpack.c.b16 %v5148, %v5147
  %v5161 = vpack.c.b16 %v5150, %v5149
  %v5162 = vpack.c.b16 %v5152, %v5151
  %v5163 = vpack.c.b16 %v5154, %v5153
  %v5164 = vpack.c.b16 %v5156, %v5155
  %v5165 = vpack.c.b16 %v5158, %v5157
  %v5174 = vsel %vm2776, %v5116, 0
  %5176 = vmatpush.bf16.msra.mxu0 0
  %5177 = vmatpush.bf16.msra.mxu0 %v5165
  %5178 = vmatpush.bf16.msra.mxu0 %v5164
  %5179 = vmatpush.bf16.msra.mxu0 %v5163
  %5180 = vmatpush.bf16.msra.mxu0 %v5162
  %5181 = vmatpush.bf16.msra.mxu0 %v5161
  %5182 = vmatpush.bf16.msra.mxu0 %v5160
  %5183 = vmatpush.bf16.msra.mxu0 %v5159
  %5184 = vmatmul.bf16.gmra.mxu0 %v5174
  %v5185 = vpop.f32.mrf.mxu0
  %v5186 = vadd.f32 0.0, %v5185
  %v5187 = vpop.f32.mrf.mxu0
  %5188 = vdwg.mxu0
  %v5189 = vadd.f32 %v5113, %v5186
  %v5190 = vld [vmem:[%s2701] sm:$0xf]
  %v5191 = vld [vmem:[%s2927] sm:$0xf]
  %v5192 = vld [vmem:[%s2927 + $0x4] sm:$0xf]
  %v5193 = vld [vmem:[%s2927 + $0x8] sm:$0xf]
  %v5194 = vld [vmem:[%s2927 + $0xc] sm:$0xf]
  %v5195 = vld [vmem:[%s2927 + $0x10] sm:$0xf]
  %v5196 = vld [vmem:[%s2927 + $0x14] sm:$0xf]
  %v5197 = vld [vmem:[%s2927 + $0x18] sm:$0xf]
  %v5198 = vld [vmem:[%s2927 + $0x1c] sm:$0xf]
  %v5199 = vld [vmem:[%s2927 + $0x20] sm:$0xf]
  %v5200 = vld [vmem:[%s2927 + $0x24] sm:$0xf]
  %v5201 = vld [vmem:[%s2927 + $0x28] sm:$0xf]
  %v5202 = vld [vmem:[%s2927 + $0x2c] sm:$0xf]
  %v5203 = vld [vmem:[%s2927 + $0x30] sm:$0xf]
  %v5204 = vld [vmem:[%s2927 + $0x34] sm:$0xf]
  %v5219 = vunpack.c.l.b16 %v5191
  %v5220 = vunpack.c.l.b16 %v5192
  %v5221 = vunpack.c.l.b16 %v5193
  %v5222 = vunpack.c.l.b16 %v5194
  %v5223 = vunpack.c.l.b16 %v5195
  %v5224 = vunpack.c.l.b16 %v5196
  %v5225 = vunpack.c.l.b16 %v5197
  %v5226 = vunpack.c.l.b16 %v5198
  %v5227 = vunpack.c.l.b16 %v5199
  %v5228 = vunpack.c.l.b16 %v5200
  %v5229 = vunpack.c.l.b16 %v5201
  %v5230 = vunpack.c.l.b16 %v5202
  %v5231 = vunpack.c.l.b16 %v5203
  %v5232 = vunpack.c.l.b16 %v5204
  %v5233 = vpack.c.b16 %v5220, %v5219
  %v5234 = vpack.c.b16 %v5222, %v5221
  %v5235 = vpack.c.b16 %v5224, %v5223
  %v5236 = vpack.c.b16 %v5226, %v5225
  %v5237 = vpack.c.b16 %v5228, %v5227
  %v5238 = vpack.c.b16 %v5230, %v5229
  %v5239 = vpack.c.b16 %v5232, %v5231
  %v5248 = vsel %vm2776, %v5190, 0
  %5250 = vmatpush.bf16.msra.mxu0 0
  %5251 = vmatpush.bf16.msra.mxu0 %v5239
  %5252 = vmatpush.bf16.msra.mxu0 %v5238
  %5253 = vmatpush.bf16.msra.mxu0 %v5237
  %5254 = vmatpush.bf16.msra.mxu0 %v5236
  %5255 = vmatpush.bf16.msra.mxu0 %v5235
  %5256 = vmatpush.bf16.msra.mxu0 %v5234
  %5257 = vmatpush.bf16.msra.mxu0 %v5233
  %5258 = vmatmul.bf16.gmra.mxu0 %v5248
  %v5259 = vpop.f32.mrf.mxu0
  %v5260 = vadd.f32 0.0, %v5259
  %v5261 = vpop.f32.mrf.mxu0
  %5262 = vdwg.mxu0
  %v5263 = vadd.f32 %v5189, %v5260
  %v5264 = vld [vmem:[%s38] sm:$0xf]
  %v5265 = vld [vmem:[%s3002] sm:$0xf]
  %v5266 = vld [vmem:[%s3002 + $0x4] sm:$0xf]
  %v5267 = vld [vmem:[%s3002 + $0x8] sm:$0xf]
  %v5268 = vld [vmem:[%s3002 + $0xc] sm:$0xf]
  %v5269 = vld [vmem:[%s3002 + $0x10] sm:$0xf]
  %v5270 = vld [vmem:[%s3002 + $0x14] sm:$0xf]
  %v5271 = vld [vmem:[%s3002 + $0x18] sm:$0xf]
  %v5272 = vld [vmem:[%s3002 + $0x1c] sm:$0xf]
  %v5273 = vld [vmem:[%s3002 + $0x20] sm:$0xf]
  %v5274 = vld [vmem:[%s3002 + $0x24] sm:$0xf]
  %v5275 = vld [vmem:[%s3002 + $0x28] sm:$0xf]
  %v5276 = vld [vmem:[%s3002 + $0x2c] sm:$0xf]
  %v5277 = vld [vmem:[%s3002 + $0x30] sm:$0xf]
  %v5278 = vld [vmem:[%s3002 + $0x34] sm:$0xf]
  %v5293 = vunpack.c.l.b16 %v5265
  %v5294 = vunpack.c.l.b16 %v5266
  %v5295 = vunpack.c.l.b16 %v5267
  %v5296 = vunpack.c.l.b16 %v5268
  %v5297 = vunpack.c.l.b16 %v5269
  %v5298 = vunpack.c.l.b16 %v5270
  %v5299 = vunpack.c.l.b16 %v5271
  %v5300 = vunpack.c.l.b16 %v5272
  %v5301 = vunpack.c.l.b16 %v5273
  %v5302 = vunpack.c.l.b16 %v5274
  %v5303 = vunpack.c.l.b16 %v5275
  %v5304 = vunpack.c.l.b16 %v5276
  %v5305 = vunpack.c.l.b16 %v5277
  %v5306 = vunpack.c.l.b16 %v5278
  %v5307 = vpack.c.b16 %v5294, %v5293
  %v5308 = vpack.c.b16 %v5296, %v5295
  %v5309 = vpack.c.b16 %v5298, %v5297
  %v5310 = vpack.c.b16 %v5300, %v5299
  %v5311 = vpack.c.b16 %v5302, %v5301
  %v5312 = vpack.c.b16 %v5304, %v5303
  %v5313 = vpack.c.b16 %v5306, %v5305
  %v5322 = vsel %vm2776, %v5264, 0
  %5324 = vmatpush.bf16.msra.mxu0 0
  %5325 = vmatpush.bf16.msra.mxu0 %v5313
  %5326 = vmatpush.bf16.msra.mxu0 %v5312
  %5327 = vmatpush.bf16.msra.mxu0 %v5311
  %5328 = vmatpush.bf16.msra.mxu0 %v5310
  %5329 = vmatpush.bf16.msra.mxu0 %v5309
  %5330 = vmatpush.bf16.msra.mxu0 %v5308
  %5331 = vmatpush.bf16.msra.mxu0 %v5307
  %5332 = vmatmul.bf16.gmra.mxu0 %v5322
  %v5333 = vpop.f32.mrf.mxu0
  %v5334 = vadd.f32 0.0, %v5333
  %v5335 = vpop.f32.mrf.mxu0
  %5336 = vdwg.mxu0
  %v5337 = vadd.f32 %v5263, %v5334
  %v5338 = vld [vmem:[%s4] sm:$0x1]
  %v5340 = vperm.slane %v5338, 0
  %v5342 = vadd.f32 %v5337, %v5340
  %v5343 = vmax.f32 %v5342, 0.0
  %v5344 = vpack.c.bf16 %v5343, %v5343
  %s5345 = scalar_lea.vmem [#allocation3], 32
  %5346 = vst.msk [vmem:[%s5345] sm:$0xf] %vm34, %v5344
  %v5347 = vld [vmem:[#allocation3] sm:$0xf]
  %v5348 = vld [vmem:[%s5] sm:$0xf]
  %v5349 = vld [vmem:[%s5 + $0x4] sm:$0xf]
  %v5350 = vld [vmem:[%s5 + $0x8] sm:$0xf]
  %v5351 = vld [vmem:[%s5 + $0xc] sm:$0xf]
  %v5352 = vld [vmem:[%s5 + $0x10] sm:$0xf]
  %v5353 = vld [vmem:[%s5 + $0x14] sm:$0xf]
  %v5354 = vld [vmem:[%s5 + $0x18] sm:$0xf]
  %v5355 = vld [vmem:[%s5 + $0x1c] sm:$0xf]
  %v5356 = vld [vmem:[%s5 + $0x20] sm:$0xf]
  %v5357 = vld [vmem:[%s5 + $0x24] sm:$0xf]
  %v5358 = vld [vmem:[%s5 + $0x28] sm:$0xf]
  %v5359 = vld [vmem:[%s5 + $0x2c] sm:$0xf]
  %v5360 = vld [vmem:[%s5 + $0x30] sm:$0xf]
  %v5361 = vld [vmem:[%s5 + $0x34] sm:$0xf]
  %v5362 = vld [vmem:[%s43] sm:$0xf]
  %s5363 = scalar_lea.vmem %s5, 56
  %v5364 = vld [vmem:[%s5363] sm:$0xf]
  %v5365 = vld [vmem:[%s5363 + $0x4] sm:$0xf]
  %v5366 = vld [vmem:[%s5363 + $0x8] sm:$0xf]
  %v5367 = vld [vmem:[%s5363 + $0xc] sm:$0xf]
  %v5368 = vld [vmem:[%s5363 + $0x10] sm:$0xf]
  %v5369 = vld [vmem:[%s5363 + $0x14] sm:$0xf]
  %v5370 = vld [vmem:[%s5363 + $0x18] sm:$0xf]
  %v5371 = vld [vmem:[%s5363 + $0x1c] sm:$0xf]
  %v5372 = vld [vmem:[%s5363 + $0x20] sm:$0xf]
  %v5373 = vld [vmem:[%s5363 + $0x24] sm:$0xf]
  %v5374 = vld [vmem:[%s5363 + $0x28] sm:$0xf]
  %v5375 = vld [vmem:[%s5363 + $0x2c] sm:$0xf]
  %v5376 = vld [vmem:[%s5363 + $0x30] sm:$0xf]
  %v5377 = vld [vmem:[%s5363 + $0x34] sm:$0xf]
  %v5392 = vunpack.c.l.b16 %v5364
  %v5393 = vunpack.c.l.b16 %v5365
  %v5394 = vunpack.c.l.b16 %v5366
  %v5395 = vunpack.c.l.b16 %v5367
  %v5396 = vunpack.c.l.b16 %v5368
  %v5397 = vunpack.c.l.b16 %v5369
  %v5398 = vunpack.c.l.b16 %v5370
  %v5399 = vunpack.c.l.b16 %v5371
  %v5400 = vunpack.c.l.b16 %v5372
  %v5401 = vunpack.c.l.b16 %v5373
  %v5402 = vunpack.c.l.b16 %v5374
  %v5403 = vunpack.c.l.b16 %v5375
  %v5404 = vunpack.c.l.b16 %v5376
  %v5405 = vunpack.c.l.b16 %v5377
  %v5406 = vpack.c.b16 %v5393, %v5392
  %v5407 = vpack.c.b16 %v5395, %v5394
  %v5408 = vpack.c.b16 %v5397, %v5396
  %v5409 = vpack.c.b16 %v5399, %v5398
  %v5410 = vpack.c.b16 %v5401, %v5400
  %v5411 = vpack.c.b16 %v5403, %v5402
  %v5412 = vpack.c.b16 %v5405, %v5404
  %v5421 = vsel %vm2776, %v5362, 0
  %5423 = vmatpush.bf16.msra.mxu0 0
  %5424 = vmatpush.bf16.msra.mxu0 %v5412
  %5425 = vmatpush.bf16.msra.mxu0 %v5411
  %5426 = vmatpush.bf16.msra.mxu0 %v5410
  %5427 = vmatpush.bf16.msra.mxu0 %v5409
  %5428 = vmatpush.bf16.msra.mxu0 %v5408
  %5429 = vmatpush.bf16.msra.mxu0 %v5407
  %5430 = vmatpush.bf16.msra.mxu0 %v5406
  %5431 = vmatmul.bf16.gmra.mxu0 %v5421
  %v5432 = vpop.f32.mrf.mxu0
  %v5433 = vadd.f32 0.0, %v5432
  %v5434 = vpop.f32.mrf.mxu0
  %5435 = vdwg.mxu0
  %v5450 = vunpack.c.l.b16 %v5348
  %v5451 = vunpack.c.l.b16 %v5349
  %v5452 = vunpack.c.l.b16 %v5350
  %v5453 = vunpack.c.l.b16 %v5351
  %v5454 = vunpack.c.l.b16 %v5352
  %v5455 = vunpack.c.l.b16 %v5353
  %v5456 = vunpack.c.l.b16 %v5354
  %v5457 = vunpack.c.l.b16 %v5355
  %v5458 = vunpack.c.l.b16 %v5356
  %v5459 = vunpack.c.l.b16 %v5357
  %v5460 = vunpack.c.l.b16 %v5358
  %v5461 = vunpack.c.l.b16 %v5359
  %v5462 = vunpack.c.l.b16 %v5360
  %v5463 = vunpack.c.l.b16 %v5361
  %v5464 = vpack.c.b16 %v5451, %v5450
  %v5465 = vpack.c.b16 %v5453, %v5452
  %v5466 = vpack.c.b16 %v5455, %v5454
  %v5467 = vpack.c.b16 %v5457, %v5456
  %v5468 = vpack.c.b16 %v5459, %v5458
  %v5469 = vpack.c.b16 %v5461, %v5460
  %v5470 = vpack.c.b16 %v5463, %v5462
  %v5479 = vsel %vm2776, %v5347, 0
  %5481 = vmatpush.bf16.msra.mxu0 0
  %5482 = vmatpush.bf16.msra.mxu0 %v5470
  %5483 = vmatpush.bf16.msra.mxu0 %v5469
  %5484 = vmatpush.bf16.msra.mxu0 %v5468
  %5485 = vmatpush.bf16.msra.mxu0 %v5467
  %5486 = vmatpush.bf16.msra.mxu0 %v5466
  %5487 = vmatpush.bf16.msra.mxu0 %v5465
  %5488 = vmatpush.bf16.msra.mxu0 %v5464
  %5489 = vmatmul.bf16.gmra.mxu0 %v5479
  %v5490 = vpop.f32.mrf.mxu0
  %v5491 = vadd.f32 %v5433, %v5490
  %v5492 = vpop.f32.mrf.mxu0
  %5493 = vdwg.mxu0
  %v5494 = vld [vmem:[%s3083] sm:$0xf]
  %s5495 = scalar_lea.vmem %s5, 112
  %v5496 = vld [vmem:[%s5495] sm:$0xf]
  %v5497 = vld [vmem:[%s5495 + $0x4] sm:$0xf]
  %v5498 = vld [vmem:[%s5495 + $0x8] sm:$0xf]
  %v5499 = vld [vmem:[%s5495 + $0xc] sm:$0xf]
  %v5500 = vld [vmem:[%s5495 + $0x10] sm:$0xf]
  %v5501 = vld [vmem:[%s5495 + $0x14] sm:$0xf]
  %v5502 = vld [vmem:[%s5495 + $0x18] sm:$0xf]
  %v5503 = vld [vmem:[%s5495 + $0x1c] sm:$0xf]
  %v5504 = vld [vmem:[%s5495 + $0x20] sm:$0xf]
  %v5505 = vld [vmem:[%s5495 + $0x24] sm:$0xf]
  %v5506 = vld [vmem:[%s5495 + $0x28] sm:$0xf]
  %v5507 = vld [vmem:[%s5495 + $0x2c] sm:$0xf]
  %v5508 = vld [vmem:[%s5495 + $0x30] sm:$0xf]
  %v5509 = vld [vmem:[%s5495 + $0x34] sm:$0xf]
  %v5524 = vunpack.c.l.b16 %v5496
  %v5525 = vunpack.c.l.b16 %v5497
  %v5526 = vunpack.c.l.b16 %v5498
  %v5527 = vunpack.c.l.b16 %v5499
  %v5528 = vunpack.c.l.b16 %v5500
  %v5529 = vunpack.c.l.b16 %v5501
  %v5530 = vunpack.c.l.b16 %v5502
  %v5531 = vunpack.c.l.b16 %v5503
  %v5532 = vunpack.c.l.b16 %v5504
  %v5533 = vunpack.c.l.b16 %v5505
  %v5534 = vunpack.c.l.b16 %v5506
  %v5535 = vunpack.c.l.b16 %v5507
  %v5536 = vunpack.c.l.b16 %v5508
  %v5537 = vunpack.c.l.b16 %v5509
  %v5538 = vpack.c.b16 %v5525, %v5524
  %v5539 = vpack.c.b16 %v5527, %v5526
  %v5540 = vpack.c.b16 %v5529, %v5528
  %v5541 = vpack.c.b16 %v5531, %v5530
  %v5542 = vpack.c.b16 %v5533, %v5532
  %v5543 = vpack.c.b16 %v5535, %v5534
  %v5544 = vpack.c.b16 %v5537, %v5536
  %v5553 = vsel %vm2776, %v5494, 0
  %5555 = vmatpush.bf16.msra.mxu0 0
  %5556 = vmatpush.bf16.msra.mxu0 %v5544
  %5557 = vmatpush.bf16.msra.mxu0 %v5543
  %5558 = vmatpush.bf16.msra.mxu0 %v5542
  %5559 = vmatpush.bf16.msra.mxu0 %v5541
  %5560 = vmatpush.bf16.msra.mxu0 %v5540
  %5561 = vmatpush.bf16.msra.mxu0 %v5539
  %5562 = vmatpush.bf16.msra.mxu0 %v5538
  %5563 = vmatmul.bf16.gmra.mxu0 %v5553
  %v5564 = vpop.f32.mrf.mxu0
  %v5565 = vadd.f32 0.0, %v5564
  %v5566 = vpop.f32.mrf.mxu0
  %5567 = vdwg.mxu0
  %v5568 = vadd.f32 %v5491, %v5565
  %v5569 = vld [vmem:[%s3460] sm:$0xf]
  %s5570 = scalar_lea.vmem %s5, 168
  %v5571 = vld [vmem:[%s5570] sm:$0xf]
  %v5572 = vld [vmem:[%s5570 + $0x4] sm:$0xf]
  %v5573 = vld [vmem:[%s5570 + $0x8] sm:$0xf]
  %v5574 = vld [vmem:[%s5570 + $0xc] sm:$0xf]
  %v5575 = vld [vmem:[%s5570 + $0x10] sm:$0xf]
  %v5576 = vld [vmem:[%s5570 + $0x14] sm:$0xf]
  %v5577 = vld [vmem:[%s5570 + $0x18] sm:$0xf]
  %v5578 = vld [vmem:[%s5570 + $0x1c] sm:$0xf]
  %v5579 = vld [vmem:[%s5570 + $0x20] sm:$0xf]
  %v5580 = vld [vmem:[%s5570 + $0x24] sm:$0xf]
  %v5581 = vld [vmem:[%s5570 + $0x28] sm:$0xf]
  %v5582 = vld [vmem:[%s5570 + $0x2c] sm:$0xf]
  %v5583 = vld [vmem:[%s5570 + $0x30] sm:$0xf]
  %v5584 = vld [vmem:[%s5570 + $0x34] sm:$0xf]
  %v5599 = vunpack.c.l.b16 %v5571
  %v5600 = vunpack.c.l.b16 %v5572
  %v5601 = vunpack.c.l.b16 %v5573
  %v5602 = vunpack.c.l.b16 %v5574
  %v5603 = vunpack.c.l.b16 %v5575
  %v5604 = vunpack.c.l.b16 %v5576
  %v5605 = vunpack.c.l.b16 %v5577
  %v5606 = vunpack.c.l.b16 %v5578
  %v5607 = vunpack.c.l.b16 %v5579
  %v5608 = vunpack.c.l.b16 %v5580
  %v5609 = vunpack.c.l.b16 %v5581
  %v5610 = vunpack.c.l.b16 %v5582
  %v5611 = vunpack.c.l.b16 %v5583
  %v5612 = vunpack.c.l.b16 %v5584
  %v5613 = vpack.c.b16 %v5600, %v5599
  %v5614 = vpack.c.b16 %v5602, %v5601
  %v5615 = vpack.c.b16 %v5604, %v5603
  %v5616 = vpack.c.b16 %v5606, %v5605
  %v5617 = vpack.c.b16 %v5608, %v5607
  %v5618 = vpack.c.b16 %v5610, %v5609
  %v5619 = vpack.c.b16 %v5612, %v5611
  %v5628 = vsel %vm2776, %v5569, 0
  %5630 = vmatpush.bf16.msra.mxu0 0
  %5631 = vmatpush.bf16.msra.mxu0 %v5619
  %5632 = vmatpush.bf16.msra.mxu0 %v5618
  %5633 = vmatpush.bf16.msra.mxu0 %v5617
  %5634 = vmatpush.bf16.msra.mxu0 %v5616
  %5635 = vmatpush.bf16.msra.mxu0 %v5615
  %5636 = vmatpush.bf16.msra.mxu0 %v5614
  %5637 = vmatpush.bf16.msra.mxu0 %v5613
  %5638 = vmatmul.bf16.gmra.mxu0 %v5628
  %v5639 = vpop.f32.mrf.mxu0
  %v5640 = vadd.f32 0.0, %v5639
  %v5641 = vpop.f32.mrf.mxu0
  %5642 = vdwg.mxu0
  %v5643 = vadd.f32 %v5568, %v5640
  %v5644 = vld [vmem:[%s3837] sm:$0xf]
  %s5645 = scalar_lea.vmem %s5, 224
  %v5646 = vld [vmem:[%s5645] sm:$0xf]
  %v5647 = vld [vmem:[%s5645 + $0x4] sm:$0xf]
  %v5648 = vld [vmem:[%s5645 + $0x8] sm:$0xf]
  %v5649 = vld [vmem:[%s5645 + $0xc] sm:$0xf]
  %v5650 = vld [vmem:[%s5645 + $0x10] sm:$0xf]
  %v5651 = vld [vmem:[%s5645 + $0x14] sm:$0xf]
  %v5652 = vld [vmem:[%s5645 + $0x18] sm:$0xf]
  %v5653 = vld [vmem:[%s5645 + $0x1c] sm:$0xf]
  %v5654 = vld [vmem:[%s5645 + $0x20] sm:$0xf]
  %v5655 = vld [vmem:[%s5645 + $0x24] sm:$0xf]
  %v5656 = vld [vmem:[%s5645 + $0x28] sm:$0xf]
  %v5657 = vld [vmem:[%s5645 + $0x2c] sm:$0xf]
  %v5658 = vld [vmem:[%s5645 + $0x30] sm:$0xf]
  %v5659 = vld [vmem:[%s5645 + $0x34] sm:$0xf]
  %v5674 = vunpack.c.l.b16 %v5646
  %v5675 = vunpack.c.l.b16 %v5647
  %v5676 = vunpack.c.l.b16 %v5648
  %v5677 = vunpack.c.l.b16 %v5649
  %v5678 = vunpack.c.l.b16 %v5650
  %v5679 = vunpack.c.l.b16 %v5651
  %v5680 = vunpack.c.l.b16 %v5652
  %v5681 = vunpack.c.l.b16 %v5653
  %v5682 = vunpack.c.l.b16 %v5654
  %v5683 = vunpack.c.l.b16 %v5655
  %v5684 = vunpack.c.l.b16 %v5656
  %v5685 = vunpack.c.l.b16 %v5657
  %v5686 = vunpack.c.l.b16 %v5658
  %v5687 = vunpack.c.l.b16 %v5659
  %v5688 = vpack.c.b16 %v5675, %v5674
  %v5689 = vpack.c.b16 %v5677, %v5676
  %v5690 = vpack.c.b16 %v5679, %v5678
  %v5691 = vpack.c.b16 %v5681, %v5680
  %v5692 = vpack.c.b16 %v5683, %v5682
  %v5693 = vpack.c.b16 %v5685, %v5684
  %v5694 = vpack.c.b16 %v5687, %v5686
  %v5703 = vsel %vm2776, %v5644, 0
  %5705 = vmatpush.bf16.msra.mxu0 0
  %5706 = vmatpush.bf16.msra.mxu0 %v5694
  %5707 = vmatpush.bf16.msra.mxu0 %v5693
  %5708 = vmatpush.bf16.msra.mxu0 %v5692
  %5709 = vmatpush.bf16.msra.mxu0 %v5691
  %5710 = vmatpush.bf16.msra.mxu0 %v5690
  %5711 = vmatpush.bf16.msra.mxu0 %v5689
  %5712 = vmatpush.bf16.msra.mxu0 %v5688
  %5713 = vmatmul.bf16.gmra.mxu0 %v5703
  %v5714 = vpop.f32.mrf.mxu0
  %v5715 = vadd.f32 0.0, %v5714
  %v5716 = vpop.f32.mrf.mxu0
  %5717 = vdwg.mxu0
  %v5718 = vadd.f32 %v5643, %v5715
  %v5719 = vld [vmem:[%s6] sm:$0x1]
  %v5721 = vperm.slane %v5719, 0
  %v5723 = vadd.f32 %v5718, %v5721
  %v5724 = vmax.f32 %v5723, 0.0
  %v5725 = vld [vmem:[%s7] sm:$0x1]
  %v5727 = vperm.slane %v5725, 0
  %v5729 = vmul.f32 %v5724, %v5727
  %5730 = vadd.xlane.f32.xlu0 %v5729
  %v5731 = vpop.xlane.xlu0 %5730
  %v5732 = vadd.f32 %v5731, 0.0
  %5733 = vmatpush.bf16.msra.mxu0 0
  %5734 = vmatpush.bf16.msra.mxu0 %v5412
  %5735 = vmatpush.bf16.msra.mxu0 %v5411
  %5736 = vmatpush.bf16.msra.mxu0 %v5410
  %5737 = vmatpush.bf16.msra.mxu0 %v5409
  %5738 = vmatpush.bf16.msra.mxu0 %v5408
  %5739 = vmatpush.bf16.msra.mxu0 %v5407
  %5740 = vmatpush.bf16.msra.mxu0 %v5406
  %5741 = vmatmul.bf16.gmra.mxu0 %v5628
  %v5742 = vpop.f32.mrf.mxu0
  %v5743 = vadd.f32 0.0, %v5742
  %v5744 = vpop.f32.mrf.mxu0
  %5745 = vdwg.mxu0
  %5746 = vmatpush.bf16.msra.mxu0 0
  %5747 = vmatpush.bf16.msra.mxu0 %v5470
  %5748 = vmatpush.bf16.msra.mxu0 %v5469
  %5749 = vmatpush.bf16.msra.mxu0 %v5468
  %5750 = vmatpush.bf16.msra.mxu0 %v5467
  %5751 = vmatpush.bf16.msra.mxu0 %v5466
  %5752 = vmatpush.bf16.msra.mxu0 %v5465
  %5753 = vmatpush.bf16.msra.mxu0 %v5464
  %5754 = vmatmul.bf16.gmra.mxu0 %v5553
  %v5755 = vpop.f32.mrf.mxu0
  %v5756 = vadd.f32 %v5743, %v5755
  %v5757 = vpop.f32.mrf.mxu0
  %5758 = vdwg.mxu0
  %5759 = vmatpush.bf16.msra.mxu0 0
  %5760 = vmatpush.bf16.msra.mxu0 %v5544
  %5761 = vmatpush.bf16.msra.mxu0 %v5543
  %5762 = vmatpush.bf16.msra.mxu0 %v5542
  %5763 = vmatpush.bf16.msra.mxu0 %v5541
  %5764 = vmatpush.bf16.msra.mxu0 %v5540
  %5765 = vmatpush.bf16.msra.mxu0 %v5539
  %5766 = vmatpush.bf16.msra.mxu0 %v5538
  %5767 = vmatmul.bf16.gmra.mxu0 %v5703
  %v5768 = vpop.f32.mrf.mxu0
  %v5769 = vadd.f32 0.0, %v5768
  %v5770 = vpop.f32.mrf.mxu0
  %5771 = vdwg.mxu0
  %v5772 = vadd.f32 %v5756, %v5769
  %v5773 = vld [vmem:[%s4214] sm:$0xf]
  %v5775 = vsel %vm2776, %v5773, 0
  %5777 = vmatpush.bf16.msra.mxu0 0
  %5778 = vmatpush.bf16.msra.mxu0 %v5619
  %5779 = vmatpush.bf16.msra.mxu0 %v5618
  %5780 = vmatpush.bf16.msra.mxu0 %v5617
  %5781 = vmatpush.bf16.msra.mxu0 %v5616
  %5782 = vmatpush.bf16.msra.mxu0 %v5615
  %5783 = vmatpush.bf16.msra.mxu0 %v5614
  %5784 = vmatpush.bf16.msra.mxu0 %v5613
  %5785 = vmatmul.bf16.gmra.mxu0 %v5775
  %v5786 = vpop.f32.mrf.mxu0
  %v5787 = vadd.f32 0.0, %v5786
  %v5788 = vpop.f32.mrf.mxu0
  %5789 = vdwg.mxu0
  %v5790 = vadd.f32 %v5772, %v5787
  %v5791 = vld [vmem:[%s4591] sm:$0xf]
  %v5793 = vsel %vm2776, %v5791, 0
  %5795 = vmatpush.bf16.msra.mxu0 0
  %5796 = vmatpush.bf16.msra.mxu0 %v5694
  %5797 = vmatpush.bf16.msra.mxu0 %v5693
  %5798 = vmatpush.bf16.msra.mxu0 %v5692
  %5799 = vmatpush.bf16.msra.mxu0 %v5691
  %5800 = vmatpush.bf16.msra.mxu0 %v5690
  %5801 = vmatpush.bf16.msra.mxu0 %v5689
  %5802 = vmatpush.bf16.msra.mxu0 %v5688
  %5803 = vmatmul.bf16.gmra.mxu0 %v5793
  %v5804 = vpop.f32.mrf.mxu0
  %v5805 = vadd.f32 0.0, %v5804
  %v5806 = vpop.f32.mrf.mxu0
  %5807 = vdwg.mxu0
  %v5808 = vadd.f32 %v5790, %v5805
  %v5809 = vadd.f32 %v5808, %v5721
  %v5810 = vmax.f32 %v5809, 0.0
  %s5811 = scalar_lea.vmem %s7, 1
  %v5812 = vld [vmem:[%s5811] sm:$0x1]
  %v5814 = vperm.slane %v5812, 0
  %v5816 = vmul.f32 %v5810, %v5814
  %5817 = vadd.xlane.f32.xlu0 %v5816
  %v5818 = vpop.xlane.xlu0 %5817
  %v5819 = vadd.f32 %v5732, %v5818
  %5820 = vmatpush.bf16.msra.mxu0 0
  %5821 = vmatpush.bf16.msra.mxu0 %v5412
  %5822 = vmatpush.bf16.msra.mxu0 %v5411
  %5823 = vmatpush.bf16.msra.mxu0 %v5410
  %5824 = vmatpush.bf16.msra.mxu0 %v5409
  %5825 = vmatpush.bf16.msra.mxu0 %v5408
  %5826 = vmatpush.bf16.msra.mxu0 %v5407
  %5827 = vmatpush.bf16.msra.mxu0 %v5406
  %5828 = vmatmul.bf16.gmra.mxu0 %v5775
  %v5829 = vpop.f32.mrf.mxu0
  %v5830 = vadd.f32 0.0, %v5829
  %v5831 = vpop.f32.mrf.mxu0
  %5832 = vdwg.mxu0
  %5833 = vmatpush.bf16.msra.mxu0 0
  %5834 = vmatpush.bf16.msra.mxu0 %v5470
  %5835 = vmatpush.bf16.msra.mxu0 %v5469
  %5836 = vmatpush.bf16.msra.mxu0 %v5468
  %5837 = vmatpush.bf16.msra.mxu0 %v5467
  %5838 = vmatpush.bf16.msra.mxu0 %v5466
  %5839 = vmatpush.bf16.msra.mxu0 %v5465
  %5840 = vmatpush.bf16.msra.mxu0 %v5464
  %5841 = vmatmul.bf16.gmra.mxu0 %v5703
  %v5842 = vpop.f32.mrf.mxu0
  %v5843 = vadd.f32 %v5830, %v5842
  %v5844 = vpop.f32.mrf.mxu0
  %5845 = vdwg.mxu0
  %5846 = vmatpush.bf16.msra.mxu0 0
  %5847 = vmatpush.bf16.msra.mxu0 %v5544
  %5848 = vmatpush.bf16.msra.mxu0 %v5543
  %5849 = vmatpush.bf16.msra.mxu0 %v5542
  %5850 = vmatpush.bf16.msra.mxu0 %v5541
  %5851 = vmatpush.bf16.msra.mxu0 %v5540
  %5852 = vmatpush.bf16.msra.mxu0 %v5539
  %5853 = vmatpush.bf16.msra.mxu0 %v5538
  %5854 = vmatmul.bf16.gmra.mxu0 %v5793
  %v5855 = vpop.f32.mrf.mxu0
  %v5856 = vadd.f32 0.0, %v5855
  %v5857 = vpop.f32.mrf.mxu0
  %5858 = vdwg.mxu0
  %v5859 = vadd.f32 %v5843, %v5856
  %v5860 = vld [vmem:[%s4968] sm:$0xf]
  %v5862 = vsel %vm2776, %v5860, 0
  %5864 = vmatpush.bf16.msra.mxu0 0
  %5865 = vmatpush.bf16.msra.mxu0 %v5619
  %5866 = vmatpush.bf16.msra.mxu0 %v5618
  %5867 = vmatpush.bf16.msra.mxu0 %v5617
  %5868 = vmatpush.bf16.msra.mxu0 %v5616
  %5869 = vmatpush.bf16.msra.mxu0 %v5615
  %5870 = vmatpush.bf16.msra.mxu0 %v5614
  %5871 = vmatpush.bf16.msra.mxu0 %v5613
  %5872 = vmatmul.bf16.gmra.mxu0 %v5862
  %v5873 = vpop.f32.mrf.mxu0
  %v5874 = vadd.f32 0.0, %v5873
  %v5875 = vpop.f32.mrf.mxu0
  %5876 = vdwg.mxu0
  %v5877 = vadd.f32 %v5859, %v5874
  %v5878 = vld [vmem:[%s5345] sm:$0xf]
  %v5880 = vsel %vm2776, %v5878, 0
  %5882 = vmatpush.bf16.msra.mxu0 0
  %5883 = vmatpush.bf16.msra.mxu0 %v5694
  %5884 = vmatpush.bf16.msra.mxu0 %v5693
  %5885 = vmatpush.bf16.msra.mxu0 %v5692
  %5886 = vmatpush.bf16.msra.mxu0 %v5691
  %5887 = vmatpush.bf16.msra.mxu0 %v5690
  %5888 = vmatpush.bf16.msra.mxu0 %v5689
  %5889 = vmatpush.bf16.msra.mxu0 %v5688
  %5890 = vmatmul.bf16.gmra.mxu0 %v5880
  %v5891 = vpop.f32.mrf.mxu0
  %v5892 = vadd.f32 0.0, %v5891
  %v5893 = vpop.f32.mrf.mxu0
  %5894 = vdwg.mxu0
  %v5895 = vadd.f32 %v5877, %v5892
  %v5896 = vadd.f32 %v5895, %v5721
  %v5897 = vmax.f32 %v5896, 0.0
  %s5898 = scalar_lea.vmem %s7, 2
  %v5899 = vld [vmem:[%s5898] sm:$0x1]
  %v5901 = vperm.slane %v5899, 0
  %v5903 = vmul.f32 %v5897, %v5901
  %5904 = vadd.xlane.f32.xlu0 %v5903
  %v5905 = vpop.xlane.xlu0 %5904
  %v5906 = vadd.f32 %v5819, %v5905
  %5907 = vmatpush.bf16.msra.mxu0 0
  %5908 = vmatpush.bf16.msra.mxu0 %v5412
  %5909 = vmatpush.bf16.msra.mxu0 %v5411
  %5910 = vmatpush.bf16.msra.mxu0 %v5410
  %5911 = vmatpush.bf16.msra.mxu0 %v5409
  %5912 = vmatpush.bf16.msra.mxu0 %v5408
  %5913 = vmatpush.bf16.msra.mxu0 %v5407
  %5914 = vmatpush.bf16.msra.mxu0 %v5406
  %5915 = vmatmul.bf16.gmra.mxu0 %v5862
  %v5916 = vpop.f32.mrf.mxu0
  %v5917 = vadd.f32 0.0, %v5916
  %v5918 = vpop.f32.mrf.mxu0
  %5919 = vdwg.mxu0
  %5920 = vmatpush.bf16.msra.mxu0 0
  %5921 = vmatpush.bf16.msra.mxu0 %v5470
  %5922 = vmatpush.bf16.msra.mxu0 %v5469
  %5923 = vmatpush.bf16.msra.mxu0 %v5468
  %5924 = vmatpush.bf16.msra.mxu0 %v5467
  %5925 = vmatpush.bf16.msra.mxu0 %v5466
  %5926 = vmatpush.bf16.msra.mxu0 %v5465
  %5927 = vmatpush.bf16.msra.mxu0 %v5464
  %5928 = vmatmul.bf16.gmra.mxu0 %v5793
  %v5929 = vpop.f32.mrf.mxu0
  %v5930 = vadd.f32 %v5917, %v5929
  %v5931 = vpop.f32.mrf.mxu0
  %5932 = vdwg.mxu0
  %5933 = vmatpush.bf16.msra.mxu0 0
  %5934 = vmatpush.bf16.msra.mxu0 %v5544
  %5935 = vmatpush.bf16.msra.mxu0 %v5543
  %5936 = vmatpush.bf16.msra.mxu0 %v5542
  %5937 = vmatpush.bf16.msra.mxu0 %v5541
  %5938 = vmatpush.bf16.msra.mxu0 %v5540
  %5939 = vmatpush.bf16.msra.mxu0 %v5539
  %5940 = vmatpush.bf16.msra.mxu0 %v5538
  %5941 = vmatmul.bf16.gmra.mxu0 %v5880
  %v5942 = vpop.f32.mrf.mxu0
  %v5943 = vadd.f32 0.0, %v5942
  %v5944 = vpop.f32.mrf.mxu0
  %5945 = vdwg.mxu0
  %v5946 = vadd.f32 %v5930, %v5943
  %v5947 = vld [vmem:[%s45] sm:$0xf]
  %v5949 = vsel %vm2776, %v5947, 0
  %5951 = vmatpush.bf16.msra.mxu0 0
  %5952 = vmatpush.bf16.msra.mxu0 %v5619
  %5953 = vmatpush.bf16.msra.mxu0 %v5618
  %5954 = vmatpush.bf16.msra.mxu0 %v5617
  %5955 = vmatpush.bf16.msra.mxu0 %v5616
  %5956 = vmatpush.bf16.msra.mxu0 %v5615
  %5957 = vmatpush.bf16.msra.mxu0 %v5614
  %5958 = vmatpush.bf16.msra.mxu0 %v5613
  %5959 = vmatmul.bf16.gmra.mxu0 %v5949
  %v5960 = vpop.f32.mrf.mxu0
  %v5961 = vadd.f32 0.0, %v5960
  %v5962 = vpop.f32.mrf.mxu0
  %5963 = vdwg.mxu0
  %v5964 = vadd.f32 %v5946, %v5961
  %v5965 = vld [vmem:[%s47] sm:$0xf]
  %v5967 = vsel %vm2776, %v5965, 0
  %5969 = vmatpush.bf16.msra.mxu0 0
  %5970 = vmatpush.bf16.msra.mxu0 %v5694
  %5971 = vmatpush.bf16.msra.mxu0 %v5693
  %5972 = vmatpush.bf16.msra.mxu0 %v5692
  %5973 = vmatpush.bf16.msra.mxu0 %v5691
  %5974 = vmatpush.bf16.msra.mxu0 %v5690
  %5975 = vmatpush.bf16.msra.mxu0 %v5689
  %5976 = vmatpush.bf16.msra.mxu0 %v5688
  %5977 = vmatmul.bf16.gmra.mxu0 %v5967
  %v5978 = vpop.f32.mrf.mxu0
  %v5979 = vadd.f32 0.0, %v5978
  %v5980 = vpop.f32.mrf.mxu0
  %5981 = vdwg.mxu0
  %v5982 = vadd.f32 %v5964, %v5979
  %v5983 = vadd.f32 %v5982, %v5721
  %v5984 = vmax.f32 %v5983, 0.0
  %s5985 = scalar_lea.vmem %s7, 3
  %v5986 = vld [vmem:[%s5985] sm:$0x1]
  %v5988 = vperm.slane %v5986, 0
  %v5990 = vmul.f32 %v5984, %v5988
  %5991 = vadd.xlane.f32.xlu0 %v5990
  %v5992 = vpop.xlane.xlu0 %5991
  %v5993 = vadd.f32 %v5906, %v5992
  %s5994 = sld [smem:[#allocation4]]
  %v5995 = vstv %s5994
  %v5996 = vadd.f32 %v5993, %v5995
  %vm5997 = vcmask 7168
  %5998 = vst.msk [vmem:[%s9] sm:$0xff] %vm5997, %v5996
  // Predicated region
  $region38: #{mnist_discriminator_forward.1} parent=0 // pred_check
    _
  $region39: #{mnist_discriminator_forward.1} parent=0 // pred_check_branch
    %6000 = sbr.rel (0) target = $region41
  $region40: #{mnist_discriminator_forward.1} parent=0 // pred_region
    _
  $region41: #{mnist_discriminator_forward.1} parent=0 // pred_fallthru
    _
  // Predicated region
  $region42: #{mnist_discriminator_forward.1} parent=0 // pred_check
    _
  $region43: #{mnist_discriminator_forward.1} parent=0 // pred_check_branch
    %6002 = sbr.rel (0) target = $region45
  $region44: #{mnist_discriminator_forward.1} parent=0 // pred_region
    _
  $region45: #{mnist_discriminator_forward.1} parent=0 // pred_fallthru
    _

</llo_original>
